<compile_context>
chip_gen: v7x
topology: tpu7x:2x2x1
jax: 0.10.0
libtpu: 0.0.40
codegen_flags: <defaults>
</compile_context>

<pallas_src>
import functools
import math

import jax
import jax.numpy as jnp
from jax.experimental import pallas as pl
from jax.experimental.pallas import tpu as pltpu


def _layer_norm(y, gamma, beta, eps=1e-5):
    """nn.LayerNorm over the last dim (biased variance, eps=1e-5)."""
    mu = jnp.mean(y, axis=-1, keepdims=True)
    var = jnp.mean(jnp.square(y - mu), axis=-1, keepdims=True)
    return (y - mu) * jax.lax.rsqrt(var + eps) * gamma + beta


def _encoder_kernel(*refs, nh, use_mask):
    if use_mask:
        (x_ref, mask_ref, wq_ref, bq_ref, wk_ref, bk_ref, wv_ref, bv_ref,
         wm_ref, bm_ref, w1_ref, b1_ref, w2_ref, b2_ref,
         g1_ref, be1_ref, g2_ref, be2_ref, out_ref) = refs
    else:
        (x_ref, wq_ref, bq_ref, wk_ref, bk_ref, wv_ref, bv_ref,
         wm_ref, bm_ref, w1_ref, b1_ref, w2_ref, b2_ref,
         g1_ref, be1_ref, g2_ref, be2_ref, out_ref) = refs
        mask_ref = None

    tb, s, hdim = x_ref.shape
    hs = hdim // nh
    bf = jnp.bfloat16
    f32 = jnp.float32

    # Flatten the batch tile: position-wise matmuls become one big MXU call.
    xf = x_ref[...].astype(f32).reshape(tb * s, hdim)
    xb = xf.astype(bf)

    def proj(w_ref, b_ref):  # bf16 operands, f32 accumulation
        return jnp.dot(xb, w_ref[...], preferred_element_type=f32) + b_ref[...]

    # Fold 1/sqrt(hs) into q once (one (tb*s, H) multiply) instead of scaling
    # every (tb, s, s) score tensor inside the head loop; cast q/k/v to bf16
    # once here so the per-head slices are bf16 (no per-head casts).
    scale = 1.0 / math.sqrt(hs)
    qb = (proj(wq_ref, bq_ref) * scale).astype(bf).reshape(tb, s, hdim)
    kb = proj(wk_ref, bk_ref).astype(bf).reshape(tb, s, hdim)
    vb = proj(wv_ref, bv_ref).astype(bf).reshape(tb, s, hdim)

    if use_mask:
        # Additive bias, computed ONCE (the select is not re-emitted per head).
        bias = jnp.where(mask_ref[...] > 0.0, jnp.float32(-65504.0),
                         jnp.float32(0.0))                   # (tb, 1, s)

    ctx_heads = []
    for h in range(nh):                                      # static unroll
        lo = h * hs
        qh = qb[:, :, lo:lo + hs]                            # (tb, s, hs) bf16
        kh = kb[:, :, lo:lo + hs]
        vh = vb[:, :, lo:lo + hs]

        sc = jnp.einsum('bqd,bkd->bqk', qh, kh,
                        preferred_element_type=f32)          # (tb, s, s) f32
        if use_mask:
            sc = sc + bias
        sc = sc - jnp.max(sc, axis=-1, keepdims=True)
        e = jnp.exp(sc)
        p = e * pl.reciprocal(jnp.sum(e, axis=-1, keepdims=True), approx=True)

        ctx_heads.append(jnp.einsum('bqk,bkd->bqd', p.astype(bf), vh,
                                    preferred_element_type=f32).astype(bf))

    ctx = jnp.concatenate(ctx_heads, axis=-1).reshape(tb * s, hdim)   # bf16

    # linear_merge + residual + norm1
    atted = jnp.dot(ctx, wm_ref[...], preferred_element_type=f32) + bm_ref[...]
    y = _layer_norm(xf + atted, g1_ref[...], be1_ref[...])

    # PositionWiseFFN (dense1 -> relu -> dense2) + residual + norm2
    h1 = jnp.maximum(jnp.dot(y.astype(bf), w1_ref[...],
                             preferred_element_type=f32) + b1_ref[...], 0.0)
    ff = jnp.dot(h1.astype(bf), w2_ref[...],
                 preferred_element_type=f32) + b2_ref[...]
    z = _layer_norm(y + ff, g2_ref[...], be2_ref[...])

    out_ref[...] = z.reshape(tb, s, hdim).astype(out_ref.dtype)


def _tpu_generation():
    """Returns (vmem_capacity_bytes_per_core, num_tensorcores_per_chip, is_v7)."""
    kind = ""
    try:
        kind = (jax.devices()[0].device_kind or "").lower()
    except Exception:
        pass
    is_v7 = "v7" in kind
    num_tc = 2 if is_v7 else 1          # v5e/v6e: 1 TC/chip; v7x: 2 TC/chip
    vmem_cap = None
    try:
        vmem_cap = int(pltpu.get_tpu_info().vmem_capacity_bytes)
    except Exception:
        vmem_cap = None
    if not vmem_cap or vmem_cap <= 0:
        vmem_cap = (64 << 20) if is_v7 else (128 << 20)
    if is_v7:
        vmem_cap = min(vmem_cap, 64 << 20)   # 64 MiB per TensorCore on v7x
    return vmem_cap, num_tc, is_v7


def _vmem_footprint_bytes(tb, S, H, weight_bytes, use_mask, weight_buffers=1):
    """Conservative per-grid-step VMEM footprint including kernel intermediates."""
    rows = tb * S
    io_tiles = 2 * 2 * rows * H * 4                 # x + out blocks, double-buffered f32
    mask_tile = (2 * tb * S * 4) if use_mask else 0
    # xf(4) + xb(2) + q/k/v f32 transients(12) + q/k/v bf16(6) + ctx bf16(2)
    # + atted(4) + y(4) + ff(4) + z(4)  = 42 bytes / element of (rows, H)
    inter = rows * H * 42
    inter += rows * (2 * H) * 6                     # h1: f32 + bf16
    inter += 2 * tb * S * S * 4                     # per-head scores / probs (f32)
    return weight_buffers * weight_bytes + io_tiles + mask_tile + inter + (2 << 20)


def _pick_block_b(B, S, H, weight_bytes, use_mask, vmem_budget, max_rows, num_tc):
    """Largest divisor of B whose estimated footprint fits the VMEM budget."""
    divisors = [d for d in range(1, B + 1) if B % d == 0]
    fitting = [d for d in divisors
               if d * S <= max_rows
               and _vmem_footprint_bytes(d, S, H, weight_bytes, use_mask) <= vmem_budget]
    tb = max(fitting) if fitting else 1
    # Only on multi-TensorCore parts (v7x) keep the grid >= 2 so the "parallel"
    # batch axis can be sharded across cores; on 1-TC chips the grid is a
    # serial loop and splitting just adds per-step overhead.
    if num_tc > 1 and tb == B and B > 1:
        tb = max(d for d in divisors if d < B)
    return tb


def encoder(x, params, x_mask=None, *, num_heads=8, block_b=None):
    """x: (B, S, H) f32.  x_mask: optional (B, S), nonzero = masked key position."""
    B, S, H = x.shape
    assert H % num_heads == 0
    use_mask = x_mask is not None
    bf, f32 = jnp.bfloat16, jnp.float32

    weight_inputs = [
        (params['wq'].astype(bf), (H, H)),   (params['bq'].astype(f32), (1, H)),
        (params['wk'].astype(bf), (H, H)),   (params['bk'].astype(f32), (1, H)),
        (params['wv'].astype(bf), (H, H)),   (params['bv'].astype(f32), (1, H)),
        (params['wm'].astype(bf), (H, H)),   (params['bm'].astype(f32), (1, H)),
        (params['w1'].astype(bf), (H, 2 * H)), (params['b1'].astype(f32), (1, 2 * H)),
        (params['w2'].astype(bf), (2 * H, H)), (params['b2'].astype(f32), (1, H)),
        (params['g1'].astype(f32), (1, H)),  (params['be1'].astype(f32), (1, H)),
        (params['g2'].astype(f32), (1, H)),  (params['be2'].astype(f32), (1, H)),
    ]
    weight_bytes = sum(a.size * a.dtype.itemsize for a, _ in weight_inputs)

    vmem_cap, num_tc, is_v7 = _tpu_generation()
    if is_v7:
        vmem_budget = max(vmem_cap - (10 << 20), 16 << 20)       # ~54 MiB of 64
        max_rows = 512
    else:
        vmem_budget = max(min(vmem_cap - (28 << 20), 100 << 20), 16 << 20)
        max_rows = 2048

    if block_b is None:
        block_b = _pick_block_b(B, S, H, weight_bytes, use_mask,
                                vmem_budget, max_rows, num_tc)
    assert B % block_b == 0

    inputs = [x]
    if use_mask:
        inputs.append(x_mask.reshape(B, 1, S).astype(f32))
    inputs.extend(a for a, _ in weight_inputs)

    # Scheduling hint for XLA around the custom call (whole-call totals).
    macs = B * S * (8 * H * H + 2 * S * H)
    cost = pl.CostEstimate(
        flops=int(2 * macs),
        transcendentals=int(B * num_heads * S * S),
        bytes_accessed=int(2 * B * S * H * 4 + weight_bytes
                           + (B * S * 4 if use_mask else 0)))

    kernel = functools.partial(_encoder_kernel, nh=num_heads, use_mask=use_mask)
    out_shape = jax.ShapeDtypeStruct((B, S, H), x.dtype)
    grid = (B // block_b,)

    def build(single_buffer_weights):
        in_specs = [pl.BlockSpec((block_b, S, H), lambda b: (b, 0, 0))]
        if use_mask:
            in_specs.append(pl.BlockSpec((block_b, 1, S), lambda b: (b, 0, 0)))
        wkw = {}
        if single_buffer_weights:
            # Constant index_map -> no re-DMA; a second pipeline buffer per
            # weight is pure VMEM waste, so single-buffer them.
            wkw["pipeline_mode"] = pl.Buffered(1)
        for _, shape in weight_inputs:
            in_specs.append(pl.BlockSpec(shape, lambda b: (0, 0), **wkw))

        wbufs = 1 if single_buffer_weights else 2
        est = _vmem_footprint_bytes(block_b, S, H, weight_bytes, use_mask,
                                    weight_buffers=wbufs)
        cp_kwargs = dict(dimension_semantics=("parallel",))
        if est > (32 << 20):
            cp_kwargs["vmem_limit_bytes"] = int(min(max(est, 32 << 20), vmem_budget))

        return pl.pallas_call(
            kernel,
            out_shape=out_shape,
            grid=grid,
            in_specs=in_specs,
            out_specs=pl.BlockSpec((block_b, S, H), lambda b: (b, 0, 0)),
            compiler_params=pltpu.CompilerParams(**cp_kwargs),
            cost_estimate=cost,
        )

    try:
        return build(single_buffer_weights=True)(*inputs)
    except Exception:
        # Defensive fallback if this JAX build rejects Buffered(1) at the
        # top-level pipeline: default double-buffered weights (still correct).
        return build(single_buffer_weights=False)(*inputs)


def init_params(key, hidden_dim):
    """PyTorch-Linear-style init; weights stored as (in, out), biases as (1, out)."""
    ks = jax.random.split(key, 12)

    def linear(kw, kb, fan_in, fan_out):
        bound = 1.0 / math.sqrt(fan_in)
        w = jax.random.uniform(kw, (fan_in, fan_out), jnp.float32, -bound, bound)
        b = jax.random.uniform(kb, (1, fan_out), jnp.float32, -bound, bound)
        return w, b

    wq, bq = linear(ks[0], ks[1], hidden_dim, hidden_dim)
    wk, bk = linear(ks[2], ks[3], hidden_dim, hidden_dim)
    wv, bv = linear(ks[4], ks[5], hidden_dim, hidden_dim)
    wm, bm = linear(ks[6], ks[7], hidden_dim, hidden_dim)
    w1, b1 = linear(ks[8], ks[9], hidden_dim, 2 * hidden_dim)
    w2, b2 = linear(ks[10], ks[11], 2 * hidden_dim, hidden_dim)
    ones = jnp.ones((1, hidden_dim), jnp.float32)
    zeros = jnp.zeros((1, hidden_dim), jnp.float32)
    return dict(wq=wq, bq=bq, wk=wk, bk=bk, wv=wv, bv=bv, wm=wm, bm=bm,
                w1=w1, b1=b1, w2=w2, b2=b2,
                g1=ones, be1=zeros, g2=ones, be2=zeros)


def encoder_ref(x, params, x_mask=None, *, num_heads=8):
    """Pure-JAX reference mirroring the PyTorch forward (dropout = identity) with
    the kernel's precision policy (bf16 matmul operands, f32 accumulation)."""
    p = params
    bf, f32 = jnp.bfloat16, jnp.float32
    B, S, H = x.shape
    hs = H // num_heads

    def lin(a, w, b):
        return jnp.dot(a.astype(bf), w.astype(bf), preferred_element_type=f32) + b

    xf = x.astype(f32)
    q, k, v = lin(xf, p['wq'], p['bq']), lin(xf, p['wk'], p['bk']), lin(xf, p['wv'], p['bv'])

    def split_heads(t):
        return t.reshape(B, S, num_heads, hs).transpose(0, 2, 1, 3)

    qh, kh, vh = split_heads(q), split_heads(k), split_heads(v)
    sc = jnp.einsum('bhqd,bhkd->bhqk', qh.astype(bf), kh.astype(bf),
                    preferred_element_type=f32) / math.sqrt(hs)
    if x_mask is not None:
        sc = jnp.where(x_mask[:, None, None, :] > 0, jnp.float32(-65504.0), sc)
    att = jax.nn.softmax(sc, axis=-1)
    ctx = jnp.einsum('bhqk,bhkd->bhqd', att.astype(bf), vh.astype(bf),
                     preferred_element_type=f32)
    ctx = ctx.transpose(0, 2, 1, 3).reshape(B, S, H)

    y = _layer_norm(xf + lin(ctx, p['wm'], p['bm']), p['g1'], p['be1'])
    h1 = jnp.maximum(lin(y, p['w1'], p['b1']), 0.0)
    return _layer_norm(y + lin(h1, p['w2'], p['b2']), p['g2'], p['be2'])


if __name__ == "__main__":
    key = jax.random.PRNGKey(0)
    kx, kp = jax.random.split(key)

    # Small shapes consistent with the module (head=8 => head_size = H/8).
    B, S, H, NH = 4, 8, 32, 8
    x = jax.random.normal(kx, (B, S, H), jnp.float32)
    # Mask the last two key positions of every sequence (padding).
    x_mask = jnp.zeros((B, S), jnp.float32).at[:, S - 2:].set(1.0)
    params = init_params(kp, H)

    out_masked = encoder(x, params, x_mask=x_mask, num_heads=NH)
    out_nomask = encoder(x, params, x_mask=None, num_heads=NH)
    jax.block_until_ready((out_masked, out_nomask))

    ref_masked = encoder_ref(x, params, x_mask=x_mask, num_heads=NH)
    ref_nomask = encoder_ref(x, params, x_mask=None, num_heads=NH)

    assert out_masked.shape == (B, S, H)
    assert jnp.allclose(out_masked, ref_masked, atol=1e-2, rtol=1e-2)
    assert jnp.allclose(out_nomask, ref_nomask, atol=1e-2, rtol=1e-2)
    print("KERNEL_OK")
</pallas_src>

<mosaic_0001>
module attributes {stable_mosaic.version = 11 : i64} {
  func.func @_encoder_kernel(%arg0: i32, %arg1: memref<4x8x32xf32, #tpu.memory_space<vmem>>, %arg2: memref<4x1x8xf32, #tpu.memory_space<vmem>>, %arg3: memref<32x32xbf16, #tpu.memory_space<vmem>>, %arg4: memref<1x32xf32, #tpu.memory_space<vmem>>, %arg5: memref<32x32xbf16, #tpu.memory_space<vmem>>, %arg6: memref<1x32xf32, #tpu.memory_space<vmem>>, %arg7: memref<32x32xbf16, #tpu.memory_space<vmem>>, %arg8: memref<1x32xf32, #tpu.memory_space<vmem>>, %arg9: memref<32x32xbf16, #tpu.memory_space<vmem>>, %arg10: memref<1x32xf32, #tpu.memory_space<vmem>>, %arg11: memref<32x64xbf16, #tpu.memory_space<vmem>>, %arg12: memref<1x64xf32, #tpu.memory_space<vmem>>, %arg13: memref<64x32xbf16, #tpu.memory_space<vmem>>, %arg14: memref<1x32xf32, #tpu.memory_space<vmem>>, %arg15: memref<1x32xf32, #tpu.memory_space<vmem>>, %arg16: memref<1x32xf32, #tpu.memory_space<vmem>>, %arg17: memref<1x32xf32, #tpu.memory_space<vmem>>, %arg18: memref<1x32xf32, #tpu.memory_space<vmem>>, %arg19: memref<4x8x32xf32, #tpu.memory_space<vmem>>) attributes {dimension_semantics = [#tpu.dimension_semantics<parallel>], iteration_bounds = array<i64: 1>, scalar_prefetch = 0 : i64, scratch_operands = 0 : i64, tpu.core_type = #tpu.core_type<tc>, window_params = [{transform_indices = @transform_0, window_bounds = array<i64: 4, 8, 32>}, {transform_indices = @transform_1, window_bounds = array<i64: 4, 1, 8>}, {pipeline_mode = #tpu.pipeline_mode<synchronous>, transform_indices = @transform_2, window_bounds = array<i64: 32, 32>}, {pipeline_mode = #tpu.pipeline_mode<synchronous>, transform_indices = @transform_3, window_bounds = array<i64: 1, 32>}, {pipeline_mode = #tpu.pipeline_mode<synchronous>, transform_indices = @transform_4, window_bounds = array<i64: 32, 32>}, {pipeline_mode = #tpu.pipeline_mode<synchronous>, transform_indices = @transform_5, window_bounds = array<i64: 1, 32>}, {pipeline_mode = #tpu.pipeline_mode<synchronous>, transform_indices = @transform_6, window_bounds = array<i64: 32, 32>}, {pipeline_mode = #tpu.pipeline_mode<synchronous>, transform_indices = @transform_7, window_bounds = array<i64: 1, 32>}, {pipeline_mode = #tpu.pipeline_mode<synchronous>, transform_indices = @transform_8, window_bounds = array<i64: 32, 32>}, {pipeline_mode = #tpu.pipeline_mode<synchronous>, transform_indices = @transform_9, window_bounds = array<i64: 1, 32>}, {pipeline_mode = #tpu.pipeline_mode<synchronous>, transform_indices = @transform_10, window_bounds = array<i64: 32, 64>}, {pipeline_mode = #tpu.pipeline_mode<synchronous>, transform_indices = @transform_11, window_bounds = array<i64: 1, 64>}, {pipeline_mode = #tpu.pipeline_mode<synchronous>, transform_indices = @transform_12, window_bounds = array<i64: 64, 32>}, {pipeline_mode = #tpu.pipeline_mode<synchronous>, transform_indices = @transform_13, window_bounds = array<i64: 1, 32>}, {pipeline_mode = #tpu.pipeline_mode<synchronous>, transform_indices = @transform_14, window_bounds = array<i64: 1, 32>}, {pipeline_mode = #tpu.pipeline_mode<synchronous>, transform_indices = @transform_15, window_bounds = array<i64: 1, 32>}, {pipeline_mode = #tpu.pipeline_mode<synchronous>, transform_indices = @transform_16, window_bounds = array<i64: 1, 32>}, {pipeline_mode = #tpu.pipeline_mode<synchronous>, transform_indices = @transform_17, window_bounds = array<i64: 1, 32>}, {transform_indices = @transform_18, window_bounds = array<i64: 4, 8, 32>}]} {
    %c0 = arith.constant 0 : index
    %c0_0 = arith.constant 0 : index
    %c0_1 = arith.constant 0 : index
    %0 = vector.load %arg1[%c0, %c0_0, %c0_1] : memref<4x8x32xf32, #tpu.memory_space<vmem>>, vector<4x8x32xf32>
    %1 = vector.shape_cast %0 : vector<4x8x32xf32> to vector<32x32xf32>
    %2 = arith.truncf %1 : vector<32x32xf32> to vector<32x32xbf16>
    %c0_2 = arith.constant 0 : index
    %c0_3 = arith.constant 0 : index
    %3 = vector.load %arg3[%c0_2, %c0_3] : memref<32x32xbf16, #tpu.memory_space<vmem>>, vector<32x32xbf16>
    %cst = arith.constant dense<0.000000e+00> : vector<32x32xf32>
    %4 = tpu.matmul %2, %3, %cst {dimension_numbers = #tpu.dot_dimension_numbers<[1], [0], [0], [1], [0, 0, 1, 1], [], []>} : vector<32x32xbf16>, vector<32x32xbf16>, vector<32x32xf32> -> vector<32x32xf32>
    %c0_4 = arith.constant 0 : index
    %c0_5 = arith.constant 0 : index
    %5 = vector.load %arg4[%c0_4, %c0_5] : memref<1x32xf32, #tpu.memory_space<vmem>>, vector<1x32xf32>
    %6 = vector.broadcast %5 : vector<1x32xf32> to vector<32x32xf32>
    %7 = arith.addf %4, %6 : vector<32x32xf32>
    %cst_6 = arith.constant 5.000000e-01 : f32
    %8 = vector.broadcast %cst_6 : f32 to vector<32x32xf32>
    %9 = arith.mulf %7, %8 : vector<32x32xf32>
    %10 = arith.truncf %9 : vector<32x32xf32> to vector<32x32xbf16>
    %11 = vector.shape_cast %10 : vector<32x32xbf16> to vector<4x8x32xbf16>
    %c0_7 = arith.constant 0 : index
    %c0_8 = arith.constant 0 : index
    %12 = vector.load %arg5[%c0_7, %c0_8] : memref<32x32xbf16, #tpu.memory_space<vmem>>, vector<32x32xbf16>
    %cst_9 = arith.constant dense<0.000000e+00> : vector<32x32xf32>
    %13 = tpu.matmul %2, %12, %cst_9 {dimension_numbers = #tpu.dot_dimension_numbers<[1], [0], [0], [1], [0, 0, 1, 1], [], []>} : vector<32x32xbf16>, vector<32x32xbf16>, vector<32x32xf32> -> vector<32x32xf32>
    %c0_10 = arith.constant 0 : index
    %c0_11 = arith.constant 0 : index
    %14 = vector.load %arg6[%c0_10, %c0_11] : memref<1x32xf32, #tpu.memory_space<vmem>>, vector<1x32xf32>
    %15 = vector.broadcast %14 : vector<1x32xf32> to vector<32x32xf32>
    %16 = arith.addf %13, %15 : vector<32x32xf32>
    %17 = arith.truncf %16 : vector<32x32xf32> to vector<32x32xbf16>
    %18 = vector.shape_cast %17 : vector<32x32xbf16> to vector<4x8x32xbf16>
    %c0_12 = arith.constant 0 : index
    %c0_13 = arith.constant 0 : index
    %19 = vector.load %arg7[%c0_12, %c0_13] : memref<32x32xbf16, #tpu.memory_space<vmem>>, vector<32x32xbf16>
    %cst_14 = arith.constant dense<0.000000e+00> : vector<32x32xf32>
    %20 = tpu.matmul %2, %19, %cst_14 {dimension_numbers = #tpu.dot_dimension_numbers<[1], [0], [0], [1], [0, 0, 1, 1], [], []>} : vector<32x32xbf16>, vector<32x32xbf16>, vector<32x32xf32> -> vector<32x32xf32>
    %c0_15 = arith.constant 0 : index
    %c0_16 = arith.constant 0 : index
    %21 = vector.load %arg8[%c0_15, %c0_16] : memref<1x32xf32, #tpu.memory_space<vmem>>, vector<1x32xf32>
    %22 = vector.broadcast %21 : vector<1x32xf32> to vector<32x32xf32>
    %23 = arith.addf %20, %22 : vector<32x32xf32>
    %24 = arith.truncf %23 : vector<32x32xf32> to vector<32x32xbf16>
    %25 = vector.shape_cast %24 : vector<32x32xbf16> to vector<4x8x32xbf16>
    %c0_17 = arith.constant 0 : index
    %c0_18 = arith.constant 0 : index
    %c0_19 = arith.constant 0 : index
    %26 = vector.load %arg2[%c0_17, %c0_18, %c0_19] : memref<4x1x8xf32, #tpu.memory_space<vmem>>, vector<4x1x8xf32>
    %cst_20 = arith.constant 0.000000e+00 : f32
    %27 = vector.broadcast %cst_20 : f32 to vector<4x1x8xf32>
    %28 = arith.cmpf ogt, %26, %27 : vector<4x1x8xf32>
    %cst_21 = arith.constant -6.550400e+04 : f32
    %cst_22 = arith.constant 0.000000e+00 : f32
    %29 = vector.broadcast %cst_21 : f32 to vector<4x1x8xf32>
    %30 = vector.broadcast %cst_22 : f32 to vector<4x1x8xf32>
    %31 = arith.select %28, %29, %30 : vector<4x1x8xi1>, vector<4x1x8xf32>
    %32 = vector.extract_strided_slice %11 {offsets = [0, 0, 0], sizes = [4, 8, 4], strides = [1, 1, 1]} : vector<4x8x32xbf16> to vector<4x8x4xbf16>
    %33 = vector.extract_strided_slice %18 {offsets = [0, 0, 0], sizes = [4, 8, 4], strides = [1, 1, 1]} : vector<4x8x32xbf16> to vector<4x8x4xbf16>
    %34 = vector.extract_strided_slice %25 {offsets = [0, 0, 0], sizes = [4, 8, 4], strides = [1, 1, 1]} : vector<4x8x32xbf16> to vector<4x8x4xbf16>
    "tpu.trace_start"() <{level = 10 : i32, message = "bqd,bkd->bqk"}> : () -> ()
    %cst_23 = arith.constant dense<0.000000e+00> : vector<4x8x8xf32>
    %35 = tpu.matmul %32, %33, %cst_23 {dimension_numbers = #tpu.dot_dimension_numbers<[2], [2], [1], [1], [0, 0, 0, 1, 1, 1], [0], [0]>} : vector<4x8x4xbf16>, vector<4x8x4xbf16>, vector<4x8x8xf32> -> vector<4x8x8xf32>
    "tpu.trace_stop"() : () -> ()
    %36 = vector.broadcast %31 : vector<4x1x8xf32> to vector<4x8x8xf32>
    %37 = arith.addf %35, %36 : vector<4x8x8xf32>
    %cst_24 = arith.constant dense<0xFF800000> : vector<4x8xf32>
    %38 = vector.multi_reduction <maximumf>, %37, %cst_24 [2] : vector<4x8x8xf32> to vector<4x8xf32>
    %39 = vector.shape_cast %38 : vector<4x8xf32> to vector<4x8x1xf32>
    %40 = vector.broadcast %39 : vector<4x8x1xf32> to vector<4x8x8xf32>
    %41 = arith.subf %37, %40 : vector<4x8x8xf32>
    %42 = math.exp %41 : vector<4x8x8xf32>
    %cst_25 = arith.constant dense<0.000000e+00> : vector<4x8xf32>
    %43 = vector.multi_reduction <add>, %42, %cst_25 [2] : vector<4x8x8xf32> to vector<4x8xf32>
    %44 = vector.shape_cast %43 : vector<4x8xf32> to vector<4x8x1xf32>
    %45 = tpu.reciprocal %44 {approx = true} : vector<4x8x1xf32> -> vector<4x8x1xf32>
    %46 = vector.broadcast %45 : vector<4x8x1xf32> to vector<4x8x8xf32>
    %47 = arith.mulf %42, %46 : vector<4x8x8xf32>
    %48 = arith.truncf %47 : vector<4x8x8xf32> to vector<4x8x8xbf16>
    "tpu.trace_start"() <{level = 10 : i32, message = "bqk,bkd->bqd"}> : () -> ()
    %cst_26 = arith.constant dense<0.000000e+00> : vector<4x8x4xf32>
    %49 = tpu.matmul %48, %34, %cst_26 {dimension_numbers = #tpu.dot_dimension_numbers<[2], [1], [1], [2], [0, 0, 0, 1, 1, 2], [0], [0]>} : vector<4x8x8xbf16>, vector<4x8x4xbf16>, vector<4x8x4xf32> -> vector<4x8x4xf32>
    "tpu.trace_stop"() : () -> ()
    %50 = arith.truncf %49 : vector<4x8x4xf32> to vector<4x8x4xbf16>
    %51 = vector.extract_strided_slice %11 {offsets = [0, 0, 4], sizes = [4, 8, 4], strides = [1, 1, 1]} : vector<4x8x32xbf16> to vector<4x8x4xbf16>
    %52 = vector.extract_strided_slice %18 {offsets = [0, 0, 4], sizes = [4, 8, 4], strides = [1, 1, 1]} : vector<4x8x32xbf16> to vector<4x8x4xbf16>
    %53 = vector.extract_strided_slice %25 {offsets = [0, 0, 4], sizes = [4, 8, 4], strides = [1, 1, 1]} : vector<4x8x32xbf16> to vector<4x8x4xbf16>
    "tpu.trace_start"() <{level = 10 : i32, message = "bqd,bkd->bqk"}> : () -> ()
    %cst_27 = arith.constant dense<0.000000e+00> : vector<4x8x8xf32>
    %54 = tpu.matmul %51, %52, %cst_27 {dimension_numbers = #tpu.dot_dimension_numbers<[2], [2], [1], [1], [0, 0, 0, 1, 1, 1], [0], [0]>} : vector<4x8x4xbf16>, vector<4x8x4xbf16>, vector<4x8x8xf32> -> vector<4x8x8xf32>
    "tpu.trace_stop"() : () -> ()
    %55 = vector.broadcast %31 : vector<4x1x8xf32> to vector<4x8x8xf32>
    %56 = arith.addf %54, %55 : vector<4x8x8xf32>
    %cst_28 = arith.constant dense<0xFF800000> : vector<4x8xf32>
    %57 = vector.multi_reduction <maximumf>, %56, %cst_28 [2] : vector<4x8x8xf32> to vector<4x8xf32>
    %58 = vector.shape_cast %57 : vector<4x8xf32> to vector<4x8x1xf32>
    %59 = vector.broadcast %58 : vector<4x8x1xf32> to vector<4x8x8xf32>
    %60 = arith.subf %56, %59 : vector<4x8x8xf32>
    %61 = math.exp %60 : vector<4x8x8xf32>
    %cst_29 = arith.constant dense<0.000000e+00> : vector<4x8xf32>
    %62 = vector.multi_reduction <add>, %61, %cst_29 [2] : vector<4x8x8xf32> to vector<4x8xf32>
    %63 = vector.shape_cast %62 : vector<4x8xf32> to vector<4x8x1xf32>
    %64 = tpu.reciprocal %63 {approx = true} : vector<4x8x1xf32> -> vector<4x8x1xf32>
    %65 = vector.broadcast %64 : vector<4x8x1xf32> to vector<4x8x8xf32>
    %66 = arith.mulf %61, %65 : vector<4x8x8xf32>
    %67 = arith.truncf %66 : vector<4x8x8xf32> to vector<4x8x8xbf16>
    "tpu.trace_start"() <{level = 10 : i32, message = "bqk,bkd->bqd"}> : () -> ()
    %cst_30 = arith.constant dense<0.000000e+00> : vector<4x8x4xf32>
    %68 = tpu.matmul %67, %53, %cst_30 {dimension_numbers = #tpu.dot_dimension_numbers<[2], [1], [1], [2], [0, 0, 0, 1, 1, 2], [0], [0]>} : vector<4x8x8xbf16>, vector<4x8x4xbf16>, vector<4x8x4xf32> -> vector<4x8x4xf32>
    "tpu.trace_stop"() : () -> ()
    %69 = arith.truncf %68 : vector<4x8x4xf32> to vector<4x8x4xbf16>
    %70 = vector.extract_strided_slice %11 {offsets = [0, 0, 8], sizes = [4, 8, 4], strides = [1, 1, 1]} : vector<4x8x32xbf16> to vector<4x8x4xbf16>
    %71 = vector.extract_strided_slice %18 {offsets = [0, 0, 8], sizes = [4, 8, 4], strides = [1, 1, 1]} : vector<4x8x32xbf16> to vector<4x8x4xbf16>
    %72 = vector.extract_strided_slice %25 {offsets = [0, 0, 8], sizes = [4, 8, 4], strides = [1, 1, 1]} : vector<4x8x32xbf16> to vector<4x8x4xbf16>
    "tpu.trace_start"() <{level = 10 : i32, message = "bqd,bkd->bqk"}> : () -> ()
    %cst_31 = arith.constant dense<0.000000e+00> : vector<4x8x8xf32>
    %73 = tpu.matmul %70, %71, %cst_31 {dimension_numbers = #tpu.dot_dimension_numbers<[2], [2], [1], [1], [0, 0, 0, 1, 1, 1], [0], [0]>} : vector<4x8x4xbf16>, vector<4x8x4xbf16>, vector<4x8x8xf32> -> vector<4x8x8xf32>
    "tpu.trace_stop"() : () -> ()
    %74 = vector.broadcast %31 : vector<4x1x8xf32> to vector<4x8x8xf32>
    %75 = arith.addf %73, %74 : vector<4x8x8xf32>
    %cst_32 = arith.constant dense<0xFF800000> : vector<4x8xf32>
    %76 = vector.multi_reduction <maximumf>, %75, %cst_32 [2] : vector<4x8x8xf32> to vector<4x8xf32>
    %77 = vector.shape_cast %76 : vector<4x8xf32> to vector<4x8x1xf32>
    %78 = vector.broadcast %77 : vector<4x8x1xf32> to vector<4x8x8xf32>
    %79 = arith.subf %75, %78 : vector<4x8x8xf32>
    %80 = math.exp %79 : vector<4x8x8xf32>
    %cst_33 = arith.constant dense<0.000000e+00> : vector<4x8xf32>
    %81 = vector.multi_reduction <add>, %80, %cst_33 [2] : vector<4x8x8xf32> to vector<4x8xf32>
    %82 = vector.shape_cast %81 : vector<4x8xf32> to vector<4x8x1xf32>
    %83 = tpu.reciprocal %82 {approx = true} : vector<4x8x1xf32> -> vector<4x8x1xf32>
    %84 = vector.broadcast %83 : vector<4x8x1xf32> to vector<4x8x8xf32>
    %85 = arith.mulf %80, %84 : vector<4x8x8xf32>
    %86 = arith.truncf %85 : vector<4x8x8xf32> to vector<4x8x8xbf16>
    "tpu.trace_start"() <{level = 10 : i32, message = "bqk,bkd->bqd"}> : () -> ()
    %cst_34 = arith.constant dense<0.000000e+00> : vector<4x8x4xf32>
    %87 = tpu.matmul %86, %72, %cst_34 {dimension_numbers = #tpu.dot_dimension_numbers<[2], [1], [1], [2], [0, 0, 0, 1, 1, 2], [0], [0]>} : vector<4x8x8xbf16>, vector<4x8x4xbf16>, vector<4x8x4xf32> -> vector<4x8x4xf32>
    "tpu.trace_stop"() : () -> ()
    %88 = arith.truncf %87 : vector<4x8x4xf32> to vector<4x8x4xbf16>
    %89 = vector.extract_strided_slice %11 {offsets = [0, 0, 12], sizes = [4, 8, 4], strides = [1, 1, 1]} : vector<4x8x32xbf16> to vector<4x8x4xbf16>
    %90 = vector.extract_strided_slice %18 {offsets = [0, 0, 12], sizes = [4, 8, 4], strides = [1, 1, 1]} : vector<4x8x32xbf16> to vector<4x8x4xbf16>
    %91 = vector.extract_strided_slice %25 {offsets = [0, 0, 12], sizes = [4, 8, 4], strides = [1, 1, 1]} : vector<4x8x32xbf16> to vector<4x8x4xbf16>
    "tpu.trace_start"() <{level = 10 : i32, message = "bqd,bkd->bqk"}> : () -> ()
    %cst_35 = arith.constant dense<0.000000e+00> : vector<4x8x8xf32>
    %92 = tpu.matmul %89, %90, %cst_35 {dimension_numbers = #tpu.dot_dimension_numbers<[2], [2], [1], [1], [0, 0, 0, 1, 1, 1], [0], [0]>} : vector<4x8x4xbf16>, vector<4x8x4xbf16>, vector<4x8x8xf32> -> vector<4x8x8xf32>
    "tpu.trace_stop"() : () -> ()
    %93 = vector.broadcast %31 : vector<4x1x8xf32> to vector<4x8x8xf32>
    %94 = arith.addf %92, %93 : vector<4x8x8xf32>
    %cst_36 = arith.constant dense<0xFF800000> : vector<4x8xf32>
    %95 = vector.multi_reduction <maximumf>, %94, %cst_36 [2] : vector<4x8x8xf32> to vector<4x8xf32>
    %96 = vector.shape_cast %95 : vector<4x8xf32> to vector<4x8x1xf32>
    %97 = vector.broadcast %96 : vector<4x8x1xf32> to vector<4x8x8xf32>
    %98 = arith.subf %94, %97 : vector<4x8x8xf32>
    %99 = math.exp %98 : vector<4x8x8xf32>
    %cst_37 = arith.constant dense<0.000000e+00> : vector<4x8xf32>
    %100 = vector.multi_reduction <add>, %99, %cst_37 [2] : vector<4x8x8xf32> to vector<4x8xf32>
    %101 = vector.shape_cast %100 : vector<4x8xf32> to vector<4x8x1xf32>
    %102 = tpu.reciprocal %101 {approx = true} : vector<4x8x1xf32> -> vector<4x8x1xf32>
    %103 = vector.broadcast %102 : vector<4x8x1xf32> to vector<4x8x8xf32>
    %104 = arith.mulf %99, %103 : vector<4x8x8xf32>
    %105 = arith.truncf %104 : vector<4x8x8xf32> to vector<4x8x8xbf16>
    "tpu.trace_start"() <{level = 10 : i32, message = "bqk,bkd->bqd"}> : () -> ()
    %cst_38 = arith.constant dense<0.000000e+00> : vector<4x8x4xf32>
    %106 = tpu.matmul %105, %91, %cst_38 {dimension_numbers = #tpu.dot_dimension_numbers<[2], [1], [1], [2], [0, 0, 0, 1, 1, 2], [0], [0]>} : vector<4x8x8xbf16>, vector<4x8x4xbf16>, vector<4x8x4xf32> -> vector<4x8x4xf32>
    "tpu.trace_stop"() : () -> ()
    %107 = arith.truncf %106 : vector<4x8x4xf32> to vector<4x8x4xbf16>
    %108 = vector.extract_strided_slice %11 {offsets = [0, 0, 16], sizes = [4, 8, 4], strides = [1, 1, 1]} : vector<4x8x32xbf16> to vector<4x8x4xbf16>
    %109 = vector.extract_strided_slice %18 {offsets = [0, 0, 16], sizes = [4, 8, 4], strides = [1, 1, 1]} : vector<4x8x32xbf16> to vector<4x8x4xbf16>
    %110 = vector.extract_strided_slice %25 {offsets = [0, 0, 16], sizes = [4, 8, 4], strides = [1, 1, 1]} : vector<4x8x32xbf16> to vector<4x8x4xbf16>
    "tpu.trace_start"() <{level = 10 : i32, message = "bqd,bkd->bqk"}> : () -> ()
    %cst_39 = arith.constant dense<0.000000e+00> : vector<4x8x8xf32>
    %111 = tpu.matmul %108, %109, %cst_39 {dimension_numbers = #tpu.dot_dimension_numbers<[2], [2], [1], [1], [0, 0, 0, 1, 1, 1], [0], [0]>} : vector<4x8x4xbf16>, vector<4x8x4xbf16>, vector<4x8x8xf32> -> vector<4x8x8xf32>
    "tpu.trace_stop"() : () -> ()
    %112 = vector.broadcast %31 : vector<4x1x8xf32> to vector<4x8x8xf32>
    %113 = arith.addf %111, %112 : vector<4x8x8xf32>
    %cst_40 = arith.constant dense<0xFF800000> : vector<4x8xf32>
    %114 = vector.multi_reduction <maximumf>, %113, %cst_40 [2] : vector<4x8x8xf32> to vector<4x8xf32>
    %115 = vector.shape_cast %114 : vector<4x8xf32> to vector<4x8x1xf32>
    %116 = vector.broadcast %115 : vector<4x8x1xf32> to vector<4x8x8xf32>
    %117 = arith.subf %113, %116 : vector<4x8x8xf32>
    %118 = math.exp %117 : vector<4x8x8xf32>
    %cst_41 = arith.constant dense<0.000000e+00> : vector<4x8xf32>
    %119 = vector.multi_reduction <add>, %118, %cst_41 [2] : vector<4x8x8xf32> to vector<4x8xf32>
    %120 = vector.shape_cast %119 : vector<4x8xf32> to vector<4x8x1xf32>
    %121 = tpu.reciprocal %120 {approx = true} : vector<4x8x1xf32> -> vector<4x8x1xf32>
    %122 = vector.broadcast %121 : vector<4x8x1xf32> to vector<4x8x8xf32>
    %123 = arith.mulf %118, %122 : vector<4x8x8xf32>
    %124 = arith.truncf %123 : vector<4x8x8xf32> to vector<4x8x8xbf16>
    "tpu.trace_start"() <{level = 10 : i32, message = "bqk,bkd->bqd"}> : () -> ()
    %cst_42 = arith.constant dense<0.000000e+00> : vector<4x8x4xf32>
    %125 = tpu.matmul %124, %110, %cst_42 {dimension_numbers = #tpu.dot_dimension_numbers<[2], [1], [1], [2], [0, 0, 0, 1, 1, 2], [0], [0]>} : vector<4x8x8xbf16>, vector<4x8x4xbf16>, vector<4x8x4xf32> -> vector<4x8x4xf32>
    "tpu.trace_stop"() : () -> ()
    %126 = arith.truncf %125 : vector<4x8x4xf32> to vector<4x8x4xbf16>
    %127 = vector.extract_strided_slice %11 {offsets = [0, 0, 20], sizes = [4, 8, 4], strides = [1, 1, 1]} : vector<4x8x32xbf16> to vector<4x8x4xbf16>
    %128 = vector.extract_strided_slice %18 {offsets = [0, 0, 20], sizes = [4, 8, 4], strides = [1, 1, 1]} : vector<4x8x32xbf16> to vector<4x8x4xbf16>
    %129 = vector.extract_strided_slice %25 {offsets = [0, 0, 20], sizes = [4, 8, 4], strides = [1, 1, 1]} : vector<4x8x32xbf16> to vector<4x8x4xbf16>
    "tpu.trace_start"() <{level = 10 : i32, message = "bqd,bkd->bqk"}> : () -> ()
    %cst_43 = arith.constant dense<0.000000e+00> : vector<4x8x8xf32>
    %130 = tpu.matmul %127, %128, %cst_43 {dimension_numbers = #tpu.dot_dimension_numbers<[2], [2], [1], [1], [0, 0, 0, 1, 1, 1], [0], [0]>} : vector<4x8x4xbf16>, vector<4x8x4xbf16>, vector<4x8x8xf32> -> vector<4x8x8xf32>
    "tpu.trace_stop"() : () -> ()
    %131 = vector.broadcast %31 : vector<4x1x8xf32> to vector<4x8x8xf32>
    %132 = arith.addf %130, %131 : vector<4x8x8xf32>
    %cst_44 = arith.constant dense<0xFF800000> : vector<4x8xf32>
    %133 = vector.multi_reduction <maximumf>, %132, %cst_44 [2] : vector<4x8x8xf32> to vector<4x8xf32>
    %134 = vector.shape_cast %133 : vector<4x8xf32> to vector<4x8x1xf32>
    %135 = vector.broadcast %134 : vector<4x8x1xf32> to vector<4x8x8xf32>
    %136 = arith.subf %132, %135 : vector<4x8x8xf32>
    %137 = math.exp %136 : vector<4x8x8xf32>
    %cst_45 = arith.constant dense<0.000000e+00> : vector<4x8xf32>
    %138 = vector.multi_reduction <add>, %137, %cst_45 [2] : vector<4x8x8xf32> to vector<4x8xf32>
    %139 = vector.shape_cast %138 : vector<4x8xf32> to vector<4x8x1xf32>
    %140 = tpu.reciprocal %139 {approx = true} : vector<4x8x1xf32> -> vector<4x8x1xf32>
    %141 = vector.broadcast %140 : vector<4x8x1xf32> to vector<4x8x8xf32>
    %142 = arith.mulf %137, %141 : vector<4x8x8xf32>
    %143 = arith.truncf %142 : vector<4x8x8xf32> to vector<4x8x8xbf16>
    "tpu.trace_start"() <{level = 10 : i32, message = "bqk,bkd->bqd"}> : () -> ()
    %cst_46 = arith.constant dense<0.000000e+00> : vector<4x8x4xf32>
    %144 = tpu.matmul %143, %129, %cst_46 {dimension_numbers = #tpu.dot_dimension_numbers<[2], [1], [1], [2], [0, 0, 0, 1, 1, 2], [0], [0]>} : vector<4x8x8xbf16>, vector<4x8x4xbf16>, vector<4x8x4xf32> -> vector<4x8x4xf32>
    "tpu.trace_stop"() : () -> ()
    %145 = arith.truncf %144 : vector<4x8x4xf32> to vector<4x8x4xbf16>
    %146 = vector.extract_strided_slice %11 {offsets = [0, 0, 24], sizes = [4, 8, 4], strides = [1, 1, 1]} : vector<4x8x32xbf16> to vector<4x8x4xbf16>
    %147 = vector.extract_strided_slice %18 {offsets = [0, 0, 24], sizes = [4, 8, 4], strides = [1, 1, 1]} : vector<4x8x32xbf16> to vector<4x8x4xbf16>
    %148 = vector.extract_strided_slice %25 {offsets = [0, 0, 24], sizes = [4, 8, 4], strides = [1, 1, 1]} : vector<4x8x32xbf16> to vector<4x8x4xbf16>
    "tpu.trace_start"() <{level = 10 : i32, message = "bqd,bkd->bqk"}> : () -> ()
    %cst_47 = arith.constant dense<0.000000e+00> : vector<4x8x8xf32>
    %149 = tpu.matmul %146, %147, %cst_47 {dimension_numbers = #tpu.dot_dimension_numbers<[2], [2], [1], [1], [0, 0, 0, 1, 1, 1], [0], [0]>} : vector<4x8x4xbf16>, vector<4x8x4xbf16>, vector<4x8x8xf32> -> vector<4x8x8xf32>
    "tpu.trace_stop"() : () -> ()
    %150 = vector.broadcast %31 : vector<4x1x8xf32> to vector<4x8x8xf32>
    %151 = arith.addf %149, %150 : vector<4x8x8xf32>
    %cst_48 = arith.constant dense<0xFF800000> : vector<4x8xf32>
    %152 = vector.multi_reduction <maximumf>, %151, %cst_48 [2] : vector<4x8x8xf32> to vector<4x8xf32>
    %153 = vector.shape_cast %152 : vector<4x8xf32> to vector<4x8x1xf32>
    %154 = vector.broadcast %153 : vector<4x8x1xf32> to vector<4x8x8xf32>
    %155 = arith.subf %151, %154 : vector<4x8x8xf32>
    %156 = math.exp %155 : vector<4x8x8xf32>
    %cst_49 = arith.constant dense<0.000000e+00> : vector<4x8xf32>
    %157 = vector.multi_reduction <add>, %156, %cst_49 [2] : vector<4x8x8xf32> to vector<4x8xf32>
    %158 = vector.shape_cast %157 : vector<4x8xf32> to vector<4x8x1xf32>
    %159 = tpu.reciprocal %158 {approx = true} : vector<4x8x1xf32> -> vector<4x8x1xf32>
    %160 = vector.broadcast %159 : vector<4x8x1xf32> to vector<4x8x8xf32>
    %161 = arith.mulf %156, %160 : vector<4x8x8xf32>
    %162 = arith.truncf %161 : vector<4x8x8xf32> to vector<4x8x8xbf16>
    "tpu.trace_start"() <{level = 10 : i32, message = "bqk,bkd->bqd"}> : () -> ()
    %cst_50 = arith.constant dense<0.000000e+00> : vector<4x8x4xf32>
    %163 = tpu.matmul %162, %148, %cst_50 {dimension_numbers = #tpu.dot_dimension_numbers<[2], [1], [1], [2], [0, 0, 0, 1, 1, 2], [0], [0]>} : vector<4x8x8xbf16>, vector<4x8x4xbf16>, vector<4x8x4xf32> -> vector<4x8x4xf32>
    "tpu.trace_stop"() : () -> ()
    %164 = arith.truncf %163 : vector<4x8x4xf32> to vector<4x8x4xbf16>
    %165 = vector.extract_strided_slice %11 {offsets = [0, 0, 28], sizes = [4, 8, 4], strides = [1, 1, 1]} : vector<4x8x32xbf16> to vector<4x8x4xbf16>
    %166 = vector.extract_strided_slice %18 {offsets = [0, 0, 28], sizes = [4, 8, 4], strides = [1, 1, 1]} : vector<4x8x32xbf16> to vector<4x8x4xbf16>
    %167 = vector.extract_strided_slice %25 {offsets = [0, 0, 28], sizes = [4, 8, 4], strides = [1, 1, 1]} : vector<4x8x32xbf16> to vector<4x8x4xbf16>
    "tpu.trace_start"() <{level = 10 : i32, message = "bqd,bkd->bqk"}> : () -> ()
    %cst_51 = arith.constant dense<0.000000e+00> : vector<4x8x8xf32>
    %168 = tpu.matmul %165, %166, %cst_51 {dimension_numbers = #tpu.dot_dimension_numbers<[2], [2], [1], [1], [0, 0, 0, 1, 1, 1], [0], [0]>} : vector<4x8x4xbf16>, vector<4x8x4xbf16>, vector<4x8x8xf32> -> vector<4x8x8xf32>
    "tpu.trace_stop"() : () -> ()
    %169 = vector.broadcast %31 : vector<4x1x8xf32> to vector<4x8x8xf32>
    %170 = arith.addf %168, %169 : vector<4x8x8xf32>
    %cst_52 = arith.constant dense<0xFF800000> : vector<4x8xf32>
    %171 = vector.multi_reduction <maximumf>, %170, %cst_52 [2] : vector<4x8x8xf32> to vector<4x8xf32>
    %172 = vector.shape_cast %171 : vector<4x8xf32> to vector<4x8x1xf32>
    %173 = vector.broadcast %172 : vector<4x8x1xf32> to vector<4x8x8xf32>
    %174 = arith.subf %170, %173 : vector<4x8x8xf32>
    %175 = math.exp %174 : vector<4x8x8xf32>
    %cst_53 = arith.constant dense<0.000000e+00> : vector<4x8xf32>
    %176 = vector.multi_reduction <add>, %175, %cst_53 [2] : vector<4x8x8xf32> to vector<4x8xf32>
    %177 = vector.shape_cast %176 : vector<4x8xf32> to vector<4x8x1xf32>
    %178 = tpu.reciprocal %177 {approx = true} : vector<4x8x1xf32> -> vector<4x8x1xf32>
    %179 = vector.broadcast %178 : vector<4x8x1xf32> to vector<4x8x8xf32>
    %180 = arith.mulf %175, %179 : vector<4x8x8xf32>
    %181 = arith.truncf %180 : vector<4x8x8xf32> to vector<4x8x8xbf16>
    "tpu.trace_start"() <{level = 10 : i32, message = "bqk,bkd->bqd"}> : () -> ()
    %cst_54 = arith.constant dense<0.000000e+00> : vector<4x8x4xf32>
    %182 = tpu.matmul %181, %167, %cst_54 {dimension_numbers = #tpu.dot_dimension_numbers<[2], [1], [1], [2], [0, 0, 0, 1, 1, 2], [0], [0]>} : vector<4x8x8xbf16>, vector<4x8x4xbf16>, vector<4x8x4xf32> -> vector<4x8x4xf32>
    "tpu.trace_stop"() : () -> ()
    %183 = arith.truncf %182 : vector<4x8x4xf32> to vector<4x8x4xbf16>
    %184 = tpu.concatenate %50, %69, %88, %107, %126, %145, %164, %183 in 2 : vector<4x8x4xbf16>, vector<4x8x4xbf16>, vector<4x8x4xbf16>, vector<4x8x4xbf16>, vector<4x8x4xbf16>, vector<4x8x4xbf16>, vector<4x8x4xbf16>, vector<4x8x4xbf16> -> vector<4x8x32xbf16>
    %185 = vector.shape_cast %184 : vector<4x8x32xbf16> to vector<32x32xbf16>
    %c0_55 = arith.constant 0 : index
    %c0_56 = arith.constant 0 : index
    %186 = vector.load %arg9[%c0_55, %c0_56] : memref<32x32xbf16, #tpu.memory_space<vmem>>, vector<32x32xbf16>
    %cst_57 = arith.constant dense<0.000000e+00> : vector<32x32xf32>
    %187 = tpu.matmul %185, %186, %cst_57 {dimension_numbers = #tpu.dot_dimension_numbers<[1], [0], [0], [1], [0, 0, 1, 1], [], []>} : vector<32x32xbf16>, vector<32x32xbf16>, vector<32x32xf32> -> vector<32x32xf32>
    %c0_58 = arith.constant 0 : index
    %c0_59 = arith.constant 0 : index
    %188 = vector.load %arg10[%c0_58, %c0_59] : memref<1x32xf32, #tpu.memory_space<vmem>>, vector<1x32xf32>
    %189 = vector.broadcast %188 : vector<1x32xf32> to vector<32x32xf32>
    %190 = arith.addf %187, %189 : vector<32x32xf32>
    %191 = arith.addf %1, %190 : vector<32x32xf32>
    %c0_60 = arith.constant 0 : index
    %c0_61 = arith.constant 0 : index
    %192 = vector.load %arg15[%c0_60, %c0_61] : memref<1x32xf32, #tpu.memory_space<vmem>>, vector<1x32xf32>
    %c0_62 = arith.constant 0 : index
    %c0_63 = arith.constant 0 : index
    %193 = vector.load %arg16[%c0_62, %c0_63] : memref<1x32xf32, #tpu.memory_space<vmem>>, vector<1x32xf32>
    %cst_64 = arith.constant dense<0.000000e+00> : vector<32xf32>
    %194 = vector.multi_reduction <add>, %191, %cst_64 [1] : vector<32x32xf32> to vector<32xf32>
    %195 = vector.shape_cast %194 : vector<32xf32> to vector<32x1xf32>
    %cst_65 = arith.constant 3.200000e+01 : f32
    %196 = vector.broadcast %cst_65 : f32 to vector<32x1xf32>
    %197 = arith.divf %195, %196 : vector<32x1xf32>
    %198 = vector.broadcast %197 : vector<32x1xf32> to vector<32x32xf32>
    %199 = arith.subf %191, %198 : vector<32x32xf32>
    %200 = arith.mulf %199, %199 : vector<32x32xf32>
    %cst_66 = arith.constant dense<0.000000e+00> : vector<32xf32>
    %201 = vector.multi_reduction <add>, %200, %cst_66 [1] : vector<32x32xf32> to vector<32xf32>
    %202 = vector.shape_cast %201 : vector<32xf32> to vector<32x1xf32>
    %cst_67 = arith.constant 3.200000e+01 : f32
    %203 = vector.broadcast %cst_67 : f32 to vector<32x1xf32>
    %204 = arith.divf %202, %203 : vector<32x1xf32>
    %205 = vector.broadcast %197 : vector<32x1xf32> to vector<32x32xf32>
    %206 = arith.subf %191, %205 : vector<32x32xf32>
    %cst_68 = arith.constant 9.99999974E-6 : f32
    %207 = vector.broadcast %cst_68 : f32 to vector<32x1xf32>
    %208 = arith.addf %204, %207 : vector<32x1xf32>
    %209 = math.rsqrt %208 : vector<32x1xf32>
    %210 = vector.broadcast %209 : vector<32x1xf32> to vector<32x32xf32>
    %211 = arith.mulf %206, %210 : vector<32x32xf32>
    %212 = vector.broadcast %192 : vector<1x32xf32> to vector<32x32xf32>
    %213 = arith.mulf %211, %212 : vector<32x32xf32>
    %214 = vector.broadcast %193 : vector<1x32xf32> to vector<32x32xf32>
    %215 = arith.addf %213, %214 : vector<32x32xf32>
    %216 = arith.truncf %215 : vector<32x32xf32> to vector<32x32xbf16>
    %c0_69 = arith.constant 0 : index
    %c0_70 = arith.constant 0 : index
    %217 = vector.load %arg11[%c0_69, %c0_70] : memref<32x64xbf16, #tpu.memory_space<vmem>>, vector<32x64xbf16>
    %cst_71 = arith.constant dense<0.000000e+00> : vector<32x64xf32>
    %218 = tpu.matmul %216, %217, %cst_71 {dimension_numbers = #tpu.dot_dimension_numbers<[1], [0], [0], [1], [0, 0, 1, 1], [], []>} : vector<32x32xbf16>, vector<32x64xbf16>, vector<32x64xf32> -> vector<32x64xf32>
    %c0_72 = arith.constant 0 : index
    %c0_73 = arith.constant 0 : index
    %219 = vector.load %arg12[%c0_72, %c0_73] : memref<1x64xf32, #tpu.memory_space<vmem>>, vector<1x64xf32>
    %220 = vector.broadcast %219 : vector<1x64xf32> to vector<32x64xf32>
    %221 = arith.addf %218, %220 : vector<32x64xf32>
    %cst_74 = arith.constant 0.000000e+00 : f32
    %222 = vector.broadcast %cst_74 : f32 to vector<32x64xf32>
    %223 = arith.maximumf %221, %222 : vector<32x64xf32>
    %224 = arith.truncf %223 : vector<32x64xf32> to vector<32x64xbf16>
    %c0_75 = arith.constant 0 : index
    %c0_76 = arith.constant 0 : index
    %225 = vector.load %arg13[%c0_75, %c0_76] : memref<64x32xbf16, #tpu.memory_space<vmem>>, vector<64x32xbf16>
    %cst_77 = arith.constant dense<0.000000e+00> : vector<32x32xf32>
    %226 = tpu.matmul %224, %225, %cst_77 {dimension_numbers = #tpu.dot_dimension_numbers<[1], [0], [0], [1], [0, 0, 1, 1], [], []>} : vector<32x64xbf16>, vector<64x32xbf16>, vector<32x32xf32> -> vector<32x32xf32>
    %c0_78 = arith.constant 0 : index
    %c0_79 = arith.constant 0 : index
    %227 = vector.load %arg14[%c0_78, %c0_79] : memref<1x32xf32, #tpu.memory_space<vmem>>, vector<1x32xf32>
    %228 = vector.broadcast %227 : vector<1x32xf32> to vector<32x32xf32>
    %229 = arith.addf %226, %228 : vector<32x32xf32>
    %230 = arith.addf %215, %229 : vector<32x32xf32>
    %c0_80 = arith.constant 0 : index
    %c0_81 = arith.constant 0 : index
    %231 = vector.load %arg17[%c0_80, %c0_81] : memref<1x32xf32, #tpu.memory_space<vmem>>, vector<1x32xf32>
    %c0_82 = arith.constant 0 : index
    %c0_83 = arith.constant 0 : index
    %232 = vector.load %arg18[%c0_82, %c0_83] : memref<1x32xf32, #tpu.memory_space<vmem>>, vector<1x32xf32>
    %cst_84 = arith.constant dense<0.000000e+00> : vector<32xf32>
    %233 = vector.multi_reduction <add>, %230, %cst_84 [1] : vector<32x32xf32> to vector<32xf32>
    %234 = vector.shape_cast %233 : vector<32xf32> to vector<32x1xf32>
    %cst_85 = arith.constant 3.200000e+01 : f32
    %235 = vector.broadcast %cst_85 : f32 to vector<32x1xf32>
    %236 = arith.divf %234, %235 : vector<32x1xf32>
    %237 = vector.broadcast %236 : vector<32x1xf32> to vector<32x32xf32>
    %238 = arith.subf %230, %237 : vector<32x32xf32>
    %239 = arith.mulf %238, %238 : vector<32x32xf32>
    %cst_86 = arith.constant dense<0.000000e+00> : vector<32xf32>
    %240 = vector.multi_reduction <add>, %239, %cst_86 [1] : vector<32x32xf32> to vector<32xf32>
    %241 = vector.shape_cast %240 : vector<32xf32> to vector<32x1xf32>
    %cst_87 = arith.constant 3.200000e+01 : f32
    %242 = vector.broadcast %cst_87 : f32 to vector<32x1xf32>
    %243 = arith.divf %241, %242 : vector<32x1xf32>
    %244 = vector.broadcast %236 : vector<32x1xf32> to vector<32x32xf32>
    %245 = arith.subf %230, %244 : vector<32x32xf32>
    %cst_88 = arith.constant 9.99999974E-6 : f32
    %246 = vector.broadcast %cst_88 : f32 to vector<32x1xf32>
    %247 = arith.addf %243, %246 : vector<32x1xf32>
    %248 = math.rsqrt %247 : vector<32x1xf32>
    %249 = vector.broadcast %248 : vector<32x1xf32> to vector<32x32xf32>
    %250 = arith.mulf %245, %249 : vector<32x32xf32>
    %251 = vector.broadcast %231 : vector<1x32xf32> to vector<32x32xf32>
    %252 = arith.mulf %250, %251 : vector<32x32xf32>
    %253 = vector.broadcast %232 : vector<1x32xf32> to vector<32x32xf32>
    %254 = arith.addf %252, %253 : vector<32x32xf32>
    %255 = vector.shape_cast %254 : vector<32x32xf32> to vector<4x8x32xf32>
    %c0_89 = arith.constant 0 : index
    %c0_90 = arith.constant 0 : index
    %c0_91 = arith.constant 0 : index
    %256 = vector.load %arg19[%c0_89, %c0_90, %c0_91] : memref<4x8x32xf32, #tpu.memory_space<vmem>>, vector<4x8x32xf32>
    tpu.vector_store %arg19[%c0_89, %c0_90, %c0_91], %255 {strides = array<i32>} : memref<4x8x32xf32, #tpu.memory_space<vmem>>, vector<4x8x32xf32>,
    return
  }
  func.func @transform_0(%arg0: i32) -> (i32, i32, i32) {
    %c0_i32 = arith.constant 0 : i32
    %c0_i32_0 = arith.constant 0 : i32
    %c0_i32_1 = arith.constant 0 : i32
    return %arg0, %c0_i32, %c0_i32_0 : i32, i32, i32
  }
  func.func @transform_1(%arg0: i32) -> (i32, i32, i32) {
    %c0_i32 = arith.constant 0 : i32
    %c0_i32_0 = arith.constant 0 : i32
    %c0_i32_1 = arith.constant 0 : i32
    return %arg0, %c0_i32, %c0_i32_0 : i32, i32, i32
  }
  func.func @transform_2(%arg0: i32) -> (i32, i32) {
    %c0_i32 = arith.constant 0 : i32
    %c0_i32_0 = arith.constant 0 : i32
    %c0_i32_1 = arith.constant 0 : i32
    return %c0_i32, %c0_i32_0 : i32, i32
  }
  func.func @transform_3(%arg0: i32) -> (i32, i32) {
    %c0_i32 = arith.constant 0 : i32
    %c0_i32_0 = arith.constant 0 : i32
    %c0_i32_1 = arith.constant 0 : i32
    return %c0_i32, %c0_i32_0 : i32, i32
  }
  func.func @transform_4(%arg0: i32) -> (i32, i32) {
    %c0_i32 = arith.constant 0 : i32
    %c0_i32_0 = arith.constant 0 : i32
    %c0_i32_1 = arith.constant 0 : i32
    return %c0_i32, %c0_i32_0 : i32, i32
  }
  func.func @transform_5(%arg0: i32) -> (i32, i32) {
    %c0_i32 = arith.constant 0 : i32
    %c0_i32_0 = arith.constant 0 : i32
    %c0_i32_1 = arith.constant 0 : i32
    return %c0_i32, %c0_i32_0 : i32, i32
  }
  func.func @transform_6(%arg0: i32) -> (i32, i32) {
    %c0_i32 = arith.constant 0 : i32
    %c0_i32_0 = arith.constant 0 : i32
    %c0_i32_1 = arith.constant 0 : i32
    return %c0_i32, %c0_i32_0 : i32, i32
  }
  func.func @transform_7(%arg0: i32) -> (i32, i32) {
    %c0_i32 = arith.constant 0 : i32
    %c0_i32_0 = arith.constant 0 : i32
    %c0_i32_1 = arith.constant 0 : i32
    return %c0_i32, %c0_i32_0 : i32, i32
  }
  func.func @transform_8(%arg0: i32) -> (i32, i32) {
    %c0_i32 = arith.constant 0 : i32
    %c0_i32_0 = arith.constant 0 : i32
    %c0_i32_1 = arith.constant 0 : i32
    return %c0_i32, %c0_i32_0 : i32, i32
  }
  func.func @transform_9(%arg0: i32) -> (i32, i32) {
    %c0_i32 = arith.constant 0 : i32
    %c0_i32_0 = arith.constant 0 : i32
    %c0_i32_1 = arith.constant 0 : i32
    return %c0_i32, %c0_i32_0 : i32, i32
  }
  func.func @transform_10(%arg0: i32) -> (i32, i32) {
    %c0_i32 = arith.constant 0 : i32
    %c0_i32_0 = arith.constant 0 : i32
    %c0_i32_1 = arith.constant 0 : i32
    return %c0_i32, %c0_i32_0 : i32, i32
  }
  func.func @transform_11(%arg0: i32) -> (i32, i32) {
    %c0_i32 = arith.constant 0 : i32
    %c0_i32_0 = arith.constant 0 : i32
    %c0_i32_1 = arith.constant 0 : i32
    return %c0_i32, %c0_i32_0 : i32, i32
  }
  func.func @transform_12(%arg0: i32) -> (i32, i32) {
    %c0_i32 = arith.constant 0 : i32
    %c0_i32_0 = arith.constant 0 : i32
    %c0_i32_1 = arith.constant 0 : i32
    return %c0_i32, %c0_i32_0 : i32, i32
  }
  func.func @transform_13(%arg0: i32) -> (i32, i32) {
    %c0_i32 = arith.constant 0 : i32
    %c0_i32_0 = arith.constant 0 : i32
    %c0_i32_1 = arith.constant 0 : i32
    return %c0_i32, %c0_i32_0 : i32, i32
  }
  func.func @transform_14(%arg0: i32) -> (i32, i32) {
    %c0_i32 = arith.constant 0 : i32
    %c0_i32_0 = arith.constant 0 : i32
    %c0_i32_1 = arith.constant 0 : i32
    return %c0_i32, %c0_i32_0 : i32, i32
  }
  func.func @transform_15(%arg0: i32) -> (i32, i32) {
    %c0_i32 = arith.constant 0 : i32
    %c0_i32_0 = arith.constant 0 : i32
    %c0_i32_1 = arith.constant 0 : i32
    return %c0_i32, %c0_i32_0 : i32, i32
  }
  func.func @transform_16(%arg0: i32) -> (i32, i32) {
    %c0_i32 = arith.constant 0 : i32
    %c0_i32_0 = arith.constant 0 : i32
    %c0_i32_1 = arith.constant 0 : i32
    return %c0_i32, %c0_i32_0 : i32, i32
  }
  func.func @transform_17(%arg0: i32) -> (i32, i32) {
    %c0_i32 = arith.constant 0 : i32
    %c0_i32_0 = arith.constant 0 : i32
    %c0_i32_1 = arith.constant 0 : i32
    return %c0_i32, %c0_i32_0 : i32, i32
  }
  func.func @transform_18(%arg0: i32) -> (i32, i32, i32) {
    %c0_i32 = arith.constant 0 : i32
    %c0_i32_0 = arith.constant 0 : i32
    %c0_i32_1 = arith.constant 0 : i32
    return %arg0, %c0_i32, %c0_i32_0 : i32, i32, i32
  }
}

module attributes {stable_mosaic.version = 11 : i64} {
  func.func @_encoder_kernel(%arg0: i32, %arg1: memref<4x8x32xf32, #tpu.memory_space<vmem>>, %arg2: memref<4x1x8xf32, #tpu.memory_space<vmem>>, %arg3: memref<32x32xbf16, #tpu.memory_space<vmem>>, %arg4: memref<1x32xf32, #tpu.memory_space<vmem>>, %arg5: memref<32x32xbf16, #tpu.memory_space<vmem>>, %arg6: memref<1x32xf32, #tpu.memory_space<vmem>>, %arg7: memref<32x32xbf16, #tpu.memory_space<vmem>>, %arg8: memref<1x32xf32, #tpu.memory_space<vmem>>, %arg9: memref<32x32xbf16, #tpu.memory_space<vmem>>, %arg10: memref<1x32xf32, #tpu.memory_space<vmem>>, %arg11: memref<32x64xbf16, #tpu.memory_space<vmem>>, %arg12: memref<1x64xf32, #tpu.memory_space<vmem>>, %arg13: memref<64x32xbf16, #tpu.memory_space<vmem>>, %arg14: memref<1x32xf32, #tpu.memory_space<vmem>>, %arg15: memref<1x32xf32, #tpu.memory_space<vmem>>, %arg16: memref<1x32xf32, #tpu.memory_space<vmem>>, %arg17: memref<1x32xf32, #tpu.memory_space<vmem>>, %arg18: memref<1x32xf32, #tpu.memory_space<vmem>>, %arg19: memref<4x8x32xf32, #tpu.memory_space<vmem>>) attributes {dimension_semantics = [#tpu.dimension_semantics<parallel>], iteration_bounds = array<i64: 1>, scalar_prefetch = 0 : i64, scratch_operands = 0 : i64, tpu.core_type = #tpu.core_type<tc>, window_params = [{transform_indices = @transform_0, window_bounds = array<i64: 4, 8, 32>}, {transform_indices = @transform_1, window_bounds = array<i64: 4, 1, 8>}, {pipeline_mode = #tpu.pipeline_mode<synchronous>, transform_indices = @transform_2, window_bounds = array<i64: 32, 32>}, {pipeline_mode = #tpu.pipeline_mode<synchronous>, transform_indices = @transform_3, window_bounds = array<i64: 1, 32>}, {pipeline_mode = #tpu.pipeline_mode<synchronous>, transform_indices = @transform_4, window_bounds = array<i64: 32, 32>}, {pipeline_mode = #tpu.pipeline_mode<synchronous>, transform_indices = @transform_5, window_bounds = array<i64: 1, 32>}, {pipeline_mode = #tpu.pipeline_mode<synchronous>, transform_indices = @transform_6, window_bounds = array<i64: 32, 32>}, {pipeline_mode = #tpu.pipeline_mode<synchronous>, transform_indices = @transform_7, window_bounds = array<i64: 1, 32>}, {pipeline_mode = #tpu.pipeline_mode<synchronous>, transform_indices = @transform_8, window_bounds = array<i64: 32, 32>}, {pipeline_mode = #tpu.pipeline_mode<synchronous>, transform_indices = @transform_9, window_bounds = array<i64: 1, 32>}, {pipeline_mode = #tpu.pipeline_mode<synchronous>, transform_indices = @transform_10, window_bounds = array<i64: 32, 64>}, {pipeline_mode = #tpu.pipeline_mode<synchronous>, transform_indices = @transform_11, window_bounds = array<i64: 1, 64>}, {pipeline_mode = #tpu.pipeline_mode<synchronous>, transform_indices = @transform_12, window_bounds = array<i64: 64, 32>}, {pipeline_mode = #tpu.pipeline_mode<synchronous>, transform_indices = @transform_13, window_bounds = array<i64: 1, 32>}, {pipeline_mode = #tpu.pipeline_mode<synchronous>, transform_indices = @transform_14, window_bounds = array<i64: 1, 32>}, {pipeline_mode = #tpu.pipeline_mode<synchronous>, transform_indices = @transform_15, window_bounds = array<i64: 1, 32>}, {pipeline_mode = #tpu.pipeline_mode<synchronous>, transform_indices = @transform_16, window_bounds = array<i64: 1, 32>}, {pipeline_mode = #tpu.pipeline_mode<synchronous>, transform_indices = @transform_17, window_bounds = array<i64: 1, 32>}, {transform_indices = @transform_18, window_bounds = array<i64: 4, 8, 32>}]} {
    %c0 = arith.constant 0 : index
    %c0_0 = arith.constant 0 : index
    %c0_1 = arith.constant 0 : index
    %0 = vector.load %arg1[%c0, %c0_0, %c0_1] : memref<4x8x32xf32, #tpu.memory_space<vmem>>, vector<4x8x32xf32>
    %1 = vector.shape_cast %0 : vector<4x8x32xf32> to vector<32x32xf32>
    %2 = arith.truncf %1 : vector<32x32xf32> to vector<32x32xbf16>
    %c0_2 = arith.constant 0 : index
    %c0_3 = arith.constant 0 : index
    %3 = vector.load %arg3[%c0_2, %c0_3] : memref<32x32xbf16, #tpu.memory_space<vmem>>, vector<32x32xbf16>
    %cst = arith.constant dense<0.000000e+00> : vector<32x32xf32>
    %4 = tpu.matmul %2, %3, %cst {dimension_numbers = #tpu.dot_dimension_numbers<[1], [0], [0], [1], [0, 0, 1, 1], [], []>} : vector<32x32xbf16>, vector<32x32xbf16>, vector<32x32xf32> -> vector<32x32xf32>
    %c0_4 = arith.constant 0 : index
    %c0_5 = arith.constant 0 : index
    %5 = vector.load %arg4[%c0_4, %c0_5] : memref<1x32xf32, #tpu.memory_space<vmem>>, vector<1x32xf32>
    %6 = vector.broadcast %5 : vector<1x32xf32> to vector<32x32xf32>
    %7 = arith.addf %4, %6 : vector<32x32xf32>
    %cst_6 = arith.constant 5.000000e-01 : f32
    %8 = vector.broadcast %cst_6 : f32 to vector<32x32xf32>
    %9 = arith.mulf %7, %8 : vector<32x32xf32>
    %10 = arith.truncf %9 : vector<32x32xf32> to vector<32x32xbf16>
    %11 = vector.shape_cast %10 : vector<32x32xbf16> to vector<4x8x32xbf16>
    %c0_7 = arith.constant 0 : index
    %c0_8 = arith.constant 0 : index
    %12 = vector.load %arg5[%c0_7, %c0_8] : memref<32x32xbf16, #tpu.memory_space<vmem>>, vector<32x32xbf16>
    %cst_9 = arith.constant dense<0.000000e+00> : vector<32x32xf32>
    %13 = tpu.matmul %2, %12, %cst_9 {dimension_numbers = #tpu.dot_dimension_numbers<[1], [0], [0], [1], [0, 0, 1, 1], [], []>} : vector<32x32xbf16>, vector<32x32xbf16>, vector<32x32xf32> -> vector<32x32xf32>
    %c0_10 = arith.constant 0 : index
    %c0_11 = arith.constant 0 : index
    %14 = vector.load %arg6[%c0_10, %c0_11] : memref<1x32xf32, #tpu.memory_space<vmem>>, vector<1x32xf32>
    %15 = vector.broadcast %14 : vector<1x32xf32> to vector<32x32xf32>
    %16 = arith.addf %13, %15 : vector<32x32xf32>
    %17 = arith.truncf %16 : vector<32x32xf32> to vector<32x32xbf16>
    %18 = vector.shape_cast %17 : vector<32x32xbf16> to vector<4x8x32xbf16>
    %c0_12 = arith.constant 0 : index
    %c0_13 = arith.constant 0 : index
    %19 = vector.load %arg7[%c0_12, %c0_13] : memref<32x32xbf16, #tpu.memory_space<vmem>>, vector<32x32xbf16>
    %cst_14 = arith.constant dense<0.000000e+00> : vector<32x32xf32>
    %20 = tpu.matmul %2, %19, %cst_14 {dimension_numbers = #tpu.dot_dimension_numbers<[1], [0], [0], [1], [0, 0, 1, 1], [], []>} : vector<32x32xbf16>, vector<32x32xbf16>, vector<32x32xf32> -> vector<32x32xf32>
    %c0_15 = arith.constant 0 : index
    %c0_16 = arith.constant 0 : index
    %21 = vector.load %arg8[%c0_15, %c0_16] : memref<1x32xf32, #tpu.memory_space<vmem>>, vector<1x32xf32>
    %22 = vector.broadcast %21 : vector<1x32xf32> to vector<32x32xf32>
    %23 = arith.addf %20, %22 : vector<32x32xf32>
    %24 = arith.truncf %23 : vector<32x32xf32> to vector<32x32xbf16>
    %25 = vector.shape_cast %24 : vector<32x32xbf16> to vector<4x8x32xbf16>
    %c0_17 = arith.constant 0 : index
    %c0_18 = arith.constant 0 : index
    %c0_19 = arith.constant 0 : index
    %26 = vector.load %arg2[%c0_17, %c0_18, %c0_19] : memref<4x1x8xf32, #tpu.memory_space<vmem>>, vector<4x1x8xf32>
    %cst_20 = arith.constant 0.000000e+00 : f32
    %27 = vector.broadcast %cst_20 : f32 to vector<4x1x8xf32>
    %28 = arith.cmpf ogt, %26, %27 : vector<4x1x8xf32>
    %cst_21 = arith.constant -6.550400e+04 : f32
    %cst_22 = arith.constant 0.000000e+00 : f32
    %29 = vector.broadcast %cst_21 : f32 to vector<4x1x8xf32>
    %30 = vector.broadcast %cst_22 : f32 to vector<4x1x8xf32>
    %31 = arith.select %28, %29, %30 : vector<4x1x8xi1>, vector<4x1x8xf32>
    %32 = vector.extract_strided_slice %11 {offsets = [0, 0, 0], sizes = [4, 8, 4], strides = [1, 1, 1]} : vector<4x8x32xbf16> to vector<4x8x4xbf16>
    %33 = vector.extract_strided_slice %18 {offsets = [0, 0, 0], sizes = [4, 8, 4], strides = [1, 1, 1]} : vector<4x8x32xbf16> to vector<4x8x4xbf16>
    %34 = vector.extract_strided_slice %25 {offsets = [0, 0, 0], sizes = [4, 8, 4], strides = [1, 1, 1]} : vector<4x8x32xbf16> to vector<4x8x4xbf16>
    "tpu.trace_start"() <{level = 10 : i32, message = "bqd,bkd->bqk"}> : () -> ()
    %cst_23 = arith.constant dense<0.000000e+00> : vector<4x8x8xf32>
    %35 = tpu.matmul %32, %33, %cst_23 {dimension_numbers = #tpu.dot_dimension_numbers<[2], [2], [1], [1], [0, 0, 0, 1, 1, 1], [0], [0]>} : vector<4x8x4xbf16>, vector<4x8x4xbf16>, vector<4x8x8xf32> -> vector<4x8x8xf32>
    "tpu.trace_stop"() : () -> ()
    %36 = vector.broadcast %31 : vector<4x1x8xf32> to vector<4x8x8xf32>
    %37 = arith.addf %35, %36 : vector<4x8x8xf32>
    %cst_24 = arith.constant dense<0xFF800000> : vector<4x8xf32>
    %38 = vector.multi_reduction <maximumf>, %37, %cst_24 [2] : vector<4x8x8xf32> to vector<4x8xf32>
    %39 = vector.shape_cast %38 : vector<4x8xf32> to vector<4x8x1xf32>
    %40 = vector.broadcast %39 : vector<4x8x1xf32> to vector<4x8x8xf32>
    %41 = arith.subf %37, %40 : vector<4x8x8xf32>
    %42 = math.exp %41 : vector<4x8x8xf32>
    %cst_25 = arith.constant dense<0.000000e+00> : vector<4x8xf32>
    %43 = vector.multi_reduction <add>, %42, %cst_25 [2] : vector<4x8x8xf32> to vector<4x8xf32>
    %44 = vector.shape_cast %43 : vector<4x8xf32> to vector<4x8x1xf32>
    %45 = tpu.reciprocal %44 {approx = true} : vector<4x8x1xf32> -> vector<4x8x1xf32>
    %46 = vector.broadcast %45 : vector<4x8x1xf32> to vector<4x8x8xf32>
    %47 = arith.mulf %42, %46 : vector<4x8x8xf32>
    %48 = arith.truncf %47 : vector<4x8x8xf32> to vector<4x8x8xbf16>
    "tpu.trace_start"() <{level = 10 : i32, message = "bqk,bkd->bqd"}> : () -> ()
    %cst_26 = arith.constant dense<0.000000e+00> : vector<4x8x4xf32>
    %49 = tpu.matmul %48, %34, %cst_26 {dimension_numbers = #tpu.dot_dimension_numbers<[2], [1], [1], [2], [0, 0, 0, 1, 1, 2], [0], [0]>} : vector<4x8x8xbf16>, vector<4x8x4xbf16>, vector<4x8x4xf32> -> vector<4x8x4xf32>
    "tpu.trace_stop"() : () -> ()
    %50 = arith.truncf %49 : vector<4x8x4xf32> to vector<4x8x4xbf16>
    %51 = vector.extract_strided_slice %11 {offsets = [0, 0, 4], sizes = [4, 8, 4], strides = [1, 1, 1]} : vector<4x8x32xbf16> to vector<4x8x4xbf16>
    %52 = vector.extract_strided_slice %18 {offsets = [0, 0, 4], sizes = [4, 8, 4], strides = [1, 1, 1]} : vector<4x8x32xbf16> to vector<4x8x4xbf16>
    %53 = vector.extract_strided_slice %25 {offsets = [0, 0, 4], sizes = [4, 8, 4], strides = [1, 1, 1]} : vector<4x8x32xbf16> to vector<4x8x4xbf16>
    "tpu.trace_start"() <{level = 10 : i32, message = "bqd,bkd->bqk"}> : () -> ()
    %cst_27 = arith.constant dense<0.000000e+00> : vector<4x8x8xf32>
    %54 = tpu.matmul %51, %52, %cst_27 {dimension_numbers = #tpu.dot_dimension_numbers<[2], [2], [1], [1], [0, 0, 0, 1, 1, 1], [0], [0]>} : vector<4x8x4xbf16>, vector<4x8x4xbf16>, vector<4x8x8xf32> -> vector<4x8x8xf32>
    "tpu.trace_stop"() : () -> ()
    %55 = vector.broadcast %31 : vector<4x1x8xf32> to vector<4x8x8xf32>
    %56 = arith.addf %54, %55 : vector<4x8x8xf32>
    %cst_28 = arith.constant dense<0xFF800000> : vector<4x8xf32>
    %57 = vector.multi_reduction <maximumf>, %56, %cst_28 [2] : vector<4x8x8xf32> to vector<4x8xf32>
    %58 = vector.shape_cast %57 : vector<4x8xf32> to vector<4x8x1xf32>
    %59 = vector.broadcast %58 : vector<4x8x1xf32> to vector<4x8x8xf32>
    %60 = arith.subf %56, %59 : vector<4x8x8xf32>
    %61 = math.exp %60 : vector<4x8x8xf32>
    %cst_29 = arith.constant dense<0.000000e+00> : vector<4x8xf32>
    %62 = vector.multi_reduction <add>, %61, %cst_29 [2] : vector<4x8x8xf32> to vector<4x8xf32>
    %63 = vector.shape_cast %62 : vector<4x8xf32> to vector<4x8x1xf32>
    %64 = tpu.reciprocal %63 {approx = true} : vector<4x8x1xf32> -> vector<4x8x1xf32>
    %65 = vector.broadcast %64 : vector<4x8x1xf32> to vector<4x8x8xf32>
    %66 = arith.mulf %61, %65 : vector<4x8x8xf32>
    %67 = arith.truncf %66 : vector<4x8x8xf32> to vector<4x8x8xbf16>
    "tpu.trace_start"() <{level = 10 : i32, message = "bqk,bkd->bqd"}> : () -> ()
    %cst_30 = arith.constant dense<0.000000e+00> : vector<4x8x4xf32>
    %68 = tpu.matmul %67, %53, %cst_30 {dimension_numbers = #tpu.dot_dimension_numbers<[2], [1], [1], [2], [0, 0, 0, 1, 1, 2], [0], [0]>} : vector<4x8x8xbf16>, vector<4x8x4xbf16>, vector<4x8x4xf32> -> vector<4x8x4xf32>
    "tpu.trace_stop"() : () -> ()
    %69 = arith.truncf %68 : vector<4x8x4xf32> to vector<4x8x4xbf16>
    %70 = vector.extract_strided_slice %11 {offsets = [0, 0, 8], sizes = [4, 8, 4], strides = [1, 1, 1]} : vector<4x8x32xbf16> to vector<4x8x4xbf16>
    %71 = vector.extract_strided_slice %18 {offsets = [0, 0, 8], sizes = [4, 8, 4], strides = [1, 1, 1]} : vector<4x8x32xbf16> to vector<4x8x4xbf16>
    %72 = vector.extract_strided_slice %25 {offsets = [0, 0, 8], sizes = [4, 8, 4], strides = [1, 1, 1]} : vector<4x8x32xbf16> to vector<4x8x4xbf16>
    "tpu.trace_start"() <{level = 10 : i32, message = "bqd,bkd->bqk"}> : () -> ()
    %cst_31 = arith.constant dense<0.000000e+00> : vector<4x8x8xf32>
    %73 = tpu.matmul %70, %71, %cst_31 {dimension_numbers = #tpu.dot_dimension_numbers<[2], [2], [1], [1], [0, 0, 0, 1, 1, 1], [0], [0]>} : vector<4x8x4xbf16>, vector<4x8x4xbf16>, vector<4x8x8xf32> -> vector<4x8x8xf32>
    "tpu.trace_stop"() : () -> ()
    %74 = vector.broadcast %31 : vector<4x1x8xf32> to vector<4x8x8xf32>
    %75 = arith.addf %73, %74 : vector<4x8x8xf32>
    %cst_32 = arith.constant dense<0xFF800000> : vector<4x8xf32>
    %76 = vector.multi_reduction <maximumf>, %75, %cst_32 [2] : vector<4x8x8xf32> to vector<4x8xf32>
    %77 = vector.shape_cast %76 : vector<4x8xf32> to vector<4x8x1xf32>
    %78 = vector.broadcast %77 : vector<4x8x1xf32> to vector<4x8x8xf32>
    %79 = arith.subf %75, %78 : vector<4x8x8xf32>
    %80 = math.exp %79 : vector<4x8x8xf32>
    %cst_33 = arith.constant dense<0.000000e+00> : vector<4x8xf32>
    %81 = vector.multi_reduction <add>, %80, %cst_33 [2] : vector<4x8x8xf32> to vector<4x8xf32>
    %82 = vector.shape_cast %81 : vector<4x8xf32> to vector<4x8x1xf32>
    %83 = tpu.reciprocal %82 {approx = true} : vector<4x8x1xf32> -> vector<4x8x1xf32>
    %84 = vector.broadcast %83 : vector<4x8x1xf32> to vector<4x8x8xf32>
    %85 = arith.mulf %80, %84 : vector<4x8x8xf32>
    %86 = arith.truncf %85 : vector<4x8x8xf32> to vector<4x8x8xbf16>
    "tpu.trace_start"() <{level = 10 : i32, message = "bqk,bkd->bqd"}> : () -> ()
    %cst_34 = arith.constant dense<0.000000e+00> : vector<4x8x4xf32>
    %87 = tpu.matmul %86, %72, %cst_34 {dimension_numbers = #tpu.dot_dimension_numbers<[2], [1], [1], [2], [0, 0, 0, 1, 1, 2], [0], [0]>} : vector<4x8x8xbf16>, vector<4x8x4xbf16>, vector<4x8x4xf32> -> vector<4x8x4xf32>
    "tpu.trace_stop"() : () -> ()
    %88 = arith.truncf %87 : vector<4x8x4xf32> to vector<4x8x4xbf16>
    %89 = vector.extract_strided_slice %11 {offsets = [0, 0, 12], sizes = [4, 8, 4], strides = [1, 1, 1]} : vector<4x8x32xbf16> to vector<4x8x4xbf16>
    %90 = vector.extract_strided_slice %18 {offsets = [0, 0, 12], sizes = [4, 8, 4], strides = [1, 1, 1]} : vector<4x8x32xbf16> to vector<4x8x4xbf16>
    %91 = vector.extract_strided_slice %25 {offsets = [0, 0, 12], sizes = [4, 8, 4], strides = [1, 1, 1]} : vector<4x8x32xbf16> to vector<4x8x4xbf16>
    "tpu.trace_start"() <{level = 10 : i32, message = "bqd,bkd->bqk"}> : () -> ()
    %cst_35 = arith.constant dense<0.000000e+00> : vector<4x8x8xf32>
    %92 = tpu.matmul %89, %90, %cst_35 {dimension_numbers = #tpu.dot_dimension_numbers<[2], [2], [1], [1], [0, 0, 0, 1, 1, 1], [0], [0]>} : vector<4x8x4xbf16>, vector<4x8x4xbf16>, vector<4x8x8xf32> -> vector<4x8x8xf32>
    "tpu.trace_stop"() : () -> ()
    %93 = vector.broadcast %31 : vector<4x1x8xf32> to vector<4x8x8xf32>
    %94 = arith.addf %92, %93 : vector<4x8x8xf32>
    %cst_36 = arith.constant dense<0xFF800000> : vector<4x8xf32>
    %95 = vector.multi_reduction <maximumf>, %94, %cst_36 [2] : vector<4x8x8xf32> to vector<4x8xf32>
    %96 = vector.shape_cast %95 : vector<4x8xf32> to vector<4x8x1xf32>
    %97 = vector.broadcast %96 : vector<4x8x1xf32> to vector<4x8x8xf32>
    %98 = arith.subf %94, %97 : vector<4x8x8xf32>
    %99 = math.exp %98 : vector<4x8x8xf32>
    %cst_37 = arith.constant dense<0.000000e+00> : vector<4x8xf32>
    %100 = vector.multi_reduction <add>, %99, %cst_37 [2] : vector<4x8x8xf32> to vector<4x8xf32>
    %101 = vector.shape_cast %100 : vector<4x8xf32> to vector<4x8x1xf32>
    %102 = tpu.reciprocal %101 {approx = true} : vector<4x8x1xf32> -> vector<4x8x1xf32>
    %103 = vector.broadcast %102 : vector<4x8x1xf32> to vector<4x8x8xf32>
    %104 = arith.mulf %99, %103 : vector<4x8x8xf32>
    %105 = arith.truncf %104 : vector<4x8x8xf32> to vector<4x8x8xbf16>
    "tpu.trace_start"() <{level = 10 : i32, message = "bqk,bkd->bqd"}> : () -> ()
    %cst_38 = arith.constant dense<0.000000e+00> : vector<4x8x4xf32>
    %106 = tpu.matmul %105, %91, %cst_38 {dimension_numbers = #tpu.dot_dimension_numbers<[2], [1], [1], [2], [0, 0, 0, 1, 1, 2], [0], [0]>} : vector<4x8x8xbf16>, vector<4x8x4xbf16>, vector<4x8x4xf32> -> vector<4x8x4xf32>
    "tpu.trace_stop"() : () -> ()
    %107 = arith.truncf %106 : vector<4x8x4xf32> to vector<4x8x4xbf16>
    %108 = vector.extract_strided_slice %11 {offsets = [0, 0, 16], sizes = [4, 8, 4], strides = [1, 1, 1]} : vector<4x8x32xbf16> to vector<4x8x4xbf16>
    %109 = vector.extract_strided_slice %18 {offsets = [0, 0, 16], sizes = [4, 8, 4], strides = [1, 1, 1]} : vector<4x8x32xbf16> to vector<4x8x4xbf16>
    %110 = vector.extract_strided_slice %25 {offsets = [0, 0, 16], sizes = [4, 8, 4], strides = [1, 1, 1]} : vector<4x8x32xbf16> to vector<4x8x4xbf16>
    "tpu.trace_start"() <{level = 10 : i32, message = "bqd,bkd->bqk"}> : () -> ()
    %cst_39 = arith.constant dense<0.000000e+00> : vector<4x8x8xf32>
    %111 = tpu.matmul %108, %109, %cst_39 {dimension_numbers = #tpu.dot_dimension_numbers<[2], [2], [1], [1], [0, 0, 0, 1, 1, 1], [0], [0]>} : vector<4x8x4xbf16>, vector<4x8x4xbf16>, vector<4x8x8xf32> -> vector<4x8x8xf32>
    "tpu.trace_stop"() : () -> ()
    %112 = vector.broadcast %31 : vector<4x1x8xf32> to vector<4x8x8xf32>
    %113 = arith.addf %111, %112 : vector<4x8x8xf32>
    %cst_40 = arith.constant dense<0xFF800000> : vector<4x8xf32>
    %114 = vector.multi_reduction <maximumf>, %113, %cst_40 [2] : vector<4x8x8xf32> to vector<4x8xf32>
    %115 = vector.shape_cast %114 : vector<4x8xf32> to vector<4x8x1xf32>
    %116 = vector.broadcast %115 : vector<4x8x1xf32> to vector<4x8x8xf32>
    %117 = arith.subf %113, %116 : vector<4x8x8xf32>
    %118 = math.exp %117 : vector<4x8x8xf32>
    %cst_41 = arith.constant dense<0.000000e+00> : vector<4x8xf32>
    %119 = vector.multi_reduction <add>, %118, %cst_41 [2] : vector<4x8x8xf32> to vector<4x8xf32>
    %120 = vector.shape_cast %119 : vector<4x8xf32> to vector<4x8x1xf32>
    %121 = tpu.reciprocal %120 {approx = true} : vector<4x8x1xf32> -> vector<4x8x1xf32>
    %122 = vector.broadcast %121 : vector<4x8x1xf32> to vector<4x8x8xf32>
    %123 = arith.mulf %118, %122 : vector<4x8x8xf32>
    %124 = arith.truncf %123 : vector<4x8x8xf32> to vector<4x8x8xbf16>
    "tpu.trace_start"() <{level = 10 : i32, message = "bqk,bkd->bqd"}> : () -> ()
    %cst_42 = arith.constant dense<0.000000e+00> : vector<4x8x4xf32>
    %125 = tpu.matmul %124, %110, %cst_42 {dimension_numbers = #tpu.dot_dimension_numbers<[2], [1], [1], [2], [0, 0, 0, 1, 1, 2], [0], [0]>} : vector<4x8x8xbf16>, vector<4x8x4xbf16>, vector<4x8x4xf32> -> vector<4x8x4xf32>
    "tpu.trace_stop"() : () -> ()
    %126 = arith.truncf %125 : vector<4x8x4xf32> to vector<4x8x4xbf16>
    %127 = vector.extract_strided_slice %11 {offsets = [0, 0, 20], sizes = [4, 8, 4], strides = [1, 1, 1]} : vector<4x8x32xbf16> to vector<4x8x4xbf16>
    %128 = vector.extract_strided_slice %18 {offsets = [0, 0, 20], sizes = [4, 8, 4], strides = [1, 1, 1]} : vector<4x8x32xbf16> to vector<4x8x4xbf16>
    %129 = vector.extract_strided_slice %25 {offsets = [0, 0, 20], sizes = [4, 8, 4], strides = [1, 1, 1]} : vector<4x8x32xbf16> to vector<4x8x4xbf16>
    "tpu.trace_start"() <{level = 10 : i32, message = "bqd,bkd->bqk"}> : () -> ()
    %cst_43 = arith.constant dense<0.000000e+00> : vector<4x8x8xf32>
    %130 = tpu.matmul %127, %128, %cst_43 {dimension_numbers = #tpu.dot_dimension_numbers<[2], [2], [1], [1], [0, 0, 0, 1, 1, 1], [0], [0]>} : vector<4x8x4xbf16>, vector<4x8x4xbf16>, vector<4x8x8xf32> -> vector<4x8x8xf32>
    "tpu.trace_stop"() : () -> ()
    %131 = vector.broadcast %31 : vector<4x1x8xf32> to vector<4x8x8xf32>
    %132 = arith.addf %130, %131 : vector<4x8x8xf32>
    %cst_44 = arith.constant dense<0xFF800000> : vector<4x8xf32>
    %133 = vector.multi_reduction <maximumf>, %132, %cst_44 [2] : vector<4x8x8xf32> to vector<4x8xf32>
    %134 = vector.shape_cast %133 : vector<4x8xf32> to vector<4x8x1xf32>
    %135 = vector.broadcast %134 : vector<4x8x1xf32> to vector<4x8x8xf32>
    %136 = arith.subf %132, %135 : vector<4x8x8xf32>
    %137 = math.exp %136 : vector<4x8x8xf32>
    %cst_45 = arith.constant dense<0.000000e+00> : vector<4x8xf32>
    %138 = vector.multi_reduction <add>, %137, %cst_45 [2] : vector<4x8x8xf32> to vector<4x8xf32>
    %139 = vector.shape_cast %138 : vector<4x8xf32> to vector<4x8x1xf32>
    %140 = tpu.reciprocal %139 {approx = true} : vector<4x8x1xf32> -> vector<4x8x1xf32>
    %141 = vector.broadcast %140 : vector<4x8x1xf32> to vector<4x8x8xf32>
    %142 = arith.mulf %137, %141 : vector<4x8x8xf32>
    %143 = arith.truncf %142 : vector<4x8x8xf32> to vector<4x8x8xbf16>
    "tpu.trace_start"() <{level = 10 : i32, message = "bqk,bkd->bqd"}> : () -> ()
    %cst_46 = arith.constant dense<0.000000e+00> : vector<4x8x4xf32>
    %144 = tpu.matmul %143, %129, %cst_46 {dimension_numbers = #tpu.dot_dimension_numbers<[2], [1], [1], [2], [0, 0, 0, 1, 1, 2], [0], [0]>} : vector<4x8x8xbf16>, vector<4x8x4xbf16>, vector<4x8x4xf32> -> vector<4x8x4xf32>
    "tpu.trace_stop"() : () -> ()
    %145 = arith.truncf %144 : vector<4x8x4xf32> to vector<4x8x4xbf16>
    %146 = vector.extract_strided_slice %11 {offsets = [0, 0, 24], sizes = [4, 8, 4], strides = [1, 1, 1]} : vector<4x8x32xbf16> to vector<4x8x4xbf16>
    %147 = vector.extract_strided_slice %18 {offsets = [0, 0, 24], sizes = [4, 8, 4], strides = [1, 1, 1]} : vector<4x8x32xbf16> to vector<4x8x4xbf16>
    %148 = vector.extract_strided_slice %25 {offsets = [0, 0, 24], sizes = [4, 8, 4], strides = [1, 1, 1]} : vector<4x8x32xbf16> to vector<4x8x4xbf16>
    "tpu.trace_start"() <{level = 10 : i32, message = "bqd,bkd->bqk"}> : () -> ()
    %cst_47 = arith.constant dense<0.000000e+00> : vector<4x8x8xf32>
    %149 = tpu.matmul %146, %147, %cst_47 {dimension_numbers = #tpu.dot_dimension_numbers<[2], [2], [1], [1], [0, 0, 0, 1, 1, 1], [0], [0]>} : vector<4x8x4xbf16>, vector<4x8x4xbf16>, vector<4x8x8xf32> -> vector<4x8x8xf32>
    "tpu.trace_stop"() : () -> ()
    %150 = vector.broadcast %31 : vector<4x1x8xf32> to vector<4x8x8xf32>
    %151 = arith.addf %149, %150 : vector<4x8x8xf32>
    %cst_48 = arith.constant dense<0xFF800000> : vector<4x8xf32>
    %152 = vector.multi_reduction <maximumf>, %151, %cst_48 [2] : vector<4x8x8xf32> to vector<4x8xf32>
    %153 = vector.shape_cast %152 : vector<4x8xf32> to vector<4x8x1xf32>
    %154 = vector.broadcast %153 : vector<4x8x1xf32> to vector<4x8x8xf32>
    %155 = arith.subf %151, %154 : vector<4x8x8xf32>
    %156 = math.exp %155 : vector<4x8x8xf32>
    %cst_49 = arith.constant dense<0.000000e+00> : vector<4x8xf32>
    %157 = vector.multi_reduction <add>, %156, %cst_49 [2] : vector<4x8x8xf32> to vector<4x8xf32>
    %158 = vector.shape_cast %157 : vector<4x8xf32> to vector<4x8x1xf32>
    %159 = tpu.reciprocal %158 {approx = true} : vector<4x8x1xf32> -> vector<4x8x1xf32>
    %160 = vector.broadcast %159 : vector<4x8x1xf32> to vector<4x8x8xf32>
    %161 = arith.mulf %156, %160 : vector<4x8x8xf32>
    %162 = arith.truncf %161 : vector<4x8x8xf32> to vector<4x8x8xbf16>
    "tpu.trace_start"() <{level = 10 : i32, message = "bqk,bkd->bqd"}> : () -> ()
    %cst_50 = arith.constant dense<0.000000e+00> : vector<4x8x4xf32>
    %163 = tpu.matmul %162, %148, %cst_50 {dimension_numbers = #tpu.dot_dimension_numbers<[2], [1], [1], [2], [0, 0, 0, 1, 1, 2], [0], [0]>} : vector<4x8x8xbf16>, vector<4x8x4xbf16>, vector<4x8x4xf32> -> vector<4x8x4xf32>
    "tpu.trace_stop"() : () -> ()
    %164 = arith.truncf %163 : vector<4x8x4xf32> to vector<4x8x4xbf16>
    %165 = vector.extract_strided_slice %11 {offsets = [0, 0, 28], sizes = [4, 8, 4], strides = [1, 1, 1]} : vector<4x8x32xbf16> to vector<4x8x4xbf16>
    %166 = vector.extract_strided_slice %18 {offsets = [0, 0, 28], sizes = [4, 8, 4], strides = [1, 1, 1]} : vector<4x8x32xbf16> to vector<4x8x4xbf16>
    %167 = vector.extract_strided_slice %25 {offsets = [0, 0, 28], sizes = [4, 8, 4], strides = [1, 1, 1]} : vector<4x8x32xbf16> to vector<4x8x4xbf16>
    "tpu.trace_start"() <{level = 10 : i32, message = "bqd,bkd->bqk"}> : () -> ()
    %cst_51 = arith.constant dense<0.000000e+00> : vector<4x8x8xf32>
    %168 = tpu.matmul %165, %166, %cst_51 {dimension_numbers = #tpu.dot_dimension_numbers<[2], [2], [1], [1], [0, 0, 0, 1, 1, 1], [0], [0]>} : vector<4x8x4xbf16>, vector<4x8x4xbf16>, vector<4x8x8xf32> -> vector<4x8x8xf32>
    "tpu.trace_stop"() : () -> ()
    %169 = vector.broadcast %31 : vector<4x1x8xf32> to vector<4x8x8xf32>
    %170 = arith.addf %168, %169 : vector<4x8x8xf32>
    %cst_52 = arith.constant dense<0xFF800000> : vector<4x8xf32>
    %171 = vector.multi_reduction <maximumf>, %170, %cst_52 [2] : vector<4x8x8xf32> to vector<4x8xf32>
    %172 = vector.shape_cast %171 : vector<4x8xf32> to vector<4x8x1xf32>
    %173 = vector.broadcast %172 : vector<4x8x1xf32> to vector<4x8x8xf32>
    %174 = arith.subf %170, %173 : vector<4x8x8xf32>
    %175 = math.exp %174 : vector<4x8x8xf32>
    %cst_53 = arith.constant dense<0.000000e+00> : vector<4x8xf32>
    %176 = vector.multi_reduction <add>, %175, %cst_53 [2] : vector<4x8x8xf32> to vector<4x8xf32>
    %177 = vector.shape_cast %176 : vector<4x8xf32> to vector<4x8x1xf32>
    %178 = tpu.reciprocal %177 {approx = true} : vector<4x8x1xf32> -> vector<4x8x1xf32>
    %179 = vector.broadcast %178 : vector<4x8x1xf32> to vector<4x8x8xf32>
    %180 = arith.mulf %175, %179 : vector<4x8x8xf32>
    %181 = arith.truncf %180 : vector<4x8x8xf32> to vector<4x8x8xbf16>
    "tpu.trace_start"() <{level = 10 : i32, message = "bqk,bkd->bqd"}> : () -> ()
    %cst_54 = arith.constant dense<0.000000e+00> : vector<4x8x4xf32>
    %182 = tpu.matmul %181, %167, %cst_54 {dimension_numbers = #tpu.dot_dimension_numbers<[2], [1], [1], [2], [0, 0, 0, 1, 1, 2], [0], [0]>} : vector<4x8x8xbf16>, vector<4x8x4xbf16>, vector<4x8x4xf32> -> vector<4x8x4xf32>
    "tpu.trace_stop"() : () -> ()
    %183 = arith.truncf %182 : vector<4x8x4xf32> to vector<4x8x4xbf16>
    %184 = tpu.concatenate %50, %69, %88, %107, %126, %145, %164, %183 in 2 : vector<4x8x4xbf16>, vector<4x8x4xbf16>, vector<4x8x4xbf16>, vector<4x8x4xbf16>, vector<4x8x4xbf16>, vector<4x8x4xbf16>, vector<4x8x4xbf16>, vector<4x8x4xbf16> -> vector<4x8x32xbf16>
    %185 = vector.shape_cast %184 : vector<4x8x32xbf16> to vector<32x32xbf16>
    %c0_55 = arith.constant 0 : index
    %c0_56 = arith.constant 0 : index
    %186 = vector.load %arg9[%c0_55, %c0_56] : memref<32x32xbf16, #tpu.memory_space<vmem>>, vector<32x32xbf16>
    %cst_57 = arith.constant dense<0.000000e+00> : vector<32x32xf32>
    %187 = tpu.matmul %185, %186, %cst_57 {dimension_numbers = #tpu.dot_dimension_numbers<[1], [0], [0], [1], [0, 0, 1, 1], [], []>} : vector<32x32xbf16>, vector<32x32xbf16>, vector<32x32xf32> -> vector<32x32xf32>
    %c0_58 = arith.constant 0 : index
    %c0_59 = arith.constant 0 : index
    %188 = vector.load %arg10[%c0_58, %c0_59] : memref<1x32xf32, #tpu.memory_space<vmem>>, vector<1x32xf32>
    %189 = vector.broadcast %188 : vector<1x32xf32> to vector<32x32xf32>
    %190 = arith.addf %187, %189 : vector<32x32xf32>
    %191 = arith.addf %1, %190 : vector<32x32xf32>
    %c0_60 = arith.constant 0 : index
    %c0_61 = arith.constant 0 : index
    %192 = vector.load %arg15[%c0_60, %c0_61] : memref<1x32xf32, #tpu.memory_space<vmem>>, vector<1x32xf32>
    %c0_62 = arith.constant 0 : index
    %c0_63 = arith.constant 0 : index
    %193 = vector.load %arg16[%c0_62, %c0_63] : memref<1x32xf32, #tpu.memory_space<vmem>>, vector<1x32xf32>
    %cst_64 = arith.constant dense<0.000000e+00> : vector<32xf32>
    %194 = vector.multi_reduction <add>, %191, %cst_64 [1] : vector<32x32xf32> to vector<32xf32>
    %195 = vector.shape_cast %194 : vector<32xf32> to vector<32x1xf32>
    %cst_65 = arith.constant 3.200000e+01 : f32
    %196 = vector.broadcast %cst_65 : f32 to vector<32x1xf32>
    %197 = arith.divf %195, %196 : vector<32x1xf32>
    %198 = vector.broadcast %197 : vector<32x1xf32> to vector<32x32xf32>
    %199 = arith.subf %191, %198 : vector<32x32xf32>
    %200 = arith.mulf %199, %199 : vector<32x32xf32>
    %cst_66 = arith.constant dense<0.000000e+00> : vector<32xf32>
    %201 = vector.multi_reduction <add>, %200, %cst_66 [1] : vector<32x32xf32> to vector<32xf32>
    %202 = vector.shape_cast %201 : vector<32xf32> to vector<32x1xf32>
    %cst_67 = arith.constant 3.200000e+01 : f32
    %203 = vector.broadcast %cst_67 : f32 to vector<32x1xf32>
    %204 = arith.divf %202, %203 : vector<32x1xf32>
    %205 = vector.broadcast %197 : vector<32x1xf32> to vector<32x32xf32>
    %206 = arith.subf %191, %205 : vector<32x32xf32>
    %cst_68 = arith.constant 9.99999974E-6 : f32
    %207 = vector.broadcast %cst_68 : f32 to vector<32x1xf32>
    %208 = arith.addf %204, %207 : vector<32x1xf32>
    %209 = math.rsqrt %208 : vector<32x1xf32>
    %210 = vector.broadcast %209 : vector<32x1xf32> to vector<32x32xf32>
    %211 = arith.mulf %206, %210 : vector<32x32xf32>
    %212 = vector.broadcast %192 : vector<1x32xf32> to vector<32x32xf32>
    %213 = arith.mulf %211, %212 : vector<32x32xf32>
    %214 = vector.broadcast %193 : vector<1x32xf32> to vector<32x32xf32>
    %215 = arith.addf %213, %214 : vector<32x32xf32>
    %216 = arith.truncf %215 : vector<32x32xf32> to vector<32x32xbf16>
    %c0_69 = arith.constant 0 : index
    %c0_70 = arith.constant 0 : index
    %217 = vector.load %arg11[%c0_69, %c0_70] : memref<32x64xbf16, #tpu.memory_space<vmem>>, vector<32x64xbf16>
    %cst_71 = arith.constant dense<0.000000e+00> : vector<32x64xf32>
    %218 = tpu.matmul %216, %217, %cst_71 {dimension_numbers = #tpu.dot_dimension_numbers<[1], [0], [0], [1], [0, 0, 1, 1], [], []>} : vector<32x32xbf16>, vector<32x64xbf16>, vector<32x64xf32> -> vector<32x64xf32>
    %c0_72 = arith.constant 0 : index
    %c0_73 = arith.constant 0 : index
    %219 = vector.load %arg12[%c0_72, %c0_73] : memref<1x64xf32, #tpu.memory_space<vmem>>, vector<1x64xf32>
    %220 = vector.broadcast %219 : vector<1x64xf32> to vector<32x64xf32>
    %221 = arith.addf %218, %220 : vector<32x64xf32>
    %cst_74 = arith.constant 0.000000e+00 : f32
    %222 = vector.broadcast %cst_74 : f32 to vector<32x64xf32>
    %223 = arith.maximumf %221, %222 : vector<32x64xf32>
    %224 = arith.truncf %223 : vector<32x64xf32> to vector<32x64xbf16>
    %c0_75 = arith.constant 0 : index
    %c0_76 = arith.constant 0 : index
    %225 = vector.load %arg13[%c0_75, %c0_76] : memref<64x32xbf16, #tpu.memory_space<vmem>>, vector<64x32xbf16>
    %cst_77 = arith.constant dense<0.000000e+00> : vector<32x32xf32>
    %226 = tpu.matmul %224, %225, %cst_77 {dimension_numbers = #tpu.dot_dimension_numbers<[1], [0], [0], [1], [0, 0, 1, 1], [], []>} : vector<32x64xbf16>, vector<64x32xbf16>, vector<32x32xf32> -> vector<32x32xf32>
    %c0_78 = arith.constant 0 : index
    %c0_79 = arith.constant 0 : index
    %227 = vector.load %arg14[%c0_78, %c0_79] : memref<1x32xf32, #tpu.memory_space<vmem>>, vector<1x32xf32>
    %228 = vector.broadcast %227 : vector<1x32xf32> to vector<32x32xf32>
    %229 = arith.addf %226, %228 : vector<32x32xf32>
    %230 = arith.addf %215, %229 : vector<32x32xf32>
    %c0_80 = arith.constant 0 : index
    %c0_81 = arith.constant 0 : index
    %231 = vector.load %arg17[%c0_80, %c0_81] : memref<1x32xf32, #tpu.memory_space<vmem>>, vector<1x32xf32>
    %c0_82 = arith.constant 0 : index
    %c0_83 = arith.constant 0 : index
    %232 = vector.load %arg18[%c0_82, %c0_83] : memref<1x32xf32, #tpu.memory_space<vmem>>, vector<1x32xf32>
    %cst_84 = arith.constant dense<0.000000e+00> : vector<32xf32>
    %233 = vector.multi_reduction <add>, %230, %cst_84 [1] : vector<32x32xf32> to vector<32xf32>
    %234 = vector.shape_cast %233 : vector<32xf32> to vector<32x1xf32>
    %cst_85 = arith.constant 3.200000e+01 : f32
    %235 = vector.broadcast %cst_85 : f32 to vector<32x1xf32>
    %236 = arith.divf %234, %235 : vector<32x1xf32>
    %237 = vector.broadcast %236 : vector<32x1xf32> to vector<32x32xf32>
    %238 = arith.subf %230, %237 : vector<32x32xf32>
    %239 = arith.mulf %238, %238 : vector<32x32xf32>
    %cst_86 = arith.constant dense<0.000000e+00> : vector<32xf32>
    %240 = vector.multi_reduction <add>, %239, %cst_86 [1] : vector<32x32xf32> to vector<32xf32>
    %241 = vector.shape_cast %240 : vector<32xf32> to vector<32x1xf32>
    %cst_87 = arith.constant 3.200000e+01 : f32
    %242 = vector.broadcast %cst_87 : f32 to vector<32x1xf32>
    %243 = arith.divf %241, %242 : vector<32x1xf32>
    %244 = vector.broadcast %236 : vector<32x1xf32> to vector<32x32xf32>
    %245 = arith.subf %230, %244 : vector<32x32xf32>
    %cst_88 = arith.constant 9.99999974E-6 : f32
    %246 = vector.broadcast %cst_88 : f32 to vector<32x1xf32>
    %247 = arith.addf %243, %246 : vector<32x1xf32>
    %248 = math.rsqrt %247 : vector<32x1xf32>
    %249 = vector.broadcast %248 : vector<32x1xf32> to vector<32x32xf32>
    %250 = arith.mulf %245, %249 : vector<32x32xf32>
    %251 = vector.broadcast %231 : vector<1x32xf32> to vector<32x32xf32>
    %252 = arith.mulf %250, %251 : vector<32x32xf32>
    %253 = vector.broadcast %232 : vector<1x32xf32> to vector<32x32xf32>
    %254 = arith.addf %252, %253 : vector<32x32xf32>
    %255 = vector.shape_cast %254 : vector<32x32xf32> to vector<4x8x32xf32>
    %c0_89 = arith.constant 0 : index
    %c0_90 = arith.constant 0 : index
    %c0_91 = arith.constant 0 : index
    %256 = vector.load %arg19[%c0_89, %c0_90, %c0_91] : memref<4x8x32xf32, #tpu.memory_space<vmem>>, vector<4x8x32xf32>
    tpu.vector_store %arg19[%c0_89, %c0_90, %c0_91], %255 {strides = array<i32>} : memref<4x8x32xf32, #tpu.memory_space<vmem>>, vector<4x8x32xf32>,
    return
  }
  func.func @transform_0(%arg0: i32) -> (i32, i32, i32) {
    %c0_i32 = arith.constant 0 : i32
    %c0_i32_0 = arith.constant 0 : i32
    %c0_i32_1 = arith.constant 0 : i32
    return %arg0, %c0_i32, %c0_i32_0 : i32, i32, i32
  }
  func.func @transform_1(%arg0: i32) -> (i32, i32, i32) {
    %c0_i32 = arith.constant 0 : i32
    %c0_i32_0 = arith.constant 0 : i32
    %c0_i32_1 = arith.constant 0 : i32
    return %arg0, %c0_i32, %c0_i32_0 : i32, i32, i32
  }
  func.func @transform_2(%arg0: i32) -> (i32, i32) {
    %c0_i32 = arith.constant 0 : i32
    %c0_i32_0 = arith.constant 0 : i32
    %c0_i32_1 = arith.constant 0 : i32
    return %c0_i32, %c0_i32_0 : i32, i32
  }
  func.func @transform_3(%arg0: i32) -> (i32, i32) {
    %c0_i32 = arith.constant 0 : i32
    %c0_i32_0 = arith.constant 0 : i32
    %c0_i32_1 = arith.constant 0 : i32
    return %c0_i32, %c0_i32_0 : i32, i32
  }
  func.func @transform_4(%arg0: i32) -> (i32, i32) {
    %c0_i32 = arith.constant 0 : i32
    %c0_i32_0 = arith.constant 0 : i32
    %c0_i32_1 = arith.constant 0 : i32
    return %c0_i32, %c0_i32_0 : i32, i32
  }
  func.func @transform_5(%arg0: i32) -> (i32, i32) {
    %c0_i32 = arith.constant 0 : i32
    %c0_i32_0 = arith.constant 0 : i32
    %c0_i32_1 = arith.constant 0 : i32
    return %c0_i32, %c0_i32_0 : i32, i32
  }
  func.func @transform_6(%arg0: i32) -> (i32, i32) {
    %c0_i32 = arith.constant 0 : i32
    %c0_i32_0 = arith.constant 0 : i32
    %c0_i32_1 = arith.constant 0 : i32
    return %c0_i32, %c0_i32_0 : i32, i32
  }
  func.func @transform_7(%arg0: i32) -> (i32, i32) {
    %c0_i32 = arith.constant 0 : i32
    %c0_i32_0 = arith.constant 0 : i32
    %c0_i32_1 = arith.constant 0 : i32
    return %c0_i32, %c0_i32_0 : i32, i32
  }
  func.func @transform_8(%arg0: i32) -> (i32, i32) {
    %c0_i32 = arith.constant 0 : i32
    %c0_i32_0 = arith.constant 0 : i32
    %c0_i32_1 = arith.constant 0 : i32
    return %c0_i32, %c0_i32_0 : i32, i32
  }
  func.func @transform_9(%arg0: i32) -> (i32, i32) {
    %c0_i32 = arith.constant 0 : i32
    %c0_i32_0 = arith.constant 0 : i32
    %c0_i32_1 = arith.constant 0 : i32
    return %c0_i32, %c0_i32_0 : i32, i32
  }
  func.func @transform_10(%arg0: i32) -> (i32, i32) {
    %c0_i32 = arith.constant 0 : i32
    %c0_i32_0 = arith.constant 0 : i32
    %c0_i32_1 = arith.constant 0 : i32
    return %c0_i32, %c0_i32_0 : i32, i32
  }
  func.func @transform_11(%arg0: i32) -> (i32, i32) {
    %c0_i32 = arith.constant 0 : i32
    %c0_i32_0 = arith.constant 0 : i32
    %c0_i32_1 = arith.constant 0 : i32
    return %c0_i32, %c0_i32_0 : i32, i32
  }
  func.func @transform_12(%arg0: i32) -> (i32, i32) {
    %c0_i32 = arith.constant 0 : i32
    %c0_i32_0 = arith.constant 0 : i32
    %c0_i32_1 = arith.constant 0 : i32
    return %c0_i32, %c0_i32_0 : i32, i32
  }
  func.func @transform_13(%arg0: i32) -> (i32, i32) {
    %c0_i32 = arith.constant 0 : i32
    %c0_i32_0 = arith.constant 0 : i32
    %c0_i32_1 = arith.constant 0 : i32
    return %c0_i32, %c0_i32_0 : i32, i32
  }
  func.func @transform_14(%arg0: i32) -> (i32, i32) {
    %c0_i32 = arith.constant 0 : i32
    %c0_i32_0 = arith.constant 0 : i32
    %c0_i32_1 = arith.constant 0 : i32
    return %c0_i32, %c0_i32_0 : i32, i32
  }
  func.func @transform_15(%arg0: i32) -> (i32, i32) {
    %c0_i32 = arith.constant 0 : i32
    %c0_i32_0 = arith.constant 0 : i32
    %c0_i32_1 = arith.constant 0 : i32
    return %c0_i32, %c0_i32_0 : i32, i32
  }
  func.func @transform_16(%arg0: i32) -> (i32, i32) {
    %c0_i32 = arith.constant 0 : i32
    %c0_i32_0 = arith.constant 0 : i32
    %c0_i32_1 = arith.constant 0 : i32
    return %c0_i32, %c0_i32_0 : i32, i32
  }
  func.func @transform_17(%arg0: i32) -> (i32, i32) {
    %c0_i32 = arith.constant 0 : i32
    %c0_i32_0 = arith.constant 0 : i32
    %c0_i32_1 = arith.constant 0 : i32
    return %c0_i32, %c0_i32_0 : i32, i32
  }
  func.func @transform_18(%arg0: i32) -> (i32, i32, i32) {
    %c0_i32 = arith.constant 0 : i32
    %c0_i32_0 = arith.constant 0 : i32
    %c0_i32_1 = arith.constant 0 : i32
    return %arg0, %c0_i32, %c0_i32_0 : i32, i32, i32
  }
}

</mosaic_0001>

<llo_original>
// kernel: tpu_custom_call.1
$region0: #{tpu_custom_call.1}
  #allocation0 [shape = 'u32[]', space=smem, size = 0x4, offset = 0x4, fixed_abs, tag = 'smem constant byte address 0x4 - core index']
  #allocation1 [shape = 'u32[144,128]{1,0:T(1,128)}', space=vmem, size = 0x12000, scoped, tag = 'internal scratch']
  %s0 = inlined_call_operand.vmem [shape: f32[4,8,32], index: 0, kind: input, shape index: {}]
  %s1 = inlined_call_operand.hbm [shape: f32[4,1,8], index: 1, kind: input, shape index: {}]
  %s2 = inlined_call_operand.vmem [shape: bf16[32,32], index: 2, kind: input, shape index: {}]
  %s3 = inlined_call_operand.vmem [shape: f32[1,32], index: 3, kind: input, shape index: {}]
  %s4 = inlined_call_operand.hbm [shape: bf16[32,32], index: 4, kind: input, shape index: {}]
  %s5 = inlined_call_operand.vmem [shape: f32[1,32], index: 5, kind: input, shape index: {}]
  %s6 = inlined_call_operand.hbm [shape: bf16[32,32], index: 6, kind: input, shape index: {}]
  %s7 = inlined_call_operand.hbm [shape: f32[1,32], index: 7, kind: input, shape index: {}]
  %s8 = inlined_call_operand.hbm [shape: bf16[32,32], index: 8, kind: input, shape index: {}]
  %s9 = inlined_call_operand.hbm [shape: f32[1,32], index: 9, kind: input, shape index: {}]
  %s10 = inlined_call_operand.vmem [shape: bf16[32,64], index: 10, kind: input, shape index: {}]
  %s11 = inlined_call_operand.vmem [shape: f32[1,64], index: 11, kind: input, shape index: {}]
  %s12 = inlined_call_operand.vmem [shape: bf16[64,32], index: 12, kind: input, shape index: {}]
  %s13 = inlined_call_operand.vmem [shape: f32[1,32], index: 13, kind: input, shape index: {}]
  %s14 = inlined_call_operand.vmem [shape: f32[1,32], index: 14, kind: input, shape index: {}]
  %s15 = inlined_call_operand.vmem [shape: f32[1,32], index: 15, kind: input, shape index: {}]
  %s16 = inlined_call_operand.vmem [shape: f32[1,32], index: 16, kind: input, shape index: {}]
  %s17 = inlined_call_operand.vmem [shape: f32[1,32], index: 17, kind: input, shape index: {}]
  %s18 = inlined_call_operand.hbm [shape: f32[4,8,32], index: 18, kind: output, shape index: {}]
  %s19 = sld [smem:[#allocation0]]
  $region106: #{tpu_custom_call.1} parent=0
    _
  %s21 = ssub.s32 1, %s19
  %s22 = scalar_select 0, %s21, %s19
  $region1: #{tpu_custom_call.1} parent=0
    #allocation2 [shape = 'u8[2048]{0}', space=vmem, size = 0x800, scoped, tag = 'input window, operand 1, single buffered']
    #allocation3 [shape = 's32[1]{0}', space=sflag, size = 0x4, scoped, tag = 'scoped memory for tpu_custom_call.1']
    #allocation4 [shape = 's32[1]{0}', space=sflag, size = 0x4, scoped, tag = 'scoped memory for tpu_custom_call.1']
    #allocation5 [shape = 'u8[8192]{0}', space=vmem, size = 0x2000, scoped, tag = 'input window, operand 4, single buffered']
    #allocation6 [shape = 's32[1]{0}', space=sflag, size = 0x4, scoped, tag = 'scoped memory for tpu_custom_call.1']
    #allocation7 [shape = 'u8[8192]{0}', space=vmem, size = 0x2000, scoped, tag = 'input window, operand 6, single buffered']
    #allocation8 [shape = 'u8[512]{0}', space=vmem, size = 0x400, scoped, tag = 'input window, operand 7, single buffered']
    #allocation9 [shape = 's32[1]{0}', space=sflag, size = 0x4, scoped, tag = 'scoped memory for tpu_custom_call.1']
    #allocation10 [shape = 'u8[8192]{0}', space=vmem, size = 0x2000, scoped, tag = 'input window, operand 8, single buffered']
    #allocation11 [shape = 'u8[512]{0}', space=vmem, size = 0x400, scoped, tag = 'input window, operand 9, single buffered']
    #allocation12 [shape = 's32[1]{0}', space=sflag, size = 0x4, scoped, tag = 'scoped memory for tpu_custom_call.1']
    #allocation13 [shape = 'u8[16384]{0}', space=vmem, size = 0x4000, scoped, tag = 'output window, operand 0, single buffered']
    %23 = vsyncpa [#allocation3], 0
    %24 = vsyncpa [#allocation6], 0
    %25 = vsyncpa [#allocation9], 0
    %26 = vsyncpa [#allocation12], 0
    %27 = vsyncpa [#allocation4], 0
    // Predicated region
    $region2: #{tpu_custom_call.1} parent=1 // pred_check
      _
    $region3: #{tpu_custom_call.1} parent=1 // pred_check_branch
      %29 = sbr.rel (0) target = $region5
    $region4: #{tpu_custom_call.1} parent=1 // pred_region
      _
    $region5: #{tpu_custom_call.1} parent=1 // pred_fallthru
      _
    // Predicated region
    $region6: #{tpu_custom_call.1} parent=1 // pred_check
      _
    $region7: #{tpu_custom_call.1} parent=1 // pred_check_branch
      %31 = sbr.rel (0) target = $region9
    $region8: #{tpu_custom_call.1} parent=1 // pred_region
      %s33 = ssub.s32 64, 64
      %34 = vsyncadd [#allocation3], %s33
      %s35 = sshll.u32 [#allocation2], 4
      %s36 = int_to_ptr.vmem [resolvable:$true] %s35
      %41 = dma.hbm_to_vmem [thread:$0]  %s1, 64, %s36, [#allocation3], 16, 16, 1
    $region9: #{tpu_custom_call.1} parent=1 // pred_fallthru
      _
    // Predicated region
    $region10: #{tpu_custom_call.1} parent=1 // pred_check
      _
    $region11: #{tpu_custom_call.1} parent=1 // pred_check_branch
      %43 = sbr.rel (0) target = $region13
    $region12: #{tpu_custom_call.1} parent=1 // pred_region
      _
    $region13: #{tpu_custom_call.1} parent=1 // pred_fallthru
      _
    // Predicated region
    $region14: #{tpu_custom_call.1} parent=1 // pred_check
      _
    $region15: #{tpu_custom_call.1} parent=1 // pred_check_branch
      %45 = sbr.rel (0) target = $region17
    $region16: #{tpu_custom_call.1} parent=1 // pred_region
      _
    $region17: #{tpu_custom_call.1} parent=1 // pred_fallthru
      _
    // Predicated region
    $region18: #{tpu_custom_call.1} parent=1 // pred_check
      _
    $region19: #{tpu_custom_call.1} parent=1 // pred_check_branch
      %47 = sbr.rel (0) target = $region21
    $region20: #{tpu_custom_call.1} parent=1 // pred_region
      %s49 = ssub.s32 256, 256
      %50 = vsyncadd [#allocation6], %s49
      %s51 = sshll.u32 [#allocation5], 4
      %s52 = int_to_ptr.vmem [resolvable:$true] %s51
      %57 = dma.hbm_to_vmem [thread:$0]  %s4, 256, %s52, [#allocation6], 64, 64, 4
    $region21: #{tpu_custom_call.1} parent=1 // pred_fallthru
      _
    // Predicated region
    $region22: #{tpu_custom_call.1} parent=1 // pred_check
      _
    $region23: #{tpu_custom_call.1} parent=1 // pred_check_branch
      %59 = sbr.rel (0) target = $region25
    $region24: #{tpu_custom_call.1} parent=1 // pred_region
      _
    $region25: #{tpu_custom_call.1} parent=1 // pred_fallthru
      _
    // Predicated region
    $region26: #{tpu_custom_call.1} parent=1 // pred_check
      _
    $region27: #{tpu_custom_call.1} parent=1 // pred_check_branch
      %61 = sbr.rel (0) target = $region29
    $region28: #{tpu_custom_call.1} parent=1 // pred_region
      %s63 = ssub.s32 256, 256
      %64 = vsyncadd [#allocation6], %s63
      %s65 = sshll.u32 [#allocation7], 4
      %s66 = int_to_ptr.vmem [resolvable:$true] %s65
      %71 = dma.hbm_to_vmem [thread:$0]  %s6, 256, %s66, [#allocation6], 64, 64, 4
    $region29: #{tpu_custom_call.1} parent=1 // pred_fallthru
      _
    // Predicated region
    $region30: #{tpu_custom_call.1} parent=1 // pred_check
      _
    $region31: #{tpu_custom_call.1} parent=1 // pred_check_branch
      %73 = sbr.rel (0) target = $region33
    $region32: #{tpu_custom_call.1} parent=1 // pred_region
      %s75 = ssub.s32 16, 16
      %76 = vsyncadd [#allocation9], %s75
      %s78 = sshll.u32 [#allocation8], 4
      %s79 = int_to_ptr.vmem [resolvable:$true] %s78
      %81 = dma.hbm_to_vmem [thread:$0]  %s7, 16, %s79, [#allocation9]
    $region33: #{tpu_custom_call.1} parent=1 // pred_fallthru
      _
    // Predicated region
    $region34: #{tpu_custom_call.1} parent=1 // pred_check
      _
    $region35: #{tpu_custom_call.1} parent=1 // pred_check_branch
      %83 = sbr.rel (0) target = $region37
    $region36: #{tpu_custom_call.1} parent=1 // pred_region
      %s85 = ssub.s32 256, 256
      %86 = vsyncadd [#allocation9], %s85
      %s87 = sshll.u32 [#allocation10], 4
      %s88 = int_to_ptr.vmem [resolvable:$true] %s87
      %93 = dma.hbm_to_vmem [thread:$0]  %s8, 256, %s88, [#allocation9], 64, 64, 4
    $region37: #{tpu_custom_call.1} parent=1 // pred_fallthru
      _
    // Predicated region
    $region38: #{tpu_custom_call.1} parent=1 // pred_check
      _
    $region39: #{tpu_custom_call.1} parent=1 // pred_check_branch
      %95 = sbr.rel (0) target = $region41
    $region40: #{tpu_custom_call.1} parent=1 // pred_region
      %s97 = ssub.s32 16, 16
      %98 = vsyncadd [#allocation12], %s97
      %s100 = sshll.u32 [#allocation11], 4
      %s101 = int_to_ptr.vmem [resolvable:$true] %s100
      %103 = dma.hbm_to_vmem [thread:$0]  %s9, 16, %s101, [#allocation12]
    $region41: #{tpu_custom_call.1} parent=1 // pred_fallthru
      _
    // Predicated region
    $region42: #{tpu_custom_call.1} parent=1 // pred_check
      _
    $region43: #{tpu_custom_call.1} parent=1 // pred_check_branch
      %105 = sbr.rel (0) target = $region45
    $region44: #{tpu_custom_call.1} parent=1 // pred_region
      _
    $region45: #{tpu_custom_call.1} parent=1 // pred_fallthru
      _
    // Predicated region
    $region46: #{tpu_custom_call.1} parent=1 // pred_check
      _
    $region47: #{tpu_custom_call.1} parent=1 // pred_check_branch
      %107 = sbr.rel (0) target = $region49
    $region48: #{tpu_custom_call.1} parent=1 // pred_region
      _
    $region49: #{tpu_custom_call.1} parent=1 // pred_fallthru
      _
    // Predicated region
    $region50: #{tpu_custom_call.1} parent=1 // pred_check
      _
    $region51: #{tpu_custom_call.1} parent=1 // pred_check_branch
      %109 = sbr.rel (0) target = $region53
    $region52: #{tpu_custom_call.1} parent=1 // pred_region
      _
    $region53: #{tpu_custom_call.1} parent=1 // pred_fallthru
      _
    // Predicated region
    $region54: #{tpu_custom_call.1} parent=1 // pred_check
      _
    $region55: #{tpu_custom_call.1} parent=1 // pred_check_branch
      %111 = sbr.rel (0) target = $region57
    $region56: #{tpu_custom_call.1} parent=1 // pred_region
      _
    $region57: #{tpu_custom_call.1} parent=1 // pred_fallthru
      _
    // Predicated region
    $region58: #{tpu_custom_call.1} parent=1 // pred_check
      _
    $region59: #{tpu_custom_call.1} parent=1 // pred_check_branch
      %113 = sbr.rel (0) target = $region61
    $region60: #{tpu_custom_call.1} parent=1 // pred_region
      _
    $region61: #{tpu_custom_call.1} parent=1 // pred_fallthru
      _
    // Predicated region
    $region62: #{tpu_custom_call.1} parent=1 // pred_check
      _
    $region63: #{tpu_custom_call.1} parent=1 // pred_check_branch
      %115 = sbr.rel (0) target = $region65
    $region64: #{tpu_custom_call.1} parent=1 // pred_region
      _
    $region65: #{tpu_custom_call.1} parent=1 // pred_fallthru
      _
    // Predicated region
    $region66: #{tpu_custom_call.1} parent=1 // pred_check
      _
    $region67: #{tpu_custom_call.1} parent=1 // pred_check_branch
      %117 = sbr.rel (0) target = $region69
    $region68: #{tpu_custom_call.1} parent=1 // pred_region
      _
    $region69: #{tpu_custom_call.1} parent=1 // pred_fallthru
      _
    // Predicated region
    $region70: #{tpu_custom_call.1} parent=1 // pred_check
      _
    $region71: #{tpu_custom_call.1} parent=1 // pred_check_branch
      %119 = sbr.rel (0) target = $region73
    $region72: #{tpu_custom_call.1} parent=1 // pred_region
      _
    $region73: #{tpu_custom_call.1} parent=1 // pred_fallthru
      _
    // Predicated region
    $region74: #{tpu_custom_call.1} parent=1 // pred_check
      _
    $region75: #{tpu_custom_call.1} parent=1 // pred_check_branch
      %121 = sbr.rel (0) target = $region77
    $region76: #{tpu_custom_call.1} parent=1 // pred_region
      %122 = dma.done [#allocation3], 64
    $region77: #{tpu_custom_call.1} parent=1 // pred_fallthru
      _
    // Predicated region
    $region78: #{tpu_custom_call.1} parent=1 // pred_check
      _
    $region79: #{tpu_custom_call.1} parent=1 // pred_check_branch
      %124 = sbr.rel (0) target = $region81
    $region80: #{tpu_custom_call.1} parent=1 // pred_region
      %125 = dma.done [#allocation6], 256
    $region81: #{tpu_custom_call.1} parent=1 // pred_fallthru
      _
    // Predicated region
    $region82: #{tpu_custom_call.1} parent=1 // pred_check
      _
    $region83: #{tpu_custom_call.1} parent=1 // pred_check_branch
      %127 = sbr.rel (0) target = $region85
    $region84: #{tpu_custom_call.1} parent=1 // pred_region
      %128 = dma.done [#allocation6], 256
    $region85: #{tpu_custom_call.1} parent=1 // pred_fallthru
      _
    // Predicated region
    $region86: #{tpu_custom_call.1} parent=1 // pred_check
      _
    $region87: #{tpu_custom_call.1} parent=1 // pred_check_branch
      %130 = sbr.rel (0) target = $region89
    $region88: #{tpu_custom_call.1} parent=1 // pred_region
      %131 = dma.done [#allocation9], 16
    $region89: #{tpu_custom_call.1} parent=1 // pred_fallthru
      _
    // Predicated region
    $region90: #{tpu_custom_call.1} parent=1 // pred_check
      _
    $region91: #{tpu_custom_call.1} parent=1 // pred_check_branch
      %133 = sbr.rel (0) target = $region93
    $region92: #{tpu_custom_call.1} parent=1 // pred_region
      %134 = dma.done [#allocation9], 256
    $region93: #{tpu_custom_call.1} parent=1 // pred_fallthru
      _
    // Predicated region
    $region94: #{tpu_custom_call.1} parent=1 // pred_check
      _
    $region95: #{tpu_custom_call.1} parent=1 // pred_check_branch
      %136 = sbr.rel (0) target = $region97
    $region96: #{tpu_custom_call.1} parent=1 // pred_region
      %137 = dma.done [#allocation12], 16
    $region97: #{tpu_custom_call.1} parent=1 // pred_fallthru
      _
    %v139 = vld [vmem:[%s0] sm:$0xff]
    %v140 = vld [vmem:[%s0 + $0x8] sm:$0xff]
    %v141 = vld [vmem:[%s0 + $0x10] sm:$0xff]
    %v142 = vld [vmem:[%s0 + $0x18] sm:$0xff]
    %v143 = vpack.c.bf16 %v140, %v139
    %v144 = vpack.c.bf16 %v142, %v141
    %v145 = vld [vmem:[%s2] sm:$0xf]
    %v146 = vld [vmem:[%s2 + $0x4] sm:$0xf]
    %v147 = vld [vmem:[%s2 + $0x8] sm:$0xf]
    %v148 = vld [vmem:[%s2 + $0xc] sm:$0xf]
    %v149 = vld [vmem:[%s3] sm:$0x1]
    %v151 = vlaneseq
    %v152 = vshrl.u32 %v151, 7
    %v153 = vsub.s32 0, %v152
    %v154 = vrot.slane %v149, %v153
    %v160 = vunpack.c.l.b16 %v145
    %v161 = vunpack.c.l.b16 %v146
    %v162 = vunpack.c.l.b16 %v147
    %v163 = vunpack.c.l.b16 %v148
    %v164 = vpack.c.b16 %v161, %v160
    %v165 = vpack.c.b16 %v163, %v162
    %vm168 = vcmask 261120
    %v170 = vsel %vm168, %v143, 0
    %v173 = vsel %vm168, %v144, 0
    %175 = vmatprep.subr.bf16.mxu0 0
    %176 = vmatpush1.bf16.msra.mxu0 %v164
    %177 = vmatprep.subr.bf16.mxu0 0
    %178 = vmatpush1.bf16.msra.mxu0 %v165
    %179 = vmatprep.subr.bf16.mxu0 0
    %180 = vmatpush1.bf16.msra.mxu0 0
    %181 = vmatprep.subr.bf16.mxu0 0
    %182 = vmatpush1.bf16.msra.mxu0 0
    %183 = vmatprep.subr.bf16.mxu0 0
    %184 = vmatpush1.bf16.msra.mxu0 0
    %185 = vmatprep.subr.bf16.mxu0 0
    %186 = vmatpush1.bf16.msra.mxu0 0
    %187 = vmatprep.subr.bf16.mxu0 0
    %188 = vmatpush1.bf16.msra.mxu0 0
    %189 = vmatprep.subr.bf16.mxu0 0
    %190 = vmatpush1.bf16.msra.mxu0 0
    %191 = vmatprep.subr.bf16.mxu0 0
    %192 = vmatpush1.bf16.msra.mxu0 0
    %193 = vmatprep.subr.bf16.mxu0 0
    %194 = vmatpush1.bf16.msra.mxu0 0
    %195 = vmatprep.subr.bf16.mxu0 0
    %196 = vmatpush1.bf16.msra.mxu0 0
    %197 = vmatprep.subr.bf16.mxu0 0
    %198 = vmatpush1.bf16.msra.mxu0 0
    %199 = vmatprep.subr.bf16.mxu0 0
    %200 = vmatpush1.bf16.msra.mxu0 0
    %201 = vmatprep.subr.bf16.mxu0 0
    %202 = vmatpush1.bf16.msra.mxu0 0
    %203 = vmatprep.subr.bf16.mxu0 0
    %204 = vmatpush1.bf16.msra.mxu0 0
    %205 = vmatprep.subr.bf16.mxu0 0
    %206 = vmatpush1.bf16.msra.mxu0 0
    %207 = vmatprep.mubr.bf16.mxu0 0
    %208 = vmatmul.mubr.bf16.gmra.mrb[0].mxu0 %v170
    %v209 = vpop.f32.mrb[0].mxu0
    %v210 = vadd.f32 %v154, %v209
    %v211 = vpop.f32.mrb[0].mxu0
    %v212 = vpop.f32.mrb[0].mxu0
    %v213 = vadd.f32 %v154, %v212
    %v214 = vpop.f32.mrb[0].mxu0
    %215 = vmatprep.mubr.bf16.mxu0 0
    %216 = vmatmul.mubr.bf16.gmra.mrb[0].mxu0 %v173
    %v217 = vpop.f32.mrb[0].mxu0
    %v218 = vadd.f32 %v154, %v217
    %v219 = vpop.f32.mrb[0].mxu0
    %v220 = vpop.f32.mrb[0].mxu0
    %v221 = vadd.f32 %v154, %v220
    %v222 = vpop.f32.mrb[0].mxu0
    %223 = vdwg.mxu0
    %v224 = vmul.f32 %v210, 0.5
    %v225 = vmul.f32 %v213, 0.5
    %v226 = vmul.f32 %v218, 0.5
    %v227 = vmul.f32 %v221, 0.5
    %v228 = vpack.c.bf16 %v225, %v224
    %v229 = vpack.c.bf16 %v227, %v226
    %v232 = vunpack.c.l.b16 %v228
    %v233 = vunpack.c.h.b16 %v228
    %v234 = vunpack.c.l.b16 %v229
    %v235 = vunpack.c.h.b16 %v229
    %v236 = vpack.c.b16 %v232, %v232
    %v237 = vpack.c.b16 %v233, %v233
    %v238 = vpack.c.b16 %v234, %v234
    %v239 = vpack.c.b16 %v235, %v235
    %v240 = vld [vmem:[#allocation5] sm:$0xf]
    %v241 = vld [vmem:[#allocation5 + $0x4] sm:$0xf]
    %v242 = vld [vmem:[#allocation5 + $0x8] sm:$0xf]
    %v243 = vld [vmem:[#allocation5 + $0xc] sm:$0xf]
    %v244 = vld [vmem:[%s5] sm:$0x1]
    %v246 = vlaneseq
    %v247 = vshrl.u32 %v246, 7
    %v248 = vsub.s32 0, %v247
    %v249 = vrot.slane %v244, %v248
    %v255 = vunpack.c.l.b16 %v240
    %v256 = vunpack.c.l.b16 %v241
    %v257 = vunpack.c.l.b16 %v242
    %v258 = vunpack.c.l.b16 %v243
    %v259 = vpack.c.b16 %v256, %v255
    %v260 = vpack.c.b16 %v258, %v257
    %263 = vmatprep.subr.bf16.mxu0 0
    %264 = vmatpush1.bf16.msra.mxu0 %v259
    %265 = vmatprep.subr.bf16.mxu0 0
    %266 = vmatpush1.bf16.msra.mxu0 %v260
    %267 = vmatprep.subr.bf16.mxu0 0
    %268 = vmatpush1.bf16.msra.mxu0 0
    %269 = vmatprep.subr.bf16.mxu0 0
    %270 = vmatpush1.bf16.msra.mxu0 0
    %271 = vmatprep.subr.bf16.mxu0 0
    %272 = vmatpush1.bf16.msra.mxu0 0
    %273 = vmatprep.subr.bf16.mxu0 0
    %274 = vmatpush1.bf16.msra.mxu0 0
    %275 = vmatprep.subr.bf16.mxu0 0
    %276 = vmatpush1.bf16.msra.mxu0 0
    %277 = vmatprep.subr.bf16.mxu0 0
    %278 = vmatpush1.bf16.msra.mxu0 0
    %279 = vmatprep.subr.bf16.mxu0 0
    %280 = vmatpush1.bf16.msra.mxu0 0
    %281 = vmatprep.subr.bf16.mxu0 0
    %282 = vmatpush1.bf16.msra.mxu0 0
    %283 = vmatprep.subr.bf16.mxu0 0
    %284 = vmatpush1.bf16.msra.mxu0 0
    %285 = vmatprep.subr.bf16.mxu0 0
    %286 = vmatpush1.bf16.msra.mxu0 0
    %287 = vmatprep.subr.bf16.mxu0 0
    %288 = vmatpush1.bf16.msra.mxu0 0
    %289 = vmatprep.subr.bf16.mxu0 0
    %290 = vmatpush1.bf16.msra.mxu0 0
    %291 = vmatprep.subr.bf16.mxu0 0
    %292 = vmatpush1.bf16.msra.mxu0 0
    %293 = vmatprep.subr.bf16.mxu0 0
    %294 = vmatpush1.bf16.msra.mxu0 0
    %295 = vmatprep.mubr.bf16.mxu0 0
    %296 = vmatmul.mubr.bf16.gmra.mrb[0].mxu0 %v170
    %v297 = vpop.f32.mrb[0].mxu0
    %v298 = vadd.f32 %v249, %v297
    %v299 = vpop.f32.mrb[0].mxu0
    %v300 = vpop.f32.mrb[0].mxu0
    %v301 = vadd.f32 %v249, %v300
    %v302 = vpop.f32.mrb[0].mxu0
    %303 = vmatprep.mubr.bf16.mxu0 0
    %304 = vmatmul.mubr.bf16.gmra.mrb[0].mxu0 %v173
    %v305 = vpop.f32.mrb[0].mxu0
    %v306 = vadd.f32 %v249, %v305
    %v307 = vpop.f32.mrb[0].mxu0
    %v308 = vpop.f32.mrb[0].mxu0
    %v309 = vadd.f32 %v249, %v308
    %v310 = vpop.f32.mrb[0].mxu0
    %311 = vdwg.mxu0
    %v312 = vpack.c.bf16 %v301, %v298
    %v313 = vpack.c.bf16 %v309, %v306
    %v316 = vunpack.c.l.b16 %v312
    %v317 = vunpack.c.h.b16 %v312
    %v318 = vunpack.c.l.b16 %v313
    %v319 = vunpack.c.h.b16 %v313
    %v320 = vpack.c.b16 %v316, %v316
    %v321 = vpack.c.b16 %v317, %v317
    %v322 = vpack.c.b16 %v318, %v318
    %v323 = vpack.c.b16 %v319, %v319
    %v324 = vld [vmem:[#allocation7] sm:$0xf]
    %v325 = vld [vmem:[#allocation7 + $0x4] sm:$0xf]
    %v326 = vld [vmem:[#allocation7 + $0x8] sm:$0xf]
    %v327 = vld [vmem:[#allocation7 + $0xc] sm:$0xf]
    %v328 = vld [vmem:[#allocation8] sm:$0x1]
    %v330 = vlaneseq
    %v331 = vshrl.u32 %v330, 7
    %v332 = vsub.s32 0, %v331
    %v333 = vrot.slane %v328, %v332
    %v339 = vunpack.c.l.b16 %v324
    %v340 = vunpack.c.l.b16 %v325
    %v341 = vunpack.c.l.b16 %v326
    %v342 = vunpack.c.l.b16 %v327
    %v343 = vpack.c.b16 %v340, %v339
    %v344 = vpack.c.b16 %v342, %v341
    %347 = vmatprep.subr.bf16.mxu0 0
    %348 = vmatpush1.bf16.msra.mxu0 %v343
    %349 = vmatprep.subr.bf16.mxu0 0
    %350 = vmatpush1.bf16.msra.mxu0 %v344
    %351 = vmatprep.subr.bf16.mxu0 0
    %352 = vmatpush1.bf16.msra.mxu0 0
    %353 = vmatprep.subr.bf16.mxu0 0
    %354 = vmatpush1.bf16.msra.mxu0 0
    %355 = vmatprep.subr.bf16.mxu0 0
    %356 = vmatpush1.bf16.msra.mxu0 0
    %357 = vmatprep.subr.bf16.mxu0 0
    %358 = vmatpush1.bf16.msra.mxu0 0
    %359 = vmatprep.subr.bf16.mxu0 0
    %360 = vmatpush1.bf16.msra.mxu0 0
    %361 = vmatprep.subr.bf16.mxu0 0
    %362 = vmatpush1.bf16.msra.mxu0 0
    %363 = vmatprep.subr.bf16.mxu0 0
    %364 = vmatpush1.bf16.msra.mxu0 0
    %365 = vmatprep.subr.bf16.mxu0 0
    %366 = vmatpush1.bf16.msra.mxu0 0
    %367 = vmatprep.subr.bf16.mxu0 0
    %368 = vmatpush1.bf16.msra.mxu0 0
    %369 = vmatprep.subr.bf16.mxu0 0
    %370 = vmatpush1.bf16.msra.mxu0 0
    %371 = vmatprep.subr.bf16.mxu0 0
    %372 = vmatpush1.bf16.msra.mxu0 0
    %373 = vmatprep.subr.bf16.mxu0 0
    %374 = vmatpush1.bf16.msra.mxu0 0
    %375 = vmatprep.subr.bf16.mxu0 0
    %376 = vmatpush1.bf16.msra.mxu0 0
    %377 = vmatprep.subr.bf16.mxu0 0
    %378 = vmatpush1.bf16.msra.mxu0 0
    %379 = vmatprep.mubr.bf16.mxu0 0
    %380 = vmatmul.mubr.bf16.gmra.mrb[0].mxu0 %v170
    %v381 = vpop.f32.mrb[0].mxu0
    %v382 = vadd.f32 %v333, %v381
    %v383 = vpop.f32.mrb[0].mxu0
    %v384 = vpop.f32.mrb[0].mxu0
    %v385 = vadd.f32 %v333, %v384
    %v386 = vpop.f32.mrb[0].mxu0
    %387 = vmatprep.mubr.bf16.mxu0 0
    %388 = vmatmul.mubr.bf16.gmra.mrb[0].mxu0 %v173
    %v389 = vpop.f32.mrb[0].mxu0
    %v390 = vadd.f32 %v333, %v389
    %v391 = vpop.f32.mrb[0].mxu0
    %v392 = vpop.f32.mrb[0].mxu0
    %v393 = vadd.f32 %v333, %v392
    %v394 = vpop.f32.mrb[0].mxu0
    %395 = vdwg.mxu0
    %v396 = vpack.c.bf16 %v385, %v382
    %v397 = vpack.c.bf16 %v393, %v390
    %v400 = vunpack.c.l.b16 %v396
    %v401 = vunpack.c.h.b16 %v396
    %v402 = vunpack.c.l.b16 %v397
    %v403 = vunpack.c.h.b16 %v397
    %v404 = vpack.c.b16 %v400, %v400
    %v405 = vpack.c.b16 %v401, %v401
    %v406 = vpack.c.b16 %v402, %v402
    %v407 = vpack.c.b16 %v403, %v403
    %v408 = vld [vmem:[#allocation2] sm:$0x1]
    %v409 = vld [vmem:[#allocation2 + $0x1] sm:$0x1]
    %v410 = vld [vmem:[#allocation2 + $0x2] sm:$0x1]
    %v411 = vld [vmem:[#allocation2 + $0x3] sm:$0x1]
    %vm412 = vcmp.gt.f32.partialorder %v408, 0.0
    %vm413 = vcmp.gt.f32.partialorder %v409, 0.0
    %vm414 = vcmp.gt.f32.partialorder %v410, 0.0
    %vm415 = vcmp.gt.f32.partialorder %v411, 0.0
    %v416 = vsel %vm412, -65504.0, 0.0
    %v417 = vsel %vm413, -65504.0, 0.0
    %v418 = vsel %vm414, -65504.0, 0.0
    %v419 = vsel %vm415, -65504.0, 0.0
    %v424 = vlaneseq
    %v425 = vshrl.u32 %v424, 7
    %v426 = vsub.s32 0, %v425
    %v427 = vrot.slane %v416, %v426
    %v428 = vlaneseq
    %v429 = vshrl.u32 %v428, 7
    %v430 = vsub.s32 0, %v429
    %v431 = vrot.slane %v417, %v430
    %v432 = vlaneseq
    %v433 = vshrl.u32 %v432, 7
    %v434 = vsub.s32 0, %v433
    %v435 = vrot.slane %v418, %v434
    %v436 = vlaneseq
    %v437 = vshrl.u32 %v436, 7
    %v438 = vsub.s32 0, %v437
    %v439 = vrot.slane %v419, %v438
    %vm444 = vcmask 31744
    %v446 = vsel %vm444, %v236, 0
    %v449 = vsel %vm444, %v320, 0
    %451 = vmatprep.subr.bf16.mxu0 0
    %452 = vmatpush1.bf16.xpose.msra.mxu0 %v449
    %453 = vmatprep.subr.bf16.mxu0 0
    %454 = vmatpush1.bf16.xpose.msra.mxu0 0
    %455 = vmatprep.subr.bf16.mxu0 0
    %456 = vmatpush1.bf16.xpose.msra.mxu0 0
    %457 = vmatprep.subr.bf16.mxu0 0
    %458 = vmatpush1.bf16.xpose.msra.mxu0 0
    %459 = vmatprep.subr.bf16.mxu0 0
    %460 = vmatpush1.bf16.xpose.msra.mxu0 0
    %461 = vmatprep.subr.bf16.mxu0 0
    %462 = vmatpush1.bf16.xpose.msra.mxu0 0
    %463 = vmatprep.subr.bf16.mxu0 0
    %464 = vmatpush1.bf16.xpose.msra.mxu0 0
    %465 = vmatprep.subr.bf16.mxu0 0
    %466 = vmatpush1.bf16.xpose.msra.mxu0 0
    %467 = vmatprep.subr.bf16.mxu0 0
    %468 = vmatpush1.bf16.xpose.msra.mxu0 0
    %469 = vmatprep.subr.bf16.mxu0 0
    %470 = vmatpush1.bf16.xpose.msra.mxu0 0
    %471 = vmatprep.subr.bf16.mxu0 0
    %472 = vmatpush1.bf16.xpose.msra.mxu0 0
    %473 = vmatprep.subr.bf16.mxu0 0
    %474 = vmatpush1.bf16.xpose.msra.mxu0 0
    %475 = vmatprep.subr.bf16.mxu0 0
    %476 = vmatpush1.bf16.xpose.msra.mxu0 0
    %477 = vmatprep.subr.bf16.mxu0 0
    %478 = vmatpush1.bf16.xpose.msra.mxu0 0
    %479 = vmatprep.subr.bf16.mxu0 0
    %480 = vmatpush1.bf16.xpose.msra.mxu0 0
    %481 = vmatprep.subr.bf16.mxu0 0
    %482 = vmatpush1.bf16.xpose.msra.mxu0 0
    %483 = vmatprep.mubr.bf16.mxu0 0
    %484 = vmatmul.mubr.bf16.gmra.mrb[0].mxu0 %v446
    %v485 = vpop.f32.mrb[0].mxu0
    %v486 = vadd.f32 %v427, %v485
    %v487 = vpop.f32.mrb[0].mxu0
    %v488 = vpop.f32.mrb[0].mxu0
    %v489 = vpop.f32.mrb[0].mxu0
    %490 = vdwg.mxu0
    %v492 = vsel %vm444, %v237, 0
    %v495 = vsel %vm444, %v321, 0
    %497 = vmatprep.subr.bf16.mxu0 0
    %498 = vmatpush1.bf16.xpose.msra.mxu0 %v495
    %499 = vmatprep.subr.bf16.mxu0 0
    %500 = vmatpush1.bf16.xpose.msra.mxu0 0
    %501 = vmatprep.subr.bf16.mxu0 0
    %502 = vmatpush1.bf16.xpose.msra.mxu0 0
    %503 = vmatprep.subr.bf16.mxu0 0
    %504 = vmatpush1.bf16.xpose.msra.mxu0 0
    %505 = vmatprep.subr.bf16.mxu0 0
    %506 = vmatpush1.bf16.xpose.msra.mxu0 0
    %507 = vmatprep.subr.bf16.mxu0 0
    %508 = vmatpush1.bf16.xpose.msra.mxu0 0
    %509 = vmatprep.subr.bf16.mxu0 0
    %510 = vmatpush1.bf16.xpose.msra.mxu0 0
    %511 = vmatprep.subr.bf16.mxu0 0
    %512 = vmatpush1.bf16.xpose.msra.mxu0 0
    %513 = vmatprep.subr.bf16.mxu0 0
    %514 = vmatpush1.bf16.xpose.msra.mxu0 0
    %515 = vmatprep.subr.bf16.mxu0 0
    %516 = vmatpush1.bf16.xpose.msra.mxu0 0
    %517 = vmatprep.subr.bf16.mxu0 0
    %518 = vmatpush1.bf16.xpose.msra.mxu0 0
    %519 = vmatprep.subr.bf16.mxu0 0
    %520 = vmatpush1.bf16.xpose.msra.mxu0 0
    %521 = vmatprep.subr.bf16.mxu0 0
    %522 = vmatpush1.bf16.xpose.msra.mxu0 0
    %523 = vmatprep.subr.bf16.mxu0 0
    %524 = vmatpush1.bf16.xpose.msra.mxu0 0
    %525 = vmatprep.subr.bf16.mxu0 0
    %526 = vmatpush1.bf16.xpose.msra.mxu0 0
    %527 = vmatprep.subr.bf16.mxu0 0
    %528 = vmatpush1.bf16.xpose.msra.mxu0 0
    %529 = vmatprep.mubr.bf16.mxu0 0
    %530 = vmatmul.mubr.bf16.gmra.mrb[0].mxu0 %v492
    %v531 = vpop.f32.mrb[0].mxu0
    %v532 = vadd.f32 %v431, %v531
    %v533 = vpop.f32.mrb[0].mxu0
    %v534 = vpop.f32.mrb[0].mxu0
    %v535 = vpop.f32.mrb[0].mxu0
    %536 = vdwg.mxu0
    %v538 = vsel %vm444, %v238, 0
    %v541 = vsel %vm444, %v322, 0
    %543 = vmatprep.subr.bf16.mxu0 0
    %544 = vmatpush1.bf16.xpose.msra.mxu0 %v541
    %545 = vmatprep.subr.bf16.mxu0 0
    %546 = vmatpush1.bf16.xpose.msra.mxu0 0
    %547 = vmatprep.subr.bf16.mxu0 0
    %548 = vmatpush1.bf16.xpose.msra.mxu0 0
    %549 = vmatprep.subr.bf16.mxu0 0
    %550 = vmatpush1.bf16.xpose.msra.mxu0 0
    %551 = vmatprep.subr.bf16.mxu0 0
    %552 = vmatpush1.bf16.xpose.msra.mxu0 0
    %553 = vmatprep.subr.bf16.mxu0 0
    %554 = vmatpush1.bf16.xpose.msra.mxu0 0
    %555 = vmatprep.subr.bf16.mxu0 0
    %556 = vmatpush1.bf16.xpose.msra.mxu0 0
    %557 = vmatprep.subr.bf16.mxu0 0
    %558 = vmatpush1.bf16.xpose.msra.mxu0 0
    %559 = vmatprep.subr.bf16.mxu0 0
    %560 = vmatpush1.bf16.xpose.msra.mxu0 0
    %561 = vmatprep.subr.bf16.mxu0 0
    %562 = vmatpush1.bf16.xpose.msra.mxu0 0
    %563 = vmatprep.subr.bf16.mxu0 0
    %564 = vmatpush1.bf16.xpose.msra.mxu0 0
    %565 = vmatprep.subr.bf16.mxu0 0
    %566 = vmatpush1.bf16.xpose.msra.mxu0 0
    %567 = vmatprep.subr.bf16.mxu0 0
    %568 = vmatpush1.bf16.xpose.msra.mxu0 0
    %569 = vmatprep.subr.bf16.mxu0 0
    %570 = vmatpush1.bf16.xpose.msra.mxu0 0
    %571 = vmatprep.subr.bf16.mxu0 0
    %572 = vmatpush1.bf16.xpose.msra.mxu0 0
    %573 = vmatprep.subr.bf16.mxu0 0
    %574 = vmatpush1.bf16.xpose.msra.mxu0 0
    %575 = vmatprep.mubr.bf16.mxu0 0
    %576 = vmatmul.mubr.bf16.gmra.mrb[0].mxu0 %v538
    %v577 = vpop.f32.mrb[0].mxu0
    %v578 = vadd.f32 %v435, %v577
    %v579 = vpop.f32.mrb[0].mxu0
    %v580 = vpop.f32.mrb[0].mxu0
    %v581 = vpop.f32.mrb[0].mxu0
    %582 = vdwg.mxu0
    %v584 = vsel %vm444, %v239, 0
    %v587 = vsel %vm444, %v323, 0
    %589 = vmatprep.subr.bf16.mxu0 0
    %590 = vmatpush1.bf16.xpose.msra.mxu0 %v587
    %591 = vmatprep.subr.bf16.mxu0 0
    %592 = vmatpush1.bf16.xpose.msra.mxu0 0
    %593 = vmatprep.subr.bf16.mxu0 0
    %594 = vmatpush1.bf16.xpose.msra.mxu0 0
    %595 = vmatprep.subr.bf16.mxu0 0
    %596 = vmatpush1.bf16.xpose.msra.mxu0 0
    %597 = vmatprep.subr.bf16.mxu0 0
    %598 = vmatpush1.bf16.xpose.msra.mxu0 0
    %599 = vmatprep.subr.bf16.mxu0 0
    %600 = vmatpush1.bf16.xpose.msra.mxu0 0
    %601 = vmatprep.subr.bf16.mxu0 0
    %602 = vmatpush1.bf16.xpose.msra.mxu0 0
    %603 = vmatprep.subr.bf16.mxu0 0
    %604 = vmatpush1.bf16.xpose.msra.mxu0 0
    %605 = vmatprep.subr.bf16.mxu0 0
    %606 = vmatpush1.bf16.xpose.msra.mxu0 0
    %607 = vmatprep.subr.bf16.mxu0 0
    %608 = vmatpush1.bf16.xpose.msra.mxu0 0
    %609 = vmatprep.subr.bf16.mxu0 0
    %610 = vmatpush1.bf16.xpose.msra.mxu0 0
    %611 = vmatprep.subr.bf16.mxu0 0
    %612 = vmatpush1.bf16.xpose.msra.mxu0 0
    %613 = vmatprep.subr.bf16.mxu0 0
    %614 = vmatpush1.bf16.xpose.msra.mxu0 0
    %615 = vmatprep.subr.bf16.mxu0 0
    %616 = vmatpush1.bf16.xpose.msra.mxu0 0
    %617 = vmatprep.subr.bf16.mxu0 0
    %618 = vmatpush1.bf16.xpose.msra.mxu0 0
    %619 = vmatprep.subr.bf16.mxu0 0
    %620 = vmatpush1.bf16.xpose.msra.mxu0 0
    %621 = vmatprep.mubr.bf16.mxu0 0
    %622 = vmatmul.mubr.bf16.gmra.mrb[0].mxu0 %v584
    %v623 = vpop.f32.mrb[0].mxu0
    %v624 = vadd.f32 %v439, %v623
    %v625 = vpop.f32.mrb[0].mxu0
    %v626 = vpop.f32.mrb[0].mxu0
    %v627 = vpop.f32.mrb[0].mxu0
    %628 = vdwg.mxu0
    %vm629 = vcmask 64512
    %v630 = vsel %vm629, %v486, -inf
    %631 = vmax.xlane.f32.xlu0 %v630
    %v632 = vpop.xlane.xlu0 %631
    %v633 = vsel %vm629, %v532, -inf
    %634 = vmax.xlane.f32.xlu0 %v633
    %v635 = vpop.xlane.xlu0 %634
    %v636 = vsel %vm629, %v578, -inf
    %637 = vmax.xlane.f32.xlu0 %v636
    %v638 = vpop.xlane.xlu0 %637
    %v639 = vsel %vm629, %v624, -inf
    %640 = vmax.xlane.f32.xlu0 %v639
    %v641 = vpop.xlane.xlu0 %640
    %v642 = vsub.f32 %v486, %v632
    %v643 = vsub.f32 %v532, %v635
    %v644 = vsub.f32 %v578, %v638
    %v645 = vsub.f32 %v624, %v641
    %v646 = vmul.f32 %v642, 1.442695
    %v647 = vpow.pop %v646
    %v648 = vmul.f32 %v643, 1.442695
    %v649 = vpow.pop %v648
    %v650 = vmul.f32 %v644, 1.442695
    %v651 = vpow.pop %v650
    %v652 = vmul.f32 %v645, 1.442695
    %v653 = vpow.pop %v652
    %v654 = vsel %vm629, %v647, 0.0
    %655 = vadd.xlane.f32.xlu0 %v654
    %v656 = vpop.xlane.xlu0 %655
    %v657 = vsel %vm629, %v649, 0.0
    %658 = vadd.xlane.f32.xlu0 %v657
    %v659 = vpop.xlane.xlu0 %658
    %v660 = vsel %vm629, %v651, 0.0
    %661 = vadd.xlane.f32.xlu0 %v660
    %v662 = vpop.xlane.xlu0 %661
    %v663 = vsel %vm629, %v653, 0.0
    %664 = vadd.xlane.f32.xlu0 %v663
    %v665 = vpop.xlane.xlu0 %664
    %v666 = vrcp.pop %v656
    %v667 = vrcp.pop %v659
    %v668 = vrcp.pop %v662
    %v669 = vrcp.pop %v665
    %v670 = vmul.f32 %v647, %v666
    %v671 = vmul.f32 %v649, %v667
    %v672 = vmul.f32 %v651, %v668
    %v673 = vmul.f32 %v653, %v669
    %v674 = vpack.c.bf16 %v670, %v670
    %v675 = vpack.c.bf16 %v671, %v671
    %v676 = vpack.c.bf16 %v672, %v672
    %v677 = vpack.c.bf16 %v673, %v673
    %v679 = vsel %vm629, %v674, 0
    %vm681 = vcmask 1043456
    %v683 = vsel %vm681, %v404, 0
    %685 = vmatprep.subr.bf16.mxu0 0
    %686 = vmatpush1.bf16.msra.mxu0 %v683
    %687 = vmatprep.subr.bf16.mxu0 0
    %688 = vmatpush1.bf16.msra.mxu0 0
    %689 = vmatprep.subr.bf16.mxu0 0
    %690 = vmatpush1.bf16.msra.mxu0 0
    %691 = vmatprep.subr.bf16.mxu0 0
    %692 = vmatpush1.bf16.msra.mxu0 0
    %693 = vmatprep.subr.bf16.mxu0 0
    %694 = vmatpush1.bf16.msra.mxu0 0
    %695 = vmatprep.subr.bf16.mxu0 0
    %696 = vmatpush1.bf16.msra.mxu0 0
    %697 = vmatprep.subr.bf16.mxu0 0
    %698 = vmatpush1.bf16.msra.mxu0 0
    %699 = vmatprep.subr.bf16.mxu0 0
    %700 = vmatpush1.bf16.msra.mxu0 0
    %701 = vmatprep.subr.bf16.mxu0 0
    %702 = vmatpush1.bf16.msra.mxu0 0
    %703 = vmatprep.subr.bf16.mxu0 0
    %704 = vmatpush1.bf16.msra.mxu0 0
    %705 = vmatprep.subr.bf16.mxu0 0
    %706 = vmatpush1.bf16.msra.mxu0 0
    %707 = vmatprep.subr.bf16.mxu0 0
    %708 = vmatpush1.bf16.msra.mxu0 0
    %709 = vmatprep.subr.bf16.mxu0 0
    %710 = vmatpush1.bf16.msra.mxu0 0
    %711 = vmatprep.subr.bf16.mxu0 0
    %712 = vmatpush1.bf16.msra.mxu0 0
    %713 = vmatprep.subr.bf16.mxu0 0
    %714 = vmatpush1.bf16.msra.mxu0 0
    %715 = vmatprep.subr.bf16.mxu0 0
    %716 = vmatpush1.bf16.msra.mxu0 0
    %717 = vmatprep.mubr.bf16.mxu0 0
    %718 = vmatmul.mubr.bf16.gmra.mrb[0].mxu0 %v679
    %v719 = vpop.f32.mrb[0].mxu0
    %v720 = vadd.f32 0.0, %v719
    %v721 = vpop.f32.mrb[0].mxu0
    %v722 = vpop.f32.mrb[0].mxu0
    %v723 = vpop.f32.mrb[0].mxu0
    %724 = vdwg.mxu0
    %v726 = vsel %vm629, %v675, 0
    %v729 = vsel %vm681, %v405, 0
    %731 = vmatprep.subr.bf16.mxu0 0
    %732 = vmatpush1.bf16.msra.mxu0 %v729
    %733 = vmatprep.subr.bf16.mxu0 0
    %734 = vmatpush1.bf16.msra.mxu0 0
    %735 = vmatprep.subr.bf16.mxu0 0
    %736 = vmatpush1.bf16.msra.mxu0 0
    %737 = vmatprep.subr.bf16.mxu0 0
    %738 = vmatpush1.bf16.msra.mxu0 0
    %739 = vmatprep.subr.bf16.mxu0 0
    %740 = vmatpush1.bf16.msra.mxu0 0
    %741 = vmatprep.subr.bf16.mxu0 0
    %742 = vmatpush1.bf16.msra.mxu0 0
    %743 = vmatprep.subr.bf16.mxu0 0
    %744 = vmatpush1.bf16.msra.mxu0 0
    %745 = vmatprep.subr.bf16.mxu0 0
    %746 = vmatpush1.bf16.msra.mxu0 0
    %747 = vmatprep.subr.bf16.mxu0 0
    %748 = vmatpush1.bf16.msra.mxu0 0
    %749 = vmatprep.subr.bf16.mxu0 0
    %750 = vmatpush1.bf16.msra.mxu0 0
    %751 = vmatprep.subr.bf16.mxu0 0
    %752 = vmatpush1.bf16.msra.mxu0 0
    %753 = vmatprep.subr.bf16.mxu0 0
    %754 = vmatpush1.bf16.msra.mxu0 0
    %755 = vmatprep.subr.bf16.mxu0 0
    %756 = vmatpush1.bf16.msra.mxu0 0
    %757 = vmatprep.subr.bf16.mxu0 0
    %758 = vmatpush1.bf16.msra.mxu0 0
    %759 = vmatprep.subr.bf16.mxu0 0
    %760 = vmatpush1.bf16.msra.mxu0 0
    %761 = vmatprep.subr.bf16.mxu0 0
    %762 = vmatpush1.bf16.msra.mxu0 0
    %763 = vmatprep.mubr.bf16.mxu0 0
    %764 = vmatmul.mubr.bf16.gmra.mrb[0].mxu0 %v726
    %v765 = vpop.f32.mrb[0].mxu0
    %v766 = vadd.f32 0.0, %v765
    %v767 = vpop.f32.mrb[0].mxu0
    %v768 = vpop.f32.mrb[0].mxu0
    %v769 = vpop.f32.mrb[0].mxu0
    %770 = vdwg.mxu0
    %v772 = vsel %vm629, %v676, 0
    %v775 = vsel %vm681, %v406, 0
    %777 = vmatprep.subr.bf16.mxu0 0
    %778 = vmatpush1.bf16.msra.mxu0 %v775
    %779 = vmatprep.subr.bf16.mxu0 0
    %780 = vmatpush1.bf16.msra.mxu0 0
    %781 = vmatprep.subr.bf16.mxu0 0
    %782 = vmatpush1.bf16.msra.mxu0 0
    %783 = vmatprep.subr.bf16.mxu0 0
    %784 = vmatpush1.bf16.msra.mxu0 0
    %785 = vmatprep.subr.bf16.mxu0 0
    %786 = vmatpush1.bf16.msra.mxu0 0
    %787 = vmatprep.subr.bf16.mxu0 0
    %788 = vmatpush1.bf16.msra.mxu0 0
    %789 = vmatprep.subr.bf16.mxu0 0
    %790 = vmatpush1.bf16.msra.mxu0 0
    %791 = vmatprep.subr.bf16.mxu0 0
    %792 = vmatpush1.bf16.msra.mxu0 0
    %793 = vmatprep.subr.bf16.mxu0 0
    %794 = vmatpush1.bf16.msra.mxu0 0
    %795 = vmatprep.subr.bf16.mxu0 0
    %796 = vmatpush1.bf16.msra.mxu0 0
    %797 = vmatprep.subr.bf16.mxu0 0
    %798 = vmatpush1.bf16.msra.mxu0 0
    %799 = vmatprep.subr.bf16.mxu0 0
    %800 = vmatpush1.bf16.msra.mxu0 0
    %801 = vmatprep.subr.bf16.mxu0 0
    %802 = vmatpush1.bf16.msra.mxu0 0
    %803 = vmatprep.subr.bf16.mxu0 0
    %804 = vmatpush1.bf16.msra.mxu0 0
    %805 = vmatprep.subr.bf16.mxu0 0
    %806 = vmatpush1.bf16.msra.mxu0 0
    %807 = vmatprep.subr.bf16.mxu0 0
    %808 = vmatpush1.bf16.msra.mxu0 0
    %809 = vmatprep.mubr.bf16.mxu0 0
    %810 = vmatmul.mubr.bf16.gmra.mrb[0].mxu0 %v772
    %v811 = vpop.f32.mrb[0].mxu0
    %v812 = vadd.f32 0.0, %v811
    %v813 = vpop.f32.mrb[0].mxu0
    %v814 = vpop.f32.mrb[0].mxu0
    %v815 = vpop.f32.mrb[0].mxu0
    %816 = vdwg.mxu0
    %v818 = vsel %vm629, %v677, 0
    %v821 = vsel %vm681, %v407, 0
    %823 = vmatprep.subr.bf16.mxu0 0
    %824 = vmatpush1.bf16.msra.mxu0 %v821
    %825 = vmatprep.subr.bf16.mxu0 0
    %826 = vmatpush1.bf16.msra.mxu0 0
    %827 = vmatprep.subr.bf16.mxu0 0
    %828 = vmatpush1.bf16.msra.mxu0 0
    %829 = vmatprep.subr.bf16.mxu0 0
    %830 = vmatpush1.bf16.msra.mxu0 0
    %831 = vmatprep.subr.bf16.mxu0 0
    %832 = vmatpush1.bf16.msra.mxu0 0
    %833 = vmatprep.subr.bf16.mxu0 0
    %834 = vmatpush1.bf16.msra.mxu0 0
    %835 = vmatprep.subr.bf16.mxu0 0
    %836 = vmatpush1.bf16.msra.mxu0 0
    %837 = vmatprep.subr.bf16.mxu0 0
    %838 = vmatpush1.bf16.msra.mxu0 0
    %839 = vmatprep.subr.bf16.mxu0 0
    %840 = vmatpush1.bf16.msra.mxu0 0
    %841 = vmatprep.subr.bf16.mxu0 0
    %842 = vmatpush1.bf16.msra.mxu0 0
    %843 = vmatprep.subr.bf16.mxu0 0
    %844 = vmatpush1.bf16.msra.mxu0 0
    %845 = vmatprep.subr.bf16.mxu0 0
    %846 = vmatpush1.bf16.msra.mxu0 0
    %847 = vmatprep.subr.bf16.mxu0 0
    %848 = vmatpush1.bf16.msra.mxu0 0
    %849 = vmatprep.subr.bf16.mxu0 0
    %850 = vmatpush1.bf16.msra.mxu0 0
    %851 = vmatprep.subr.bf16.mxu0 0
    %852 = vmatpush1.bf16.msra.mxu0 0
    %853 = vmatprep.subr.bf16.mxu0 0
    %854 = vmatpush1.bf16.msra.mxu0 0
    %855 = vmatprep.mubr.bf16.mxu0 0
    %856 = vmatmul.mubr.bf16.gmra.mrb[0].mxu0 %v818
    %v857 = vpop.f32.mrb[0].mxu0
    %v858 = vadd.f32 0.0, %v857
    %v859 = vpop.f32.mrb[0].mxu0
    %v860 = vpop.f32.mrb[0].mxu0
    %v861 = vpop.f32.mrb[0].mxu0
    %862 = vdwg.mxu0
    %v863 = vpack.c.bf16 %v720, %v720
    %v864 = vpack.c.bf16 %v766, %v766
    %v865 = vpack.c.bf16 %v812, %v812
    %v866 = vpack.c.bf16 %v858, %v858
    %867 = vrot.lane.b32.xlu0 %v236, 124
    %v868 = vpop.permute.xlu0 %867
    %869 = vrot.lane.b32.xlu0 %v320, 124
    %v870 = vpop.permute.xlu0 %869
    %v872 = vsel %vm444, %v868, 0
    %v875 = vsel %vm444, %v870, 0
    %877 = vmatprep.subr.bf16.mxu0 0
    %878 = vmatpush1.bf16.xpose.msra.mxu0 %v875
    %879 = vmatprep.subr.bf16.mxu0 0
    %880 = vmatpush1.bf16.xpose.msra.mxu0 0
    %881 = vmatprep.subr.bf16.mxu0 0
    %882 = vmatpush1.bf16.xpose.msra.mxu0 0
    %883 = vmatprep.subr.bf16.mxu0 0
    %884 = vmatpush1.bf16.xpose.msra.mxu0 0
    %885 = vmatprep.subr.bf16.mxu0 0
    %886 = vmatpush1.bf16.xpose.msra.mxu0 0
    %887 = vmatprep.subr.bf16.mxu0 0
    %888 = vmatpush1.bf16.xpose.msra.mxu0 0
    %889 = vmatprep.subr.bf16.mxu0 0
    %890 = vmatpush1.bf16.xpose.msra.mxu0 0
    %891 = vmatprep.subr.bf16.mxu0 0
    %892 = vmatpush1.bf16.xpose.msra.mxu0 0
    %893 = vmatprep.subr.bf16.mxu0 0
    %894 = vmatpush1.bf16.xpose.msra.mxu0 0
    %895 = vmatprep.subr.bf16.mxu0 0
    %896 = vmatpush1.bf16.xpose.msra.mxu0 0
    %897 = vmatprep.subr.bf16.mxu0 0
    %898 = vmatpush1.bf16.xpose.msra.mxu0 0
    %899 = vmatprep.subr.bf16.mxu0 0
    %900 = vmatpush1.bf16.xpose.msra.mxu0 0
    %901 = vmatprep.subr.bf16.mxu0 0
    %902 = vmatpush1.bf16.xpose.msra.mxu0 0
    %903 = vmatprep.subr.bf16.mxu0 0
    %904 = vmatpush1.bf16.xpose.msra.mxu0 0
    %905 = vmatprep.subr.bf16.mxu0 0
    %906 = vmatpush1.bf16.xpose.msra.mxu0 0
    %907 = vmatprep.subr.bf16.mxu0 0
    %908 = vmatpush1.bf16.xpose.msra.mxu0 0
    %909 = vmatprep.mubr.bf16.mxu0 0
    %910 = vmatmul.mubr.bf16.gmra.mrb[0].mxu0 %v872
    %v911 = vpop.f32.mrb[0].mxu0
    %v912 = vadd.f32 %v427, %v911
    %v913 = vpop.f32.mrb[0].mxu0
    %v914 = vpop.f32.mrb[0].mxu0
    %v915 = vpop.f32.mrb[0].mxu0
    %916 = vdwg.mxu0
    %917 = vrot.lane.b32.xlu0 %v237, 124
    %v918 = vpop.permute.xlu0 %917
    %919 = vrot.lane.b32.xlu0 %v321, 124
    %v920 = vpop.permute.xlu0 %919
    %v922 = vsel %vm444, %v918, 0
    %v925 = vsel %vm444, %v920, 0
    %927 = vmatprep.subr.bf16.mxu0 0
    %928 = vmatpush1.bf16.xpose.msra.mxu0 %v925
    %929 = vmatprep.subr.bf16.mxu0 0
    %930 = vmatpush1.bf16.xpose.msra.mxu0 0
    %931 = vmatprep.subr.bf16.mxu0 0
    %932 = vmatpush1.bf16.xpose.msra.mxu0 0
    %933 = vmatprep.subr.bf16.mxu0 0
    %934 = vmatpush1.bf16.xpose.msra.mxu0 0
    %935 = vmatprep.subr.bf16.mxu0 0
    %936 = vmatpush1.bf16.xpose.msra.mxu0 0
    %937 = vmatprep.subr.bf16.mxu0 0
    %938 = vmatpush1.bf16.xpose.msra.mxu0 0
    %939 = vmatprep.subr.bf16.mxu0 0
    %940 = vmatpush1.bf16.xpose.msra.mxu0 0
    %941 = vmatprep.subr.bf16.mxu0 0
    %942 = vmatpush1.bf16.xpose.msra.mxu0 0
    %943 = vmatprep.subr.bf16.mxu0 0
    %944 = vmatpush1.bf16.xpose.msra.mxu0 0
    %945 = vmatprep.subr.bf16.mxu0 0
    %946 = vmatpush1.bf16.xpose.msra.mxu0 0
    %947 = vmatprep.subr.bf16.mxu0 0
    %948 = vmatpush1.bf16.xpose.msra.mxu0 0
    %949 = vmatprep.subr.bf16.mxu0 0
    %950 = vmatpush1.bf16.xpose.msra.mxu0 0
    %951 = vmatprep.subr.bf16.mxu0 0
    %952 = vmatpush1.bf16.xpose.msra.mxu0 0
    %953 = vmatprep.subr.bf16.mxu0 0
    %954 = vmatpush1.bf16.xpose.msra.mxu0 0
    %955 = vmatprep.subr.bf16.mxu0 0
    %956 = vmatpush1.bf16.xpose.msra.mxu0 0
    %957 = vmatprep.subr.bf16.mxu0 0
    %958 = vmatpush1.bf16.xpose.msra.mxu0 0
    %959 = vmatprep.mubr.bf16.mxu0 0
    %960 = vmatmul.mubr.bf16.gmra.mrb[0].mxu0 %v922
    %v961 = vpop.f32.mrb[0].mxu0
    %v962 = vadd.f32 %v431, %v961
    %v963 = vpop.f32.mrb[0].mxu0
    %v964 = vpop.f32.mrb[0].mxu0
    %v965 = vpop.f32.mrb[0].mxu0
    %966 = vdwg.mxu0
    %967 = vrot.lane.b32.xlu0 %v238, 124
    %v968 = vpop.permute.xlu0 %967
    %969 = vrot.lane.b32.xlu0 %v322, 124
    %v970 = vpop.permute.xlu0 %969
    %v972 = vsel %vm444, %v968, 0
    %v975 = vsel %vm444, %v970, 0
    %977 = vmatprep.subr.bf16.mxu0 0
    %978 = vmatpush1.bf16.xpose.msra.mxu0 %v975
    %979 = vmatprep.subr.bf16.mxu0 0
    %980 = vmatpush1.bf16.xpose.msra.mxu0 0
    %981 = vmatprep.subr.bf16.mxu0 0
    %982 = vmatpush1.bf16.xpose.msra.mxu0 0
    %983 = vmatprep.subr.bf16.mxu0 0
    %984 = vmatpush1.bf16.xpose.msra.mxu0 0
    %985 = vmatprep.subr.bf16.mxu0 0
    %986 = vmatpush1.bf16.xpose.msra.mxu0 0
    %987 = vmatprep.subr.bf16.mxu0 0
    %988 = vmatpush1.bf16.xpose.msra.mxu0 0
    %989 = vmatprep.subr.bf16.mxu0 0
    %990 = vmatpush1.bf16.xpose.msra.mxu0 0
    %991 = vmatprep.subr.bf16.mxu0 0
    %992 = vmatpush1.bf16.xpose.msra.mxu0 0
    %993 = vmatprep.subr.bf16.mxu0 0
    %994 = vmatpush1.bf16.xpose.msra.mxu0 0
    %995 = vmatprep.subr.bf16.mxu0 0
    %996 = vmatpush1.bf16.xpose.msra.mxu0 0
    %997 = vmatprep.subr.bf16.mxu0 0
    %998 = vmatpush1.bf16.xpose.msra.mxu0 0
    %999 = vmatprep.subr.bf16.mxu0 0
    %1000 = vmatpush1.bf16.xpose.msra.mxu0 0
    %1001 = vmatprep.subr.bf16.mxu0 0
    %1002 = vmatpush1.bf16.xpose.msra.mxu0 0
    %1003 = vmatprep.subr.bf16.mxu0 0
    %1004 = vmatpush1.bf16.xpose.msra.mxu0 0
    %1005 = vmatprep.subr.bf16.mxu0 0
    %1006 = vmatpush1.bf16.xpose.msra.mxu0 0
    %1007 = vmatprep.subr.bf16.mxu0 0
    %1008 = vmatpush1.bf16.xpose.msra.mxu0 0
    %1009 = vmatprep.mubr.bf16.mxu0 0
    %1010 = vmatmul.mubr.bf16.gmra.mrb[0].mxu0 %v972
    %v1011 = vpop.f32.mrb[0].mxu0
    %v1012 = vadd.f32 %v435, %v1011
    %v1013 = vpop.f32.mrb[0].mxu0
    %v1014 = vpop.f32.mrb[0].mxu0
    %v1015 = vpop.f32.mrb[0].mxu0
    %1016 = vdwg.mxu0
    %1017 = vrot.lane.b32.xlu0 %v239, 124
    %v1018 = vpop.permute.xlu0 %1017
    %1019 = vrot.lane.b32.xlu0 %v323, 124
    %v1020 = vpop.permute.xlu0 %1019
    %v1022 = vsel %vm444, %v1018, 0
    %v1025 = vsel %vm444, %v1020, 0
    %1027 = vmatprep.subr.bf16.mxu0 0
    %1028 = vmatpush1.bf16.xpose.msra.mxu0 %v1025
    %1029 = vmatprep.subr.bf16.mxu0 0
    %1030 = vmatpush1.bf16.xpose.msra.mxu0 0
    %1031 = vmatprep.subr.bf16.mxu0 0
    %1032 = vmatpush1.bf16.xpose.msra.mxu0 0
    %1033 = vmatprep.subr.bf16.mxu0 0
    %1034 = vmatpush1.bf16.xpose.msra.mxu0 0
    %1035 = vmatprep.subr.bf16.mxu0 0
    %1036 = vmatpush1.bf16.xpose.msra.mxu0 0
    %1037 = vmatprep.subr.bf16.mxu0 0
    %1038 = vmatpush1.bf16.xpose.msra.mxu0 0
    %1039 = vmatprep.subr.bf16.mxu0 0
    %1040 = vmatpush1.bf16.xpose.msra.mxu0 0
    %1041 = vmatprep.subr.bf16.mxu0 0
    %1042 = vmatpush1.bf16.xpose.msra.mxu0 0
    %1043 = vmatprep.subr.bf16.mxu0 0
    %1044 = vmatpush1.bf16.xpose.msra.mxu0 0
    %1045 = vmatprep.subr.bf16.mxu0 0
    %1046 = vmatpush1.bf16.xpose.msra.mxu0 0
    %1047 = vmatprep.subr.bf16.mxu0 0
    %1048 = vmatpush1.bf16.xpose.msra.mxu0 0
    %1049 = vmatprep.subr.bf16.mxu0 0
    %1050 = vmatpush1.bf16.xpose.msra.mxu0 0
    %1051 = vmatprep.subr.bf16.mxu0 0
    %1052 = vmatpush1.bf16.xpose.msra.mxu0 0
    %1053 = vmatprep.subr.bf16.mxu0 0
    %1054 = vmatpush1.bf16.xpose.msra.mxu0 0
    %1055 = vmatprep.subr.bf16.mxu0 0
    %1056 = vmatpush1.bf16.xpose.msra.mxu0 0
    %1057 = vmatprep.subr.bf16.mxu0 0
    %1058 = vmatpush1.bf16.xpose.msra.mxu0 0
    %1059 = vmatprep.mubr.bf16.mxu0 0
    %1060 = vmatmul.mubr.bf16.gmra.mrb[0].mxu0 %v1022
    %v1061 = vpop.f32.mrb[0].mxu0
    %v1062 = vadd.f32 %v439, %v1061
    %v1063 = vpop.f32.mrb[0].mxu0
    %v1064 = vpop.f32.mrb[0].mxu0
    %v1065 = vpop.f32.mrb[0].mxu0
    %1066 = vdwg.mxu0
    %v1067 = vsel %vm629, %v912, -inf
    %1068 = vmax.xlane.f32.xlu0 %v1067
    %v1069 = vpop.xlane.xlu0 %1068
    %v1070 = vsel %vm629, %v962, -inf
    %1071 = vmax.xlane.f32.xlu0 %v1070
    %v1072 = vpop.xlane.xlu0 %1071
    %v1073 = vsel %vm629, %v1012, -inf
    %1074 = vmax.xlane.f32.xlu0 %v1073
    %v1075 = vpop.xlane.xlu0 %1074
    %v1076 = vsel %vm629, %v1062, -inf
    %1077 = vmax.xlane.f32.xlu0 %v1076
    %v1078 = vpop.xlane.xlu0 %1077
    %v1079 = vsub.f32 %v912, %v1069
    %v1080 = vsub.f32 %v962, %v1072
    %v1081 = vsub.f32 %v1012, %v1075
    %v1082 = vsub.f32 %v1062, %v1078
    %v1083 = vmul.f32 %v1079, 1.442695
    %v1084 = vpow.pop %v1083
    %v1085 = vmul.f32 %v1080, 1.442695
    %v1086 = vpow.pop %v1085
    %v1087 = vmul.f32 %v1081, 1.442695
    %v1088 = vpow.pop %v1087
    %v1089 = vmul.f32 %v1082, 1.442695
    %v1090 = vpow.pop %v1089
    %v1091 = vsel %vm629, %v1084, 0.0
    %1092 = vadd.xlane.f32.xlu0 %v1091
    %v1093 = vpop.xlane.xlu0 %1092
    %v1094 = vsel %vm629, %v1086, 0.0
    %1095 = vadd.xlane.f32.xlu0 %v1094
    %v1096 = vpop.xlane.xlu0 %1095
    %v1097 = vsel %vm629, %v1088, 0.0
    %1098 = vadd.xlane.f32.xlu0 %v1097
    %v1099 = vpop.xlane.xlu0 %1098
    %v1100 = vsel %vm629, %v1090, 0.0
    %1101 = vadd.xlane.f32.xlu0 %v1100
    %v1102 = vpop.xlane.xlu0 %1101
    %v1103 = vrcp.pop %v1093
    %v1104 = vrcp.pop %v1096
    %v1105 = vrcp.pop %v1099
    %v1106 = vrcp.pop %v1102
    %v1107 = vmul.f32 %v1084, %v1103
    %v1108 = vmul.f32 %v1086, %v1104
    %v1109 = vmul.f32 %v1088, %v1105
    %v1110 = vmul.f32 %v1090, %v1106
    %v1111 = vpack.c.bf16 %v1107, %v1107
    %v1112 = vpack.c.bf16 %v1108, %v1108
    %v1113 = vpack.c.bf16 %v1109, %v1109
    %v1114 = vpack.c.bf16 %v1110, %v1110
    %1115 = vrot.lane.b32.xlu0 %v404, 124
    %v1116 = vpop.permute.xlu0 %1115
    %v1118 = vsel %vm629, %v1111, 0
    %v1121 = vsel %vm681, %v1116, 0
    %1123 = vmatprep.subr.bf16.mxu0 0
    %1124 = vmatpush1.bf16.msra.mxu0 %v1121
    %1125 = vmatprep.subr.bf16.mxu0 0
    %1126 = vmatpush1.bf16.msra.mxu0 0
    %1127 = vmatprep.subr.bf16.mxu0 0
    %1128 = vmatpush1.bf16.msra.mxu0 0
    %1129 = vmatprep.subr.bf16.mxu0 0
    %1130 = vmatpush1.bf16.msra.mxu0 0
    %1131 = vmatprep.subr.bf16.mxu0 0
    %1132 = vmatpush1.bf16.msra.mxu0 0
    %1133 = vmatprep.subr.bf16.mxu0 0
    %1134 = vmatpush1.bf16.msra.mxu0 0
    %1135 = vmatprep.subr.bf16.mxu0 0
    %1136 = vmatpush1.bf16.msra.mxu0 0
    %1137 = vmatprep.subr.bf16.mxu0 0
    %1138 = vmatpush1.bf16.msra.mxu0 0
    %1139 = vmatprep.subr.bf16.mxu0 0
    %1140 = vmatpush1.bf16.msra.mxu0 0
    %1141 = vmatprep.subr.bf16.mxu0 0
    %1142 = vmatpush1.bf16.msra.mxu0 0
    %1143 = vmatprep.subr.bf16.mxu0 0
    %1144 = vmatpush1.bf16.msra.mxu0 0
    %1145 = vmatprep.subr.bf16.mxu0 0
    %1146 = vmatpush1.bf16.msra.mxu0 0
    %1147 = vmatprep.subr.bf16.mxu0 0
    %1148 = vmatpush1.bf16.msra.mxu0 0
    %1149 = vmatprep.subr.bf16.mxu0 0
    %1150 = vmatpush1.bf16.msra.mxu0 0
    %1151 = vmatprep.subr.bf16.mxu0 0
    %1152 = vmatpush1.bf16.msra.mxu0 0
    %1153 = vmatprep.subr.bf16.mxu0 0
    %1154 = vmatpush1.bf16.msra.mxu0 0
    %1155 = vmatprep.mubr.bf16.mxu0 0
    %1156 = vmatmul.mubr.bf16.gmra.mrb[0].mxu0 %v1118
    %v1157 = vpop.f32.mrb[0].mxu0
    %v1158 = vadd.f32 0.0, %v1157
    %v1159 = vpop.f32.mrb[0].mxu0
    %v1160 = vpop.f32.mrb[0].mxu0
    %v1161 = vpop.f32.mrb[0].mxu0
    %1162 = vdwg.mxu0
    %1163 = vrot.lane.b32.xlu0 %v405, 124
    %v1164 = vpop.permute.xlu0 %1163
    %v1166 = vsel %vm629, %v1112, 0
    %v1169 = vsel %vm681, %v1164, 0
    %1171 = vmatprep.subr.bf16.mxu0 0
    %1172 = vmatpush1.bf16.msra.mxu0 %v1169
    %1173 = vmatprep.subr.bf16.mxu0 0
    %1174 = vmatpush1.bf16.msra.mxu0 0
    %1175 = vmatprep.subr.bf16.mxu0 0
    %1176 = vmatpush1.bf16.msra.mxu0 0
    %1177 = vmatprep.subr.bf16.mxu0 0
    %1178 = vmatpush1.bf16.msra.mxu0 0
    %1179 = vmatprep.subr.bf16.mxu0 0
    %1180 = vmatpush1.bf16.msra.mxu0 0
    %1181 = vmatprep.subr.bf16.mxu0 0
    %1182 = vmatpush1.bf16.msra.mxu0 0
    %1183 = vmatprep.subr.bf16.mxu0 0
    %1184 = vmatpush1.bf16.msra.mxu0 0
    %1185 = vmatprep.subr.bf16.mxu0 0
    %1186 = vmatpush1.bf16.msra.mxu0 0
    %1187 = vmatprep.subr.bf16.mxu0 0
    %1188 = vmatpush1.bf16.msra.mxu0 0
    %1189 = vmatprep.subr.bf16.mxu0 0
    %1190 = vmatpush1.bf16.msra.mxu0 0
    %1191 = vmatprep.subr.bf16.mxu0 0
    %1192 = vmatpush1.bf16.msra.mxu0 0
    %1193 = vmatprep.subr.bf16.mxu0 0
    %1194 = vmatpush1.bf16.msra.mxu0 0
    %1195 = vmatprep.subr.bf16.mxu0 0
    %1196 = vmatpush1.bf16.msra.mxu0 0
    %1197 = vmatprep.subr.bf16.mxu0 0
    %1198 = vmatpush1.bf16.msra.mxu0 0
    %1199 = vmatprep.subr.bf16.mxu0 0
    %1200 = vmatpush1.bf16.msra.mxu0 0
    %1201 = vmatprep.subr.bf16.mxu0 0
    %1202 = vmatpush1.bf16.msra.mxu0 0
    %1203 = vmatprep.mubr.bf16.mxu0 0
    %1204 = vmatmul.mubr.bf16.gmra.mrb[0].mxu0 %v1166
    %v1205 = vpop.f32.mrb[0].mxu0
    %v1206 = vadd.f32 0.0, %v1205
    %v1207 = vpop.f32.mrb[0].mxu0
    %v1208 = vpop.f32.mrb[0].mxu0
    %v1209 = vpop.f32.mrb[0].mxu0
    %1210 = vdwg.mxu0
    %1211 = vrot.lane.b32.xlu0 %v406, 124
    %v1212 = vpop.permute.xlu0 %1211
    %v1214 = vsel %vm629, %v1113, 0
    %v1217 = vsel %vm681, %v1212, 0
    %1219 = vmatprep.subr.bf16.mxu0 0
    %1220 = vmatpush1.bf16.msra.mxu0 %v1217
    %1221 = vmatprep.subr.bf16.mxu0 0
    %1222 = vmatpush1.bf16.msra.mxu0 0
    %1223 = vmatprep.subr.bf16.mxu0 0
    %1224 = vmatpush1.bf16.msra.mxu0 0
    %1225 = vmatprep.subr.bf16.mxu0 0
    %1226 = vmatpush1.bf16.msra.mxu0 0
    %1227 = vmatprep.subr.bf16.mxu0 0
    %1228 = vmatpush1.bf16.msra.mxu0 0
    %1229 = vmatprep.subr.bf16.mxu0 0
    %1230 = vmatpush1.bf16.msra.mxu0 0
    %1231 = vmatprep.subr.bf16.mxu0 0
    %1232 = vmatpush1.bf16.msra.mxu0 0
    %1233 = vmatprep.subr.bf16.mxu0 0
    %1234 = vmatpush1.bf16.msra.mxu0 0
    %1235 = vmatprep.subr.bf16.mxu0 0
    %1236 = vmatpush1.bf16.msra.mxu0 0
    %1237 = vmatprep.subr.bf16.mxu0 0
    %1238 = vmatpush1.bf16.msra.mxu0 0
    %1239 = vmatprep.subr.bf16.mxu0 0
    %1240 = vmatpush1.bf16.msra.mxu0 0
    %1241 = vmatprep.subr.bf16.mxu0 0
    %1242 = vmatpush1.bf16.msra.mxu0 0
    %1243 = vmatprep.subr.bf16.mxu0 0
    %1244 = vmatpush1.bf16.msra.mxu0 0
    %1245 = vmatprep.subr.bf16.mxu0 0
    %1246 = vmatpush1.bf16.msra.mxu0 0
    %1247 = vmatprep.subr.bf16.mxu0 0
    %1248 = vmatpush1.bf16.msra.mxu0 0
    %1249 = vmatprep.subr.bf16.mxu0 0
    %1250 = vmatpush1.bf16.msra.mxu0 0
    %1251 = vmatprep.mubr.bf16.mxu0 0
    %1252 = vmatmul.mubr.bf16.gmra.mrb[0].mxu0 %v1214
    %v1253 = vpop.f32.mrb[0].mxu0
    %v1254 = vadd.f32 0.0, %v1253
    %v1255 = vpop.f32.mrb[0].mxu0
    %v1256 = vpop.f32.mrb[0].mxu0
    %v1257 = vpop.f32.mrb[0].mxu0
    %1258 = vdwg.mxu0
    %1259 = vrot.lane.b32.xlu0 %v407, 124
    %v1260 = vpop.permute.xlu0 %1259
    %v1262 = vsel %vm629, %v1114, 0
    %v1265 = vsel %vm681, %v1260, 0
    %1267 = vmatprep.subr.bf16.mxu0 0
    %1268 = vmatpush1.bf16.msra.mxu0 %v1265
    %1269 = vmatprep.subr.bf16.mxu0 0
    %1270 = vmatpush1.bf16.msra.mxu0 0
    %1271 = vmatprep.subr.bf16.mxu0 0
    %1272 = vmatpush1.bf16.msra.mxu0 0
    %1273 = vmatprep.subr.bf16.mxu0 0
    %1274 = vmatpush1.bf16.msra.mxu0 0
    %1275 = vmatprep.subr.bf16.mxu0 0
    %1276 = vmatpush1.bf16.msra.mxu0 0
    %1277 = vmatprep.subr.bf16.mxu0 0
    %1278 = vmatpush1.bf16.msra.mxu0 0
    %1279 = vmatprep.subr.bf16.mxu0 0
    %1280 = vmatpush1.bf16.msra.mxu0 0
    %1281 = vmatprep.subr.bf16.mxu0 0
    %1282 = vmatpush1.bf16.msra.mxu0 0
    %1283 = vmatprep.subr.bf16.mxu0 0
    %1284 = vmatpush1.bf16.msra.mxu0 0
    %1285 = vmatprep.subr.bf16.mxu0 0
    %1286 = vmatpush1.bf16.msra.mxu0 0
    %1287 = vmatprep.subr.bf16.mxu0 0
    %1288 = vmatpush1.bf16.msra.mxu0 0
    %1289 = vmatprep.subr.bf16.mxu0 0
    %1290 = vmatpush1.bf16.msra.mxu0 0
    %1291 = vmatprep.subr.bf16.mxu0 0
    %1292 = vmatpush1.bf16.msra.mxu0 0
    %1293 = vmatprep.subr.bf16.mxu0 0
    %1294 = vmatpush1.bf16.msra.mxu0 0
    %1295 = vmatprep.subr.bf16.mxu0 0
    %1296 = vmatpush1.bf16.msra.mxu0 0
    %1297 = vmatprep.subr.bf16.mxu0 0
    %1298 = vmatpush1.bf16.msra.mxu0 0
    %1299 = vmatprep.mubr.bf16.mxu0 0
    %1300 = vmatmul.mubr.bf16.gmra.mrb[0].mxu0 %v1262
    %v1301 = vpop.f32.mrb[0].mxu0
    %v1302 = vadd.f32 0.0, %v1301
    %v1303 = vpop.f32.mrb[0].mxu0
    %v1304 = vpop.f32.mrb[0].mxu0
    %v1305 = vpop.f32.mrb[0].mxu0
    %1306 = vdwg.mxu0
    %v1307 = vpack.c.bf16 %v1158, %v1158
    %v1308 = vpack.c.bf16 %v1206, %v1206
    %v1309 = vpack.c.bf16 %v1254, %v1254
    %v1310 = vpack.c.bf16 %v1302, %v1302
    %1311 = vrot.lane.b32.xlu0 %v236, 120
    %v1312 = vpop.permute.xlu0 %1311
    %1313 = vrot.lane.b32.xlu0 %v320, 120
    %v1314 = vpop.permute.xlu0 %1313
    %v1316 = vsel %vm444, %v1312, 0
    %v1319 = vsel %vm444, %v1314, 0
    %1321 = vmatprep.subr.bf16.mxu0 0
    %1322 = vmatpush1.bf16.xpose.msra.mxu0 %v1319
    %1323 = vmatprep.subr.bf16.mxu0 0
    %1324 = vmatpush1.bf16.xpose.msra.mxu0 0
    %1325 = vmatprep.subr.bf16.mxu0 0
    %1326 = vmatpush1.bf16.xpose.msra.mxu0 0
    %1327 = vmatprep.subr.bf16.mxu0 0
    %1328 = vmatpush1.bf16.xpose.msra.mxu0 0
    %1329 = vmatprep.subr.bf16.mxu0 0
    %1330 = vmatpush1.bf16.xpose.msra.mxu0 0
    %1331 = vmatprep.subr.bf16.mxu0 0
    %1332 = vmatpush1.bf16.xpose.msra.mxu0 0
    %1333 = vmatprep.subr.bf16.mxu0 0
    %1334 = vmatpush1.bf16.xpose.msra.mxu0 0
    %1335 = vmatprep.subr.bf16.mxu0 0
    %1336 = vmatpush1.bf16.xpose.msra.mxu0 0
    %1337 = vmatprep.subr.bf16.mxu0 0
    %1338 = vmatpush1.bf16.xpose.msra.mxu0 0
    %1339 = vmatprep.subr.bf16.mxu0 0
    %1340 = vmatpush1.bf16.xpose.msra.mxu0 0
    %1341 = vmatprep.subr.bf16.mxu0 0
    %1342 = vmatpush1.bf16.xpose.msra.mxu0 0
    %1343 = vmatprep.subr.bf16.mxu0 0
    %1344 = vmatpush1.bf16.xpose.msra.mxu0 0
    %1345 = vmatprep.subr.bf16.mxu0 0
    %1346 = vmatpush1.bf16.xpose.msra.mxu0 0
    %1347 = vmatprep.subr.bf16.mxu0 0
    %1348 = vmatpush1.bf16.xpose.msra.mxu0 0
    %1349 = vmatprep.subr.bf16.mxu0 0
    %1350 = vmatpush1.bf16.xpose.msra.mxu0 0
    %1351 = vmatprep.subr.bf16.mxu0 0
    %1352 = vmatpush1.bf16.xpose.msra.mxu0 0
    %1353 = vmatprep.mubr.bf16.mxu0 0
    %1354 = vmatmul.mubr.bf16.gmra.mrb[0].mxu0 %v1316
    %v1355 = vpop.f32.mrb[0].mxu0
    %v1356 = vadd.f32 %v427, %v1355
    %v1357 = vpop.f32.mrb[0].mxu0
    %v1358 = vpop.f32.mrb[0].mxu0
    %v1359 = vpop.f32.mrb[0].mxu0
    %1360 = vdwg.mxu0
    %1361 = vrot.lane.b32.xlu0 %v237, 120
    %v1362 = vpop.permute.xlu0 %1361
    %1363 = vrot.lane.b32.xlu0 %v321, 120
    %v1364 = vpop.permute.xlu0 %1363
    %v1366 = vsel %vm444, %v1362, 0
    %v1369 = vsel %vm444, %v1364, 0
    %1371 = vmatprep.subr.bf16.mxu0 0
    %1372 = vmatpush1.bf16.xpose.msra.mxu0 %v1369
    %1373 = vmatprep.subr.bf16.mxu0 0
    %1374 = vmatpush1.bf16.xpose.msra.mxu0 0
    %1375 = vmatprep.subr.bf16.mxu0 0
    %1376 = vmatpush1.bf16.xpose.msra.mxu0 0
    %1377 = vmatprep.subr.bf16.mxu0 0
    %1378 = vmatpush1.bf16.xpose.msra.mxu0 0
    %1379 = vmatprep.subr.bf16.mxu0 0
    %1380 = vmatpush1.bf16.xpose.msra.mxu0 0
    %1381 = vmatprep.subr.bf16.mxu0 0
    %1382 = vmatpush1.bf16.xpose.msra.mxu0 0
    %1383 = vmatprep.subr.bf16.mxu0 0
    %1384 = vmatpush1.bf16.xpose.msra.mxu0 0
    %1385 = vmatprep.subr.bf16.mxu0 0
    %1386 = vmatpush1.bf16.xpose.msra.mxu0 0
    %1387 = vmatprep.subr.bf16.mxu0 0
    %1388 = vmatpush1.bf16.xpose.msra.mxu0 0
    %1389 = vmatprep.subr.bf16.mxu0 0
    %1390 = vmatpush1.bf16.xpose.msra.mxu0 0
    %1391 = vmatprep.subr.bf16.mxu0 0
    %1392 = vmatpush1.bf16.xpose.msra.mxu0 0
    %1393 = vmatprep.subr.bf16.mxu0 0
    %1394 = vmatpush1.bf16.xpose.msra.mxu0 0
    %1395 = vmatprep.subr.bf16.mxu0 0
    %1396 = vmatpush1.bf16.xpose.msra.mxu0 0
    %1397 = vmatprep.subr.bf16.mxu0 0
    %1398 = vmatpush1.bf16.xpose.msra.mxu0 0
    %1399 = vmatprep.subr.bf16.mxu0 0
    %1400 = vmatpush1.bf16.xpose.msra.mxu0 0
    %1401 = vmatprep.subr.bf16.mxu0 0
    %1402 = vmatpush1.bf16.xpose.msra.mxu0 0
    %1403 = vmatprep.mubr.bf16.mxu0 0
    %1404 = vmatmul.mubr.bf16.gmra.mrb[0].mxu0 %v1366
    %v1405 = vpop.f32.mrb[0].mxu0
    %v1406 = vadd.f32 %v431, %v1405
    %v1407 = vpop.f32.mrb[0].mxu0
    %v1408 = vpop.f32.mrb[0].mxu0
    %v1409 = vpop.f32.mrb[0].mxu0
    %1410 = vdwg.mxu0
    %1411 = vrot.lane.b32.xlu0 %v238, 120
    %v1412 = vpop.permute.xlu0 %1411
    %1413 = vrot.lane.b32.xlu0 %v322, 120
    %v1414 = vpop.permute.xlu0 %1413
    %v1416 = vsel %vm444, %v1412, 0
    %v1419 = vsel %vm444, %v1414, 0
    %1421 = vmatprep.subr.bf16.mxu0 0
    %1422 = vmatpush1.bf16.xpose.msra.mxu0 %v1419
    %1423 = vmatprep.subr.bf16.mxu0 0
    %1424 = vmatpush1.bf16.xpose.msra.mxu0 0
    %1425 = vmatprep.subr.bf16.mxu0 0
    %1426 = vmatpush1.bf16.xpose.msra.mxu0 0
    %1427 = vmatprep.subr.bf16.mxu0 0
    %1428 = vmatpush1.bf16.xpose.msra.mxu0 0
    %1429 = vmatprep.subr.bf16.mxu0 0
    %1430 = vmatpush1.bf16.xpose.msra.mxu0 0
    %1431 = vmatprep.subr.bf16.mxu0 0
    %1432 = vmatpush1.bf16.xpose.msra.mxu0 0
    %1433 = vmatprep.subr.bf16.mxu0 0
    %1434 = vmatpush1.bf16.xpose.msra.mxu0 0
    %1435 = vmatprep.subr.bf16.mxu0 0
    %1436 = vmatpush1.bf16.xpose.msra.mxu0 0
    %1437 = vmatprep.subr.bf16.mxu0 0
    %1438 = vmatpush1.bf16.xpose.msra.mxu0 0
    %1439 = vmatprep.subr.bf16.mxu0 0
    %1440 = vmatpush1.bf16.xpose.msra.mxu0 0
    %1441 = vmatprep.subr.bf16.mxu0 0
    %1442 = vmatpush1.bf16.xpose.msra.mxu0 0
    %1443 = vmatprep.subr.bf16.mxu0 0
    %1444 = vmatpush1.bf16.xpose.msra.mxu0 0
    %1445 = vmatprep.subr.bf16.mxu0 0
    %1446 = vmatpush1.bf16.xpose.msra.mxu0 0
    %1447 = vmatprep.subr.bf16.mxu0 0
    %1448 = vmatpush1.bf16.xpose.msra.mxu0 0
    %1449 = vmatprep.subr.bf16.mxu0 0
    %1450 = vmatpush1.bf16.xpose.msra.mxu0 0
    %1451 = vmatprep.subr.bf16.mxu0 0
    %1452 = vmatpush1.bf16.xpose.msra.mxu0 0
    %1453 = vmatprep.mubr.bf16.mxu0 0
    %1454 = vmatmul.mubr.bf16.gmra.mrb[0].mxu0 %v1416
    %v1455 = vpop.f32.mrb[0].mxu0
    %v1456 = vadd.f32 %v435, %v1455
    %v1457 = vpop.f32.mrb[0].mxu0
    %v1458 = vpop.f32.mrb[0].mxu0
    %v1459 = vpop.f32.mrb[0].mxu0
    %1460 = vdwg.mxu0
    %1461 = vrot.lane.b32.xlu0 %v239, 120
    %v1462 = vpop.permute.xlu0 %1461
    %1463 = vrot.lane.b32.xlu0 %v323, 120
    %v1464 = vpop.permute.xlu0 %1463
    %v1466 = vsel %vm444, %v1462, 0
    %v1469 = vsel %vm444, %v1464, 0
    %1471 = vmatprep.subr.bf16.mxu0 0
    %1472 = vmatpush1.bf16.xpose.msra.mxu0 %v1469
    %1473 = vmatprep.subr.bf16.mxu0 0
    %1474 = vmatpush1.bf16.xpose.msra.mxu0 0
    %1475 = vmatprep.subr.bf16.mxu0 0
    %1476 = vmatpush1.bf16.xpose.msra.mxu0 0
    %1477 = vmatprep.subr.bf16.mxu0 0
    %1478 = vmatpush1.bf16.xpose.msra.mxu0 0
    %1479 = vmatprep.subr.bf16.mxu0 0
    %1480 = vmatpush1.bf16.xpose.msra.mxu0 0
    %1481 = vmatprep.subr.bf16.mxu0 0
    %1482 = vmatpush1.bf16.xpose.msra.mxu0 0
    %1483 = vmatprep.subr.bf16.mxu0 0
    %1484 = vmatpush1.bf16.xpose.msra.mxu0 0
    %1485 = vmatprep.subr.bf16.mxu0 0
    %1486 = vmatpush1.bf16.xpose.msra.mxu0 0
    %1487 = vmatprep.subr.bf16.mxu0 0
    %1488 = vmatpush1.bf16.xpose.msra.mxu0 0
    %1489 = vmatprep.subr.bf16.mxu0 0
    %1490 = vmatpush1.bf16.xpose.msra.mxu0 0
    %1491 = vmatprep.subr.bf16.mxu0 0
    %1492 = vmatpush1.bf16.xpose.msra.mxu0 0
    %1493 = vmatprep.subr.bf16.mxu0 0
    %1494 = vmatpush1.bf16.xpose.msra.mxu0 0
    %1495 = vmatprep.subr.bf16.mxu0 0
    %1496 = vmatpush1.bf16.xpose.msra.mxu0 0
    %1497 = vmatprep.subr.bf16.mxu0 0
    %1498 = vmatpush1.bf16.xpose.msra.mxu0 0
    %1499 = vmatprep.subr.bf16.mxu0 0
    %1500 = vmatpush1.bf16.xpose.msra.mxu0 0
    %1501 = vmatprep.subr.bf16.mxu0 0
    %1502 = vmatpush1.bf16.xpose.msra.mxu0 0
    %1503 = vmatprep.mubr.bf16.mxu0 0
    %1504 = vmatmul.mubr.bf16.gmra.mrb[0].mxu0 %v1466
    %v1505 = vpop.f32.mrb[0].mxu0
    %v1506 = vadd.f32 %v439, %v1505
    %v1507 = vpop.f32.mrb[0].mxu0
    %v1508 = vpop.f32.mrb[0].mxu0
    %v1509 = vpop.f32.mrb[0].mxu0
    %1510 = vdwg.mxu0
    %v1511 = vsel %vm629, %v1356, -inf
    %1512 = vmax.xlane.f32.xlu0 %v1511
    %v1513 = vpop.xlane.xlu0 %1512
    %v1514 = vsel %vm629, %v1406, -inf
    %1515 = vmax.xlane.f32.xlu0 %v1514
    %v1516 = vpop.xlane.xlu0 %1515
    %v1517 = vsel %vm629, %v1456, -inf
    %1518 = vmax.xlane.f32.xlu0 %v1517
    %v1519 = vpop.xlane.xlu0 %1518
    %v1520 = vsel %vm629, %v1506, -inf
    %1521 = vmax.xlane.f32.xlu0 %v1520
    %v1522 = vpop.xlane.xlu0 %1521
    %v1523 = vsub.f32 %v1356, %v1513
    %v1524 = vsub.f32 %v1406, %v1516
    %v1525 = vsub.f32 %v1456, %v1519
    %v1526 = vsub.f32 %v1506, %v1522
    %v1527 = vmul.f32 %v1523, 1.442695
    %v1528 = vpow.pop %v1527
    %v1529 = vmul.f32 %v1524, 1.442695
    %v1530 = vpow.pop %v1529
    %v1531 = vmul.f32 %v1525, 1.442695
    %v1532 = vpow.pop %v1531
    %v1533 = vmul.f32 %v1526, 1.442695
    %v1534 = vpow.pop %v1533
    %v1535 = vsel %vm629, %v1528, 0.0
    %1536 = vadd.xlane.f32.xlu0 %v1535
    %v1537 = vpop.xlane.xlu0 %1536
    %v1538 = vsel %vm629, %v1530, 0.0
    %1539 = vadd.xlane.f32.xlu0 %v1538
    %v1540 = vpop.xlane.xlu0 %1539
    %v1541 = vsel %vm629, %v1532, 0.0
    %1542 = vadd.xlane.f32.xlu0 %v1541
    %v1543 = vpop.xlane.xlu0 %1542
    %v1544 = vsel %vm629, %v1534, 0.0
    %1545 = vadd.xlane.f32.xlu0 %v1544
    %v1546 = vpop.xlane.xlu0 %1545
    %v1547 = vrcp.pop %v1537
    %v1548 = vrcp.pop %v1540
    %v1549 = vrcp.pop %v1543
    %v1550 = vrcp.pop %v1546
    %v1551 = vmul.f32 %v1528, %v1547
    %v1552 = vmul.f32 %v1530, %v1548
    %v1553 = vmul.f32 %v1532, %v1549
    %v1554 = vmul.f32 %v1534, %v1550
    %v1555 = vpack.c.bf16 %v1551, %v1551
    %v1556 = vpack.c.bf16 %v1552, %v1552
    %v1557 = vpack.c.bf16 %v1553, %v1553
    %v1558 = vpack.c.bf16 %v1554, %v1554
    %1559 = vrot.lane.b32.xlu0 %v404, 120
    %v1560 = vpop.permute.xlu0 %1559
    %v1562 = vsel %vm629, %v1555, 0
    %v1565 = vsel %vm681, %v1560, 0
    %1567 = vmatprep.subr.bf16.mxu0 0
    %1568 = vmatpush1.bf16.msra.mxu0 %v1565
    %1569 = vmatprep.subr.bf16.mxu0 0
    %1570 = vmatpush1.bf16.msra.mxu0 0
    %1571 = vmatprep.subr.bf16.mxu0 0
    %1572 = vmatpush1.bf16.msra.mxu0 0
    %1573 = vmatprep.subr.bf16.mxu0 0
    %1574 = vmatpush1.bf16.msra.mxu0 0
    %1575 = vmatprep.subr.bf16.mxu0 0
    %1576 = vmatpush1.bf16.msra.mxu0 0
    %1577 = vmatprep.subr.bf16.mxu0 0
    %1578 = vmatpush1.bf16.msra.mxu0 0
    %1579 = vmatprep.subr.bf16.mxu0 0
    %1580 = vmatpush1.bf16.msra.mxu0 0
    %1581 = vmatprep.subr.bf16.mxu0 0
    %1582 = vmatpush1.bf16.msra.mxu0 0
    %1583 = vmatprep.subr.bf16.mxu0 0
    %1584 = vmatpush1.bf16.msra.mxu0 0
    %1585 = vmatprep.subr.bf16.mxu0 0
    %1586 = vmatpush1.bf16.msra.mxu0 0
    %1587 = vmatprep.subr.bf16.mxu0 0
    %1588 = vmatpush1.bf16.msra.mxu0 0
    %1589 = vmatprep.subr.bf16.mxu0 0
    %1590 = vmatpush1.bf16.msra.mxu0 0
    %1591 = vmatprep.subr.bf16.mxu0 0
    %1592 = vmatpush1.bf16.msra.mxu0 0
    %1593 = vmatprep.subr.bf16.mxu0 0
    %1594 = vmatpush1.bf16.msra.mxu0 0
    %1595 = vmatprep.subr.bf16.mxu0 0
    %1596 = vmatpush1.bf16.msra.mxu0 0
    %1597 = vmatprep.subr.bf16.mxu0 0
    %1598 = vmatpush1.bf16.msra.mxu0 0
    %1599 = vmatprep.mubr.bf16.mxu0 0
    %1600 = vmatmul.mubr.bf16.gmra.mrb[0].mxu0 %v1562
    %v1601 = vpop.f32.mrb[0].mxu0
    %v1602 = vadd.f32 0.0, %v1601
    %v1603 = vpop.f32.mrb[0].mxu0
    %v1604 = vpop.f32.mrb[0].mxu0
    %v1605 = vpop.f32.mrb[0].mxu0
    %1606 = vdwg.mxu0
    %1607 = vrot.lane.b32.xlu0 %v405, 120
    %v1608 = vpop.permute.xlu0 %1607
    %v1610 = vsel %vm629, %v1556, 0
    %v1613 = vsel %vm681, %v1608, 0
    %1615 = vmatprep.subr.bf16.mxu0 0
    %1616 = vmatpush1.bf16.msra.mxu0 %v1613
    %1617 = vmatprep.subr.bf16.mxu0 0
    %1618 = vmatpush1.bf16.msra.mxu0 0
    %1619 = vmatprep.subr.bf16.mxu0 0
    %1620 = vmatpush1.bf16.msra.mxu0 0
    %1621 = vmatprep.subr.bf16.mxu0 0
    %1622 = vmatpush1.bf16.msra.mxu0 0
    %1623 = vmatprep.subr.bf16.mxu0 0
    %1624 = vmatpush1.bf16.msra.mxu0 0
    %1625 = vmatprep.subr.bf16.mxu0 0
    %1626 = vmatpush1.bf16.msra.mxu0 0
    %1627 = vmatprep.subr.bf16.mxu0 0
    %1628 = vmatpush1.bf16.msra.mxu0 0
    %1629 = vmatprep.subr.bf16.mxu0 0
    %1630 = vmatpush1.bf16.msra.mxu0 0
    %1631 = vmatprep.subr.bf16.mxu0 0
    %1632 = vmatpush1.bf16.msra.mxu0 0
    %1633 = vmatprep.subr.bf16.mxu0 0
    %1634 = vmatpush1.bf16.msra.mxu0 0
    %1635 = vmatprep.subr.bf16.mxu0 0
    %1636 = vmatpush1.bf16.msra.mxu0 0
    %1637 = vmatprep.subr.bf16.mxu0 0
    %1638 = vmatpush1.bf16.msra.mxu0 0
    %1639 = vmatprep.subr.bf16.mxu0 0
    %1640 = vmatpush1.bf16.msra.mxu0 0
    %1641 = vmatprep.subr.bf16.mxu0 0
    %1642 = vmatpush1.bf16.msra.mxu0 0
    %1643 = vmatprep.subr.bf16.mxu0 0
    %1644 = vmatpush1.bf16.msra.mxu0 0
    %1645 = vmatprep.subr.bf16.mxu0 0
    %1646 = vmatpush1.bf16.msra.mxu0 0
    %1647 = vmatprep.mubr.bf16.mxu0 0
    %1648 = vmatmul.mubr.bf16.gmra.mrb[0].mxu0 %v1610
    %v1649 = vpop.f32.mrb[0].mxu0
    %v1650 = vadd.f32 0.0, %v1649
    %v1651 = vpop.f32.mrb[0].mxu0
    %v1652 = vpop.f32.mrb[0].mxu0
    %v1653 = vpop.f32.mrb[0].mxu0
    %1654 = vdwg.mxu0
    %1655 = vrot.lane.b32.xlu0 %v406, 120
    %v1656 = vpop.permute.xlu0 %1655
    %v1658 = vsel %vm629, %v1557, 0
    %v1661 = vsel %vm681, %v1656, 0
    %1663 = vmatprep.subr.bf16.mxu0 0
    %1664 = vmatpush1.bf16.msra.mxu0 %v1661
    %1665 = vmatprep.subr.bf16.mxu0 0
    %1666 = vmatpush1.bf16.msra.mxu0 0
    %1667 = vmatprep.subr.bf16.mxu0 0
    %1668 = vmatpush1.bf16.msra.mxu0 0
    %1669 = vmatprep.subr.bf16.mxu0 0
    %1670 = vmatpush1.bf16.msra.mxu0 0
    %1671 = vmatprep.subr.bf16.mxu0 0
    %1672 = vmatpush1.bf16.msra.mxu0 0
    %1673 = vmatprep.subr.bf16.mxu0 0
    %1674 = vmatpush1.bf16.msra.mxu0 0
    %1675 = vmatprep.subr.bf16.mxu0 0
    %1676 = vmatpush1.bf16.msra.mxu0 0
    %1677 = vmatprep.subr.bf16.mxu0 0
    %1678 = vmatpush1.bf16.msra.mxu0 0
    %1679 = vmatprep.subr.bf16.mxu0 0
    %1680 = vmatpush1.bf16.msra.mxu0 0
    %1681 = vmatprep.subr.bf16.mxu0 0
    %1682 = vmatpush1.bf16.msra.mxu0 0
    %1683 = vmatprep.subr.bf16.mxu0 0
    %1684 = vmatpush1.bf16.msra.mxu0 0
    %1685 = vmatprep.subr.bf16.mxu0 0
    %1686 = vmatpush1.bf16.msra.mxu0 0
    %1687 = vmatprep.subr.bf16.mxu0 0
    %1688 = vmatpush1.bf16.msra.mxu0 0
    %1689 = vmatprep.subr.bf16.mxu0 0
    %1690 = vmatpush1.bf16.msra.mxu0 0
    %1691 = vmatprep.subr.bf16.mxu0 0
    %1692 = vmatpush1.bf16.msra.mxu0 0
    %1693 = vmatprep.subr.bf16.mxu0 0
    %1694 = vmatpush1.bf16.msra.mxu0 0
    %1695 = vmatprep.mubr.bf16.mxu0 0
    %1696 = vmatmul.mubr.bf16.gmra.mrb[0].mxu0 %v1658
    %v1697 = vpop.f32.mrb[0].mxu0
    %v1698 = vadd.f32 0.0, %v1697
    %v1699 = vpop.f32.mrb[0].mxu0
    %v1700 = vpop.f32.mrb[0].mxu0
    %v1701 = vpop.f32.mrb[0].mxu0
    %1702 = vdwg.mxu0
    %1703 = vrot.lane.b32.xlu0 %v407, 120
    %v1704 = vpop.permute.xlu0 %1703
    %v1706 = vsel %vm629, %v1558, 0
    %v1709 = vsel %vm681, %v1704, 0
    %1711 = vmatprep.subr.bf16.mxu0 0
    %1712 = vmatpush1.bf16.msra.mxu0 %v1709
    %1713 = vmatprep.subr.bf16.mxu0 0
    %1714 = vmatpush1.bf16.msra.mxu0 0
    %1715 = vmatprep.subr.bf16.mxu0 0
    %1716 = vmatpush1.bf16.msra.mxu0 0
    %1717 = vmatprep.subr.bf16.mxu0 0
    %1718 = vmatpush1.bf16.msra.mxu0 0
    %1719 = vmatprep.subr.bf16.mxu0 0
    %1720 = vmatpush1.bf16.msra.mxu0 0
    %1721 = vmatprep.subr.bf16.mxu0 0
    %1722 = vmatpush1.bf16.msra.mxu0 0
    %1723 = vmatprep.subr.bf16.mxu0 0
    %1724 = vmatpush1.bf16.msra.mxu0 0
    %1725 = vmatprep.subr.bf16.mxu0 0
    %1726 = vmatpush1.bf16.msra.mxu0 0
    %1727 = vmatprep.subr.bf16.mxu0 0
    %1728 = vmatpush1.bf16.msra.mxu0 0
    %1729 = vmatprep.subr.bf16.mxu0 0
    %1730 = vmatpush1.bf16.msra.mxu0 0
    %1731 = vmatprep.subr.bf16.mxu0 0
    %1732 = vmatpush1.bf16.msra.mxu0 0
    %1733 = vmatprep.subr.bf16.mxu0 0
    %1734 = vmatpush1.bf16.msra.mxu0 0
    %1735 = vmatprep.subr.bf16.mxu0 0
    %1736 = vmatpush1.bf16.msra.mxu0 0
    %1737 = vmatprep.subr.bf16.mxu0 0
    %1738 = vmatpush1.bf16.msra.mxu0 0
    %1739 = vmatprep.subr.bf16.mxu0 0
    %1740 = vmatpush1.bf16.msra.mxu0 0
    %1741 = vmatprep.subr.bf16.mxu0 0
    %1742 = vmatpush1.bf16.msra.mxu0 0
    %1743 = vmatprep.mubr.bf16.mxu0 0
    %1744 = vmatmul.mubr.bf16.gmra.mrb[0].mxu0 %v1706
    %v1745 = vpop.f32.mrb[0].mxu0
    %v1746 = vadd.f32 0.0, %v1745
    %v1747 = vpop.f32.mrb[0].mxu0
    %v1748 = vpop.f32.mrb[0].mxu0
    %v1749 = vpop.f32.mrb[0].mxu0
    %1750 = vdwg.mxu0
    %v1751 = vpack.c.bf16 %v1602, %v1602
    %v1752 = vpack.c.bf16 %v1650, %v1650
    %v1753 = vpack.c.bf16 %v1698, %v1698
    %v1754 = vpack.c.bf16 %v1746, %v1746
    %1755 = vrot.lane.b32.xlu0 %v236, 116
    %v1756 = vpop.permute.xlu0 %1755
    %1757 = vrot.lane.b32.xlu0 %v320, 116
    %v1758 = vpop.permute.xlu0 %1757
    %v1760 = vsel %vm444, %v1756, 0
    %v1763 = vsel %vm444, %v1758, 0
    %1765 = vmatprep.subr.bf16.mxu0 0
    %1766 = vmatpush1.bf16.xpose.msra.mxu0 %v1763
    %1767 = vmatprep.subr.bf16.mxu0 0
    %1768 = vmatpush1.bf16.xpose.msra.mxu0 0
    %1769 = vmatprep.subr.bf16.mxu0 0
    %1770 = vmatpush1.bf16.xpose.msra.mxu0 0
    %1771 = vmatprep.subr.bf16.mxu0 0
    %1772 = vmatpush1.bf16.xpose.msra.mxu0 0
    %1773 = vmatprep.subr.bf16.mxu0 0
    %1774 = vmatpush1.bf16.xpose.msra.mxu0 0
    %1775 = vmatprep.subr.bf16.mxu0 0
    %1776 = vmatpush1.bf16.xpose.msra.mxu0 0
    %1777 = vmatprep.subr.bf16.mxu0 0
    %1778 = vmatpush1.bf16.xpose.msra.mxu0 0
    %1779 = vmatprep.subr.bf16.mxu0 0
    %1780 = vmatpush1.bf16.xpose.msra.mxu0 0
    %1781 = vmatprep.subr.bf16.mxu0 0
    %1782 = vmatpush1.bf16.xpose.msra.mxu0 0
    %1783 = vmatprep.subr.bf16.mxu0 0
    %1784 = vmatpush1.bf16.xpose.msra.mxu0 0
    %1785 = vmatprep.subr.bf16.mxu0 0
    %1786 = vmatpush1.bf16.xpose.msra.mxu0 0
    %1787 = vmatprep.subr.bf16.mxu0 0
    %1788 = vmatpush1.bf16.xpose.msra.mxu0 0
    %1789 = vmatprep.subr.bf16.mxu0 0
    %1790 = vmatpush1.bf16.xpose.msra.mxu0 0
    %1791 = vmatprep.subr.bf16.mxu0 0
    %1792 = vmatpush1.bf16.xpose.msra.mxu0 0
    %1793 = vmatprep.subr.bf16.mxu0 0
    %1794 = vmatpush1.bf16.xpose.msra.mxu0 0
    %1795 = vmatprep.subr.bf16.mxu0 0
    %1796 = vmatpush1.bf16.xpose.msra.mxu0 0
    %1797 = vmatprep.mubr.bf16.mxu0 0
    %1798 = vmatmul.mubr.bf16.gmra.mrb[0].mxu0 %v1760
    %v1799 = vpop.f32.mrb[0].mxu0
    %v1800 = vadd.f32 %v427, %v1799
    %v1801 = vpop.f32.mrb[0].mxu0
    %v1802 = vpop.f32.mrb[0].mxu0
    %v1803 = vpop.f32.mrb[0].mxu0
    %1804 = vdwg.mxu0
    %1805 = vrot.lane.b32.xlu0 %v237, 116
    %v1806 = vpop.permute.xlu0 %1805
    %1807 = vrot.lane.b32.xlu0 %v321, 116
    %v1808 = vpop.permute.xlu0 %1807
    %v1810 = vsel %vm444, %v1806, 0
    %v1813 = vsel %vm444, %v1808, 0
    %1815 = vmatprep.subr.bf16.mxu0 0
    %1816 = vmatpush1.bf16.xpose.msra.mxu0 %v1813
    %1817 = vmatprep.subr.bf16.mxu0 0
    %1818 = vmatpush1.bf16.xpose.msra.mxu0 0
    %1819 = vmatprep.subr.bf16.mxu0 0
    %1820 = vmatpush1.bf16.xpose.msra.mxu0 0
    %1821 = vmatprep.subr.bf16.mxu0 0
    %1822 = vmatpush1.bf16.xpose.msra.mxu0 0
    %1823 = vmatprep.subr.bf16.mxu0 0
    %1824 = vmatpush1.bf16.xpose.msra.mxu0 0
    %1825 = vmatprep.subr.bf16.mxu0 0
    %1826 = vmatpush1.bf16.xpose.msra.mxu0 0
    %1827 = vmatprep.subr.bf16.mxu0 0
    %1828 = vmatpush1.bf16.xpose.msra.mxu0 0
    %1829 = vmatprep.subr.bf16.mxu0 0
    %1830 = vmatpush1.bf16.xpose.msra.mxu0 0
    %1831 = vmatprep.subr.bf16.mxu0 0
    %1832 = vmatpush1.bf16.xpose.msra.mxu0 0
    %1833 = vmatprep.subr.bf16.mxu0 0
    %1834 = vmatpush1.bf16.xpose.msra.mxu0 0
    %1835 = vmatprep.subr.bf16.mxu0 0
    %1836 = vmatpush1.bf16.xpose.msra.mxu0 0
    %1837 = vmatprep.subr.bf16.mxu0 0
    %1838 = vmatpush1.bf16.xpose.msra.mxu0 0
    %1839 = vmatprep.subr.bf16.mxu0 0
    %1840 = vmatpush1.bf16.xpose.msra.mxu0 0
    %1841 = vmatprep.subr.bf16.mxu0 0
    %1842 = vmatpush1.bf16.xpose.msra.mxu0 0
    %1843 = vmatprep.subr.bf16.mxu0 0
    %1844 = vmatpush1.bf16.xpose.msra.mxu0 0
    %1845 = vmatprep.subr.bf16.mxu0 0
    %1846 = vmatpush1.bf16.xpose.msra.mxu0 0
    %1847 = vmatprep.mubr.bf16.mxu0 0
    %1848 = vmatmul.mubr.bf16.gmra.mrb[0].mxu0 %v1810
    %v1849 = vpop.f32.mrb[0].mxu0
    %v1850 = vadd.f32 %v431, %v1849
    %v1851 = vpop.f32.mrb[0].mxu0
    %v1852 = vpop.f32.mrb[0].mxu0
    %v1853 = vpop.f32.mrb[0].mxu0
    %1854 = vdwg.mxu0
    %1855 = vrot.lane.b32.xlu0 %v238, 116
    %v1856 = vpop.permute.xlu0 %1855
    %1857 = vrot.lane.b32.xlu0 %v322, 116
    %v1858 = vpop.permute.xlu0 %1857
    %v1860 = vsel %vm444, %v1856, 0
    %v1863 = vsel %vm444, %v1858, 0
    %1865 = vmatprep.subr.bf16.mxu0 0
    %1866 = vmatpush1.bf16.xpose.msra.mxu0 %v1863
    %1867 = vmatprep.subr.bf16.mxu0 0
    %1868 = vmatpush1.bf16.xpose.msra.mxu0 0
    %1869 = vmatprep.subr.bf16.mxu0 0
    %1870 = vmatpush1.bf16.xpose.msra.mxu0 0
    %1871 = vmatprep.subr.bf16.mxu0 0
    %1872 = vmatpush1.bf16.xpose.msra.mxu0 0
    %1873 = vmatprep.subr.bf16.mxu0 0
    %1874 = vmatpush1.bf16.xpose.msra.mxu0 0
    %1875 = vmatprep.subr.bf16.mxu0 0
    %1876 = vmatpush1.bf16.xpose.msra.mxu0 0
    %1877 = vmatprep.subr.bf16.mxu0 0
    %1878 = vmatpush1.bf16.xpose.msra.mxu0 0
    %1879 = vmatprep.subr.bf16.mxu0 0
    %1880 = vmatpush1.bf16.xpose.msra.mxu0 0
    %1881 = vmatprep.subr.bf16.mxu0 0
    %1882 = vmatpush1.bf16.xpose.msra.mxu0 0
    %1883 = vmatprep.subr.bf16.mxu0 0
    %1884 = vmatpush1.bf16.xpose.msra.mxu0 0
    %1885 = vmatprep.subr.bf16.mxu0 0
    %1886 = vmatpush1.bf16.xpose.msra.mxu0 0
    %1887 = vmatprep.subr.bf16.mxu0 0
    %1888 = vmatpush1.bf16.xpose.msra.mxu0 0
    %1889 = vmatprep.subr.bf16.mxu0 0
    %1890 = vmatpush1.bf16.xpose.msra.mxu0 0
    %1891 = vmatprep.subr.bf16.mxu0 0
    %1892 = vmatpush1.bf16.xpose.msra.mxu0 0
    %1893 = vmatprep.subr.bf16.mxu0 0
    %1894 = vmatpush1.bf16.xpose.msra.mxu0 0
    %1895 = vmatprep.subr.bf16.mxu0 0
    %1896 = vmatpush1.bf16.xpose.msra.mxu0 0
    %1897 = vmatprep.mubr.bf16.mxu0 0
    %1898 = vmatmul.mubr.bf16.gmra.mrb[0].mxu0 %v1860
    %v1899 = vpop.f32.mrb[0].mxu0
    %v1900 = vadd.f32 %v435, %v1899
    %v1901 = vpop.f32.mrb[0].mxu0
    %v1902 = vpop.f32.mrb[0].mxu0
    %v1903 = vpop.f32.mrb[0].mxu0
    %1904 = vdwg.mxu0
    %1905 = vrot.lane.b32.xlu0 %v239, 116
    %v1906 = vpop.permute.xlu0 %1905
    %1907 = vrot.lane.b32.xlu0 %v323, 116
    %v1908 = vpop.permute.xlu0 %1907
    %v1910 = vsel %vm444, %v1906, 0
    %v1913 = vsel %vm444, %v1908, 0
    %1915 = vmatprep.subr.bf16.mxu0 0
    %1916 = vmatpush1.bf16.xpose.msra.mxu0 %v1913
    %1917 = vmatprep.subr.bf16.mxu0 0
    %1918 = vmatpush1.bf16.xpose.msra.mxu0 0
    %1919 = vmatprep.subr.bf16.mxu0 0
    %1920 = vmatpush1.bf16.xpose.msra.mxu0 0
    %1921 = vmatprep.subr.bf16.mxu0 0
    %1922 = vmatpush1.bf16.xpose.msra.mxu0 0
    %1923 = vmatprep.subr.bf16.mxu0 0
    %1924 = vmatpush1.bf16.xpose.msra.mxu0 0
    %1925 = vmatprep.subr.bf16.mxu0 0
    %1926 = vmatpush1.bf16.xpose.msra.mxu0 0
    %1927 = vmatprep.subr.bf16.mxu0 0
    %1928 = vmatpush1.bf16.xpose.msra.mxu0 0
    %1929 = vmatprep.subr.bf16.mxu0 0
    %1930 = vmatpush1.bf16.xpose.msra.mxu0 0
    %1931 = vmatprep.subr.bf16.mxu0 0
    %1932 = vmatpush1.bf16.xpose.msra.mxu0 0
    %1933 = vmatprep.subr.bf16.mxu0 0
    %1934 = vmatpush1.bf16.xpose.msra.mxu0 0
    %1935 = vmatprep.subr.bf16.mxu0 0
    %1936 = vmatpush1.bf16.xpose.msra.mxu0 0
    %1937 = vmatprep.subr.bf16.mxu0 0
    %1938 = vmatpush1.bf16.xpose.msra.mxu0 0
    %1939 = vmatprep.subr.bf16.mxu0 0
    %1940 = vmatpush1.bf16.xpose.msra.mxu0 0
    %1941 = vmatprep.subr.bf16.mxu0 0
    %1942 = vmatpush1.bf16.xpose.msra.mxu0 0
    %1943 = vmatprep.subr.bf16.mxu0 0
    %1944 = vmatpush1.bf16.xpose.msra.mxu0 0
    %1945 = vmatprep.subr.bf16.mxu0 0
    %1946 = vmatpush1.bf16.xpose.msra.mxu0 0
    %1947 = vmatprep.mubr.bf16.mxu0 0
    %1948 = vmatmul.mubr.bf16.gmra.mrb[0].mxu0 %v1910
    %v1949 = vpop.f32.mrb[0].mxu0
    %v1950 = vadd.f32 %v439, %v1949
    %v1951 = vpop.f32.mrb[0].mxu0
    %v1952 = vpop.f32.mrb[0].mxu0
    %v1953 = vpop.f32.mrb[0].mxu0
    %1954 = vdwg.mxu0
    %v1955 = vsel %vm629, %v1800, -inf
    %1956 = vmax.xlane.f32.xlu0 %v1955
    %v1957 = vpop.xlane.xlu0 %1956
    %v1958 = vsel %vm629, %v1850, -inf
    %1959 = vmax.xlane.f32.xlu0 %v1958
    %v1960 = vpop.xlane.xlu0 %1959
    %v1961 = vsel %vm629, %v1900, -inf
    %1962 = vmax.xlane.f32.xlu0 %v1961
    %v1963 = vpop.xlane.xlu0 %1962
    %v1964 = vsel %vm629, %v1950, -inf
    %1965 = vmax.xlane.f32.xlu0 %v1964
    %v1966 = vpop.xlane.xlu0 %1965
    %v1967 = vsub.f32 %v1800, %v1957
    %v1968 = vsub.f32 %v1850, %v1960
    %v1969 = vsub.f32 %v1900, %v1963
    %v1970 = vsub.f32 %v1950, %v1966
    %v1971 = vmul.f32 %v1967, 1.442695
    %v1972 = vpow.pop %v1971
    %v1973 = vmul.f32 %v1968, 1.442695
    %v1974 = vpow.pop %v1973
    %v1975 = vmul.f32 %v1969, 1.442695
    %v1976 = vpow.pop %v1975
    %v1977 = vmul.f32 %v1970, 1.442695
    %v1978 = vpow.pop %v1977
    %v1979 = vsel %vm629, %v1972, 0.0
    %1980 = vadd.xlane.f32.xlu0 %v1979
    %v1981 = vpop.xlane.xlu0 %1980
    %v1982 = vsel %vm629, %v1974, 0.0
    %1983 = vadd.xlane.f32.xlu0 %v1982
    %v1984 = vpop.xlane.xlu0 %1983
    %v1985 = vsel %vm629, %v1976, 0.0
    %1986 = vadd.xlane.f32.xlu0 %v1985
    %v1987 = vpop.xlane.xlu0 %1986
    %v1988 = vsel %vm629, %v1978, 0.0
    %1989 = vadd.xlane.f32.xlu0 %v1988
    %v1990 = vpop.xlane.xlu0 %1989
    %v1991 = vrcp.pop %v1981
    %v1992 = vrcp.pop %v1984
    %v1993 = vrcp.pop %v1987
    %v1994 = vrcp.pop %v1990
    %v1995 = vmul.f32 %v1972, %v1991
    %v1996 = vmul.f32 %v1974, %v1992
    %v1997 = vmul.f32 %v1976, %v1993
    %v1998 = vmul.f32 %v1978, %v1994
    %v1999 = vpack.c.bf16 %v1995, %v1995
    %v2000 = vpack.c.bf16 %v1996, %v1996
    %v2001 = vpack.c.bf16 %v1997, %v1997
    %v2002 = vpack.c.bf16 %v1998, %v1998
    %2003 = vrot.lane.b32.xlu0 %v404, 116
    %v2004 = vpop.permute.xlu0 %2003
    %v2006 = vsel %vm629, %v1999, 0
    %v2009 = vsel %vm681, %v2004, 0
    %2011 = vmatprep.subr.bf16.mxu0 0
    %2012 = vmatpush1.bf16.msra.mxu0 %v2009
    %2013 = vmatprep.subr.bf16.mxu0 0
    %2014 = vmatpush1.bf16.msra.mxu0 0
    %2015 = vmatprep.subr.bf16.mxu0 0
    %2016 = vmatpush1.bf16.msra.mxu0 0
    %2017 = vmatprep.subr.bf16.mxu0 0
    %2018 = vmatpush1.bf16.msra.mxu0 0
    %2019 = vmatprep.subr.bf16.mxu0 0
    %2020 = vmatpush1.bf16.msra.mxu0 0
    %2021 = vmatprep.subr.bf16.mxu0 0
    %2022 = vmatpush1.bf16.msra.mxu0 0
    %2023 = vmatprep.subr.bf16.mxu0 0
    %2024 = vmatpush1.bf16.msra.mxu0 0
    %2025 = vmatprep.subr.bf16.mxu0 0
    %2026 = vmatpush1.bf16.msra.mxu0 0
    %2027 = vmatprep.subr.bf16.mxu0 0
    %2028 = vmatpush1.bf16.msra.mxu0 0
    %2029 = vmatprep.subr.bf16.mxu0 0
    %2030 = vmatpush1.bf16.msra.mxu0 0
    %2031 = vmatprep.subr.bf16.mxu0 0
    %2032 = vmatpush1.bf16.msra.mxu0 0
    %2033 = vmatprep.subr.bf16.mxu0 0
    %2034 = vmatpush1.bf16.msra.mxu0 0
    %2035 = vmatprep.subr.bf16.mxu0 0
    %2036 = vmatpush1.bf16.msra.mxu0 0
    %2037 = vmatprep.subr.bf16.mxu0 0
    %2038 = vmatpush1.bf16.msra.mxu0 0
    %2039 = vmatprep.subr.bf16.mxu0 0
    %2040 = vmatpush1.bf16.msra.mxu0 0
    %2041 = vmatprep.subr.bf16.mxu0 0
    %2042 = vmatpush1.bf16.msra.mxu0 0
    %2043 = vmatprep.mubr.bf16.mxu0 0
    %2044 = vmatmul.mubr.bf16.gmra.mrb[0].mxu0 %v2006
    %v2045 = vpop.f32.mrb[0].mxu0
    %v2046 = vadd.f32 0.0, %v2045
    %v2047 = vpop.f32.mrb[0].mxu0
    %v2048 = vpop.f32.mrb[0].mxu0
    %v2049 = vpop.f32.mrb[0].mxu0
    %2050 = vdwg.mxu0
    %2051 = vrot.lane.b32.xlu0 %v405, 116
    %v2052 = vpop.permute.xlu0 %2051
    %v2054 = vsel %vm629, %v2000, 0
    %v2057 = vsel %vm681, %v2052, 0
    %2059 = vmatprep.subr.bf16.mxu0 0
    %2060 = vmatpush1.bf16.msra.mxu0 %v2057
    %2061 = vmatprep.subr.bf16.mxu0 0
    %2062 = vmatpush1.bf16.msra.mxu0 0
    %2063 = vmatprep.subr.bf16.mxu0 0
    %2064 = vmatpush1.bf16.msra.mxu0 0
    %2065 = vmatprep.subr.bf16.mxu0 0
    %2066 = vmatpush1.bf16.msra.mxu0 0
    %2067 = vmatprep.subr.bf16.mxu0 0
    %2068 = vmatpush1.bf16.msra.mxu0 0
    %2069 = vmatprep.subr.bf16.mxu0 0
    %2070 = vmatpush1.bf16.msra.mxu0 0
    %2071 = vmatprep.subr.bf16.mxu0 0
    %2072 = vmatpush1.bf16.msra.mxu0 0
    %2073 = vmatprep.subr.bf16.mxu0 0
    %2074 = vmatpush1.bf16.msra.mxu0 0
    %2075 = vmatprep.subr.bf16.mxu0 0
    %2076 = vmatpush1.bf16.msra.mxu0 0
    %2077 = vmatprep.subr.bf16.mxu0 0
    %2078 = vmatpush1.bf16.msra.mxu0 0
    %2079 = vmatprep.subr.bf16.mxu0 0
    %2080 = vmatpush1.bf16.msra.mxu0 0
    %2081 = vmatprep.subr.bf16.mxu0 0
    %2082 = vmatpush1.bf16.msra.mxu0 0
    %2083 = vmatprep.subr.bf16.mxu0 0
    %2084 = vmatpush1.bf16.msra.mxu0 0
    %2085 = vmatprep.subr.bf16.mxu0 0
    %2086 = vmatpush1.bf16.msra.mxu0 0
    %2087 = vmatprep.subr.bf16.mxu0 0
    %2088 = vmatpush1.bf16.msra.mxu0 0
    %2089 = vmatprep.subr.bf16.mxu0 0
    %2090 = vmatpush1.bf16.msra.mxu0 0
    %2091 = vmatprep.mubr.bf16.mxu0 0
    %2092 = vmatmul.mubr.bf16.gmra.mrb[0].mxu0 %v2054
    %v2093 = vpop.f32.mrb[0].mxu0
    %v2094 = vadd.f32 0.0, %v2093
    %v2095 = vpop.f32.mrb[0].mxu0
    %v2096 = vpop.f32.mrb[0].mxu0
    %v2097 = vpop.f32.mrb[0].mxu0
    %2098 = vdwg.mxu0
    %2099 = vrot.lane.b32.xlu0 %v406, 116
    %v2100 = vpop.permute.xlu0 %2099
    %v2102 = vsel %vm629, %v2001, 0
    %v2105 = vsel %vm681, %v2100, 0
    %2107 = vmatprep.subr.bf16.mxu0 0
    %2108 = vmatpush1.bf16.msra.mxu0 %v2105
    %2109 = vmatprep.subr.bf16.mxu0 0
    %2110 = vmatpush1.bf16.msra.mxu0 0
    %2111 = vmatprep.subr.bf16.mxu0 0
    %2112 = vmatpush1.bf16.msra.mxu0 0
    %2113 = vmatprep.subr.bf16.mxu0 0
    %2114 = vmatpush1.bf16.msra.mxu0 0
    %2115 = vmatprep.subr.bf16.mxu0 0
    %2116 = vmatpush1.bf16.msra.mxu0 0
    %2117 = vmatprep.subr.bf16.mxu0 0
    %2118 = vmatpush1.bf16.msra.mxu0 0
    %2119 = vmatprep.subr.bf16.mxu0 0
    %2120 = vmatpush1.bf16.msra.mxu0 0
    %2121 = vmatprep.subr.bf16.mxu0 0
    %2122 = vmatpush1.bf16.msra.mxu0 0
    %2123 = vmatprep.subr.bf16.mxu0 0
    %2124 = vmatpush1.bf16.msra.mxu0 0
    %2125 = vmatprep.subr.bf16.mxu0 0
    %2126 = vmatpush1.bf16.msra.mxu0 0
    %2127 = vmatprep.subr.bf16.mxu0 0
    %2128 = vmatpush1.bf16.msra.mxu0 0
    %2129 = vmatprep.subr.bf16.mxu0 0
    %2130 = vmatpush1.bf16.msra.mxu0 0
    %2131 = vmatprep.subr.bf16.mxu0 0
    %2132 = vmatpush1.bf16.msra.mxu0 0
    %2133 = vmatprep.subr.bf16.mxu0 0
    %2134 = vmatpush1.bf16.msra.mxu0 0
    %2135 = vmatprep.subr.bf16.mxu0 0
    %2136 = vmatpush1.bf16.msra.mxu0 0
    %2137 = vmatprep.subr.bf16.mxu0 0
    %2138 = vmatpush1.bf16.msra.mxu0 0
    %2139 = vmatprep.mubr.bf16.mxu0 0
    %2140 = vmatmul.mubr.bf16.gmra.mrb[0].mxu0 %v2102
    %v2141 = vpop.f32.mrb[0].mxu0
    %v2142 = vadd.f32 0.0, %v2141
    %v2143 = vpop.f32.mrb[0].mxu0
    %v2144 = vpop.f32.mrb[0].mxu0
    %v2145 = vpop.f32.mrb[0].mxu0
    %2146 = vdwg.mxu0
    %2147 = vrot.lane.b32.xlu0 %v407, 116
    %v2148 = vpop.permute.xlu0 %2147
    %v2150 = vsel %vm629, %v2002, 0
    %v2153 = vsel %vm681, %v2148, 0
    %2155 = vmatprep.subr.bf16.mxu0 0
    %2156 = vmatpush1.bf16.msra.mxu0 %v2153
    %2157 = vmatprep.subr.bf16.mxu0 0
    %2158 = vmatpush1.bf16.msra.mxu0 0
    %2159 = vmatprep.subr.bf16.mxu0 0
    %2160 = vmatpush1.bf16.msra.mxu0 0
    %2161 = vmatprep.subr.bf16.mxu0 0
    %2162 = vmatpush1.bf16.msra.mxu0 0
    %2163 = vmatprep.subr.bf16.mxu0 0
    %2164 = vmatpush1.bf16.msra.mxu0 0
    %2165 = vmatprep.subr.bf16.mxu0 0
    %2166 = vmatpush1.bf16.msra.mxu0 0
    %2167 = vmatprep.subr.bf16.mxu0 0
    %2168 = vmatpush1.bf16.msra.mxu0 0
    %2169 = vmatprep.subr.bf16.mxu0 0
    %2170 = vmatpush1.bf16.msra.mxu0 0
    %2171 = vmatprep.subr.bf16.mxu0 0
    %2172 = vmatpush1.bf16.msra.mxu0 0
    %2173 = vmatprep.subr.bf16.mxu0 0
    %2174 = vmatpush1.bf16.msra.mxu0 0
    %2175 = vmatprep.subr.bf16.mxu0 0
    %2176 = vmatpush1.bf16.msra.mxu0 0
    %2177 = vmatprep.subr.bf16.mxu0 0
    %2178 = vmatpush1.bf16.msra.mxu0 0
    %2179 = vmatprep.subr.bf16.mxu0 0
    %2180 = vmatpush1.bf16.msra.mxu0 0
    %2181 = vmatprep.subr.bf16.mxu0 0
    %2182 = vmatpush1.bf16.msra.mxu0 0
    %2183 = vmatprep.subr.bf16.mxu0 0
    %2184 = vmatpush1.bf16.msra.mxu0 0
    %2185 = vmatprep.subr.bf16.mxu0 0
    %2186 = vmatpush1.bf16.msra.mxu0 0
    %2187 = vmatprep.mubr.bf16.mxu0 0
    %2188 = vmatmul.mubr.bf16.gmra.mrb[0].mxu0 %v2150
    %v2189 = vpop.f32.mrb[0].mxu0
    %v2190 = vadd.f32 0.0, %v2189
    %v2191 = vpop.f32.mrb[0].mxu0
    %v2192 = vpop.f32.mrb[0].mxu0
    %v2193 = vpop.f32.mrb[0].mxu0
    %2194 = vdwg.mxu0
    %v2195 = vpack.c.bf16 %v2046, %v2046
    %v2196 = vpack.c.bf16 %v2094, %v2094
    %v2197 = vpack.c.bf16 %v2142, %v2142
    %v2198 = vpack.c.bf16 %v2190, %v2190
    %2199 = vrot.lane.b32.xlu0 %v236, 112
    %v2200 = vpop.permute.xlu0 %2199
    %2201 = vrot.lane.b32.xlu0 %v320, 112
    %v2202 = vpop.permute.xlu0 %2201
    %v2204 = vsel %vm444, %v2200, 0
    %v2207 = vsel %vm444, %v2202, 0
    %2209 = vmatprep.subr.bf16.mxu0 0
    %2210 = vmatpush1.bf16.xpose.msra.mxu0 %v2207
    %2211 = vmatprep.subr.bf16.mxu0 0
    %2212 = vmatpush1.bf16.xpose.msra.mxu0 0
    %2213 = vmatprep.subr.bf16.mxu0 0
    %2214 = vmatpush1.bf16.xpose.msra.mxu0 0
    %2215 = vmatprep.subr.bf16.mxu0 0
    %2216 = vmatpush1.bf16.xpose.msra.mxu0 0
    %2217 = vmatprep.subr.bf16.mxu0 0
    %2218 = vmatpush1.bf16.xpose.msra.mxu0 0
    %2219 = vmatprep.subr.bf16.mxu0 0
    %2220 = vmatpush1.bf16.xpose.msra.mxu0 0
    %2221 = vmatprep.subr.bf16.mxu0 0
    %2222 = vmatpush1.bf16.xpose.msra.mxu0 0
    %2223 = vmatprep.subr.bf16.mxu0 0
    %2224 = vmatpush1.bf16.xpose.msra.mxu0 0
    %2225 = vmatprep.subr.bf16.mxu0 0
    %2226 = vmatpush1.bf16.xpose.msra.mxu0 0
    %2227 = vmatprep.subr.bf16.mxu0 0
    %2228 = vmatpush1.bf16.xpose.msra.mxu0 0
    %2229 = vmatprep.subr.bf16.mxu0 0
    %2230 = vmatpush1.bf16.xpose.msra.mxu0 0
    %2231 = vmatprep.subr.bf16.mxu0 0
    %2232 = vmatpush1.bf16.xpose.msra.mxu0 0
    %2233 = vmatprep.subr.bf16.mxu0 0
    %2234 = vmatpush1.bf16.xpose.msra.mxu0 0
    %2235 = vmatprep.subr.bf16.mxu0 0
    %2236 = vmatpush1.bf16.xpose.msra.mxu0 0
    %2237 = vmatprep.subr.bf16.mxu0 0
    %2238 = vmatpush1.bf16.xpose.msra.mxu0 0
    %2239 = vmatprep.subr.bf16.mxu0 0
    %2240 = vmatpush1.bf16.xpose.msra.mxu0 0
    %2241 = vmatprep.mubr.bf16.mxu0 0
    %2242 = vmatmul.mubr.bf16.gmra.mrb[0].mxu0 %v2204
    %v2243 = vpop.f32.mrb[0].mxu0
    %v2244 = vadd.f32 %v427, %v2243
    %v2245 = vpop.f32.mrb[0].mxu0
    %v2246 = vpop.f32.mrb[0].mxu0
    %v2247 = vpop.f32.mrb[0].mxu0
    %2248 = vdwg.mxu0
    %2249 = vrot.lane.b32.xlu0 %v237, 112
    %v2250 = vpop.permute.xlu0 %2249
    %2251 = vrot.lane.b32.xlu0 %v321, 112
    %v2252 = vpop.permute.xlu0 %2251
    %v2254 = vsel %vm444, %v2250, 0
    %v2257 = vsel %vm444, %v2252, 0
    %2259 = vmatprep.subr.bf16.mxu0 0
    %2260 = vmatpush1.bf16.xpose.msra.mxu0 %v2257
    %2261 = vmatprep.subr.bf16.mxu0 0
    %2262 = vmatpush1.bf16.xpose.msra.mxu0 0
    %2263 = vmatprep.subr.bf16.mxu0 0
    %2264 = vmatpush1.bf16.xpose.msra.mxu0 0
    %2265 = vmatprep.subr.bf16.mxu0 0
    %2266 = vmatpush1.bf16.xpose.msra.mxu0 0
    %2267 = vmatprep.subr.bf16.mxu0 0
    %2268 = vmatpush1.bf16.xpose.msra.mxu0 0
    %2269 = vmatprep.subr.bf16.mxu0 0
    %2270 = vmatpush1.bf16.xpose.msra.mxu0 0
    %2271 = vmatprep.subr.bf16.mxu0 0
    %2272 = vmatpush1.bf16.xpose.msra.mxu0 0
    %2273 = vmatprep.subr.bf16.mxu0 0
    %2274 = vmatpush1.bf16.xpose.msra.mxu0 0
    %2275 = vmatprep.subr.bf16.mxu0 0
    %2276 = vmatpush1.bf16.xpose.msra.mxu0 0
    %2277 = vmatprep.subr.bf16.mxu0 0
    %2278 = vmatpush1.bf16.xpose.msra.mxu0 0
    %2279 = vmatprep.subr.bf16.mxu0 0
    %2280 = vmatpush1.bf16.xpose.msra.mxu0 0
    %2281 = vmatprep.subr.bf16.mxu0 0
    %2282 = vmatpush1.bf16.xpose.msra.mxu0 0
    %2283 = vmatprep.subr.bf16.mxu0 0
    %2284 = vmatpush1.bf16.xpose.msra.mxu0 0
    %2285 = vmatprep.subr.bf16.mxu0 0
    %2286 = vmatpush1.bf16.xpose.msra.mxu0 0
    %2287 = vmatprep.subr.bf16.mxu0 0
    %2288 = vmatpush1.bf16.xpose.msra.mxu0 0
    %2289 = vmatprep.subr.bf16.mxu0 0
    %2290 = vmatpush1.bf16.xpose.msra.mxu0 0
    %2291 = vmatprep.mubr.bf16.mxu0 0
    %2292 = vmatmul.mubr.bf16.gmra.mrb[0].mxu0 %v2254
    %v2293 = vpop.f32.mrb[0].mxu0
    %v2294 = vadd.f32 %v431, %v2293
    %v2295 = vpop.f32.mrb[0].mxu0
    %v2296 = vpop.f32.mrb[0].mxu0
    %v2297 = vpop.f32.mrb[0].mxu0
    %2298 = vdwg.mxu0
    %2299 = vrot.lane.b32.xlu0 %v238, 112
    %v2300 = vpop.permute.xlu0 %2299
    %2301 = vrot.lane.b32.xlu0 %v322, 112
    %v2302 = vpop.permute.xlu0 %2301
    %v2304 = vsel %vm444, %v2300, 0
    %v2307 = vsel %vm444, %v2302, 0
    %2309 = vmatprep.subr.bf16.mxu0 0
    %2310 = vmatpush1.bf16.xpose.msra.mxu0 %v2307
    %2311 = vmatprep.subr.bf16.mxu0 0
    %2312 = vmatpush1.bf16.xpose.msra.mxu0 0
    %2313 = vmatprep.subr.bf16.mxu0 0
    %2314 = vmatpush1.bf16.xpose.msra.mxu0 0
    %2315 = vmatprep.subr.bf16.mxu0 0
    %2316 = vmatpush1.bf16.xpose.msra.mxu0 0
    %2317 = vmatprep.subr.bf16.mxu0 0
    %2318 = vmatpush1.bf16.xpose.msra.mxu0 0
    %2319 = vmatprep.subr.bf16.mxu0 0
    %2320 = vmatpush1.bf16.xpose.msra.mxu0 0
    %2321 = vmatprep.subr.bf16.mxu0 0
    %2322 = vmatpush1.bf16.xpose.msra.mxu0 0
    %2323 = vmatprep.subr.bf16.mxu0 0
    %2324 = vmatpush1.bf16.xpose.msra.mxu0 0
    %2325 = vmatprep.subr.bf16.mxu0 0
    %2326 = vmatpush1.bf16.xpose.msra.mxu0 0
    %2327 = vmatprep.subr.bf16.mxu0 0
    %2328 = vmatpush1.bf16.xpose.msra.mxu0 0
    %2329 = vmatprep.subr.bf16.mxu0 0
    %2330 = vmatpush1.bf16.xpose.msra.mxu0 0
    %2331 = vmatprep.subr.bf16.mxu0 0
    %2332 = vmatpush1.bf16.xpose.msra.mxu0 0
    %2333 = vmatprep.subr.bf16.mxu0 0
    %2334 = vmatpush1.bf16.xpose.msra.mxu0 0
    %2335 = vmatprep.subr.bf16.mxu0 0
    %2336 = vmatpush1.bf16.xpose.msra.mxu0 0
    %2337 = vmatprep.subr.bf16.mxu0 0
    %2338 = vmatpush1.bf16.xpose.msra.mxu0 0
    %2339 = vmatprep.subr.bf16.mxu0 0
    %2340 = vmatpush1.bf16.xpose.msra.mxu0 0
    %2341 = vmatprep.mubr.bf16.mxu0 0
    %2342 = vmatmul.mubr.bf16.gmra.mrb[0].mxu0 %v2304
    %v2343 = vpop.f32.mrb[0].mxu0
    %v2344 = vadd.f32 %v435, %v2343
    %v2345 = vpop.f32.mrb[0].mxu0
    %v2346 = vpop.f32.mrb[0].mxu0
    %v2347 = vpop.f32.mrb[0].mxu0
    %2348 = vdwg.mxu0
    %2349 = vrot.lane.b32.xlu0 %v239, 112
    %v2350 = vpop.permute.xlu0 %2349
    %2351 = vrot.lane.b32.xlu0 %v323, 112
    %v2352 = vpop.permute.xlu0 %2351
    %v2354 = vsel %vm444, %v2350, 0
    %v2357 = vsel %vm444, %v2352, 0
    %2359 = vmatprep.subr.bf16.mxu0 0
    %2360 = vmatpush1.bf16.xpose.msra.mxu0 %v2357
    %2361 = vmatprep.subr.bf16.mxu0 0
    %2362 = vmatpush1.bf16.xpose.msra.mxu0 0
    %2363 = vmatprep.subr.bf16.mxu0 0
    %2364 = vmatpush1.bf16.xpose.msra.mxu0 0
    %2365 = vmatprep.subr.bf16.mxu0 0
    %2366 = vmatpush1.bf16.xpose.msra.mxu0 0
    %2367 = vmatprep.subr.bf16.mxu0 0
    %2368 = vmatpush1.bf16.xpose.msra.mxu0 0
    %2369 = vmatprep.subr.bf16.mxu0 0
    %2370 = vmatpush1.bf16.xpose.msra.mxu0 0
    %2371 = vmatprep.subr.bf16.mxu0 0
    %2372 = vmatpush1.bf16.xpose.msra.mxu0 0
    %2373 = vmatprep.subr.bf16.mxu0 0
    %2374 = vmatpush1.bf16.xpose.msra.mxu0 0
    %2375 = vmatprep.subr.bf16.mxu0 0
    %2376 = vmatpush1.bf16.xpose.msra.mxu0 0
    %2377 = vmatprep.subr.bf16.mxu0 0
    %2378 = vmatpush1.bf16.xpose.msra.mxu0 0
    %2379 = vmatprep.subr.bf16.mxu0 0
    %2380 = vmatpush1.bf16.xpose.msra.mxu0 0
    %2381 = vmatprep.subr.bf16.mxu0 0
    %2382 = vmatpush1.bf16.xpose.msra.mxu0 0
    %2383 = vmatprep.subr.bf16.mxu0 0
    %2384 = vmatpush1.bf16.xpose.msra.mxu0 0
    %2385 = vmatprep.subr.bf16.mxu0 0
    %2386 = vmatpush1.bf16.xpose.msra.mxu0 0
    %2387 = vmatprep.subr.bf16.mxu0 0
    %2388 = vmatpush1.bf16.xpose.msra.mxu0 0
    %2389 = vmatprep.subr.bf16.mxu0 0
    %2390 = vmatpush1.bf16.xpose.msra.mxu0 0
    %2391 = vmatprep.mubr.bf16.mxu0 0
    %2392 = vmatmul.mubr.bf16.gmra.mrb[0].mxu0 %v2354
    %v2393 = vpop.f32.mrb[0].mxu0
    %v2394 = vadd.f32 %v439, %v2393
    %v2395 = vpop.f32.mrb[0].mxu0
    %v2396 = vpop.f32.mrb[0].mxu0
    %v2397 = vpop.f32.mrb[0].mxu0
    %2398 = vdwg.mxu0
    %v2399 = vsel %vm629, %v2244, -inf
    %2400 = vmax.xlane.f32.xlu0 %v2399
    %v2401 = vpop.xlane.xlu0 %2400
    %v2402 = vsel %vm629, %v2294, -inf
    %2403 = vmax.xlane.f32.xlu0 %v2402
    %v2404 = vpop.xlane.xlu0 %2403
    %v2405 = vsel %vm629, %v2344, -inf
    %2406 = vmax.xlane.f32.xlu0 %v2405
    %v2407 = vpop.xlane.xlu0 %2406
    %v2408 = vsel %vm629, %v2394, -inf
    %2409 = vmax.xlane.f32.xlu0 %v2408
    %v2410 = vpop.xlane.xlu0 %2409
    %v2411 = vsub.f32 %v2244, %v2401
    %v2412 = vsub.f32 %v2294, %v2404
    %v2413 = vsub.f32 %v2344, %v2407
    %v2414 = vsub.f32 %v2394, %v2410
    %v2415 = vmul.f32 %v2411, 1.442695
    %v2416 = vpow.pop %v2415
    %v2417 = vmul.f32 %v2412, 1.442695
    %v2418 = vpow.pop %v2417
    %v2419 = vmul.f32 %v2413, 1.442695
    %v2420 = vpow.pop %v2419
    %v2421 = vmul.f32 %v2414, 1.442695
    %v2422 = vpow.pop %v2421
    %v2423 = vsel %vm629, %v2416, 0.0
    %2424 = vadd.xlane.f32.xlu0 %v2423
    %v2425 = vpop.xlane.xlu0 %2424
    %v2426 = vsel %vm629, %v2418, 0.0
    %2427 = vadd.xlane.f32.xlu0 %v2426
    %v2428 = vpop.xlane.xlu0 %2427
    %v2429 = vsel %vm629, %v2420, 0.0
    %2430 = vadd.xlane.f32.xlu0 %v2429
    %v2431 = vpop.xlane.xlu0 %2430
    %v2432 = vsel %vm629, %v2422, 0.0
    %2433 = vadd.xlane.f32.xlu0 %v2432
    %v2434 = vpop.xlane.xlu0 %2433
    %v2435 = vrcp.pop %v2425
    %v2436 = vrcp.pop %v2428
    %v2437 = vrcp.pop %v2431
    %v2438 = vrcp.pop %v2434
    %v2439 = vmul.f32 %v2416, %v2435
    %v2440 = vmul.f32 %v2418, %v2436
    %v2441 = vmul.f32 %v2420, %v2437
    %v2442 = vmul.f32 %v2422, %v2438
    %v2443 = vpack.c.bf16 %v2439, %v2439
    %v2444 = vpack.c.bf16 %v2440, %v2440
    %v2445 = vpack.c.bf16 %v2441, %v2441
    %v2446 = vpack.c.bf16 %v2442, %v2442
    %2447 = vrot.lane.b32.xlu0 %v404, 112
    %v2448 = vpop.permute.xlu0 %2447
    %v2450 = vsel %vm629, %v2443, 0
    %v2453 = vsel %vm681, %v2448, 0
    %2455 = vmatprep.subr.bf16.mxu0 0
    %2456 = vmatpush1.bf16.msra.mxu0 %v2453
    %2457 = vmatprep.subr.bf16.mxu0 0
    %2458 = vmatpush1.bf16.msra.mxu0 0
    %2459 = vmatprep.subr.bf16.mxu0 0
    %2460 = vmatpush1.bf16.msra.mxu0 0
    %2461 = vmatprep.subr.bf16.mxu0 0
    %2462 = vmatpush1.bf16.msra.mxu0 0
    %2463 = vmatprep.subr.bf16.mxu0 0
    %2464 = vmatpush1.bf16.msra.mxu0 0
    %2465 = vmatprep.subr.bf16.mxu0 0
    %2466 = vmatpush1.bf16.msra.mxu0 0
    %2467 = vmatprep.subr.bf16.mxu0 0
    %2468 = vmatpush1.bf16.msra.mxu0 0
    %2469 = vmatprep.subr.bf16.mxu0 0
    %2470 = vmatpush1.bf16.msra.mxu0 0
    %2471 = vmatprep.subr.bf16.mxu0 0
    %2472 = vmatpush1.bf16.msra.mxu0 0
    %2473 = vmatprep.subr.bf16.mxu0 0
    %2474 = vmatpush1.bf16.msra.mxu0 0
    %2475 = vmatprep.subr.bf16.mxu0 0
    %2476 = vmatpush1.bf16.msra.mxu0 0
    %2477 = vmatprep.subr.bf16.mxu0 0
    %2478 = vmatpush1.bf16.msra.mxu0 0
    %2479 = vmatprep.subr.bf16.mxu0 0
    %2480 = vmatpush1.bf16.msra.mxu0 0
    %2481 = vmatprep.subr.bf16.mxu0 0
    %2482 = vmatpush1.bf16.msra.mxu0 0
    %2483 = vmatprep.subr.bf16.mxu0 0
    %2484 = vmatpush1.bf16.msra.mxu0 0
    %2485 = vmatprep.subr.bf16.mxu0 0
    %2486 = vmatpush1.bf16.msra.mxu0 0
    %2487 = vmatprep.mubr.bf16.mxu0 0
    %2488 = vmatmul.mubr.bf16.gmra.mrb[0].mxu0 %v2450
    %v2489 = vpop.f32.mrb[0].mxu0
    %v2490 = vadd.f32 0.0, %v2489
    %v2491 = vpop.f32.mrb[0].mxu0
    %v2492 = vpop.f32.mrb[0].mxu0
    %v2493 = vpop.f32.mrb[0].mxu0
    %2494 = vdwg.mxu0
    %2495 = vrot.lane.b32.xlu0 %v405, 112
    %v2496 = vpop.permute.xlu0 %2495
    %v2498 = vsel %vm629, %v2444, 0
    %v2501 = vsel %vm681, %v2496, 0
    %2503 = vmatprep.subr.bf16.mxu0 0
    %2504 = vmatpush1.bf16.msra.mxu0 %v2501
    %2505 = vmatprep.subr.bf16.mxu0 0
    %2506 = vmatpush1.bf16.msra.mxu0 0
    %2507 = vmatprep.subr.bf16.mxu0 0
    %2508 = vmatpush1.bf16.msra.mxu0 0
    %2509 = vmatprep.subr.bf16.mxu0 0
    %2510 = vmatpush1.bf16.msra.mxu0 0
    %2511 = vmatprep.subr.bf16.mxu0 0
    %2512 = vmatpush1.bf16.msra.mxu0 0
    %2513 = vmatprep.subr.bf16.mxu0 0
    %2514 = vmatpush1.bf16.msra.mxu0 0
    %2515 = vmatprep.subr.bf16.mxu0 0
    %2516 = vmatpush1.bf16.msra.mxu0 0
    %2517 = vmatprep.subr.bf16.mxu0 0
    %2518 = vmatpush1.bf16.msra.mxu0 0
    %2519 = vmatprep.subr.bf16.mxu0 0
    %2520 = vmatpush1.bf16.msra.mxu0 0
    %2521 = vmatprep.subr.bf16.mxu0 0
    %2522 = vmatpush1.bf16.msra.mxu0 0
    %2523 = vmatprep.subr.bf16.mxu0 0
    %2524 = vmatpush1.bf16.msra.mxu0 0
    %2525 = vmatprep.subr.bf16.mxu0 0
    %2526 = vmatpush1.bf16.msra.mxu0 0
    %2527 = vmatprep.subr.bf16.mxu0 0
    %2528 = vmatpush1.bf16.msra.mxu0 0
    %2529 = vmatprep.subr.bf16.mxu0 0
    %2530 = vmatpush1.bf16.msra.mxu0 0
    %2531 = vmatprep.subr.bf16.mxu0 0
    %2532 = vmatpush1.bf16.msra.mxu0 0
    %2533 = vmatprep.subr.bf16.mxu0 0
    %2534 = vmatpush1.bf16.msra.mxu0 0
    %2535 = vmatprep.mubr.bf16.mxu0 0
    %2536 = vmatmul.mubr.bf16.gmra.mrb[0].mxu0 %v2498
    %v2537 = vpop.f32.mrb[0].mxu0
    %v2538 = vadd.f32 0.0, %v2537
    %v2539 = vpop.f32.mrb[0].mxu0
    %v2540 = vpop.f32.mrb[0].mxu0
    %v2541 = vpop.f32.mrb[0].mxu0
    %2542 = vdwg.mxu0
    %2543 = vrot.lane.b32.xlu0 %v406, 112
    %v2544 = vpop.permute.xlu0 %2543
    %v2546 = vsel %vm629, %v2445, 0
    %v2549 = vsel %vm681, %v2544, 0
    %2551 = vmatprep.subr.bf16.mxu0 0
    %2552 = vmatpush1.bf16.msra.mxu0 %v2549
    %2553 = vmatprep.subr.bf16.mxu0 0
    %2554 = vmatpush1.bf16.msra.mxu0 0
    %2555 = vmatprep.subr.bf16.mxu0 0
    %2556 = vmatpush1.bf16.msra.mxu0 0
    %2557 = vmatprep.subr.bf16.mxu0 0
    %2558 = vmatpush1.bf16.msra.mxu0 0
    %2559 = vmatprep.subr.bf16.mxu0 0
    %2560 = vmatpush1.bf16.msra.mxu0 0
    %2561 = vmatprep.subr.bf16.mxu0 0
    %2562 = vmatpush1.bf16.msra.mxu0 0
    %2563 = vmatprep.subr.bf16.mxu0 0
    %2564 = vmatpush1.bf16.msra.mxu0 0
    %2565 = vmatprep.subr.bf16.mxu0 0
    %2566 = vmatpush1.bf16.msra.mxu0 0
    %2567 = vmatprep.subr.bf16.mxu0 0
    %2568 = vmatpush1.bf16.msra.mxu0 0
    %2569 = vmatprep.subr.bf16.mxu0 0
    %2570 = vmatpush1.bf16.msra.mxu0 0
    %2571 = vmatprep.subr.bf16.mxu0 0
    %2572 = vmatpush1.bf16.msra.mxu0 0
    %2573 = vmatprep.subr.bf16.mxu0 0
    %2574 = vmatpush1.bf16.msra.mxu0 0
    %2575 = vmatprep.subr.bf16.mxu0 0
    %2576 = vmatpush1.bf16.msra.mxu0 0
    %2577 = vmatprep.subr.bf16.mxu0 0
    %2578 = vmatpush1.bf16.msra.mxu0 0
    %2579 = vmatprep.subr.bf16.mxu0 0
    %2580 = vmatpush1.bf16.msra.mxu0 0
    %2581 = vmatprep.subr.bf16.mxu0 0
    %2582 = vmatpush1.bf16.msra.mxu0 0
    %2583 = vmatprep.mubr.bf16.mxu0 0
    %2584 = vmatmul.mubr.bf16.gmra.mrb[0].mxu0 %v2546
    %v2585 = vpop.f32.mrb[0].mxu0
    %v2586 = vadd.f32 0.0, %v2585
    %v2587 = vpop.f32.mrb[0].mxu0
    %v2588 = vpop.f32.mrb[0].mxu0
    %v2589 = vpop.f32.mrb[0].mxu0
    %2590 = vdwg.mxu0
    %2591 = vrot.lane.b32.xlu0 %v407, 112
    %v2592 = vpop.permute.xlu0 %2591
    %v2594 = vsel %vm629, %v2446, 0
    %v2597 = vsel %vm681, %v2592, 0
    %2599 = vmatprep.subr.bf16.mxu0 0
    %2600 = vmatpush1.bf16.msra.mxu0 %v2597
    %2601 = vmatprep.subr.bf16.mxu0 0
    %2602 = vmatpush1.bf16.msra.mxu0 0
    %2603 = vmatprep.subr.bf16.mxu0 0
    %2604 = vmatpush1.bf16.msra.mxu0 0
    %2605 = vmatprep.subr.bf16.mxu0 0
    %2606 = vmatpush1.bf16.msra.mxu0 0
    %2607 = vmatprep.subr.bf16.mxu0 0
    %2608 = vmatpush1.bf16.msra.mxu0 0
    %2609 = vmatprep.subr.bf16.mxu0 0
    %2610 = vmatpush1.bf16.msra.mxu0 0
    %2611 = vmatprep.subr.bf16.mxu0 0
    %2612 = vmatpush1.bf16.msra.mxu0 0
    %2613 = vmatprep.subr.bf16.mxu0 0
    %2614 = vmatpush1.bf16.msra.mxu0 0
    %2615 = vmatprep.subr.bf16.mxu0 0
    %2616 = vmatpush1.bf16.msra.mxu0 0
    %2617 = vmatprep.subr.bf16.mxu0 0
    %2618 = vmatpush1.bf16.msra.mxu0 0
    %2619 = vmatprep.subr.bf16.mxu0 0
    %2620 = vmatpush1.bf16.msra.mxu0 0
    %2621 = vmatprep.subr.bf16.mxu0 0
    %2622 = vmatpush1.bf16.msra.mxu0 0
    %2623 = vmatprep.subr.bf16.mxu0 0
    %2624 = vmatpush1.bf16.msra.mxu0 0
    %2625 = vmatprep.subr.bf16.mxu0 0
    %2626 = vmatpush1.bf16.msra.mxu0 0
    %2627 = vmatprep.subr.bf16.mxu0 0
    %2628 = vmatpush1.bf16.msra.mxu0 0
    %2629 = vmatprep.subr.bf16.mxu0 0
    %2630 = vmatpush1.bf16.msra.mxu0 0
    %2631 = vmatprep.mubr.bf16.mxu0 0
    %2632 = vmatmul.mubr.bf16.gmra.mrb[0].mxu0 %v2594
    %v2633 = vpop.f32.mrb[0].mxu0
    %v2634 = vadd.f32 0.0, %v2633
    %v2635 = vpop.f32.mrb[0].mxu0
    %v2636 = vpop.f32.mrb[0].mxu0
    %v2637 = vpop.f32.mrb[0].mxu0
    %2638 = vdwg.mxu0
    %v2639 = vpack.c.bf16 %v2490, %v2490
    %v2640 = vpack.c.bf16 %v2538, %v2538
    %v2641 = vpack.c.bf16 %v2586, %v2586
    %v2642 = vpack.c.bf16 %v2634, %v2634
    %2643 = vrot.lane.b32.xlu0 %v236, 108
    %v2644 = vpop.permute.xlu0 %2643
    %2645 = vrot.lane.b32.xlu0 %v320, 108
    %v2646 = vpop.permute.xlu0 %2645
    %v2648 = vsel %vm444, %v2644, 0
    %v2651 = vsel %vm444, %v2646, 0
    %2653 = vmatprep.subr.bf16.mxu0 0
    %2654 = vmatpush1.bf16.xpose.msra.mxu0 %v2651
    %2655 = vmatprep.subr.bf16.mxu0 0
    %2656 = vmatpush1.bf16.xpose.msra.mxu0 0
    %2657 = vmatprep.subr.bf16.mxu0 0
    %2658 = vmatpush1.bf16.xpose.msra.mxu0 0
    %2659 = vmatprep.subr.bf16.mxu0 0
    %2660 = vmatpush1.bf16.xpose.msra.mxu0 0
    %2661 = vmatprep.subr.bf16.mxu0 0
    %2662 = vmatpush1.bf16.xpose.msra.mxu0 0
    %2663 = vmatprep.subr.bf16.mxu0 0
    %2664 = vmatpush1.bf16.xpose.msra.mxu0 0
    %2665 = vmatprep.subr.bf16.mxu0 0
    %2666 = vmatpush1.bf16.xpose.msra.mxu0 0
    %2667 = vmatprep.subr.bf16.mxu0 0
    %2668 = vmatpush1.bf16.xpose.msra.mxu0 0
    %2669 = vmatprep.subr.bf16.mxu0 0
    %2670 = vmatpush1.bf16.xpose.msra.mxu0 0
    %2671 = vmatprep.subr.bf16.mxu0 0
    %2672 = vmatpush1.bf16.xpose.msra.mxu0 0
    %2673 = vmatprep.subr.bf16.mxu0 0
    %2674 = vmatpush1.bf16.xpose.msra.mxu0 0
    %2675 = vmatprep.subr.bf16.mxu0 0
    %2676 = vmatpush1.bf16.xpose.msra.mxu0 0
    %2677 = vmatprep.subr.bf16.mxu0 0
    %2678 = vmatpush1.bf16.xpose.msra.mxu0 0
    %2679 = vmatprep.subr.bf16.mxu0 0
    %2680 = vmatpush1.bf16.xpose.msra.mxu0 0
    %2681 = vmatprep.subr.bf16.mxu0 0
    %2682 = vmatpush1.bf16.xpose.msra.mxu0 0
    %2683 = vmatprep.subr.bf16.mxu0 0
    %2684 = vmatpush1.bf16.xpose.msra.mxu0 0
    %2685 = vmatprep.mubr.bf16.mxu0 0
    %2686 = vmatmul.mubr.bf16.gmra.mrb[0].mxu0 %v2648
    %v2687 = vpop.f32.mrb[0].mxu0
    %v2688 = vadd.f32 %v427, %v2687
    %v2689 = vpop.f32.mrb[0].mxu0
    %v2690 = vpop.f32.mrb[0].mxu0
    %v2691 = vpop.f32.mrb[0].mxu0
    %2692 = vdwg.mxu0
    %2693 = vrot.lane.b32.xlu0 %v237, 108
    %v2694 = vpop.permute.xlu0 %2693
    %2695 = vrot.lane.b32.xlu0 %v321, 108
    %v2696 = vpop.permute.xlu0 %2695
    %v2698 = vsel %vm444, %v2694, 0
    %v2701 = vsel %vm444, %v2696, 0
    %2703 = vmatprep.subr.bf16.mxu0 0
    %2704 = vmatpush1.bf16.xpose.msra.mxu0 %v2701
    %2705 = vmatprep.subr.bf16.mxu0 0
    %2706 = vmatpush1.bf16.xpose.msra.mxu0 0
    %2707 = vmatprep.subr.bf16.mxu0 0
    %2708 = vmatpush1.bf16.xpose.msra.mxu0 0
    %2709 = vmatprep.subr.bf16.mxu0 0
    %2710 = vmatpush1.bf16.xpose.msra.mxu0 0
    %2711 = vmatprep.subr.bf16.mxu0 0
    %2712 = vmatpush1.bf16.xpose.msra.mxu0 0
    %2713 = vmatprep.subr.bf16.mxu0 0
    %2714 = vmatpush1.bf16.xpose.msra.mxu0 0
    %2715 = vmatprep.subr.bf16.mxu0 0
    %2716 = vmatpush1.bf16.xpose.msra.mxu0 0
    %2717 = vmatprep.subr.bf16.mxu0 0
    %2718 = vmatpush1.bf16.xpose.msra.mxu0 0
    %2719 = vmatprep.subr.bf16.mxu0 0
    %2720 = vmatpush1.bf16.xpose.msra.mxu0 0
    %2721 = vmatprep.subr.bf16.mxu0 0
    %2722 = vmatpush1.bf16.xpose.msra.mxu0 0
    %2723 = vmatprep.subr.bf16.mxu0 0
    %2724 = vmatpush1.bf16.xpose.msra.mxu0 0
    %2725 = vmatprep.subr.bf16.mxu0 0
    %2726 = vmatpush1.bf16.xpose.msra.mxu0 0
    %2727 = vmatprep.subr.bf16.mxu0 0
    %2728 = vmatpush1.bf16.xpose.msra.mxu0 0
    %2729 = vmatprep.subr.bf16.mxu0 0
    %2730 = vmatpush1.bf16.xpose.msra.mxu0 0
    %2731 = vmatprep.subr.bf16.mxu0 0
    %2732 = vmatpush1.bf16.xpose.msra.mxu0 0
    %2733 = vmatprep.subr.bf16.mxu0 0
    %2734 = vmatpush1.bf16.xpose.msra.mxu0 0
    %2735 = vmatprep.mubr.bf16.mxu0 0
    %2736 = vmatmul.mubr.bf16.gmra.mrb[0].mxu0 %v2698
    %v2737 = vpop.f32.mrb[0].mxu0
    %v2738 = vadd.f32 %v431, %v2737
    %v2739 = vpop.f32.mrb[0].mxu0
    %v2740 = vpop.f32.mrb[0].mxu0
    %v2741 = vpop.f32.mrb[0].mxu0
    %2742 = vdwg.mxu0
    %2743 = vrot.lane.b32.xlu0 %v238, 108
    %v2744 = vpop.permute.xlu0 %2743
    %2745 = vrot.lane.b32.xlu0 %v322, 108
    %v2746 = vpop.permute.xlu0 %2745
    %v2748 = vsel %vm444, %v2744, 0
    %v2751 = vsel %vm444, %v2746, 0
    %2753 = vmatprep.subr.bf16.mxu0 0
    %2754 = vmatpush1.bf16.xpose.msra.mxu0 %v2751
    %2755 = vmatprep.subr.bf16.mxu0 0
    %2756 = vmatpush1.bf16.xpose.msra.mxu0 0
    %2757 = vmatprep.subr.bf16.mxu0 0
    %2758 = vmatpush1.bf16.xpose.msra.mxu0 0
    %2759 = vmatprep.subr.bf16.mxu0 0
    %2760 = vmatpush1.bf16.xpose.msra.mxu0 0
    %2761 = vmatprep.subr.bf16.mxu0 0
    %2762 = vmatpush1.bf16.xpose.msra.mxu0 0
    %2763 = vmatprep.subr.bf16.mxu0 0
    %2764 = vmatpush1.bf16.xpose.msra.mxu0 0
    %2765 = vmatprep.subr.bf16.mxu0 0
    %2766 = vmatpush1.bf16.xpose.msra.mxu0 0
    %2767 = vmatprep.subr.bf16.mxu0 0
    %2768 = vmatpush1.bf16.xpose.msra.mxu0 0
    %2769 = vmatprep.subr.bf16.mxu0 0
    %2770 = vmatpush1.bf16.xpose.msra.mxu0 0
    %2771 = vmatprep.subr.bf16.mxu0 0
    %2772 = vmatpush1.bf16.xpose.msra.mxu0 0
    %2773 = vmatprep.subr.bf16.mxu0 0
    %2774 = vmatpush1.bf16.xpose.msra.mxu0 0
    %2775 = vmatprep.subr.bf16.mxu0 0
    %2776 = vmatpush1.bf16.xpose.msra.mxu0 0
    %2777 = vmatprep.subr.bf16.mxu0 0
    %2778 = vmatpush1.bf16.xpose.msra.mxu0 0
    %2779 = vmatprep.subr.bf16.mxu0 0
    %2780 = vmatpush1.bf16.xpose.msra.mxu0 0
    %2781 = vmatprep.subr.bf16.mxu0 0
    %2782 = vmatpush1.bf16.xpose.msra.mxu0 0
    %2783 = vmatprep.subr.bf16.mxu0 0
    %2784 = vmatpush1.bf16.xpose.msra.mxu0 0
    %2785 = vmatprep.mubr.bf16.mxu0 0
    %2786 = vmatmul.mubr.bf16.gmra.mrb[0].mxu0 %v2748
    %v2787 = vpop.f32.mrb[0].mxu0
    %v2788 = vadd.f32 %v435, %v2787
    %v2789 = vpop.f32.mrb[0].mxu0
    %v2790 = vpop.f32.mrb[0].mxu0
    %v2791 = vpop.f32.mrb[0].mxu0
    %2792 = vdwg.mxu0
    %2793 = vrot.lane.b32.xlu0 %v239, 108
    %v2794 = vpop.permute.xlu0 %2793
    %2795 = vrot.lane.b32.xlu0 %v323, 108
    %v2796 = vpop.permute.xlu0 %2795
    %v2798 = vsel %vm444, %v2794, 0
    %v2801 = vsel %vm444, %v2796, 0
    %2803 = vmatprep.subr.bf16.mxu0 0
    %2804 = vmatpush1.bf16.xpose.msra.mxu0 %v2801
    %2805 = vmatprep.subr.bf16.mxu0 0
    %2806 = vmatpush1.bf16.xpose.msra.mxu0 0
    %2807 = vmatprep.subr.bf16.mxu0 0
    %2808 = vmatpush1.bf16.xpose.msra.mxu0 0
    %2809 = vmatprep.subr.bf16.mxu0 0
    %2810 = vmatpush1.bf16.xpose.msra.mxu0 0
    %2811 = vmatprep.subr.bf16.mxu0 0
    %2812 = vmatpush1.bf16.xpose.msra.mxu0 0
    %2813 = vmatprep.subr.bf16.mxu0 0
    %2814 = vmatpush1.bf16.xpose.msra.mxu0 0
    %2815 = vmatprep.subr.bf16.mxu0 0
    %2816 = vmatpush1.bf16.xpose.msra.mxu0 0
    %2817 = vmatprep.subr.bf16.mxu0 0
    %2818 = vmatpush1.bf16.xpose.msra.mxu0 0
    %2819 = vmatprep.subr.bf16.mxu0 0
    %2820 = vmatpush1.bf16.xpose.msra.mxu0 0
    %2821 = vmatprep.subr.bf16.mxu0 0
    %2822 = vmatpush1.bf16.xpose.msra.mxu0 0
    %2823 = vmatprep.subr.bf16.mxu0 0
    %2824 = vmatpush1.bf16.xpose.msra.mxu0 0
    %2825 = vmatprep.subr.bf16.mxu0 0
    %2826 = vmatpush1.bf16.xpose.msra.mxu0 0
    %2827 = vmatprep.subr.bf16.mxu0 0
    %2828 = vmatpush1.bf16.xpose.msra.mxu0 0
    %2829 = vmatprep.subr.bf16.mxu0 0
    %2830 = vmatpush1.bf16.xpose.msra.mxu0 0
    %2831 = vmatprep.subr.bf16.mxu0 0
    %2832 = vmatpush1.bf16.xpose.msra.mxu0 0
    %2833 = vmatprep.subr.bf16.mxu0 0
    %2834 = vmatpush1.bf16.xpose.msra.mxu0 0
    %2835 = vmatprep.mubr.bf16.mxu0 0
    %2836 = vmatmul.mubr.bf16.gmra.mrb[0].mxu0 %v2798
    %v2837 = vpop.f32.mrb[0].mxu0
    %v2838 = vadd.f32 %v439, %v2837
    %v2839 = vpop.f32.mrb[0].mxu0
    %v2840 = vpop.f32.mrb[0].mxu0
    %v2841 = vpop.f32.mrb[0].mxu0
    %2842 = vdwg.mxu0
    %v2843 = vsel %vm629, %v2688, -inf
    %2844 = vmax.xlane.f32.xlu0 %v2843
    %v2845 = vpop.xlane.xlu0 %2844
    %v2846 = vsel %vm629, %v2738, -inf
    %2847 = vmax.xlane.f32.xlu0 %v2846
    %v2848 = vpop.xlane.xlu0 %2847
    %v2849 = vsel %vm629, %v2788, -inf
    %2850 = vmax.xlane.f32.xlu0 %v2849
    %v2851 = vpop.xlane.xlu0 %2850
    %v2852 = vsel %vm629, %v2838, -inf
    %2853 = vmax.xlane.f32.xlu0 %v2852
    %v2854 = vpop.xlane.xlu0 %2853
    %v2855 = vsub.f32 %v2688, %v2845
    %v2856 = vsub.f32 %v2738, %v2848
    %v2857 = vsub.f32 %v2788, %v2851
    %v2858 = vsub.f32 %v2838, %v2854
    %v2859 = vmul.f32 %v2855, 1.442695
    %v2860 = vpow.pop %v2859
    %v2861 = vmul.f32 %v2856, 1.442695
    %v2862 = vpow.pop %v2861
    %v2863 = vmul.f32 %v2857, 1.442695
    %v2864 = vpow.pop %v2863
    %v2865 = vmul.f32 %v2858, 1.442695
    %v2866 = vpow.pop %v2865
    %v2867 = vsel %vm629, %v2860, 0.0
    %2868 = vadd.xlane.f32.xlu0 %v2867
    %v2869 = vpop.xlane.xlu0 %2868
    %v2870 = vsel %vm629, %v2862, 0.0
    %2871 = vadd.xlane.f32.xlu0 %v2870
    %v2872 = vpop.xlane.xlu0 %2871
    %v2873 = vsel %vm629, %v2864, 0.0
    %2874 = vadd.xlane.f32.xlu0 %v2873
    %v2875 = vpop.xlane.xlu0 %2874
    %v2876 = vsel %vm629, %v2866, 0.0
    %2877 = vadd.xlane.f32.xlu0 %v2876
    %v2878 = vpop.xlane.xlu0 %2877
    %v2879 = vrcp.pop %v2869
    %v2880 = vrcp.pop %v2872
    %v2881 = vrcp.pop %v2875
    %v2882 = vrcp.pop %v2878
    %v2883 = vmul.f32 %v2860, %v2879
    %v2884 = vmul.f32 %v2862, %v2880
    %v2885 = vmul.f32 %v2864, %v2881
    %v2886 = vmul.f32 %v2866, %v2882
    %v2887 = vpack.c.bf16 %v2883, %v2883
    %v2888 = vpack.c.bf16 %v2884, %v2884
    %v2889 = vpack.c.bf16 %v2885, %v2885
    %v2890 = vpack.c.bf16 %v2886, %v2886
    %2891 = vrot.lane.b32.xlu0 %v404, 108
    %v2892 = vpop.permute.xlu0 %2891
    %v2894 = vsel %vm629, %v2887, 0
    %v2897 = vsel %vm681, %v2892, 0
    %2899 = vmatprep.subr.bf16.mxu0 0
    %2900 = vmatpush1.bf16.msra.mxu0 %v2897
    %2901 = vmatprep.subr.bf16.mxu0 0
    %2902 = vmatpush1.bf16.msra.mxu0 0
    %2903 = vmatprep.subr.bf16.mxu0 0
    %2904 = vmatpush1.bf16.msra.mxu0 0
    %2905 = vmatprep.subr.bf16.mxu0 0
    %2906 = vmatpush1.bf16.msra.mxu0 0
    %2907 = vmatprep.subr.bf16.mxu0 0
    %2908 = vmatpush1.bf16.msra.mxu0 0
    %2909 = vmatprep.subr.bf16.mxu0 0
    %2910 = vmatpush1.bf16.msra.mxu0 0
    %2911 = vmatprep.subr.bf16.mxu0 0
    %2912 = vmatpush1.bf16.msra.mxu0 0
    %2913 = vmatprep.subr.bf16.mxu0 0
    %2914 = vmatpush1.bf16.msra.mxu0 0
    %2915 = vmatprep.subr.bf16.mxu0 0
    %2916 = vmatpush1.bf16.msra.mxu0 0
    %2917 = vmatprep.subr.bf16.mxu0 0
    %2918 = vmatpush1.bf16.msra.mxu0 0
    %2919 = vmatprep.subr.bf16.mxu0 0
    %2920 = vmatpush1.bf16.msra.mxu0 0
    %2921 = vmatprep.subr.bf16.mxu0 0
    %2922 = vmatpush1.bf16.msra.mxu0 0
    %2923 = vmatprep.subr.bf16.mxu0 0
    %2924 = vmatpush1.bf16.msra.mxu0 0
    %2925 = vmatprep.subr.bf16.mxu0 0
    %2926 = vmatpush1.bf16.msra.mxu0 0
    %2927 = vmatprep.subr.bf16.mxu0 0
    %2928 = vmatpush1.bf16.msra.mxu0 0
    %2929 = vmatprep.subr.bf16.mxu0 0
    %2930 = vmatpush1.bf16.msra.mxu0 0
    %2931 = vmatprep.mubr.bf16.mxu0 0
    %2932 = vmatmul.mubr.bf16.gmra.mrb[0].mxu0 %v2894
    %v2933 = vpop.f32.mrb[0].mxu0
    %v2934 = vadd.f32 0.0, %v2933
    %v2935 = vpop.f32.mrb[0].mxu0
    %v2936 = vpop.f32.mrb[0].mxu0
    %v2937 = vpop.f32.mrb[0].mxu0
    %2938 = vdwg.mxu0
    %2939 = vrot.lane.b32.xlu0 %v405, 108
    %v2940 = vpop.permute.xlu0 %2939
    %v2942 = vsel %vm629, %v2888, 0
    %v2945 = vsel %vm681, %v2940, 0
    %2947 = vmatprep.subr.bf16.mxu0 0
    %2948 = vmatpush1.bf16.msra.mxu0 %v2945
    %2949 = vmatprep.subr.bf16.mxu0 0
    %2950 = vmatpush1.bf16.msra.mxu0 0
    %2951 = vmatprep.subr.bf16.mxu0 0
    %2952 = vmatpush1.bf16.msra.mxu0 0
    %2953 = vmatprep.subr.bf16.mxu0 0
    %2954 = vmatpush1.bf16.msra.mxu0 0
    %2955 = vmatprep.subr.bf16.mxu0 0
    %2956 = vmatpush1.bf16.msra.mxu0 0
    %2957 = vmatprep.subr.bf16.mxu0 0
    %2958 = vmatpush1.bf16.msra.mxu0 0
    %2959 = vmatprep.subr.bf16.mxu0 0
    %2960 = vmatpush1.bf16.msra.mxu0 0
    %2961 = vmatprep.subr.bf16.mxu0 0
    %2962 = vmatpush1.bf16.msra.mxu0 0
    %2963 = vmatprep.subr.bf16.mxu0 0
    %2964 = vmatpush1.bf16.msra.mxu0 0
    %2965 = vmatprep.subr.bf16.mxu0 0
    %2966 = vmatpush1.bf16.msra.mxu0 0
    %2967 = vmatprep.subr.bf16.mxu0 0
    %2968 = vmatpush1.bf16.msra.mxu0 0
    %2969 = vmatprep.subr.bf16.mxu0 0
    %2970 = vmatpush1.bf16.msra.mxu0 0
    %2971 = vmatprep.subr.bf16.mxu0 0
    %2972 = vmatpush1.bf16.msra.mxu0 0
    %2973 = vmatprep.subr.bf16.mxu0 0
    %2974 = vmatpush1.bf16.msra.mxu0 0
    %2975 = vmatprep.subr.bf16.mxu0 0
    %2976 = vmatpush1.bf16.msra.mxu0 0
    %2977 = vmatprep.subr.bf16.mxu0 0
    %2978 = vmatpush1.bf16.msra.mxu0 0
    %2979 = vmatprep.mubr.bf16.mxu0 0
    %2980 = vmatmul.mubr.bf16.gmra.mrb[0].mxu0 %v2942
    %v2981 = vpop.f32.mrb[0].mxu0
    %v2982 = vadd.f32 0.0, %v2981
    %v2983 = vpop.f32.mrb[0].mxu0
    %v2984 = vpop.f32.mrb[0].mxu0
    %v2985 = vpop.f32.mrb[0].mxu0
    %2986 = vdwg.mxu0
    %2987 = vrot.lane.b32.xlu0 %v406, 108
    %v2988 = vpop.permute.xlu0 %2987
    %v2990 = vsel %vm629, %v2889, 0
    %v2993 = vsel %vm681, %v2988, 0
    %2995 = vmatprep.subr.bf16.mxu0 0
    %2996 = vmatpush1.bf16.msra.mxu0 %v2993
    %2997 = vmatprep.subr.bf16.mxu0 0
    %2998 = vmatpush1.bf16.msra.mxu0 0
    %2999 = vmatprep.subr.bf16.mxu0 0
    %3000 = vmatpush1.bf16.msra.mxu0 0
    %3001 = vmatprep.subr.bf16.mxu0 0
    %3002 = vmatpush1.bf16.msra.mxu0 0
    %3003 = vmatprep.subr.bf16.mxu0 0
    %3004 = vmatpush1.bf16.msra.mxu0 0
    %3005 = vmatprep.subr.bf16.mxu0 0
    %3006 = vmatpush1.bf16.msra.mxu0 0
    %3007 = vmatprep.subr.bf16.mxu0 0
    %3008 = vmatpush1.bf16.msra.mxu0 0
    %3009 = vmatprep.subr.bf16.mxu0 0
    %3010 = vmatpush1.bf16.msra.mxu0 0
    %3011 = vmatprep.subr.bf16.mxu0 0
    %3012 = vmatpush1.bf16.msra.mxu0 0
    %3013 = vmatprep.subr.bf16.mxu0 0
    %3014 = vmatpush1.bf16.msra.mxu0 0
    %3015 = vmatprep.subr.bf16.mxu0 0
    %3016 = vmatpush1.bf16.msra.mxu0 0
    %3017 = vmatprep.subr.bf16.mxu0 0
    %3018 = vmatpush1.bf16.msra.mxu0 0
    %3019 = vmatprep.subr.bf16.mxu0 0
    %3020 = vmatpush1.bf16.msra.mxu0 0
    %3021 = vmatprep.subr.bf16.mxu0 0
    %3022 = vmatpush1.bf16.msra.mxu0 0
    %3023 = vmatprep.subr.bf16.mxu0 0
    %3024 = vmatpush1.bf16.msra.mxu0 0
    %3025 = vmatprep.subr.bf16.mxu0 0
    %3026 = vmatpush1.bf16.msra.mxu0 0
    %3027 = vmatprep.mubr.bf16.mxu0 0
    %3028 = vmatmul.mubr.bf16.gmra.mrb[0].mxu0 %v2990
    %v3029 = vpop.f32.mrb[0].mxu0
    %v3030 = vadd.f32 0.0, %v3029
    %v3031 = vpop.f32.mrb[0].mxu0
    %v3032 = vpop.f32.mrb[0].mxu0
    %v3033 = vpop.f32.mrb[0].mxu0
    %3034 = vdwg.mxu0
    %3035 = vrot.lane.b32.xlu0 %v407, 108
    %v3036 = vpop.permute.xlu0 %3035
    %v3038 = vsel %vm629, %v2890, 0
    %v3041 = vsel %vm681, %v3036, 0
    %3043 = vmatprep.subr.bf16.mxu0 0
    %3044 = vmatpush1.bf16.msra.mxu0 %v3041
    %3045 = vmatprep.subr.bf16.mxu0 0
    %3046 = vmatpush1.bf16.msra.mxu0 0
    %3047 = vmatprep.subr.bf16.mxu0 0
    %3048 = vmatpush1.bf16.msra.mxu0 0
    %3049 = vmatprep.subr.bf16.mxu0 0
    %3050 = vmatpush1.bf16.msra.mxu0 0
    %3051 = vmatprep.subr.bf16.mxu0 0
    %3052 = vmatpush1.bf16.msra.mxu0 0
    %3053 = vmatprep.subr.bf16.mxu0 0
    %3054 = vmatpush1.bf16.msra.mxu0 0
    %3055 = vmatprep.subr.bf16.mxu0 0
    %3056 = vmatpush1.bf16.msra.mxu0 0
    %3057 = vmatprep.subr.bf16.mxu0 0
    %3058 = vmatpush1.bf16.msra.mxu0 0
    %3059 = vmatprep.subr.bf16.mxu0 0
    %3060 = vmatpush1.bf16.msra.mxu0 0
    %3061 = vmatprep.subr.bf16.mxu0 0
    %3062 = vmatpush1.bf16.msra.mxu0 0
    %3063 = vmatprep.subr.bf16.mxu0 0
    %3064 = vmatpush1.bf16.msra.mxu0 0
    %3065 = vmatprep.subr.bf16.mxu0 0
    %3066 = vmatpush1.bf16.msra.mxu0 0
    %3067 = vmatprep.subr.bf16.mxu0 0
    %3068 = vmatpush1.bf16.msra.mxu0 0
    %3069 = vmatprep.subr.bf16.mxu0 0
    %3070 = vmatpush1.bf16.msra.mxu0 0
    %3071 = vmatprep.subr.bf16.mxu0 0
    %3072 = vmatpush1.bf16.msra.mxu0 0
    %3073 = vmatprep.subr.bf16.mxu0 0
    %3074 = vmatpush1.bf16.msra.mxu0 0
    %3075 = vmatprep.mubr.bf16.mxu0 0
    %3076 = vmatmul.mubr.bf16.gmra.mrb[0].mxu0 %v3038
    %v3077 = vpop.f32.mrb[0].mxu0
    %v3078 = vadd.f32 0.0, %v3077
    %v3079 = vpop.f32.mrb[0].mxu0
    %v3080 = vpop.f32.mrb[0].mxu0
    %v3081 = vpop.f32.mrb[0].mxu0
    %3082 = vdwg.mxu0
    %v3083 = vpack.c.bf16 %v2934, %v2934
    %v3084 = vpack.c.bf16 %v2982, %v2982
    %v3085 = vpack.c.bf16 %v3030, %v3030
    %v3086 = vpack.c.bf16 %v3078, %v3078
    %3087 = vrot.lane.b32.xlu0 %v236, 104
    %v3088 = vpop.permute.xlu0 %3087
    %3089 = vrot.lane.b32.xlu0 %v320, 104
    %v3090 = vpop.permute.xlu0 %3089
    %v3092 = vsel %vm444, %v3088, 0
    %v3095 = vsel %vm444, %v3090, 0
    %3097 = vmatprep.subr.bf16.mxu0 0
    %3098 = vmatpush1.bf16.xpose.msra.mxu0 %v3095
    %3099 = vmatprep.subr.bf16.mxu0 0
    %3100 = vmatpush1.bf16.xpose.msra.mxu0 0
    %3101 = vmatprep.subr.bf16.mxu0 0
    %3102 = vmatpush1.bf16.xpose.msra.mxu0 0
    %3103 = vmatprep.subr.bf16.mxu0 0
    %3104 = vmatpush1.bf16.xpose.msra.mxu0 0
    %3105 = vmatprep.subr.bf16.mxu0 0
    %3106 = vmatpush1.bf16.xpose.msra.mxu0 0
    %3107 = vmatprep.subr.bf16.mxu0 0
    %3108 = vmatpush1.bf16.xpose.msra.mxu0 0
    %3109 = vmatprep.subr.bf16.mxu0 0
    %3110 = vmatpush1.bf16.xpose.msra.mxu0 0
    %3111 = vmatprep.subr.bf16.mxu0 0
    %3112 = vmatpush1.bf16.xpose.msra.mxu0 0
    %3113 = vmatprep.subr.bf16.mxu0 0
    %3114 = vmatpush1.bf16.xpose.msra.mxu0 0
    %3115 = vmatprep.subr.bf16.mxu0 0
    %3116 = vmatpush1.bf16.xpose.msra.mxu0 0
    %3117 = vmatprep.subr.bf16.mxu0 0
    %3118 = vmatpush1.bf16.xpose.msra.mxu0 0
    %3119 = vmatprep.subr.bf16.mxu0 0
    %3120 = vmatpush1.bf16.xpose.msra.mxu0 0
    %3121 = vmatprep.subr.bf16.mxu0 0
    %3122 = vmatpush1.bf16.xpose.msra.mxu0 0
    %3123 = vmatprep.subr.bf16.mxu0 0
    %3124 = vmatpush1.bf16.xpose.msra.mxu0 0
    %3125 = vmatprep.subr.bf16.mxu0 0
    %3126 = vmatpush1.bf16.xpose.msra.mxu0 0
    %3127 = vmatprep.subr.bf16.mxu0 0
    %3128 = vmatpush1.bf16.xpose.msra.mxu0 0
    %3129 = vmatprep.mubr.bf16.mxu0 0
    %3130 = vmatmul.mubr.bf16.gmra.mrb[0].mxu0 %v3092
    %v3131 = vpop.f32.mrb[0].mxu0
    %v3132 = vadd.f32 %v427, %v3131
    %v3133 = vpop.f32.mrb[0].mxu0
    %v3134 = vpop.f32.mrb[0].mxu0
    %v3135 = vpop.f32.mrb[0].mxu0
    %3136 = vdwg.mxu0
    %3137 = vrot.lane.b32.xlu0 %v237, 104
    %v3138 = vpop.permute.xlu0 %3137
    %3139 = vrot.lane.b32.xlu0 %v321, 104
    %v3140 = vpop.permute.xlu0 %3139
    %v3142 = vsel %vm444, %v3138, 0
    %v3145 = vsel %vm444, %v3140, 0
    %3147 = vmatprep.subr.bf16.mxu0 0
    %3148 = vmatpush1.bf16.xpose.msra.mxu0 %v3145
    %3149 = vmatprep.subr.bf16.mxu0 0
    %3150 = vmatpush1.bf16.xpose.msra.mxu0 0
    %3151 = vmatprep.subr.bf16.mxu0 0
    %3152 = vmatpush1.bf16.xpose.msra.mxu0 0
    %3153 = vmatprep.subr.bf16.mxu0 0
    %3154 = vmatpush1.bf16.xpose.msra.mxu0 0
    %3155 = vmatprep.subr.bf16.mxu0 0
    %3156 = vmatpush1.bf16.xpose.msra.mxu0 0
    %3157 = vmatprep.subr.bf16.mxu0 0
    %3158 = vmatpush1.bf16.xpose.msra.mxu0 0
    %3159 = vmatprep.subr.bf16.mxu0 0
    %3160 = vmatpush1.bf16.xpose.msra.mxu0 0
    %3161 = vmatprep.subr.bf16.mxu0 0
    %3162 = vmatpush1.bf16.xpose.msra.mxu0 0
    %3163 = vmatprep.subr.bf16.mxu0 0
    %3164 = vmatpush1.bf16.xpose.msra.mxu0 0
    %3165 = vmatprep.subr.bf16.mxu0 0
    %3166 = vmatpush1.bf16.xpose.msra.mxu0 0
    %3167 = vmatprep.subr.bf16.mxu0 0
    %3168 = vmatpush1.bf16.xpose.msra.mxu0 0
    %3169 = vmatprep.subr.bf16.mxu0 0
    %3170 = vmatpush1.bf16.xpose.msra.mxu0 0
    %3171 = vmatprep.subr.bf16.mxu0 0
    %3172 = vmatpush1.bf16.xpose.msra.mxu0 0
    %3173 = vmatprep.subr.bf16.mxu0 0
    %3174 = vmatpush1.bf16.xpose.msra.mxu0 0
    %3175 = vmatprep.subr.bf16.mxu0 0
    %3176 = vmatpush1.bf16.xpose.msra.mxu0 0
    %3177 = vmatprep.subr.bf16.mxu0 0
    %3178 = vmatpush1.bf16.xpose.msra.mxu0 0
    %3179 = vmatprep.mubr.bf16.mxu0 0
    %3180 = vmatmul.mubr.bf16.gmra.mrb[0].mxu0 %v3142
    %v3181 = vpop.f32.mrb[0].mxu0
    %v3182 = vadd.f32 %v431, %v3181
    %v3183 = vpop.f32.mrb[0].mxu0
    %v3184 = vpop.f32.mrb[0].mxu0
    %v3185 = vpop.f32.mrb[0].mxu0
    %3186 = vdwg.mxu0
    %3187 = vrot.lane.b32.xlu0 %v238, 104
    %v3188 = vpop.permute.xlu0 %3187
    %3189 = vrot.lane.b32.xlu0 %v322, 104
    %v3190 = vpop.permute.xlu0 %3189
    %v3192 = vsel %vm444, %v3188, 0
    %v3195 = vsel %vm444, %v3190, 0
    %3197 = vmatprep.subr.bf16.mxu0 0
    %3198 = vmatpush1.bf16.xpose.msra.mxu0 %v3195
    %3199 = vmatprep.subr.bf16.mxu0 0
    %3200 = vmatpush1.bf16.xpose.msra.mxu0 0
    %3201 = vmatprep.subr.bf16.mxu0 0
    %3202 = vmatpush1.bf16.xpose.msra.mxu0 0
    %3203 = vmatprep.subr.bf16.mxu0 0
    %3204 = vmatpush1.bf16.xpose.msra.mxu0 0
    %3205 = vmatprep.subr.bf16.mxu0 0
    %3206 = vmatpush1.bf16.xpose.msra.mxu0 0
    %3207 = vmatprep.subr.bf16.mxu0 0
    %3208 = vmatpush1.bf16.xpose.msra.mxu0 0
    %3209 = vmatprep.subr.bf16.mxu0 0
    %3210 = vmatpush1.bf16.xpose.msra.mxu0 0
    %3211 = vmatprep.subr.bf16.mxu0 0
    %3212 = vmatpush1.bf16.xpose.msra.mxu0 0
    %3213 = vmatprep.subr.bf16.mxu0 0
    %3214 = vmatpush1.bf16.xpose.msra.mxu0 0
    %3215 = vmatprep.subr.bf16.mxu0 0
    %3216 = vmatpush1.bf16.xpose.msra.mxu0 0
    %3217 = vmatprep.subr.bf16.mxu0 0
    %3218 = vmatpush1.bf16.xpose.msra.mxu0 0
    %3219 = vmatprep.subr.bf16.mxu0 0
    %3220 = vmatpush1.bf16.xpose.msra.mxu0 0
    %3221 = vmatprep.subr.bf16.mxu0 0
    %3222 = vmatpush1.bf16.xpose.msra.mxu0 0
    %3223 = vmatprep.subr.bf16.mxu0 0
    %3224 = vmatpush1.bf16.xpose.msra.mxu0 0
    %3225 = vmatprep.subr.bf16.mxu0 0
    %3226 = vmatpush1.bf16.xpose.msra.mxu0 0
    %3227 = vmatprep.subr.bf16.mxu0 0
    %3228 = vmatpush1.bf16.xpose.msra.mxu0 0
    %3229 = vmatprep.mubr.bf16.mxu0 0
    %3230 = vmatmul.mubr.bf16.gmra.mrb[0].mxu0 %v3192
    %v3231 = vpop.f32.mrb[0].mxu0
    %v3232 = vadd.f32 %v435, %v3231
    %v3233 = vpop.f32.mrb[0].mxu0
    %v3234 = vpop.f32.mrb[0].mxu0
    %v3235 = vpop.f32.mrb[0].mxu0
    %3236 = vdwg.mxu0
    %3237 = vrot.lane.b32.xlu0 %v239, 104
    %v3238 = vpop.permute.xlu0 %3237
    %3239 = vrot.lane.b32.xlu0 %v323, 104
    %v3240 = vpop.permute.xlu0 %3239
    %v3242 = vsel %vm444, %v3238, 0
    %v3245 = vsel %vm444, %v3240, 0
    %3247 = vmatprep.subr.bf16.mxu0 0
    %3248 = vmatpush1.bf16.xpose.msra.mxu0 %v3245
    %3249 = vmatprep.subr.bf16.mxu0 0
    %3250 = vmatpush1.bf16.xpose.msra.mxu0 0
    %3251 = vmatprep.subr.bf16.mxu0 0
    %3252 = vmatpush1.bf16.xpose.msra.mxu0 0
    %3253 = vmatprep.subr.bf16.mxu0 0
    %3254 = vmatpush1.bf16.xpose.msra.mxu0 0
    %3255 = vmatprep.subr.bf16.mxu0 0
    %3256 = vmatpush1.bf16.xpose.msra.mxu0 0
    %3257 = vmatprep.subr.bf16.mxu0 0
    %3258 = vmatpush1.bf16.xpose.msra.mxu0 0
    %3259 = vmatprep.subr.bf16.mxu0 0
    %3260 = vmatpush1.bf16.xpose.msra.mxu0 0
    %3261 = vmatprep.subr.bf16.mxu0 0
    %3262 = vmatpush1.bf16.xpose.msra.mxu0 0
    %3263 = vmatprep.subr.bf16.mxu0 0
    %3264 = vmatpush1.bf16.xpose.msra.mxu0 0
    %3265 = vmatprep.subr.bf16.mxu0 0
    %3266 = vmatpush1.bf16.xpose.msra.mxu0 0
    %3267 = vmatprep.subr.bf16.mxu0 0
    %3268 = vmatpush1.bf16.xpose.msra.mxu0 0
    %3269 = vmatprep.subr.bf16.mxu0 0
    %3270 = vmatpush1.bf16.xpose.msra.mxu0 0
    %3271 = vmatprep.subr.bf16.mxu0 0
    %3272 = vmatpush1.bf16.xpose.msra.mxu0 0
    %3273 = vmatprep.subr.bf16.mxu0 0
    %3274 = vmatpush1.bf16.xpose.msra.mxu0 0
    %3275 = vmatprep.subr.bf16.mxu0 0
    %3276 = vmatpush1.bf16.xpose.msra.mxu0 0
    %3277 = vmatprep.subr.bf16.mxu0 0
    %3278 = vmatpush1.bf16.xpose.msra.mxu0 0
    %3279 = vmatprep.mubr.bf16.mxu0 0
    %3280 = vmatmul.mubr.bf16.gmra.mrb[0].mxu0 %v3242
    %v3281 = vpop.f32.mrb[0].mxu0
    %v3282 = vadd.f32 %v439, %v3281
    %v3283 = vpop.f32.mrb[0].mxu0
    %v3284 = vpop.f32.mrb[0].mxu0
    %v3285 = vpop.f32.mrb[0].mxu0
    %3286 = vdwg.mxu0
    %v3287 = vsel %vm629, %v3132, -inf
    %3288 = vmax.xlane.f32.xlu0 %v3287
    %v3289 = vpop.xlane.xlu0 %3288
    %v3290 = vsel %vm629, %v3182, -inf
    %3291 = vmax.xlane.f32.xlu0 %v3290
    %v3292 = vpop.xlane.xlu0 %3291
    %v3293 = vsel %vm629, %v3232, -inf
    %3294 = vmax.xlane.f32.xlu0 %v3293
    %v3295 = vpop.xlane.xlu0 %3294
    %v3296 = vsel %vm629, %v3282, -inf
    %3297 = vmax.xlane.f32.xlu0 %v3296
    %v3298 = vpop.xlane.xlu0 %3297
    %v3299 = vsub.f32 %v3132, %v3289
    %v3300 = vsub.f32 %v3182, %v3292
    %v3301 = vsub.f32 %v3232, %v3295
    %v3302 = vsub.f32 %v3282, %v3298
    %v3303 = vmul.f32 %v3299, 1.442695
    %v3304 = vpow.pop %v3303
    %v3305 = vmul.f32 %v3300, 1.442695
    %v3306 = vpow.pop %v3305
    %v3307 = vmul.f32 %v3301, 1.442695
    %v3308 = vpow.pop %v3307
    %v3309 = vmul.f32 %v3302, 1.442695
    %v3310 = vpow.pop %v3309
    %v3311 = vsel %vm629, %v3304, 0.0
    %3312 = vadd.xlane.f32.xlu0 %v3311
    %v3313 = vpop.xlane.xlu0 %3312
    %v3314 = vsel %vm629, %v3306, 0.0
    %3315 = vadd.xlane.f32.xlu0 %v3314
    %v3316 = vpop.xlane.xlu0 %3315
    %v3317 = vsel %vm629, %v3308, 0.0
    %3318 = vadd.xlane.f32.xlu0 %v3317
    %v3319 = vpop.xlane.xlu0 %3318
    %v3320 = vsel %vm629, %v3310, 0.0
    %3321 = vadd.xlane.f32.xlu0 %v3320
    %v3322 = vpop.xlane.xlu0 %3321
    %v3323 = vrcp.pop %v3313
    %v3324 = vrcp.pop %v3316
    %v3325 = vrcp.pop %v3319
    %v3326 = vrcp.pop %v3322
    %v3327 = vmul.f32 %v3304, %v3323
    %v3328 = vmul.f32 %v3306, %v3324
    %v3329 = vmul.f32 %v3308, %v3325
    %v3330 = vmul.f32 %v3310, %v3326
    %v3331 = vpack.c.bf16 %v3327, %v3327
    %v3332 = vpack.c.bf16 %v3328, %v3328
    %v3333 = vpack.c.bf16 %v3329, %v3329
    %v3334 = vpack.c.bf16 %v3330, %v3330
    %3335 = vrot.lane.b32.xlu0 %v404, 104
    %v3336 = vpop.permute.xlu0 %3335
    %v3338 = vsel %vm629, %v3331, 0
    %v3341 = vsel %vm681, %v3336, 0
    %3343 = vmatprep.subr.bf16.mxu0 0
    %3344 = vmatpush1.bf16.msra.mxu0 %v3341
    %3345 = vmatprep.subr.bf16.mxu0 0
    %3346 = vmatpush1.bf16.msra.mxu0 0
    %3347 = vmatprep.subr.bf16.mxu0 0
    %3348 = vmatpush1.bf16.msra.mxu0 0
    %3349 = vmatprep.subr.bf16.mxu0 0
    %3350 = vmatpush1.bf16.msra.mxu0 0
    %3351 = vmatprep.subr.bf16.mxu0 0
    %3352 = vmatpush1.bf16.msra.mxu0 0
    %3353 = vmatprep.subr.bf16.mxu0 0
    %3354 = vmatpush1.bf16.msra.mxu0 0
    %3355 = vmatprep.subr.bf16.mxu0 0
    %3356 = vmatpush1.bf16.msra.mxu0 0
    %3357 = vmatprep.subr.bf16.mxu0 0
    %3358 = vmatpush1.bf16.msra.mxu0 0
    %3359 = vmatprep.subr.bf16.mxu0 0
    %3360 = vmatpush1.bf16.msra.mxu0 0
    %3361 = vmatprep.subr.bf16.mxu0 0
    %3362 = vmatpush1.bf16.msra.mxu0 0
    %3363 = vmatprep.subr.bf16.mxu0 0
    %3364 = vmatpush1.bf16.msra.mxu0 0
    %3365 = vmatprep.subr.bf16.mxu0 0
    %3366 = vmatpush1.bf16.msra.mxu0 0
    %3367 = vmatprep.subr.bf16.mxu0 0
    %3368 = vmatpush1.bf16.msra.mxu0 0
    %3369 = vmatprep.subr.bf16.mxu0 0
    %3370 = vmatpush1.bf16.msra.mxu0 0
    %3371 = vmatprep.subr.bf16.mxu0 0
    %3372 = vmatpush1.bf16.msra.mxu0 0
    %3373 = vmatprep.subr.bf16.mxu0 0
    %3374 = vmatpush1.bf16.msra.mxu0 0
    %3375 = vmatprep.mubr.bf16.mxu0 0
    %3376 = vmatmul.mubr.bf16.gmra.mrb[0].mxu0 %v3338
    %v3377 = vpop.f32.mrb[0].mxu0
    %v3378 = vadd.f32 0.0, %v3377
    %v3379 = vpop.f32.mrb[0].mxu0
    %v3380 = vpop.f32.mrb[0].mxu0
    %v3381 = vpop.f32.mrb[0].mxu0
    %3382 = vdwg.mxu0
    %3383 = vrot.lane.b32.xlu0 %v405, 104
    %v3384 = vpop.permute.xlu0 %3383
    %v3386 = vsel %vm629, %v3332, 0
    %v3389 = vsel %vm681, %v3384, 0
    %3391 = vmatprep.subr.bf16.mxu0 0
    %3392 = vmatpush1.bf16.msra.mxu0 %v3389
    %3393 = vmatprep.subr.bf16.mxu0 0
    %3394 = vmatpush1.bf16.msra.mxu0 0
    %3395 = vmatprep.subr.bf16.mxu0 0
    %3396 = vmatpush1.bf16.msra.mxu0 0
    %3397 = vmatprep.subr.bf16.mxu0 0
    %3398 = vmatpush1.bf16.msra.mxu0 0
    %3399 = vmatprep.subr.bf16.mxu0 0
    %3400 = vmatpush1.bf16.msra.mxu0 0
    %3401 = vmatprep.subr.bf16.mxu0 0
    %3402 = vmatpush1.bf16.msra.mxu0 0
    %3403 = vmatprep.subr.bf16.mxu0 0
    %3404 = vmatpush1.bf16.msra.mxu0 0
    %3405 = vmatprep.subr.bf16.mxu0 0
    %3406 = vmatpush1.bf16.msra.mxu0 0
    %3407 = vmatprep.subr.bf16.mxu0 0
    %3408 = vmatpush1.bf16.msra.mxu0 0
    %3409 = vmatprep.subr.bf16.mxu0 0
    %3410 = vmatpush1.bf16.msra.mxu0 0
    %3411 = vmatprep.subr.bf16.mxu0 0
    %3412 = vmatpush1.bf16.msra.mxu0 0
    %3413 = vmatprep.subr.bf16.mxu0 0
    %3414 = vmatpush1.bf16.msra.mxu0 0
    %3415 = vmatprep.subr.bf16.mxu0 0
    %3416 = vmatpush1.bf16.msra.mxu0 0
    %3417 = vmatprep.subr.bf16.mxu0 0
    %3418 = vmatpush1.bf16.msra.mxu0 0
    %3419 = vmatprep.subr.bf16.mxu0 0
    %3420 = vmatpush1.bf16.msra.mxu0 0
    %3421 = vmatprep.subr.bf16.mxu0 0
    %3422 = vmatpush1.bf16.msra.mxu0 0
    %3423 = vmatprep.mubr.bf16.mxu0 0
    %3424 = vmatmul.mubr.bf16.gmra.mrb[0].mxu0 %v3386
    %v3425 = vpop.f32.mrb[0].mxu0
    %v3426 = vadd.f32 0.0, %v3425
    %v3427 = vpop.f32.mrb[0].mxu0
    %v3428 = vpop.f32.mrb[0].mxu0
    %v3429 = vpop.f32.mrb[0].mxu0
    %3430 = vdwg.mxu0
    %3431 = vrot.lane.b32.xlu0 %v406, 104
    %v3432 = vpop.permute.xlu0 %3431
    %v3434 = vsel %vm629, %v3333, 0
    %v3437 = vsel %vm681, %v3432, 0
    %3439 = vmatprep.subr.bf16.mxu0 0
    %3440 = vmatpush1.bf16.msra.mxu0 %v3437
    %3441 = vmatprep.subr.bf16.mxu0 0
    %3442 = vmatpush1.bf16.msra.mxu0 0
    %3443 = vmatprep.subr.bf16.mxu0 0
    %3444 = vmatpush1.bf16.msra.mxu0 0
    %3445 = vmatprep.subr.bf16.mxu0 0
    %3446 = vmatpush1.bf16.msra.mxu0 0
    %3447 = vmatprep.subr.bf16.mxu0 0
    %3448 = vmatpush1.bf16.msra.mxu0 0
    %3449 = vmatprep.subr.bf16.mxu0 0
    %3450 = vmatpush1.bf16.msra.mxu0 0
    %3451 = vmatprep.subr.bf16.mxu0 0
    %3452 = vmatpush1.bf16.msra.mxu0 0
    %3453 = vmatprep.subr.bf16.mxu0 0
    %3454 = vmatpush1.bf16.msra.mxu0 0
    %3455 = vmatprep.subr.bf16.mxu0 0
    %3456 = vmatpush1.bf16.msra.mxu0 0
    %3457 = vmatprep.subr.bf16.mxu0 0
    %3458 = vmatpush1.bf16.msra.mxu0 0
    %3459 = vmatprep.subr.bf16.mxu0 0
    %3460 = vmatpush1.bf16.msra.mxu0 0
    %3461 = vmatprep.subr.bf16.mxu0 0
    %3462 = vmatpush1.bf16.msra.mxu0 0
    %3463 = vmatprep.subr.bf16.mxu0 0
    %3464 = vmatpush1.bf16.msra.mxu0 0
    %3465 = vmatprep.subr.bf16.mxu0 0
    %3466 = vmatpush1.bf16.msra.mxu0 0
    %3467 = vmatprep.subr.bf16.mxu0 0
    %3468 = vmatpush1.bf16.msra.mxu0 0
    %3469 = vmatprep.subr.bf16.mxu0 0
    %3470 = vmatpush1.bf16.msra.mxu0 0
    %3471 = vmatprep.mubr.bf16.mxu0 0
    %3472 = vmatmul.mubr.bf16.gmra.mrb[0].mxu0 %v3434
    %v3473 = vpop.f32.mrb[0].mxu0
    %v3474 = vadd.f32 0.0, %v3473
    %v3475 = vpop.f32.mrb[0].mxu0
    %v3476 = vpop.f32.mrb[0].mxu0
    %v3477 = vpop.f32.mrb[0].mxu0
    %3478 = vdwg.mxu0
    %3479 = vrot.lane.b32.xlu0 %v407, 104
    %v3480 = vpop.permute.xlu0 %3479
    %v3482 = vsel %vm629, %v3334, 0
    %v3485 = vsel %vm681, %v3480, 0
    %3487 = vmatprep.subr.bf16.mxu0 0
    %3488 = vmatpush1.bf16.msra.mxu0 %v3485
    %3489 = vmatprep.subr.bf16.mxu0 0
    %3490 = vmatpush1.bf16.msra.mxu0 0
    %3491 = vmatprep.subr.bf16.mxu0 0
    %3492 = vmatpush1.bf16.msra.mxu0 0
    %3493 = vmatprep.subr.bf16.mxu0 0
    %3494 = vmatpush1.bf16.msra.mxu0 0
    %3495 = vmatprep.subr.bf16.mxu0 0
    %3496 = vmatpush1.bf16.msra.mxu0 0
    %3497 = vmatprep.subr.bf16.mxu0 0
    %3498 = vmatpush1.bf16.msra.mxu0 0
    %3499 = vmatprep.subr.bf16.mxu0 0
    %3500 = vmatpush1.bf16.msra.mxu0 0
    %3501 = vmatprep.subr.bf16.mxu0 0
    %3502 = vmatpush1.bf16.msra.mxu0 0
    %3503 = vmatprep.subr.bf16.mxu0 0
    %3504 = vmatpush1.bf16.msra.mxu0 0
    %3505 = vmatprep.subr.bf16.mxu0 0
    %3506 = vmatpush1.bf16.msra.mxu0 0
    %3507 = vmatprep.subr.bf16.mxu0 0
    %3508 = vmatpush1.bf16.msra.mxu0 0
    %3509 = vmatprep.subr.bf16.mxu0 0
    %3510 = vmatpush1.bf16.msra.mxu0 0
    %3511 = vmatprep.subr.bf16.mxu0 0
    %3512 = vmatpush1.bf16.msra.mxu0 0
    %3513 = vmatprep.subr.bf16.mxu0 0
    %3514 = vmatpush1.bf16.msra.mxu0 0
    %3515 = vmatprep.subr.bf16.mxu0 0
    %3516 = vmatpush1.bf16.msra.mxu0 0
    %3517 = vmatprep.subr.bf16.mxu0 0
    %3518 = vmatpush1.bf16.msra.mxu0 0
    %3519 = vmatprep.mubr.bf16.mxu0 0
    %3520 = vmatmul.mubr.bf16.gmra.mrb[0].mxu0 %v3482
    %v3521 = vpop.f32.mrb[0].mxu0
    %v3522 = vadd.f32 0.0, %v3521
    %v3523 = vpop.f32.mrb[0].mxu0
    %v3524 = vpop.f32.mrb[0].mxu0
    %v3525 = vpop.f32.mrb[0].mxu0
    %3526 = vdwg.mxu0
    %v3527 = vpack.c.bf16 %v3378, %v3378
    %v3528 = vpack.c.bf16 %v3426, %v3426
    %v3529 = vpack.c.bf16 %v3474, %v3474
    %v3530 = vpack.c.bf16 %v3522, %v3522
    %3531 = vrot.lane.b32.xlu0 %v236, 100
    %v3532 = vpop.permute.xlu0 %3531
    %3533 = vrot.lane.b32.xlu0 %v320, 100
    %v3534 = vpop.permute.xlu0 %3533
    %v3536 = vsel %vm444, %v3532, 0
    %v3539 = vsel %vm444, %v3534, 0
    %3541 = vmatprep.subr.bf16.mxu0 0
    %3542 = vmatpush1.bf16.xpose.msra.mxu0 %v3539
    %3543 = vmatprep.subr.bf16.mxu0 0
    %3544 = vmatpush1.bf16.xpose.msra.mxu0 0
    %3545 = vmatprep.subr.bf16.mxu0 0
    %3546 = vmatpush1.bf16.xpose.msra.mxu0 0
    %3547 = vmatprep.subr.bf16.mxu0 0
    %3548 = vmatpush1.bf16.xpose.msra.mxu0 0
    %3549 = vmatprep.subr.bf16.mxu0 0
    %3550 = vmatpush1.bf16.xpose.msra.mxu0 0
    %3551 = vmatprep.subr.bf16.mxu0 0
    %3552 = vmatpush1.bf16.xpose.msra.mxu0 0
    %3553 = vmatprep.subr.bf16.mxu0 0
    %3554 = vmatpush1.bf16.xpose.msra.mxu0 0
    %3555 = vmatprep.subr.bf16.mxu0 0
    %3556 = vmatpush1.bf16.xpose.msra.mxu0 0
    %3557 = vmatprep.subr.bf16.mxu0 0
    %3558 = vmatpush1.bf16.xpose.msra.mxu0 0
    %3559 = vmatprep.subr.bf16.mxu0 0
    %3560 = vmatpush1.bf16.xpose.msra.mxu0 0
    %3561 = vmatprep.subr.bf16.mxu0 0
    %3562 = vmatpush1.bf16.xpose.msra.mxu0 0
    %3563 = vmatprep.subr.bf16.mxu0 0
    %3564 = vmatpush1.bf16.xpose.msra.mxu0 0
    %3565 = vmatprep.subr.bf16.mxu0 0
    %3566 = vmatpush1.bf16.xpose.msra.mxu0 0
    %3567 = vmatprep.subr.bf16.mxu0 0
    %3568 = vmatpush1.bf16.xpose.msra.mxu0 0
    %3569 = vmatprep.subr.bf16.mxu0 0
    %3570 = vmatpush1.bf16.xpose.msra.mxu0 0
    %3571 = vmatprep.subr.bf16.mxu0 0
    %3572 = vmatpush1.bf16.xpose.msra.mxu0 0
    %3573 = vmatprep.mubr.bf16.mxu0 0
    %3574 = vmatmul.mubr.bf16.gmra.mrb[0].mxu0 %v3536
    %v3575 = vpop.f32.mrb[0].mxu0
    %v3576 = vadd.f32 %v427, %v3575
    %v3577 = vpop.f32.mrb[0].mxu0
    %v3578 = vpop.f32.mrb[0].mxu0
    %v3579 = vpop.f32.mrb[0].mxu0
    %3580 = vdwg.mxu0
    %3581 = vrot.lane.b32.xlu0 %v237, 100
    %v3582 = vpop.permute.xlu0 %3581
    %3583 = vrot.lane.b32.xlu0 %v321, 100
    %v3584 = vpop.permute.xlu0 %3583
    %v3586 = vsel %vm444, %v3582, 0
    %v3589 = vsel %vm444, %v3584, 0
    %3591 = vmatprep.subr.bf16.mxu0 0
    %3592 = vmatpush1.bf16.xpose.msra.mxu0 %v3589
    %3593 = vmatprep.subr.bf16.mxu0 0
    %3594 = vmatpush1.bf16.xpose.msra.mxu0 0
    %3595 = vmatprep.subr.bf16.mxu0 0
    %3596 = vmatpush1.bf16.xpose.msra.mxu0 0
    %3597 = vmatprep.subr.bf16.mxu0 0
    %3598 = vmatpush1.bf16.xpose.msra.mxu0 0
    %3599 = vmatprep.subr.bf16.mxu0 0
    %3600 = vmatpush1.bf16.xpose.msra.mxu0 0
    %3601 = vmatprep.subr.bf16.mxu0 0
    %3602 = vmatpush1.bf16.xpose.msra.mxu0 0
    %3603 = vmatprep.subr.bf16.mxu0 0
    %3604 = vmatpush1.bf16.xpose.msra.mxu0 0
    %3605 = vmatprep.subr.bf16.mxu0 0
    %3606 = vmatpush1.bf16.xpose.msra.mxu0 0
    %3607 = vmatprep.subr.bf16.mxu0 0
    %3608 = vmatpush1.bf16.xpose.msra.mxu0 0
    %3609 = vmatprep.subr.bf16.mxu0 0
    %3610 = vmatpush1.bf16.xpose.msra.mxu0 0
    %3611 = vmatprep.subr.bf16.mxu0 0
    %3612 = vmatpush1.bf16.xpose.msra.mxu0 0
    %3613 = vmatprep.subr.bf16.mxu0 0
    %3614 = vmatpush1.bf16.xpose.msra.mxu0 0
    %3615 = vmatprep.subr.bf16.mxu0 0
    %3616 = vmatpush1.bf16.xpose.msra.mxu0 0
    %3617 = vmatprep.subr.bf16.mxu0 0
    %3618 = vmatpush1.bf16.xpose.msra.mxu0 0
    %3619 = vmatprep.subr.bf16.mxu0 0
    %3620 = vmatpush1.bf16.xpose.msra.mxu0 0
    %3621 = vmatprep.subr.bf16.mxu0 0
    %3622 = vmatpush1.bf16.xpose.msra.mxu0 0
    %3623 = vmatprep.mubr.bf16.mxu0 0
    %3624 = vmatmul.mubr.bf16.gmra.mrb[0].mxu0 %v3586
    %v3625 = vpop.f32.mrb[0].mxu0
    %v3626 = vadd.f32 %v431, %v3625
    %v3627 = vpop.f32.mrb[0].mxu0
    %v3628 = vpop.f32.mrb[0].mxu0
    %v3629 = vpop.f32.mrb[0].mxu0
    %3630 = vdwg.mxu0
    %3631 = vrot.lane.b32.xlu0 %v238, 100
    %v3632 = vpop.permute.xlu0 %3631
    %3633 = vrot.lane.b32.xlu0 %v322, 100
    %v3634 = vpop.permute.xlu0 %3633
    %v3636 = vsel %vm444, %v3632, 0
    %v3639 = vsel %vm444, %v3634, 0
    %3641 = vmatprep.subr.bf16.mxu0 0
    %3642 = vmatpush1.bf16.xpose.msra.mxu0 %v3639
    %3643 = vmatprep.subr.bf16.mxu0 0
    %3644 = vmatpush1.bf16.xpose.msra.mxu0 0
    %3645 = vmatprep.subr.bf16.mxu0 0
    %3646 = vmatpush1.bf16.xpose.msra.mxu0 0
    %3647 = vmatprep.subr.bf16.mxu0 0
    %3648 = vmatpush1.bf16.xpose.msra.mxu0 0
    %3649 = vmatprep.subr.bf16.mxu0 0
    %3650 = vmatpush1.bf16.xpose.msra.mxu0 0
    %3651 = vmatprep.subr.bf16.mxu0 0
    %3652 = vmatpush1.bf16.xpose.msra.mxu0 0
    %3653 = vmatprep.subr.bf16.mxu0 0
    %3654 = vmatpush1.bf16.xpose.msra.mxu0 0
    %3655 = vmatprep.subr.bf16.mxu0 0
    %3656 = vmatpush1.bf16.xpose.msra.mxu0 0
    %3657 = vmatprep.subr.bf16.mxu0 0
    %3658 = vmatpush1.bf16.xpose.msra.mxu0 0
    %3659 = vmatprep.subr.bf16.mxu0 0
    %3660 = vmatpush1.bf16.xpose.msra.mxu0 0
    %3661 = vmatprep.subr.bf16.mxu0 0
    %3662 = vmatpush1.bf16.xpose.msra.mxu0 0
    %3663 = vmatprep.subr.bf16.mxu0 0
    %3664 = vmatpush1.bf16.xpose.msra.mxu0 0
    %3665 = vmatprep.subr.bf16.mxu0 0
    %3666 = vmatpush1.bf16.xpose.msra.mxu0 0
    %3667 = vmatprep.subr.bf16.mxu0 0
    %3668 = vmatpush1.bf16.xpose.msra.mxu0 0
    %3669 = vmatprep.subr.bf16.mxu0 0
    %3670 = vmatpush1.bf16.xpose.msra.mxu0 0
    %3671 = vmatprep.subr.bf16.mxu0 0
    %3672 = vmatpush1.bf16.xpose.msra.mxu0 0
    %3673 = vmatprep.mubr.bf16.mxu0 0
    %3674 = vmatmul.mubr.bf16.gmra.mrb[0].mxu0 %v3636
    %v3675 = vpop.f32.mrb[0].mxu0
    %v3676 = vadd.f32 %v435, %v3675
    %v3677 = vpop.f32.mrb[0].mxu0
    %v3678 = vpop.f32.mrb[0].mxu0
    %v3679 = vpop.f32.mrb[0].mxu0
    %3680 = vdwg.mxu0
    %3681 = vrot.lane.b32.xlu0 %v239, 100
    %v3682 = vpop.permute.xlu0 %3681
    %3683 = vrot.lane.b32.xlu0 %v323, 100
    %v3684 = vpop.permute.xlu0 %3683
    %v3686 = vsel %vm444, %v3682, 0
    %v3689 = vsel %vm444, %v3684, 0
    %3691 = vmatprep.subr.bf16.mxu0 0
    %3692 = vmatpush1.bf16.xpose.msra.mxu0 %v3689
    %3693 = vmatprep.subr.bf16.mxu0 0
    %3694 = vmatpush1.bf16.xpose.msra.mxu0 0
    %3695 = vmatprep.subr.bf16.mxu0 0
    %3696 = vmatpush1.bf16.xpose.msra.mxu0 0
    %3697 = vmatprep.subr.bf16.mxu0 0
    %3698 = vmatpush1.bf16.xpose.msra.mxu0 0
    %3699 = vmatprep.subr.bf16.mxu0 0
    %3700 = vmatpush1.bf16.xpose.msra.mxu0 0
    %3701 = vmatprep.subr.bf16.mxu0 0
    %3702 = vmatpush1.bf16.xpose.msra.mxu0 0
    %3703 = vmatprep.subr.bf16.mxu0 0
    %3704 = vmatpush1.bf16.xpose.msra.mxu0 0
    %3705 = vmatprep.subr.bf16.mxu0 0
    %3706 = vmatpush1.bf16.xpose.msra.mxu0 0
    %3707 = vmatprep.subr.bf16.mxu0 0
    %3708 = vmatpush1.bf16.xpose.msra.mxu0 0
    %3709 = vmatprep.subr.bf16.mxu0 0
    %3710 = vmatpush1.bf16.xpose.msra.mxu0 0
    %3711 = vmatprep.subr.bf16.mxu0 0
    %3712 = vmatpush1.bf16.xpose.msra.mxu0 0
    %3713 = vmatprep.subr.bf16.mxu0 0
    %3714 = vmatpush1.bf16.xpose.msra.mxu0 0
    %3715 = vmatprep.subr.bf16.mxu0 0
    %3716 = vmatpush1.bf16.xpose.msra.mxu0 0
    %3717 = vmatprep.subr.bf16.mxu0 0
    %3718 = vmatpush1.bf16.xpose.msra.mxu0 0
    %3719 = vmatprep.subr.bf16.mxu0 0
    %3720 = vmatpush1.bf16.xpose.msra.mxu0 0
    %3721 = vmatprep.subr.bf16.mxu0 0
    %3722 = vmatpush1.bf16.xpose.msra.mxu0 0
    %3723 = vmatprep.mubr.bf16.mxu0 0
    %3724 = vmatmul.mubr.bf16.gmra.mrb[0].mxu0 %v3686
    %v3725 = vpop.f32.mrb[0].mxu0
    %v3726 = vadd.f32 %v439, %v3725
    %v3727 = vpop.f32.mrb[0].mxu0
    %v3728 = vpop.f32.mrb[0].mxu0
    %v3729 = vpop.f32.mrb[0].mxu0
    %3730 = vdwg.mxu0
    %v3731 = vsel %vm629, %v3576, -inf
    %3732 = vmax.xlane.f32.xlu0 %v3731
    %v3733 = vpop.xlane.xlu0 %3732
    %v3734 = vsel %vm629, %v3626, -inf
    %3735 = vmax.xlane.f32.xlu0 %v3734
    %v3736 = vpop.xlane.xlu0 %3735
    %v3737 = vsel %vm629, %v3676, -inf
    %3738 = vmax.xlane.f32.xlu0 %v3737
    %v3739 = vpop.xlane.xlu0 %3738
    %v3740 = vsel %vm629, %v3726, -inf
    %3741 = vmax.xlane.f32.xlu0 %v3740
    %v3742 = vpop.xlane.xlu0 %3741
    %v3743 = vsub.f32 %v3576, %v3733
    %v3744 = vsub.f32 %v3626, %v3736
    %v3745 = vsub.f32 %v3676, %v3739
    %v3746 = vsub.f32 %v3726, %v3742
    %v3747 = vmul.f32 %v3743, 1.442695
    %v3748 = vpow.pop %v3747
    %v3749 = vmul.f32 %v3744, 1.442695
    %v3750 = vpow.pop %v3749
    %v3751 = vmul.f32 %v3745, 1.442695
    %v3752 = vpow.pop %v3751
    %v3753 = vmul.f32 %v3746, 1.442695
    %v3754 = vpow.pop %v3753
    %v3755 = vsel %vm629, %v3748, 0.0
    %3756 = vadd.xlane.f32.xlu0 %v3755
    %v3757 = vpop.xlane.xlu0 %3756
    %v3758 = vsel %vm629, %v3750, 0.0
    %3759 = vadd.xlane.f32.xlu0 %v3758
    %v3760 = vpop.xlane.xlu0 %3759
    %v3761 = vsel %vm629, %v3752, 0.0
    %3762 = vadd.xlane.f32.xlu0 %v3761
    %v3763 = vpop.xlane.xlu0 %3762
    %v3764 = vsel %vm629, %v3754, 0.0
    %3765 = vadd.xlane.f32.xlu0 %v3764
    %v3766 = vpop.xlane.xlu0 %3765
    %v3767 = vrcp.pop %v3757
    %v3768 = vrcp.pop %v3760
    %v3769 = vrcp.pop %v3763
    %v3770 = vrcp.pop %v3766
    %v3771 = vmul.f32 %v3748, %v3767
    %v3772 = vmul.f32 %v3750, %v3768
    %v3773 = vmul.f32 %v3752, %v3769
    %v3774 = vmul.f32 %v3754, %v3770
    %v3775 = vpack.c.bf16 %v3771, %v3771
    %v3776 = vpack.c.bf16 %v3772, %v3772
    %v3777 = vpack.c.bf16 %v3773, %v3773
    %v3778 = vpack.c.bf16 %v3774, %v3774
    %3779 = vrot.lane.b32.xlu0 %v404, 100
    %v3780 = vpop.permute.xlu0 %3779
    %v3782 = vsel %vm629, %v3775, 0
    %v3785 = vsel %vm681, %v3780, 0
    %3787 = vmatprep.subr.bf16.mxu0 0
    %3788 = vmatpush1.bf16.msra.mxu0 %v3785
    %3789 = vmatprep.subr.bf16.mxu0 0
    %3790 = vmatpush1.bf16.msra.mxu0 0
    %3791 = vmatprep.subr.bf16.mxu0 0
    %3792 = vmatpush1.bf16.msra.mxu0 0
    %3793 = vmatprep.subr.bf16.mxu0 0
    %3794 = vmatpush1.bf16.msra.mxu0 0
    %3795 = vmatprep.subr.bf16.mxu0 0
    %3796 = vmatpush1.bf16.msra.mxu0 0
    %3797 = vmatprep.subr.bf16.mxu0 0
    %3798 = vmatpush1.bf16.msra.mxu0 0
    %3799 = vmatprep.subr.bf16.mxu0 0
    %3800 = vmatpush1.bf16.msra.mxu0 0
    %3801 = vmatprep.subr.bf16.mxu0 0
    %3802 = vmatpush1.bf16.msra.mxu0 0
    %3803 = vmatprep.subr.bf16.mxu0 0
    %3804 = vmatpush1.bf16.msra.mxu0 0
    %3805 = vmatprep.subr.bf16.mxu0 0
    %3806 = vmatpush1.bf16.msra.mxu0 0
    %3807 = vmatprep.subr.bf16.mxu0 0
    %3808 = vmatpush1.bf16.msra.mxu0 0
    %3809 = vmatprep.subr.bf16.mxu0 0
    %3810 = vmatpush1.bf16.msra.mxu0 0
    %3811 = vmatprep.subr.bf16.mxu0 0
    %3812 = vmatpush1.bf16.msra.mxu0 0
    %3813 = vmatprep.subr.bf16.mxu0 0
    %3814 = vmatpush1.bf16.msra.mxu0 0
    %3815 = vmatprep.subr.bf16.mxu0 0
    %3816 = vmatpush1.bf16.msra.mxu0 0
    %3817 = vmatprep.subr.bf16.mxu0 0
    %3818 = vmatpush1.bf16.msra.mxu0 0
    %3819 = vmatprep.mubr.bf16.mxu0 0
    %3820 = vmatmul.mubr.bf16.gmra.mrb[0].mxu0 %v3782
    %v3821 = vpop.f32.mrb[0].mxu0
    %v3822 = vadd.f32 0.0, %v3821
    %v3823 = vpop.f32.mrb[0].mxu0
    %v3824 = vpop.f32.mrb[0].mxu0
    %v3825 = vpop.f32.mrb[0].mxu0
    %3826 = vdwg.mxu0
    %3827 = vrot.lane.b32.xlu0 %v405, 100
    %v3828 = vpop.permute.xlu0 %3827
    %v3830 = vsel %vm629, %v3776, 0
    %v3833 = vsel %vm681, %v3828, 0
    %3835 = vmatprep.subr.bf16.mxu0 0
    %3836 = vmatpush1.bf16.msra.mxu0 %v3833
    %3837 = vmatprep.subr.bf16.mxu0 0
    %3838 = vmatpush1.bf16.msra.mxu0 0
    %3839 = vmatprep.subr.bf16.mxu0 0
    %3840 = vmatpush1.bf16.msra.mxu0 0
    %3841 = vmatprep.subr.bf16.mxu0 0
    %3842 = vmatpush1.bf16.msra.mxu0 0
    %3843 = vmatprep.subr.bf16.mxu0 0
    %3844 = vmatpush1.bf16.msra.mxu0 0
    %3845 = vmatprep.subr.bf16.mxu0 0
    %3846 = vmatpush1.bf16.msra.mxu0 0
    %3847 = vmatprep.subr.bf16.mxu0 0
    %3848 = vmatpush1.bf16.msra.mxu0 0
    %3849 = vmatprep.subr.bf16.mxu0 0
    %3850 = vmatpush1.bf16.msra.mxu0 0
    %3851 = vmatprep.subr.bf16.mxu0 0
    %3852 = vmatpush1.bf16.msra.mxu0 0
    %3853 = vmatprep.subr.bf16.mxu0 0
    %3854 = vmatpush1.bf16.msra.mxu0 0
    %3855 = vmatprep.subr.bf16.mxu0 0
    %3856 = vmatpush1.bf16.msra.mxu0 0
    %3857 = vmatprep.subr.bf16.mxu0 0
    %3858 = vmatpush1.bf16.msra.mxu0 0
    %3859 = vmatprep.subr.bf16.mxu0 0
    %3860 = vmatpush1.bf16.msra.mxu0 0
    %3861 = vmatprep.subr.bf16.mxu0 0
    %3862 = vmatpush1.bf16.msra.mxu0 0
    %3863 = vmatprep.subr.bf16.mxu0 0
    %3864 = vmatpush1.bf16.msra.mxu0 0
    %3865 = vmatprep.subr.bf16.mxu0 0
    %3866 = vmatpush1.bf16.msra.mxu0 0
    %3867 = vmatprep.mubr.bf16.mxu0 0
    %3868 = vmatmul.mubr.bf16.gmra.mrb[0].mxu0 %v3830
    %v3869 = vpop.f32.mrb[0].mxu0
    %v3870 = vadd.f32 0.0, %v3869
    %v3871 = vpop.f32.mrb[0].mxu0
    %v3872 = vpop.f32.mrb[0].mxu0
    %v3873 = vpop.f32.mrb[0].mxu0
    %3874 = vdwg.mxu0
    %3875 = vrot.lane.b32.xlu0 %v406, 100
    %v3876 = vpop.permute.xlu0 %3875
    %v3878 = vsel %vm629, %v3777, 0
    %v3881 = vsel %vm681, %v3876, 0
    %3883 = vmatprep.subr.bf16.mxu0 0
    %3884 = vmatpush1.bf16.msra.mxu0 %v3881
    %3885 = vmatprep.subr.bf16.mxu0 0
    %3886 = vmatpush1.bf16.msra.mxu0 0
    %3887 = vmatprep.subr.bf16.mxu0 0
    %3888 = vmatpush1.bf16.msra.mxu0 0
    %3889 = vmatprep.subr.bf16.mxu0 0
    %3890 = vmatpush1.bf16.msra.mxu0 0
    %3891 = vmatprep.subr.bf16.mxu0 0
    %3892 = vmatpush1.bf16.msra.mxu0 0
    %3893 = vmatprep.subr.bf16.mxu0 0
    %3894 = vmatpush1.bf16.msra.mxu0 0
    %3895 = vmatprep.subr.bf16.mxu0 0
    %3896 = vmatpush1.bf16.msra.mxu0 0
    %3897 = vmatprep.subr.bf16.mxu0 0
    %3898 = vmatpush1.bf16.msra.mxu0 0
    %3899 = vmatprep.subr.bf16.mxu0 0
    %3900 = vmatpush1.bf16.msra.mxu0 0
    %3901 = vmatprep.subr.bf16.mxu0 0
    %3902 = vmatpush1.bf16.msra.mxu0 0
    %3903 = vmatprep.subr.bf16.mxu0 0
    %3904 = vmatpush1.bf16.msra.mxu0 0
    %3905 = vmatprep.subr.bf16.mxu0 0
    %3906 = vmatpush1.bf16.msra.mxu0 0
    %3907 = vmatprep.subr.bf16.mxu0 0
    %3908 = vmatpush1.bf16.msra.mxu0 0
    %3909 = vmatprep.subr.bf16.mxu0 0
    %3910 = vmatpush1.bf16.msra.mxu0 0
    %3911 = vmatprep.subr.bf16.mxu0 0
    %3912 = vmatpush1.bf16.msra.mxu0 0
    %3913 = vmatprep.subr.bf16.mxu0 0
    %3914 = vmatpush1.bf16.msra.mxu0 0
    %3915 = vmatprep.mubr.bf16.mxu0 0
    %3916 = vmatmul.mubr.bf16.gmra.mrb[0].mxu0 %v3878
    %v3917 = vpop.f32.mrb[0].mxu0
    %v3918 = vadd.f32 0.0, %v3917
    %v3919 = vpop.f32.mrb[0].mxu0
    %v3920 = vpop.f32.mrb[0].mxu0
    %v3921 = vpop.f32.mrb[0].mxu0
    %3922 = vdwg.mxu0
    %3923 = vrot.lane.b32.xlu0 %v407, 100
    %v3924 = vpop.permute.xlu0 %3923
    %v3926 = vsel %vm629, %v3778, 0
    %v3929 = vsel %vm681, %v3924, 0
    %3931 = vmatprep.subr.bf16.mxu0 0
    %3932 = vmatpush1.bf16.msra.mxu0 %v3929
    %3933 = vmatprep.subr.bf16.mxu0 0
    %3934 = vmatpush1.bf16.msra.mxu0 0
    %3935 = vmatprep.subr.bf16.mxu0 0
    %3936 = vmatpush1.bf16.msra.mxu0 0
    %3937 = vmatprep.subr.bf16.mxu0 0
    %3938 = vmatpush1.bf16.msra.mxu0 0
    %3939 = vmatprep.subr.bf16.mxu0 0
    %3940 = vmatpush1.bf16.msra.mxu0 0
    %3941 = vmatprep.subr.bf16.mxu0 0
    %3942 = vmatpush1.bf16.msra.mxu0 0
    %3943 = vmatprep.subr.bf16.mxu0 0
    %3944 = vmatpush1.bf16.msra.mxu0 0
    %3945 = vmatprep.subr.bf16.mxu0 0
    %3946 = vmatpush1.bf16.msra.mxu0 0
    %3947 = vmatprep.subr.bf16.mxu0 0
    %3948 = vmatpush1.bf16.msra.mxu0 0
    %3949 = vmatprep.subr.bf16.mxu0 0
    %3950 = vmatpush1.bf16.msra.mxu0 0
    %3951 = vmatprep.subr.bf16.mxu0 0
    %3952 = vmatpush1.bf16.msra.mxu0 0
    %3953 = vmatprep.subr.bf16.mxu0 0
    %3954 = vmatpush1.bf16.msra.mxu0 0
    %3955 = vmatprep.subr.bf16.mxu0 0
    %3956 = vmatpush1.bf16.msra.mxu0 0
    %3957 = vmatprep.subr.bf16.mxu0 0
    %3958 = vmatpush1.bf16.msra.mxu0 0
    %3959 = vmatprep.subr.bf16.mxu0 0
    %3960 = vmatpush1.bf16.msra.mxu0 0
    %3961 = vmatprep.subr.bf16.mxu0 0
    %3962 = vmatpush1.bf16.msra.mxu0 0
    %3963 = vmatprep.mubr.bf16.mxu0 0
    %3964 = vmatmul.mubr.bf16.gmra.mrb[0].mxu0 %v3926
    %v3965 = vpop.f32.mrb[0].mxu0
    %v3966 = vadd.f32 0.0, %v3965
    %v3967 = vpop.f32.mrb[0].mxu0
    %v3968 = vpop.f32.mrb[0].mxu0
    %v3969 = vpop.f32.mrb[0].mxu0
    %3970 = vdwg.mxu0
    %v3971 = vpack.c.bf16 %v3822, %v3822
    %v3972 = vpack.c.bf16 %v3870, %v3870
    %v3973 = vpack.c.bf16 %v3918, %v3918
    %v3974 = vpack.c.bf16 %v3966, %v3966
    %3979 = vrot.lane.b32.xlu0 %v1307, 4
    %v3980 = vpop.permute.xlu0 %3979
    %3981 = vrot.lane.b32.xlu0 %v1308, 4
    %v3982 = vpop.permute.xlu0 %3981
    %3983 = vrot.lane.b32.xlu0 %v1309, 4
    %v3984 = vpop.permute.xlu0 %3983
    %3985 = vrot.lane.b32.xlu0 %v1310, 4
    %v3986 = vpop.permute.xlu0 %3985
    %3991 = vrot.lane.b32.xlu0 %v1751, 8
    %v3992 = vpop.permute.xlu0 %3991
    %3993 = vrot.lane.b32.xlu0 %v1752, 8
    %v3994 = vpop.permute.xlu0 %3993
    %3995 = vrot.lane.b32.xlu0 %v1753, 8
    %v3996 = vpop.permute.xlu0 %3995
    %3997 = vrot.lane.b32.xlu0 %v1754, 8
    %v3998 = vpop.permute.xlu0 %3997
    %4003 = vrot.lane.b32.xlu0 %v2195, 12
    %v4004 = vpop.permute.xlu0 %4003
    %4005 = vrot.lane.b32.xlu0 %v2196, 12
    %v4006 = vpop.permute.xlu0 %4005
    %4007 = vrot.lane.b32.xlu0 %v2197, 12
    %v4008 = vpop.permute.xlu0 %4007
    %4009 = vrot.lane.b32.xlu0 %v2198, 12
    %v4010 = vpop.permute.xlu0 %4009
    %4015 = vrot.lane.b32.xlu0 %v2639, 16
    %v4016 = vpop.permute.xlu0 %4015
    %4017 = vrot.lane.b32.xlu0 %v2640, 16
    %v4018 = vpop.permute.xlu0 %4017
    %4019 = vrot.lane.b32.xlu0 %v2641, 16
    %v4020 = vpop.permute.xlu0 %4019
    %4021 = vrot.lane.b32.xlu0 %v2642, 16
    %v4022 = vpop.permute.xlu0 %4021
    %4027 = vrot.lane.b32.xlu0 %v3083, 20
    %v4028 = vpop.permute.xlu0 %4027
    %4029 = vrot.lane.b32.xlu0 %v3084, 20
    %v4030 = vpop.permute.xlu0 %4029
    %4031 = vrot.lane.b32.xlu0 %v3085, 20
    %v4032 = vpop.permute.xlu0 %4031
    %4033 = vrot.lane.b32.xlu0 %v3086, 20
    %v4034 = vpop.permute.xlu0 %4033
    %4039 = vrot.lane.b32.xlu0 %v3527, 24
    %v4040 = vpop.permute.xlu0 %4039
    %4041 = vrot.lane.b32.xlu0 %v3528, 24
    %v4042 = vpop.permute.xlu0 %4041
    %4043 = vrot.lane.b32.xlu0 %v3529, 24
    %v4044 = vpop.permute.xlu0 %4043
    %4045 = vrot.lane.b32.xlu0 %v3530, 24
    %v4046 = vpop.permute.xlu0 %4045
    %4051 = vrot.lane.b32.xlu0 %v3971, 28
    %v4052 = vpop.permute.xlu0 %4051
    %4053 = vrot.lane.b32.xlu0 %v3972, 28
    %v4054 = vpop.permute.xlu0 %4053
    %4055 = vrot.lane.b32.xlu0 %v3973, 28
    %v4056 = vpop.permute.xlu0 %4055
    %4057 = vrot.lane.b32.xlu0 %v3974, 28
    %v4058 = vpop.permute.xlu0 %4057
    %v4061 = vsel %vm444, %v863, %v3980
    %v4064 = vsel %vm444, %v864, %v3982
    %v4067 = vsel %vm444, %v865, %v3984
    %v4070 = vsel %vm444, %v866, %v3986
    %v4072 = vsel %vm629, %v4061, %v3992
    %v4074 = vsel %vm629, %v4064, %v3994
    %v4076 = vsel %vm629, %v4067, %v3996
    %v4078 = vsel %vm629, %v4070, %v3998
    %vm4079 = vcmask 97280
    %v4081 = vsel %vm4079, %v4072, %v4004
    %v4083 = vsel %vm4079, %v4074, %v4006
    %v4085 = vsel %vm4079, %v4076, %v4008
    %v4087 = vsel %vm4079, %v4078, %v4010
    %vm4088 = vcmask 130048
    %v4090 = vsel %vm4088, %v4081, %v4016
    %v4092 = vsel %vm4088, %v4083, %v4018
    %v4094 = vsel %vm4088, %v4085, %v4020
    %v4096 = vsel %vm4088, %v4087, %v4022
    %vm4097 = vcmask 162816
    %v4099 = vsel %vm4097, %v4090, %v4028
    %v4101 = vsel %vm4097, %v4092, %v4030
    %v4103 = vsel %vm4097, %v4094, %v4032
    %v4105 = vsel %vm4097, %v4096, %v4034
    %vm4106 = vcmask 195584
    %v4108 = vsel %vm4106, %v4099, %v4040
    %v4110 = vsel %vm4106, %v4101, %v4042
    %v4112 = vsel %vm4106, %v4103, %v4044
    %v4114 = vsel %vm4106, %v4105, %v4046
    %vm4115 = vcmask 228352
    %v4117 = vsel %vm4115, %v4108, %v4052
    %v4119 = vsel %vm4115, %v4110, %v4054
    %v4121 = vsel %vm4115, %v4112, %v4056
    %v4123 = vsel %vm4115, %v4114, %v4058
    %v4124 = vld [vmem:[#allocation10] sm:$0xf]
    %v4125 = vld [vmem:[#allocation10 + $0x4] sm:$0xf]
    %v4126 = vld [vmem:[#allocation10 + $0x8] sm:$0xf]
    %v4127 = vld [vmem:[#allocation10 + $0xc] sm:$0xf]
    %v4128 = vld [vmem:[#allocation11] sm:$0x1]
    %v4130 = vlaneseq
    %v4131 = vshrl.u32 %v4130, 7
    %v4132 = vsub.s32 0, %v4131
    %v4133 = vrot.slane %v4128, %v4132
    %v4139 = vunpack.c.l.b16 %v4117
    %v4140 = vunpack.c.l.b16 %v4119
    %v4141 = vunpack.c.l.b16 %v4121
    %v4142 = vunpack.c.l.b16 %v4123
    %v4143 = vpack.c.b16 %v4140, %v4139
    %v4144 = vpack.c.b16 %v4142, %v4141
    %v4149 = vunpack.c.l.b16 %v4124
    %v4150 = vunpack.c.l.b16 %v4125
    %v4151 = vunpack.c.l.b16 %v4126
    %v4152 = vunpack.c.l.b16 %v4127
    %v4153 = vpack.c.b16 %v4150, %v4149
    %v4154 = vpack.c.b16 %v4152, %v4151
    %v4158 = vsel %vm168, %v4143, 0
    %v4161 = vsel %vm168, %v4144, 0
    %4163 = vmatprep.subr.bf16.mxu0 0
    %4164 = vmatpush1.bf16.msra.mxu0 %v4153
    %4165 = vmatprep.subr.bf16.mxu0 0
    %4166 = vmatpush1.bf16.msra.mxu0 %v4154
    %4167 = vmatprep.subr.bf16.mxu0 0
    %4168 = vmatpush1.bf16.msra.mxu0 0
    %4169 = vmatprep.subr.bf16.mxu0 0
    %4170 = vmatpush1.bf16.msra.mxu0 0
    %4171 = vmatprep.subr.bf16.mxu0 0
    %4172 = vmatpush1.bf16.msra.mxu0 0
    %4173 = vmatprep.subr.bf16.mxu0 0
    %4174 = vmatpush1.bf16.msra.mxu0 0
    %4175 = vmatprep.subr.bf16.mxu0 0
    %4176 = vmatpush1.bf16.msra.mxu0 0
    %4177 = vmatprep.subr.bf16.mxu0 0
    %4178 = vmatpush1.bf16.msra.mxu0 0
    %4179 = vmatprep.subr.bf16.mxu0 0
    %4180 = vmatpush1.bf16.msra.mxu0 0
    %4181 = vmatprep.subr.bf16.mxu0 0
    %4182 = vmatpush1.bf16.msra.mxu0 0
    %4183 = vmatprep.subr.bf16.mxu0 0
    %4184 = vmatpush1.bf16.msra.mxu0 0
    %4185 = vmatprep.subr.bf16.mxu0 0
    %4186 = vmatpush1.bf16.msra.mxu0 0
    %4187 = vmatprep.subr.bf16.mxu0 0
    %4188 = vmatpush1.bf16.msra.mxu0 0
    %4189 = vmatprep.subr.bf16.mxu0 0
    %4190 = vmatpush1.bf16.msra.mxu0 0
    %4191 = vmatprep.subr.bf16.mxu0 0
    %4192 = vmatpush1.bf16.msra.mxu0 0
    %4193 = vmatprep.subr.bf16.mxu0 0
    %4194 = vmatpush1.bf16.msra.mxu0 0
    %4195 = vmatprep.mubr.bf16.mxu0 0
    %4196 = vmatmul.mubr.bf16.gmra.mrb[0].mxu0 %v4158
    %v4197 = vpop.f32.mrb[0].mxu0
    %v4198 = vadd.f32 %v4133, %v4197
    %v4199 = vpop.f32.mrb[0].mxu0
    %v4200 = vpop.f32.mrb[0].mxu0
    %v4201 = vadd.f32 %v4133, %v4200
    %v4202 = vpop.f32.mrb[0].mxu0
    %4203 = vmatprep.mubr.bf16.mxu0 0
    %4204 = vmatmul.mubr.bf16.gmra.mrb[0].mxu0 %v4161
    %v4205 = vpop.f32.mrb[0].mxu0
    %v4206 = vadd.f32 %v4133, %v4205
    %v4207 = vpop.f32.mrb[0].mxu0
    %v4208 = vpop.f32.mrb[0].mxu0
    %v4209 = vadd.f32 %v4133, %v4208
    %v4210 = vpop.f32.mrb[0].mxu0
    %4211 = vdwg.mxu0
    %v4212 = vadd.f32 %v139, %v4198
    %v4213 = vadd.f32 %v140, %v4201
    %v4214 = vadd.f32 %v141, %v4206
    %v4215 = vadd.f32 %v142, %v4209
    %v4216 = vld [vmem:[%s14] sm:$0x1]
    %v4217 = vld [vmem:[%s15] sm:$0x1]
    %v4218 = vsel %vm168, %v4212, 0.0
    %4219 = vadd.xlane.f32.xlu0 %v4218
    %v4220 = vpop.xlane.xlu0 %4219
    %v4221 = vsel %vm168, %v4213, 0.0
    %4222 = vadd.xlane.f32.xlu0 %v4221
    %v4223 = vpop.xlane.xlu0 %4222
    %v4224 = vsel %vm168, %v4214, 0.0
    %4225 = vadd.xlane.f32.xlu0 %v4224
    %v4226 = vpop.xlane.xlu0 %4225
    %v4227 = vsel %vm168, %v4215, 0.0
    %4228 = vadd.xlane.f32.xlu0 %v4227
    %v4229 = vpop.xlane.xlu0 %4228
    %v4230 = vrcp.pop 32.0
    %v4231 = vmul.f32 %v4220, %v4230
    %v4232 = vmul.f32 %v4223, %v4230
    %v4233 = vmul.f32 %v4226, %v4230
    %v4234 = vmul.f32 %v4229, %v4230
    %v4235 = vsub.f32 %v4212, %v4231
    %v4236 = vsub.f32 %v4213, %v4232
    %v4237 = vsub.f32 %v4214, %v4233
    %v4238 = vsub.f32 %v4215, %v4234
    %v4239 = vmul.f32 %v4235, %v4235
    %v4240 = vmul.f32 %v4236, %v4236
    %v4241 = vmul.f32 %v4237, %v4237
    %v4242 = vmul.f32 %v4238, %v4238
    %v4243 = vsel %vm168, %v4239, 0.0
    %4244 = vadd.xlane.f32.xlu0 %v4243
    %v4245 = vpop.xlane.xlu0 %4244
    %v4246 = vsel %vm168, %v4240, 0.0
    %4247 = vadd.xlane.f32.xlu0 %v4246
    %v4248 = vpop.xlane.xlu0 %4247
    %v4249 = vsel %vm168, %v4241, 0.0
    %4250 = vadd.xlane.f32.xlu0 %v4249
    %v4251 = vpop.xlane.xlu0 %4250
    %v4252 = vsel %vm168, %v4242, 0.0
    %4253 = vadd.xlane.f32.xlu0 %v4252
    %v4254 = vpop.xlane.xlu0 %4253
    %v4255 = vmul.f32 %v4245, %v4230
    %v4256 = vmul.f32 %v4248, %v4230
    %v4257 = vmul.f32 %v4251, %v4230
    %v4258 = vmul.f32 %v4254, %v4230
    %v4259 = vadd.f32 %v4255, 1e-05
    %v4260 = vadd.f32 %v4256, 1e-05
    %v4261 = vadd.f32 %v4257, 1e-05
    %v4262 = vadd.f32 %v4258, 1e-05
    %v4263 = vrsqrt.pop %v4259
    %v4264 = vrsqrt.pop %v4260
    %v4265 = vrsqrt.pop %v4261
    %v4266 = vrsqrt.pop %v4262
    %v4267 = vmul.f32 %v4235, %v4263
    %v4268 = vmul.f32 %v4236, %v4264
    %v4269 = vmul.f32 %v4237, %v4265
    %v4270 = vmul.f32 %v4238, %v4266
    %v4272 = vlaneseq
    %v4273 = vshrl.u32 %v4272, 7
    %v4274 = vsub.s32 0, %v4273
    %v4275 = vrot.slane %v4216, %v4274
    %v4277 = vmul.f32 %v4267, %v4275
    %v4278 = vmul.f32 %v4268, %v4275
    %v4279 = vmul.f32 %v4269, %v4275
    %v4280 = vmul.f32 %v4270, %v4275
    %v4282 = vlaneseq
    %v4283 = vshrl.u32 %v4282, 7
    %v4284 = vsub.s32 0, %v4283
    %v4285 = vrot.slane %v4217, %v4284
    %v4287 = vadd.f32 %v4277, %v4285
    %v4288 = vadd.f32 %v4278, %v4285
    %v4289 = vadd.f32 %v4279, %v4285
    %v4290 = vadd.f32 %v4280, %v4285
    %v4291 = vpack.c.bf16 %v4288, %v4287
    %v4292 = vpack.c.bf16 %v4290, %v4289
    %v4293 = vld [vmem:[%s10] sm:$0xf]
    %v4294 = vld [vmem:[%s10 + $0x4] sm:$0xf]
    %v4295 = vld [vmem:[%s10 + $0x8] sm:$0xf]
    %v4296 = vld [vmem:[%s10 + $0xc] sm:$0xf]
    %v4297 = vld [vmem:[%s11] sm:$0x1]
    %v4299 = vlaneseq
    %v4300 = vshrl.u32 %v4299, 7
    %v4301 = vsub.s32 0, %v4300
    %v4302 = vrot.slane %v4297, %v4301
    %v4308 = vunpack.c.l.b16 %v4293
    %v4309 = vunpack.c.l.b16 %v4294
    %v4310 = vunpack.c.l.b16 %v4295
    %v4311 = vunpack.c.l.b16 %v4296
    %v4312 = vpack.c.b16 %v4309, %v4308
    %v4313 = vpack.c.b16 %v4311, %v4310
    %v4317 = vsel %vm168, %v4291, 0
    %v4320 = vsel %vm168, %v4292, 0
    %4322 = vmatprep.subr.bf16.mxu0 0
    %4323 = vmatpush1.bf16.msra.mxu0 %v4312
    %4324 = vmatprep.subr.bf16.mxu0 0
    %4325 = vmatpush1.bf16.msra.mxu0 %v4313
    %4326 = vmatprep.subr.bf16.mxu0 0
    %4327 = vmatpush1.bf16.msra.mxu0 0
    %4328 = vmatprep.subr.bf16.mxu0 0
    %4329 = vmatpush1.bf16.msra.mxu0 0
    %4330 = vmatprep.subr.bf16.mxu0 0
    %4331 = vmatpush1.bf16.msra.mxu0 0
    %4332 = vmatprep.subr.bf16.mxu0 0
    %4333 = vmatpush1.bf16.msra.mxu0 0
    %4334 = vmatprep.subr.bf16.mxu0 0
    %4335 = vmatpush1.bf16.msra.mxu0 0
    %4336 = vmatprep.subr.bf16.mxu0 0
    %4337 = vmatpush1.bf16.msra.mxu0 0
    %4338 = vmatprep.subr.bf16.mxu0 0
    %4339 = vmatpush1.bf16.msra.mxu0 0
    %4340 = vmatprep.subr.bf16.mxu0 0
    %4341 = vmatpush1.bf16.msra.mxu0 0
    %4342 = vmatprep.subr.bf16.mxu0 0
    %4343 = vmatpush1.bf16.msra.mxu0 0
    %4344 = vmatprep.subr.bf16.mxu0 0
    %4345 = vmatpush1.bf16.msra.mxu0 0
    %4346 = vmatprep.subr.bf16.mxu0 0
    %4347 = vmatpush1.bf16.msra.mxu0 0
    %4348 = vmatprep.subr.bf16.mxu0 0
    %4349 = vmatpush1.bf16.msra.mxu0 0
    %4350 = vmatprep.subr.bf16.mxu0 0
    %4351 = vmatpush1.bf16.msra.mxu0 0
    %4352 = vmatprep.subr.bf16.mxu0 0
    %4353 = vmatpush1.bf16.msra.mxu0 0
    %4354 = vmatprep.mubr.bf16.mxu0 0
    %4355 = vmatmul.mubr.bf16.gmra.mrb[0].mxu0 %v4317
    %v4356 = vpop.f32.mrb[0].mxu0
    %v4357 = vadd.f32 %v4302, %v4356
    %v4358 = vpop.f32.mrb[0].mxu0
    %v4359 = vpop.f32.mrb[0].mxu0
    %v4360 = vadd.f32 %v4302, %v4359
    %v4361 = vpop.f32.mrb[0].mxu0
    %4362 = vmatprep.mubr.bf16.mxu0 0
    %4363 = vmatmul.mubr.bf16.gmra.mrb[0].mxu0 %v4320
    %v4364 = vpop.f32.mrb[0].mxu0
    %v4365 = vadd.f32 %v4302, %v4364
    %v4366 = vpop.f32.mrb[0].mxu0
    %v4367 = vpop.f32.mrb[0].mxu0
    %v4368 = vadd.f32 %v4302, %v4367
    %v4369 = vpop.f32.mrb[0].mxu0
    %4370 = vdwg.mxu0
    %v4371 = vmax.f32 %v4357, 0.0
    %v4372 = vmax.f32 %v4360, 0.0
    %v4373 = vmax.f32 %v4365, 0.0
    %v4374 = vmax.f32 %v4368, 0.0
    %v4375 = vpack.c.bf16 %v4372, %v4371
    %v4376 = vpack.c.bf16 %v4374, %v4373
    %v4377 = vld [vmem:[%s12] sm:$0xf]
    %v4378 = vld [vmem:[%s12 + $0x4] sm:$0xf]
    %v4379 = vld [vmem:[%s12 + $0x8] sm:$0xf]
    %v4380 = vld [vmem:[%s12 + $0xc] sm:$0xf]
    %v4381 = vld [vmem:[%s12 + $0x10] sm:$0xf]
    %v4382 = vld [vmem:[%s12 + $0x14] sm:$0xf]
    %v4383 = vld [vmem:[%s12 + $0x18] sm:$0xf]
    %v4384 = vld [vmem:[%s12 + $0x1c] sm:$0xf]
    %v4385 = vld [vmem:[%s13] sm:$0x1]
    %v4387 = vlaneseq
    %v4388 = vshrl.u32 %v4387, 7
    %v4389 = vsub.s32 0, %v4388
    %v4390 = vrot.slane %v4385, %v4389
    %v4400 = vunpack.c.l.b16 %v4377
    %v4401 = vunpack.c.l.b16 %v4378
    %v4402 = vunpack.c.l.b16 %v4379
    %v4403 = vunpack.c.l.b16 %v4380
    %v4404 = vunpack.c.l.b16 %v4381
    %v4405 = vunpack.c.l.b16 %v4382
    %v4406 = vunpack.c.l.b16 %v4383
    %v4407 = vunpack.c.l.b16 %v4384
    %v4408 = vpack.c.b16 %v4401, %v4400
    %v4409 = vpack.c.b16 %v4403, %v4402
    %v4410 = vpack.c.b16 %v4405, %v4404
    %v4411 = vpack.c.b16 %v4407, %v4406
    %vm4416 = vcmask 523264
    %v4418 = vsel %vm4416, %v4375, 0
    %v4421 = vsel %vm4416, %v4376, 0
    %4423 = vmatprep.subr.bf16.mxu0 0
    %4424 = vmatpush1.bf16.msra.mxu0 %v4408
    %4425 = vmatprep.subr.bf16.mxu0 0
    %4426 = vmatpush1.bf16.msra.mxu0 %v4409
    %4427 = vmatprep.subr.bf16.mxu0 0
    %4428 = vmatpush1.bf16.msra.mxu0 %v4410
    %4429 = vmatprep.subr.bf16.mxu0 0
    %4430 = vmatpush1.bf16.msra.mxu0 %v4411
    %4431 = vmatprep.subr.bf16.mxu0 0
    %4432 = vmatpush1.bf16.msra.mxu0 0
    %4433 = vmatprep.subr.bf16.mxu0 0
    %4434 = vmatpush1.bf16.msra.mxu0 0
    %4435 = vmatprep.subr.bf16.mxu0 0
    %4436 = vmatpush1.bf16.msra.mxu0 0
    %4437 = vmatprep.subr.bf16.mxu0 0
    %4438 = vmatpush1.bf16.msra.mxu0 0
    %4439 = vmatprep.subr.bf16.mxu0 0
    %4440 = vmatpush1.bf16.msra.mxu0 0
    %4441 = vmatprep.subr.bf16.mxu0 0
    %4442 = vmatpush1.bf16.msra.mxu0 0
    %4443 = vmatprep.subr.bf16.mxu0 0
    %4444 = vmatpush1.bf16.msra.mxu0 0
    %4445 = vmatprep.subr.bf16.mxu0 0
    %4446 = vmatpush1.bf16.msra.mxu0 0
    %4447 = vmatprep.subr.bf16.mxu0 0
    %4448 = vmatpush1.bf16.msra.mxu0 0
    %4449 = vmatprep.subr.bf16.mxu0 0
    %4450 = vmatpush1.bf16.msra.mxu0 0
    %4451 = vmatprep.subr.bf16.mxu0 0
    %4452 = vmatpush1.bf16.msra.mxu0 0
    %4453 = vmatprep.subr.bf16.mxu0 0
    %4454 = vmatpush1.bf16.msra.mxu0 0
    %4455 = vmatprep.mubr.bf16.mxu0 0
    %4456 = vmatmul.mubr.bf16.gmra.mrb[0].mxu0 %v4418
    %v4457 = vpop.f32.mrb[0].mxu0
    %v4458 = vadd.f32 %v4390, %v4457
    %v4459 = vpop.f32.mrb[0].mxu0
    %v4460 = vpop.f32.mrb[0].mxu0
    %v4461 = vadd.f32 %v4390, %v4460
    %v4462 = vpop.f32.mrb[0].mxu0
    %4463 = vmatprep.mubr.bf16.mxu0 0
    %4464 = vmatmul.mubr.bf16.gmra.mrb[0].mxu0 %v4421
    %v4465 = vpop.f32.mrb[0].mxu0
    %v4466 = vadd.f32 %v4390, %v4465
    %v4467 = vpop.f32.mrb[0].mxu0
    %v4468 = vpop.f32.mrb[0].mxu0
    %v4469 = vadd.f32 %v4390, %v4468
    %v4470 = vpop.f32.mrb[0].mxu0
    %4471 = vdwg.mxu0
    %v4472 = vadd.f32 %v4287, %v4458
    %v4473 = vadd.f32 %v4288, %v4461
    %v4474 = vadd.f32 %v4289, %v4466
    %v4475 = vadd.f32 %v4290, %v4469
    %v4476 = vld [vmem:[%s16] sm:$0x1]
    %v4477 = vld [vmem:[%s17] sm:$0x1]
    %v4478 = vsel %vm168, %v4472, 0.0
    %4479 = vadd.xlane.f32.xlu0 %v4478
    %v4480 = vpop.xlane.xlu0 %4479
    %v4481 = vsel %vm168, %v4473, 0.0
    %4482 = vadd.xlane.f32.xlu0 %v4481
    %v4483 = vpop.xlane.xlu0 %4482
    %v4484 = vsel %vm168, %v4474, 0.0
    %4485 = vadd.xlane.f32.xlu0 %v4484
    %v4486 = vpop.xlane.xlu0 %4485
    %v4487 = vsel %vm168, %v4475, 0.0
    %4488 = vadd.xlane.f32.xlu0 %v4487
    %v4489 = vpop.xlane.xlu0 %4488
    %v4490 = vmul.f32 %v4480, %v4230
    %v4491 = vmul.f32 %v4483, %v4230
    %v4492 = vmul.f32 %v4486, %v4230
    %v4493 = vmul.f32 %v4489, %v4230
    %v4494 = vsub.f32 %v4472, %v4490
    %v4495 = vsub.f32 %v4473, %v4491
    %v4496 = vsub.f32 %v4474, %v4492
    %v4497 = vsub.f32 %v4475, %v4493
    %v4498 = vmul.f32 %v4494, %v4494
    %v4499 = vmul.f32 %v4495, %v4495
    %v4500 = vmul.f32 %v4496, %v4496
    %v4501 = vmul.f32 %v4497, %v4497
    %v4502 = vsel %vm168, %v4498, 0.0
    %4503 = vadd.xlane.f32.xlu0 %v4502
    %v4504 = vpop.xlane.xlu0 %4503
    %v4505 = vsel %vm168, %v4499, 0.0
    %4506 = vadd.xlane.f32.xlu0 %v4505
    %v4507 = vpop.xlane.xlu0 %4506
    %v4508 = vsel %vm168, %v4500, 0.0
    %4509 = vadd.xlane.f32.xlu0 %v4508
    %v4510 = vpop.xlane.xlu0 %4509
    %v4511 = vsel %vm168, %v4501, 0.0
    %4512 = vadd.xlane.f32.xlu0 %v4511
    %v4513 = vpop.xlane.xlu0 %4512
    %v4514 = vmul.f32 %v4504, %v4230
    %v4515 = vmul.f32 %v4507, %v4230
    %v4516 = vmul.f32 %v4510, %v4230
    %v4517 = vmul.f32 %v4513, %v4230
    %v4518 = vadd.f32 %v4514, 1e-05
    %v4519 = vadd.f32 %v4515, 1e-05
    %v4520 = vadd.f32 %v4516, 1e-05
    %v4521 = vadd.f32 %v4517, 1e-05
    %v4522 = vrsqrt.pop %v4518
    %v4523 = vrsqrt.pop %v4519
    %v4524 = vrsqrt.pop %v4520
    %v4525 = vrsqrt.pop %v4521
    %v4526 = vmul.f32 %v4494, %v4522
    %v4527 = vmul.f32 %v4495, %v4523
    %v4528 = vmul.f32 %v4496, %v4524
    %v4529 = vmul.f32 %v4497, %v4525
    %v4531 = vlaneseq
    %v4532 = vshrl.u32 %v4531, 7
    %v4533 = vsub.s32 0, %v4532
    %v4534 = vrot.slane %v4476, %v4533
    %v4536 = vmul.f32 %v4526, %v4534
    %v4537 = vmul.f32 %v4527, %v4534
    %v4538 = vmul.f32 %v4528, %v4534
    %v4539 = vmul.f32 %v4529, %v4534
    %v4541 = vlaneseq
    %v4542 = vshrl.u32 %v4541, 7
    %v4543 = vsub.s32 0, %v4542
    %v4544 = vrot.slane %v4477, %v4543
    %v4546 = vadd.f32 %v4536, %v4544
    %v4547 = vadd.f32 %v4537, %v4544
    %v4548 = vadd.f32 %v4538, %v4544
    %v4549 = vadd.f32 %v4539, %v4544
    %4550 = vst.msk [vmem:[#allocation13] sm:$0xff] %vm168, %v4546
    %4551 = vst.msk [vmem:[#allocation13 + $0x8] sm:$0xff] %vm168, %v4547
    %4552 = vst.msk [vmem:[#allocation13 + $0x10] sm:$0xff] %vm168, %v4548
    %4553 = vst.msk [vmem:[#allocation13 + $0x18] sm:$0xff] %vm168, %v4549
    // Predicated region
    $region98: #{tpu_custom_call.1} parent=1 // pred_check
      _
    $region99: #{tpu_custom_call.1} parent=1 // pred_check_branch
      %4555 = sbr.rel (0) target = $region101
    $region100: #{tpu_custom_call.1} parent=1 // pred_region
      %s4557 = ssub.s32 512, 512
      %4558 = vsyncadd [#allocation4], %s4557
      %s4559 = sshll.u32 [#allocation13], 4
      %s4560 = int_to_ptr.vmem [resolvable:$true] %s4559
      %4565 = dma.vmem_to_hbm [thread:$0]  %s4560, 512, %s18, [#allocation4], 128, 128, 8
    $region101: #{tpu_custom_call.1} parent=1 // pred_fallthru
      _
    // Predicated region
    $region102: #{tpu_custom_call.1} parent=1 // pred_check
      _
    $region103: #{tpu_custom_call.1} parent=1 // pred_check_branch
      %4567 = sbr.rel (0) target = $region105
    $region104: #{tpu_custom_call.1} parent=1 // pred_region
      %4568 = dma.done [#allocation4], 512
    $region105: #{tpu_custom_call.1} parent=1 // pred_fallthru
      _
    %4569 = vsyncpa [#allocation3], 1
    %4570 = vsyncpa [#allocation6], 1
    %4571 = vsyncpa [#allocation9], 1
    %4572 = vsyncpa [#allocation12], 1
    %4573 = vsyncpa [#allocation4], 1

// kernel: tpu_custom_call.1
$region0: #{tpu_custom_call.1}
  #allocation0 [shape = 'u32[]', space=smem, size = 0x4, offset = 0x4, fixed_abs, tag = 'smem constant byte address 0x4 - core index']
  #allocation1 [shape = 'u32[144,128]{1,0:T(1,128)}', space=vmem, size = 0x12000, scoped, tag = 'internal scratch']
  %s0 = inlined_call_operand.vmem [shape: f32[4,8,32], index: 0, kind: input, shape index: {}]
  %s1 = inlined_call_operand.hbm [shape: f32[4,1,8], index: 1, kind: input, shape index: {}]
  %s2 = inlined_call_operand.vmem [shape: bf16[32,32], index: 2, kind: input, shape index: {}]
  %s3 = inlined_call_operand.vmem [shape: f32[1,32], index: 3, kind: input, shape index: {}]
  %s4 = inlined_call_operand.hbm [shape: bf16[32,32], index: 4, kind: input, shape index: {}]
  %s5 = inlined_call_operand.vmem [shape: f32[1,32], index: 5, kind: input, shape index: {}]
  %s6 = inlined_call_operand.hbm [shape: bf16[32,32], index: 6, kind: input, shape index: {}]
  %s7 = inlined_call_operand.hbm [shape: f32[1,32], index: 7, kind: input, shape index: {}]
  %s8 = inlined_call_operand.hbm [shape: bf16[32,32], index: 8, kind: input, shape index: {}]
  %s9 = inlined_call_operand.hbm [shape: f32[1,32], index: 9, kind: input, shape index: {}]
  %s10 = inlined_call_operand.vmem [shape: bf16[32,64], index: 10, kind: input, shape index: {}]
  %s11 = inlined_call_operand.vmem [shape: f32[1,64], index: 11, kind: input, shape index: {}]
  %s12 = inlined_call_operand.vmem [shape: bf16[64,32], index: 12, kind: input, shape index: {}]
  %s13 = inlined_call_operand.vmem [shape: f32[1,32], index: 13, kind: input, shape index: {}]
  %s14 = inlined_call_operand.vmem [shape: f32[1,32], index: 14, kind: input, shape index: {}]
  %s15 = inlined_call_operand.vmem [shape: f32[1,32], index: 15, kind: input, shape index: {}]
  %s16 = inlined_call_operand.vmem [shape: f32[1,32], index: 16, kind: input, shape index: {}]
  %s17 = inlined_call_operand.vmem [shape: f32[1,32], index: 17, kind: input, shape index: {}]
  %s18 = inlined_call_operand.hbm [shape: f32[4,8,32], index: 18, kind: output, shape index: {}]
  %s19 = sld [smem:[#allocation0]]
  $region106: #{tpu_custom_call.1} parent=0
    _
  %s21 = ssub.s32 1, %s19
  %s22 = scalar_select 0, %s21, %s19
  $region1: #{tpu_custom_call.1} parent=0
    #allocation2 [shape = 'u8[2048]{0}', space=vmem, size = 0x800, scoped, tag = 'input window, operand 1, single buffered']
    #allocation3 [shape = 's32[1]{0}', space=sflag, size = 0x4, scoped, tag = 'scoped memory for tpu_custom_call.1']
    #allocation4 [shape = 's32[1]{0}', space=sflag, size = 0x4, scoped, tag = 'scoped memory for tpu_custom_call.1']
    #allocation5 [shape = 'u8[8192]{0}', space=vmem, size = 0x2000, scoped, tag = 'input window, operand 4, single buffered']
    #allocation6 [shape = 's32[1]{0}', space=sflag, size = 0x4, scoped, tag = 'scoped memory for tpu_custom_call.1']
    #allocation7 [shape = 'u8[8192]{0}', space=vmem, size = 0x2000, scoped, tag = 'input window, operand 6, single buffered']
    #allocation8 [shape = 'u8[512]{0}', space=vmem, size = 0x400, scoped, tag = 'input window, operand 7, single buffered']
    #allocation9 [shape = 's32[1]{0}', space=sflag, size = 0x4, scoped, tag = 'scoped memory for tpu_custom_call.1']
    #allocation10 [shape = 'u8[8192]{0}', space=vmem, size = 0x2000, scoped, tag = 'input window, operand 8, single buffered']
    #allocation11 [shape = 'u8[512]{0}', space=vmem, size = 0x400, scoped, tag = 'input window, operand 9, single buffered']
    #allocation12 [shape = 's32[1]{0}', space=sflag, size = 0x4, scoped, tag = 'scoped memory for tpu_custom_call.1']
    #allocation13 [shape = 'u8[16384]{0}', space=vmem, size = 0x4000, scoped, tag = 'output window, operand 0, single buffered']
    %23 = vsyncpa [#allocation3], 0
    %24 = vsyncpa [#allocation6], 0
    %25 = vsyncpa [#allocation9], 0
    %26 = vsyncpa [#allocation12], 0
    %27 = vsyncpa [#allocation4], 0
    // Predicated region
    $region2: #{tpu_custom_call.1} parent=1 // pred_check
      _
    $region3: #{tpu_custom_call.1} parent=1 // pred_check_branch
      %29 = sbr.rel (0) target = $region5
    $region4: #{tpu_custom_call.1} parent=1 // pred_region
      _
    $region5: #{tpu_custom_call.1} parent=1 // pred_fallthru
      _
    // Predicated region
    $region6: #{tpu_custom_call.1} parent=1 // pred_check
      _
    $region7: #{tpu_custom_call.1} parent=1 // pred_check_branch
      %31 = sbr.rel (0) target = $region9
    $region8: #{tpu_custom_call.1} parent=1 // pred_region
      %s33 = ssub.s32 64, 64
      %34 = vsyncadd [#allocation3], %s33
      %s35 = sshll.u32 [#allocation2], 4
      %s36 = int_to_ptr.vmem [resolvable:$true] %s35
      %41 = dma.hbm_to_vmem [thread:$0]  %s1, 64, %s36, [#allocation3], 16, 16, 1
    $region9: #{tpu_custom_call.1} parent=1 // pred_fallthru
      _
    // Predicated region
    $region10: #{tpu_custom_call.1} parent=1 // pred_check
      _
    $region11: #{tpu_custom_call.1} parent=1 // pred_check_branch
      %43 = sbr.rel (0) target = $region13
    $region12: #{tpu_custom_call.1} parent=1 // pred_region
      _
    $region13: #{tpu_custom_call.1} parent=1 // pred_fallthru
      _
    // Predicated region
    $region14: #{tpu_custom_call.1} parent=1 // pred_check
      _
    $region15: #{tpu_custom_call.1} parent=1 // pred_check_branch
      %45 = sbr.rel (0) target = $region17
    $region16: #{tpu_custom_call.1} parent=1 // pred_region
      _
    $region17: #{tpu_custom_call.1} parent=1 // pred_fallthru
      _
    // Predicated region
    $region18: #{tpu_custom_call.1} parent=1 // pred_check
      _
    $region19: #{tpu_custom_call.1} parent=1 // pred_check_branch
      %47 = sbr.rel (0) target = $region21
    $region20: #{tpu_custom_call.1} parent=1 // pred_region
      %s49 = ssub.s32 256, 256
      %50 = vsyncadd [#allocation6], %s49
      %s51 = sshll.u32 [#allocation5], 4
      %s52 = int_to_ptr.vmem [resolvable:$true] %s51
      %57 = dma.hbm_to_vmem [thread:$0]  %s4, 256, %s52, [#allocation6], 64, 64, 4
    $region21: #{tpu_custom_call.1} parent=1 // pred_fallthru
      _
    // Predicated region
    $region22: #{tpu_custom_call.1} parent=1 // pred_check
      _
    $region23: #{tpu_custom_call.1} parent=1 // pred_check_branch
      %59 = sbr.rel (0) target = $region25
    $region24: #{tpu_custom_call.1} parent=1 // pred_region
      _
    $region25: #{tpu_custom_call.1} parent=1 // pred_fallthru
      _
    // Predicated region
    $region26: #{tpu_custom_call.1} parent=1 // pred_check
      _
    $region27: #{tpu_custom_call.1} parent=1 // pred_check_branch
      %61 = sbr.rel (0) target = $region29
    $region28: #{tpu_custom_call.1} parent=1 // pred_region
      %s63 = ssub.s32 256, 256
      %64 = vsyncadd [#allocation6], %s63
      %s65 = sshll.u32 [#allocation7], 4
      %s66 = int_to_ptr.vmem [resolvable:$true] %s65
      %71 = dma.hbm_to_vmem [thread:$0]  %s6, 256, %s66, [#allocation6], 64, 64, 4
    $region29: #{tpu_custom_call.1} parent=1 // pred_fallthru
      _
    // Predicated region
    $region30: #{tpu_custom_call.1} parent=1 // pred_check
      _
    $region31: #{tpu_custom_call.1} parent=1 // pred_check_branch
      %73 = sbr.rel (0) target = $region33
    $region32: #{tpu_custom_call.1} parent=1 // pred_region
      %s75 = ssub.s32 16, 16
      %76 = vsyncadd [#allocation9], %s75
      %s78 = sshll.u32 [#allocation8], 4
      %s79 = int_to_ptr.vmem [resolvable:$true] %s78
      %81 = dma.hbm_to_vmem [thread:$0]  %s7, 16, %s79, [#allocation9]
    $region33: #{tpu_custom_call.1} parent=1 // pred_fallthru
      _
    // Predicated region
    $region34: #{tpu_custom_call.1} parent=1 // pred_check
      _
    $region35: #{tpu_custom_call.1} parent=1 // pred_check_branch
      %83 = sbr.rel (0) target = $region37
    $region36: #{tpu_custom_call.1} parent=1 // pred_region
      %s85 = ssub.s32 256, 256
      %86 = vsyncadd [#allocation9], %s85
      %s87 = sshll.u32 [#allocation10], 4
      %s88 = int_to_ptr.vmem [resolvable:$true] %s87
      %93 = dma.hbm_to_vmem [thread:$0]  %s8, 256, %s88, [#allocation9], 64, 64, 4
    $region37: #{tpu_custom_call.1} parent=1 // pred_fallthru
      _
    // Predicated region
    $region38: #{tpu_custom_call.1} parent=1 // pred_check
      _
    $region39: #{tpu_custom_call.1} parent=1 // pred_check_branch
      %95 = sbr.rel (0) target = $region41
    $region40: #{tpu_custom_call.1} parent=1 // pred_region
      %s97 = ssub.s32 16, 16
      %98 = vsyncadd [#allocation12], %s97
      %s100 = sshll.u32 [#allocation11], 4
      %s101 = int_to_ptr.vmem [resolvable:$true] %s100
      %103 = dma.hbm_to_vmem [thread:$0]  %s9, 16, %s101, [#allocation12]
    $region41: #{tpu_custom_call.1} parent=1 // pred_fallthru
      _
    // Predicated region
    $region42: #{tpu_custom_call.1} parent=1 // pred_check
      _
    $region43: #{tpu_custom_call.1} parent=1 // pred_check_branch
      %105 = sbr.rel (0) target = $region45
    $region44: #{tpu_custom_call.1} parent=1 // pred_region
      _
    $region45: #{tpu_custom_call.1} parent=1 // pred_fallthru
      _
    // Predicated region
    $region46: #{tpu_custom_call.1} parent=1 // pred_check
      _
    $region47: #{tpu_custom_call.1} parent=1 // pred_check_branch
      %107 = sbr.rel (0) target = $region49
    $region48: #{tpu_custom_call.1} parent=1 // pred_region
      _
    $region49: #{tpu_custom_call.1} parent=1 // pred_fallthru
      _
    // Predicated region
    $region50: #{tpu_custom_call.1} parent=1 // pred_check
      _
    $region51: #{tpu_custom_call.1} parent=1 // pred_check_branch
      %109 = sbr.rel (0) target = $region53
    $region52: #{tpu_custom_call.1} parent=1 // pred_region
      _
    $region53: #{tpu_custom_call.1} parent=1 // pred_fallthru
      _
    // Predicated region
    $region54: #{tpu_custom_call.1} parent=1 // pred_check
      _
    $region55: #{tpu_custom_call.1} parent=1 // pred_check_branch
      %111 = sbr.rel (0) target = $region57
    $region56: #{tpu_custom_call.1} parent=1 // pred_region
      _
    $region57: #{tpu_custom_call.1} parent=1 // pred_fallthru
      _
    // Predicated region
    $region58: #{tpu_custom_call.1} parent=1 // pred_check
      _
    $region59: #{tpu_custom_call.1} parent=1 // pred_check_branch
      %113 = sbr.rel (0) target = $region61
    $region60: #{tpu_custom_call.1} parent=1 // pred_region
      _
    $region61: #{tpu_custom_call.1} parent=1 // pred_fallthru
      _
    // Predicated region
    $region62: #{tpu_custom_call.1} parent=1 // pred_check
      _
    $region63: #{tpu_custom_call.1} parent=1 // pred_check_branch
      %115 = sbr.rel (0) target = $region65
    $region64: #{tpu_custom_call.1} parent=1 // pred_region
      _
    $region65: #{tpu_custom_call.1} parent=1 // pred_fallthru
      _
    // Predicated region
    $region66: #{tpu_custom_call.1} parent=1 // pred_check
      _
    $region67: #{tpu_custom_call.1} parent=1 // pred_check_branch
      %117 = sbr.rel (0) target = $region69
    $region68: #{tpu_custom_call.1} parent=1 // pred_region
      _
    $region69: #{tpu_custom_call.1} parent=1 // pred_fallthru
      _
    // Predicated region
    $region70: #{tpu_custom_call.1} parent=1 // pred_check
      _
    $region71: #{tpu_custom_call.1} parent=1 // pred_check_branch
      %119 = sbr.rel (0) target = $region73
    $region72: #{tpu_custom_call.1} parent=1 // pred_region
      _
    $region73: #{tpu_custom_call.1} parent=1 // pred_fallthru
      _
    // Predicated region
    $region74: #{tpu_custom_call.1} parent=1 // pred_check
      _
    $region75: #{tpu_custom_call.1} parent=1 // pred_check_branch
      %121 = sbr.rel (0) target = $region77
    $region76: #{tpu_custom_call.1} parent=1 // pred_region
      %122 = dma.done [#allocation3], 64
    $region77: #{tpu_custom_call.1} parent=1 // pred_fallthru
      _
    // Predicated region
    $region78: #{tpu_custom_call.1} parent=1 // pred_check
      _
    $region79: #{tpu_custom_call.1} parent=1 // pred_check_branch
      %124 = sbr.rel (0) target = $region81
    $region80: #{tpu_custom_call.1} parent=1 // pred_region
      %125 = dma.done [#allocation6], 256
    $region81: #{tpu_custom_call.1} parent=1 // pred_fallthru
      _
    // Predicated region
    $region82: #{tpu_custom_call.1} parent=1 // pred_check
      _
    $region83: #{tpu_custom_call.1} parent=1 // pred_check_branch
      %127 = sbr.rel (0) target = $region85
    $region84: #{tpu_custom_call.1} parent=1 // pred_region
      %128 = dma.done [#allocation6], 256
    $region85: #{tpu_custom_call.1} parent=1 // pred_fallthru
      _
    // Predicated region
    $region86: #{tpu_custom_call.1} parent=1 // pred_check
      _
    $region87: #{tpu_custom_call.1} parent=1 // pred_check_branch
      %130 = sbr.rel (0) target = $region89
    $region88: #{tpu_custom_call.1} parent=1 // pred_region
      %131 = dma.done [#allocation9], 16
    $region89: #{tpu_custom_call.1} parent=1 // pred_fallthru
      _
    // Predicated region
    $region90: #{tpu_custom_call.1} parent=1 // pred_check
      _
    $region91: #{tpu_custom_call.1} parent=1 // pred_check_branch
      %133 = sbr.rel (0) target = $region93
    $region92: #{tpu_custom_call.1} parent=1 // pred_region
      %134 = dma.done [#allocation9], 256
    $region93: #{tpu_custom_call.1} parent=1 // pred_fallthru
      _
    // Predicated region
    $region94: #{tpu_custom_call.1} parent=1 // pred_check
      _
    $region95: #{tpu_custom_call.1} parent=1 // pred_check_branch
      %136 = sbr.rel (0) target = $region97
    $region96: #{tpu_custom_call.1} parent=1 // pred_region
      %137 = dma.done [#allocation12], 16
    $region97: #{tpu_custom_call.1} parent=1 // pred_fallthru
      _
    %v139 = vld [vmem:[%s0] sm:$0xff]
    %v140 = vld [vmem:[%s0 + $0x8] sm:$0xff]
    %v141 = vld [vmem:[%s0 + $0x10] sm:$0xff]
    %v142 = vld [vmem:[%s0 + $0x18] sm:$0xff]
    %v143 = vpack.c.bf16 %v140, %v139
    %v144 = vpack.c.bf16 %v142, %v141
    %v145 = vld [vmem:[%s2] sm:$0xf]
    %v146 = vld [vmem:[%s2 + $0x4] sm:$0xf]
    %v147 = vld [vmem:[%s2 + $0x8] sm:$0xf]
    %v148 = vld [vmem:[%s2 + $0xc] sm:$0xf]
    %v149 = vld [vmem:[%s3] sm:$0x1]
    %v151 = vlaneseq
    %v152 = vshrl.u32 %v151, 7
    %v153 = vsub.s32 0, %v152
    %v154 = vrot.slane %v149, %v153
    %v160 = vunpack.c.l.b16 %v145
    %v161 = vunpack.c.l.b16 %v146
    %v162 = vunpack.c.l.b16 %v147
    %v163 = vunpack.c.l.b16 %v148
    %v164 = vpack.c.b16 %v161, %v160
    %v165 = vpack.c.b16 %v163, %v162
    %vm168 = vcmask 261120
    %v170 = vsel %vm168, %v143, 0
    %v173 = vsel %vm168, %v144, 0
    %175 = vmatprep.subr.bf16.mxu0 0
    %176 = vmatpush1.bf16.msra.mxu0 %v164
    %177 = vmatprep.subr.bf16.mxu0 0
    %178 = vmatpush1.bf16.msra.mxu0 %v165
    %179 = vmatprep.subr.bf16.mxu0 0
    %180 = vmatpush1.bf16.msra.mxu0 0
    %181 = vmatprep.subr.bf16.mxu0 0
    %182 = vmatpush1.bf16.msra.mxu0 0
    %183 = vmatprep.subr.bf16.mxu0 0
    %184 = vmatpush1.bf16.msra.mxu0 0
    %185 = vmatprep.subr.bf16.mxu0 0
    %186 = vmatpush1.bf16.msra.mxu0 0
    %187 = vmatprep.subr.bf16.mxu0 0
    %188 = vmatpush1.bf16.msra.mxu0 0
    %189 = vmatprep.subr.bf16.mxu0 0
    %190 = vmatpush1.bf16.msra.mxu0 0
    %191 = vmatprep.subr.bf16.mxu0 0
    %192 = vmatpush1.bf16.msra.mxu0 0
    %193 = vmatprep.subr.bf16.mxu0 0
    %194 = vmatpush1.bf16.msra.mxu0 0
    %195 = vmatprep.subr.bf16.mxu0 0
    %196 = vmatpush1.bf16.msra.mxu0 0
    %197 = vmatprep.subr.bf16.mxu0 0
    %198 = vmatpush1.bf16.msra.mxu0 0
    %199 = vmatprep.subr.bf16.mxu0 0
    %200 = vmatpush1.bf16.msra.mxu0 0
    %201 = vmatprep.subr.bf16.mxu0 0
    %202 = vmatpush1.bf16.msra.mxu0 0
    %203 = vmatprep.subr.bf16.mxu0 0
    %204 = vmatpush1.bf16.msra.mxu0 0
    %205 = vmatprep.subr.bf16.mxu0 0
    %206 = vmatpush1.bf16.msra.mxu0 0
    %207 = vmatprep.mubr.bf16.mxu0 0
    %208 = vmatmul.mubr.bf16.gmra.mrb[0].mxu0 %v170
    %v209 = vpop.f32.mrb[0].mxu0
    %v210 = vadd.f32 %v154, %v209
    %v211 = vpop.f32.mrb[0].mxu0
    %v212 = vpop.f32.mrb[0].mxu0
    %v213 = vadd.f32 %v154, %v212
    %v214 = vpop.f32.mrb[0].mxu0
    %215 = vmatprep.mubr.bf16.mxu0 0
    %216 = vmatmul.mubr.bf16.gmra.mrb[0].mxu0 %v173
    %v217 = vpop.f32.mrb[0].mxu0
    %v218 = vadd.f32 %v154, %v217
    %v219 = vpop.f32.mrb[0].mxu0
    %v220 = vpop.f32.mrb[0].mxu0
    %v221 = vadd.f32 %v154, %v220
    %v222 = vpop.f32.mrb[0].mxu0
    %223 = vdwg.mxu0
    %v224 = vmul.f32 %v210, 0.5
    %v225 = vmul.f32 %v213, 0.5
    %v226 = vmul.f32 %v218, 0.5
    %v227 = vmul.f32 %v221, 0.5
    %v228 = vpack.c.bf16 %v225, %v224
    %v229 = vpack.c.bf16 %v227, %v226
    %v232 = vunpack.c.l.b16 %v228
    %v233 = vunpack.c.h.b16 %v228
    %v234 = vunpack.c.l.b16 %v229
    %v235 = vunpack.c.h.b16 %v229
    %v236 = vpack.c.b16 %v232, %v232
    %v237 = vpack.c.b16 %v233, %v233
    %v238 = vpack.c.b16 %v234, %v234
    %v239 = vpack.c.b16 %v235, %v235
    %v240 = vld [vmem:[#allocation5] sm:$0xf]
    %v241 = vld [vmem:[#allocation5 + $0x4] sm:$0xf]
    %v242 = vld [vmem:[#allocation5 + $0x8] sm:$0xf]
    %v243 = vld [vmem:[#allocation5 + $0xc] sm:$0xf]
    %v244 = vld [vmem:[%s5] sm:$0x1]
    %v246 = vlaneseq
    %v247 = vshrl.u32 %v246, 7
    %v248 = vsub.s32 0, %v247
    %v249 = vrot.slane %v244, %v248
    %v255 = vunpack.c.l.b16 %v240
    %v256 = vunpack.c.l.b16 %v241
    %v257 = vunpack.c.l.b16 %v242
    %v258 = vunpack.c.l.b16 %v243
    %v259 = vpack.c.b16 %v256, %v255
    %v260 = vpack.c.b16 %v258, %v257
    %263 = vmatprep.subr.bf16.mxu0 0
    %264 = vmatpush1.bf16.msra.mxu0 %v259
    %265 = vmatprep.subr.bf16.mxu0 0
    %266 = vmatpush1.bf16.msra.mxu0 %v260
    %267 = vmatprep.subr.bf16.mxu0 0
    %268 = vmatpush1.bf16.msra.mxu0 0
    %269 = vmatprep.subr.bf16.mxu0 0
    %270 = vmatpush1.bf16.msra.mxu0 0
    %271 = vmatprep.subr.bf16.mxu0 0
    %272 = vmatpush1.bf16.msra.mxu0 0
    %273 = vmatprep.subr.bf16.mxu0 0
    %274 = vmatpush1.bf16.msra.mxu0 0
    %275 = vmatprep.subr.bf16.mxu0 0
    %276 = vmatpush1.bf16.msra.mxu0 0
    %277 = vmatprep.subr.bf16.mxu0 0
    %278 = vmatpush1.bf16.msra.mxu0 0
    %279 = vmatprep.subr.bf16.mxu0 0
    %280 = vmatpush1.bf16.msra.mxu0 0
    %281 = vmatprep.subr.bf16.mxu0 0
    %282 = vmatpush1.bf16.msra.mxu0 0
    %283 = vmatprep.subr.bf16.mxu0 0
    %284 = vmatpush1.bf16.msra.mxu0 0
    %285 = vmatprep.subr.bf16.mxu0 0
    %286 = vmatpush1.bf16.msra.mxu0 0
    %287 = vmatprep.subr.bf16.mxu0 0
    %288 = vmatpush1.bf16.msra.mxu0 0
    %289 = vmatprep.subr.bf16.mxu0 0
    %290 = vmatpush1.bf16.msra.mxu0 0
    %291 = vmatprep.subr.bf16.mxu0 0
    %292 = vmatpush1.bf16.msra.mxu0 0
    %293 = vmatprep.subr.bf16.mxu0 0
    %294 = vmatpush1.bf16.msra.mxu0 0
    %295 = vmatprep.mubr.bf16.mxu0 0
    %296 = vmatmul.mubr.bf16.gmra.mrb[0].mxu0 %v170
    %v297 = vpop.f32.mrb[0].mxu0
    %v298 = vadd.f32 %v249, %v297
    %v299 = vpop.f32.mrb[0].mxu0
    %v300 = vpop.f32.mrb[0].mxu0
    %v301 = vadd.f32 %v249, %v300
    %v302 = vpop.f32.mrb[0].mxu0
    %303 = vmatprep.mubr.bf16.mxu0 0
    %304 = vmatmul.mubr.bf16.gmra.mrb[0].mxu0 %v173
    %v305 = vpop.f32.mrb[0].mxu0
    %v306 = vadd.f32 %v249, %v305
    %v307 = vpop.f32.mrb[0].mxu0
    %v308 = vpop.f32.mrb[0].mxu0
    %v309 = vadd.f32 %v249, %v308
    %v310 = vpop.f32.mrb[0].mxu0
    %311 = vdwg.mxu0
    %v312 = vpack.c.bf16 %v301, %v298
    %v313 = vpack.c.bf16 %v309, %v306
    %v316 = vunpack.c.l.b16 %v312
    %v317 = vunpack.c.h.b16 %v312
    %v318 = vunpack.c.l.b16 %v313
    %v319 = vunpack.c.h.b16 %v313
    %v320 = vpack.c.b16 %v316, %v316
    %v321 = vpack.c.b16 %v317, %v317
    %v322 = vpack.c.b16 %v318, %v318
    %v323 = vpack.c.b16 %v319, %v319
    %v324 = vld [vmem:[#allocation7] sm:$0xf]
    %v325 = vld [vmem:[#allocation7 + $0x4] sm:$0xf]
    %v326 = vld [vmem:[#allocation7 + $0x8] sm:$0xf]
    %v327 = vld [vmem:[#allocation7 + $0xc] sm:$0xf]
    %v328 = vld [vmem:[#allocation8] sm:$0x1]
    %v330 = vlaneseq
    %v331 = vshrl.u32 %v330, 7
    %v332 = vsub.s32 0, %v331
    %v333 = vrot.slane %v328, %v332
    %v339 = vunpack.c.l.b16 %v324
    %v340 = vunpack.c.l.b16 %v325
    %v341 = vunpack.c.l.b16 %v326
    %v342 = vunpack.c.l.b16 %v327
    %v343 = vpack.c.b16 %v340, %v339
    %v344 = vpack.c.b16 %v342, %v341
    %347 = vmatprep.subr.bf16.mxu0 0
    %348 = vmatpush1.bf16.msra.mxu0 %v343
    %349 = vmatprep.subr.bf16.mxu0 0
    %350 = vmatpush1.bf16.msra.mxu0 %v344
    %351 = vmatprep.subr.bf16.mxu0 0
    %352 = vmatpush1.bf16.msra.mxu0 0
    %353 = vmatprep.subr.bf16.mxu0 0
    %354 = vmatpush1.bf16.msra.mxu0 0
    %355 = vmatprep.subr.bf16.mxu0 0
    %356 = vmatpush1.bf16.msra.mxu0 0
    %357 = vmatprep.subr.bf16.mxu0 0
    %358 = vmatpush1.bf16.msra.mxu0 0
    %359 = vmatprep.subr.bf16.mxu0 0
    %360 = vmatpush1.bf16.msra.mxu0 0
    %361 = vmatprep.subr.bf16.mxu0 0
    %362 = vmatpush1.bf16.msra.mxu0 0
    %363 = vmatprep.subr.bf16.mxu0 0
    %364 = vmatpush1.bf16.msra.mxu0 0
    %365 = vmatprep.subr.bf16.mxu0 0
    %366 = vmatpush1.bf16.msra.mxu0 0
    %367 = vmatprep.subr.bf16.mxu0 0
    %368 = vmatpush1.bf16.msra.mxu0 0
    %369 = vmatprep.subr.bf16.mxu0 0
    %370 = vmatpush1.bf16.msra.mxu0 0
    %371 = vmatprep.subr.bf16.mxu0 0
    %372 = vmatpush1.bf16.msra.mxu0 0
    %373 = vmatprep.subr.bf16.mxu0 0
    %374 = vmatpush1.bf16.msra.mxu0 0
    %375 = vmatprep.subr.bf16.mxu0 0
    %376 = vmatpush1.bf16.msra.mxu0 0
    %377 = vmatprep.subr.bf16.mxu0 0
    %378 = vmatpush1.bf16.msra.mxu0 0
    %379 = vmatprep.mubr.bf16.mxu0 0
    %380 = vmatmul.mubr.bf16.gmra.mrb[0].mxu0 %v170
    %v381 = vpop.f32.mrb[0].mxu0
    %v382 = vadd.f32 %v333, %v381
    %v383 = vpop.f32.mrb[0].mxu0
    %v384 = vpop.f32.mrb[0].mxu0
    %v385 = vadd.f32 %v333, %v384
    %v386 = vpop.f32.mrb[0].mxu0
    %387 = vmatprep.mubr.bf16.mxu0 0
    %388 = vmatmul.mubr.bf16.gmra.mrb[0].mxu0 %v173
    %v389 = vpop.f32.mrb[0].mxu0
    %v390 = vadd.f32 %v333, %v389
    %v391 = vpop.f32.mrb[0].mxu0
    %v392 = vpop.f32.mrb[0].mxu0
    %v393 = vadd.f32 %v333, %v392
    %v394 = vpop.f32.mrb[0].mxu0
    %395 = vdwg.mxu0
    %v396 = vpack.c.bf16 %v385, %v382
    %v397 = vpack.c.bf16 %v393, %v390
    %v400 = vunpack.c.l.b16 %v396
    %v401 = vunpack.c.h.b16 %v396
    %v402 = vunpack.c.l.b16 %v397
    %v403 = vunpack.c.h.b16 %v397
    %v404 = vpack.c.b16 %v400, %v400
    %v405 = vpack.c.b16 %v401, %v401
    %v406 = vpack.c.b16 %v402, %v402
    %v407 = vpack.c.b16 %v403, %v403
    %v408 = vld [vmem:[#allocation2] sm:$0x1]
    %v409 = vld [vmem:[#allocation2 + $0x1] sm:$0x1]
    %v410 = vld [vmem:[#allocation2 + $0x2] sm:$0x1]
    %v411 = vld [vmem:[#allocation2 + $0x3] sm:$0x1]
    %vm412 = vcmp.gt.f32.partialorder %v408, 0.0
    %vm413 = vcmp.gt.f32.partialorder %v409, 0.0
    %vm414 = vcmp.gt.f32.partialorder %v410, 0.0
    %vm415 = vcmp.gt.f32.partialorder %v411, 0.0
    %v416 = vsel %vm412, -65504.0, 0.0
    %v417 = vsel %vm413, -65504.0, 0.0
    %v418 = vsel %vm414, -65504.0, 0.0
    %v419 = vsel %vm415, -65504.0, 0.0
    %v424 = vlaneseq
    %v425 = vshrl.u32 %v424, 7
    %v426 = vsub.s32 0, %v425
    %v427 = vrot.slane %v416, %v426
    %v428 = vlaneseq
    %v429 = vshrl.u32 %v428, 7
    %v430 = vsub.s32 0, %v429
    %v431 = vrot.slane %v417, %v430
    %v432 = vlaneseq
    %v433 = vshrl.u32 %v432, 7
    %v434 = vsub.s32 0, %v433
    %v435 = vrot.slane %v418, %v434
    %v436 = vlaneseq
    %v437 = vshrl.u32 %v436, 7
    %v438 = vsub.s32 0, %v437
    %v439 = vrot.slane %v419, %v438
    %vm444 = vcmask 31744
    %v446 = vsel %vm444, %v236, 0
    %v449 = vsel %vm444, %v320, 0
    %451 = vmatprep.subr.bf16.mxu0 0
    %452 = vmatpush1.bf16.xpose.msra.mxu0 %v449
    %453 = vmatprep.subr.bf16.mxu0 0
    %454 = vmatpush1.bf16.xpose.msra.mxu0 0
    %455 = vmatprep.subr.bf16.mxu0 0
    %456 = vmatpush1.bf16.xpose.msra.mxu0 0
    %457 = vmatprep.subr.bf16.mxu0 0
    %458 = vmatpush1.bf16.xpose.msra.mxu0 0
    %459 = vmatprep.subr.bf16.mxu0 0
    %460 = vmatpush1.bf16.xpose.msra.mxu0 0
    %461 = vmatprep.subr.bf16.mxu0 0
    %462 = vmatpush1.bf16.xpose.msra.mxu0 0
    %463 = vmatprep.subr.bf16.mxu0 0
    %464 = vmatpush1.bf16.xpose.msra.mxu0 0
    %465 = vmatprep.subr.bf16.mxu0 0
    %466 = vmatpush1.bf16.xpose.msra.mxu0 0
    %467 = vmatprep.subr.bf16.mxu0 0
    %468 = vmatpush1.bf16.xpose.msra.mxu0 0
    %469 = vmatprep.subr.bf16.mxu0 0
    %470 = vmatpush1.bf16.xpose.msra.mxu0 0
    %471 = vmatprep.subr.bf16.mxu0 0
    %472 = vmatpush1.bf16.xpose.msra.mxu0 0
    %473 = vmatprep.subr.bf16.mxu0 0
    %474 = vmatpush1.bf16.xpose.msra.mxu0 0
    %475 = vmatprep.subr.bf16.mxu0 0
    %476 = vmatpush1.bf16.xpose.msra.mxu0 0
    %477 = vmatprep.subr.bf16.mxu0 0
    %478 = vmatpush1.bf16.xpose.msra.mxu0 0
    %479 = vmatprep.subr.bf16.mxu0 0
    %480 = vmatpush1.bf16.xpose.msra.mxu0 0
    %481 = vmatprep.subr.bf16.mxu0 0
    %482 = vmatpush1.bf16.xpose.msra.mxu0 0
    %483 = vmatprep.mubr.bf16.mxu0 0
    %484 = vmatmul.mubr.bf16.gmra.mrb[0].mxu0 %v446
    %v485 = vpop.f32.mrb[0].mxu0
    %v486 = vadd.f32 %v427, %v485
    %v487 = vpop.f32.mrb[0].mxu0
    %v488 = vpop.f32.mrb[0].mxu0
    %v489 = vpop.f32.mrb[0].mxu0
    %490 = vdwg.mxu0
    %v492 = vsel %vm444, %v237, 0
    %v495 = vsel %vm444, %v321, 0
    %497 = vmatprep.subr.bf16.mxu0 0
    %498 = vmatpush1.bf16.xpose.msra.mxu0 %v495
    %499 = vmatprep.subr.bf16.mxu0 0
    %500 = vmatpush1.bf16.xpose.msra.mxu0 0
    %501 = vmatprep.subr.bf16.mxu0 0
    %502 = vmatpush1.bf16.xpose.msra.mxu0 0
    %503 = vmatprep.subr.bf16.mxu0 0
    %504 = vmatpush1.bf16.xpose.msra.mxu0 0
    %505 = vmatprep.subr.bf16.mxu0 0
    %506 = vmatpush1.bf16.xpose.msra.mxu0 0
    %507 = vmatprep.subr.bf16.mxu0 0
    %508 = vmatpush1.bf16.xpose.msra.mxu0 0
    %509 = vmatprep.subr.bf16.mxu0 0
    %510 = vmatpush1.bf16.xpose.msra.mxu0 0
    %511 = vmatprep.subr.bf16.mxu0 0
    %512 = vmatpush1.bf16.xpose.msra.mxu0 0
    %513 = vmatprep.subr.bf16.mxu0 0
    %514 = vmatpush1.bf16.xpose.msra.mxu0 0
    %515 = vmatprep.subr.bf16.mxu0 0
    %516 = vmatpush1.bf16.xpose.msra.mxu0 0
    %517 = vmatprep.subr.bf16.mxu0 0
    %518 = vmatpush1.bf16.xpose.msra.mxu0 0
    %519 = vmatprep.subr.bf16.mxu0 0
    %520 = vmatpush1.bf16.xpose.msra.mxu0 0
    %521 = vmatprep.subr.bf16.mxu0 0
    %522 = vmatpush1.bf16.xpose.msra.mxu0 0
    %523 = vmatprep.subr.bf16.mxu0 0
    %524 = vmatpush1.bf16.xpose.msra.mxu0 0
    %525 = vmatprep.subr.bf16.mxu0 0
    %526 = vmatpush1.bf16.xpose.msra.mxu0 0
    %527 = vmatprep.subr.bf16.mxu0 0
    %528 = vmatpush1.bf16.xpose.msra.mxu0 0
    %529 = vmatprep.mubr.bf16.mxu0 0
    %530 = vmatmul.mubr.bf16.gmra.mrb[0].mxu0 %v492
    %v531 = vpop.f32.mrb[0].mxu0
    %v532 = vadd.f32 %v431, %v531
    %v533 = vpop.f32.mrb[0].mxu0
    %v534 = vpop.f32.mrb[0].mxu0
    %v535 = vpop.f32.mrb[0].mxu0
    %536 = vdwg.mxu0
    %v538 = vsel %vm444, %v238, 0
    %v541 = vsel %vm444, %v322, 0
    %543 = vmatprep.subr.bf16.mxu0 0
    %544 = vmatpush1.bf16.xpose.msra.mxu0 %v541
    %545 = vmatprep.subr.bf16.mxu0 0
    %546 = vmatpush1.bf16.xpose.msra.mxu0 0
    %547 = vmatprep.subr.bf16.mxu0 0
    %548 = vmatpush1.bf16.xpose.msra.mxu0 0
    %549 = vmatprep.subr.bf16.mxu0 0
    %550 = vmatpush1.bf16.xpose.msra.mxu0 0
    %551 = vmatprep.subr.bf16.mxu0 0
    %552 = vmatpush1.bf16.xpose.msra.mxu0 0
    %553 = vmatprep.subr.bf16.mxu0 0
    %554 = vmatpush1.bf16.xpose.msra.mxu0 0
    %555 = vmatprep.subr.bf16.mxu0 0
    %556 = vmatpush1.bf16.xpose.msra.mxu0 0
    %557 = vmatprep.subr.bf16.mxu0 0
    %558 = vmatpush1.bf16.xpose.msra.mxu0 0
    %559 = vmatprep.subr.bf16.mxu0 0
    %560 = vmatpush1.bf16.xpose.msra.mxu0 0
    %561 = vmatprep.subr.bf16.mxu0 0
    %562 = vmatpush1.bf16.xpose.msra.mxu0 0
    %563 = vmatprep.subr.bf16.mxu0 0
    %564 = vmatpush1.bf16.xpose.msra.mxu0 0
    %565 = vmatprep.subr.bf16.mxu0 0
    %566 = vmatpush1.bf16.xpose.msra.mxu0 0
    %567 = vmatprep.subr.bf16.mxu0 0
    %568 = vmatpush1.bf16.xpose.msra.mxu0 0
    %569 = vmatprep.subr.bf16.mxu0 0
    %570 = vmatpush1.bf16.xpose.msra.mxu0 0
    %571 = vmatprep.subr.bf16.mxu0 0
    %572 = vmatpush1.bf16.xpose.msra.mxu0 0
    %573 = vmatprep.subr.bf16.mxu0 0
    %574 = vmatpush1.bf16.xpose.msra.mxu0 0
    %575 = vmatprep.mubr.bf16.mxu0 0
    %576 = vmatmul.mubr.bf16.gmra.mrb[0].mxu0 %v538
    %v577 = vpop.f32.mrb[0].mxu0
    %v578 = vadd.f32 %v435, %v577
    %v579 = vpop.f32.mrb[0].mxu0
    %v580 = vpop.f32.mrb[0].mxu0
    %v581 = vpop.f32.mrb[0].mxu0
    %582 = vdwg.mxu0
    %v584 = vsel %vm444, %v239, 0
    %v587 = vsel %vm444, %v323, 0
    %589 = vmatprep.subr.bf16.mxu0 0
    %590 = vmatpush1.bf16.xpose.msra.mxu0 %v587
    %591 = vmatprep.subr.bf16.mxu0 0
    %592 = vmatpush1.bf16.xpose.msra.mxu0 0
    %593 = vmatprep.subr.bf16.mxu0 0
    %594 = vmatpush1.bf16.xpose.msra.mxu0 0
    %595 = vmatprep.subr.bf16.mxu0 0
    %596 = vmatpush1.bf16.xpose.msra.mxu0 0
    %597 = vmatprep.subr.bf16.mxu0 0
    %598 = vmatpush1.bf16.xpose.msra.mxu0 0
    %599 = vmatprep.subr.bf16.mxu0 0
    %600 = vmatpush1.bf16.xpose.msra.mxu0 0
    %601 = vmatprep.subr.bf16.mxu0 0
    %602 = vmatpush1.bf16.xpose.msra.mxu0 0
    %603 = vmatprep.subr.bf16.mxu0 0
    %604 = vmatpush1.bf16.xpose.msra.mxu0 0
    %605 = vmatprep.subr.bf16.mxu0 0
    %606 = vmatpush1.bf16.xpose.msra.mxu0 0
    %607 = vmatprep.subr.bf16.mxu0 0
    %608 = vmatpush1.bf16.xpose.msra.mxu0 0
    %609 = vmatprep.subr.bf16.mxu0 0
    %610 = vmatpush1.bf16.xpose.msra.mxu0 0
    %611 = vmatprep.subr.bf16.mxu0 0
    %612 = vmatpush1.bf16.xpose.msra.mxu0 0
    %613 = vmatprep.subr.bf16.mxu0 0
    %614 = vmatpush1.bf16.xpose.msra.mxu0 0
    %615 = vmatprep.subr.bf16.mxu0 0
    %616 = vmatpush1.bf16.xpose.msra.mxu0 0
    %617 = vmatprep.subr.bf16.mxu0 0
    %618 = vmatpush1.bf16.xpose.msra.mxu0 0
    %619 = vmatprep.subr.bf16.mxu0 0
    %620 = vmatpush1.bf16.xpose.msra.mxu0 0
    %621 = vmatprep.mubr.bf16.mxu0 0
    %622 = vmatmul.mubr.bf16.gmra.mrb[0].mxu0 %v584
    %v623 = vpop.f32.mrb[0].mxu0
    %v624 = vadd.f32 %v439, %v623
    %v625 = vpop.f32.mrb[0].mxu0
    %v626 = vpop.f32.mrb[0].mxu0
    %v627 = vpop.f32.mrb[0].mxu0
    %628 = vdwg.mxu0
    %vm629 = vcmask 64512
    %v630 = vsel %vm629, %v486, -inf
    %631 = vmax.xlane.f32.xlu0 %v630
    %v632 = vpop.xlane.xlu0 %631
    %v633 = vsel %vm629, %v532, -inf
    %634 = vmax.xlane.f32.xlu0 %v633
    %v635 = vpop.xlane.xlu0 %634
    %v636 = vsel %vm629, %v578, -inf
    %637 = vmax.xlane.f32.xlu0 %v636
    %v638 = vpop.xlane.xlu0 %637
    %v639 = vsel %vm629, %v624, -inf
    %640 = vmax.xlane.f32.xlu0 %v639
    %v641 = vpop.xlane.xlu0 %640
    %v642 = vsub.f32 %v486, %v632
    %v643 = vsub.f32 %v532, %v635
    %v644 = vsub.f32 %v578, %v638
    %v645 = vsub.f32 %v624, %v641
    %v646 = vmul.f32 %v642, 1.442695
    %v647 = vpow.pop %v646
    %v648 = vmul.f32 %v643, 1.442695
    %v649 = vpow.pop %v648
    %v650 = vmul.f32 %v644, 1.442695
    %v651 = vpow.pop %v650
    %v652 = vmul.f32 %v645, 1.442695
    %v653 = vpow.pop %v652
    %v654 = vsel %vm629, %v647, 0.0
    %655 = vadd.xlane.f32.xlu0 %v654
    %v656 = vpop.xlane.xlu0 %655
    %v657 = vsel %vm629, %v649, 0.0
    %658 = vadd.xlane.f32.xlu0 %v657
    %v659 = vpop.xlane.xlu0 %658
    %v660 = vsel %vm629, %v651, 0.0
    %661 = vadd.xlane.f32.xlu0 %v660
    %v662 = vpop.xlane.xlu0 %661
    %v663 = vsel %vm629, %v653, 0.0
    %664 = vadd.xlane.f32.xlu0 %v663
    %v665 = vpop.xlane.xlu0 %664
    %v666 = vrcp.pop %v656
    %v667 = vrcp.pop %v659
    %v668 = vrcp.pop %v662
    %v669 = vrcp.pop %v665
    %v670 = vmul.f32 %v647, %v666
    %v671 = vmul.f32 %v649, %v667
    %v672 = vmul.f32 %v651, %v668
    %v673 = vmul.f32 %v653, %v669
    %v674 = vpack.c.bf16 %v670, %v670
    %v675 = vpack.c.bf16 %v671, %v671
    %v676 = vpack.c.bf16 %v672, %v672
    %v677 = vpack.c.bf16 %v673, %v673
    %v679 = vsel %vm629, %v674, 0
    %vm681 = vcmask 1043456
    %v683 = vsel %vm681, %v404, 0
    %685 = vmatprep.subr.bf16.mxu0 0
    %686 = vmatpush1.bf16.msra.mxu0 %v683
    %687 = vmatprep.subr.bf16.mxu0 0
    %688 = vmatpush1.bf16.msra.mxu0 0
    %689 = vmatprep.subr.bf16.mxu0 0
    %690 = vmatpush1.bf16.msra.mxu0 0
    %691 = vmatprep.subr.bf16.mxu0 0
    %692 = vmatpush1.bf16.msra.mxu0 0
    %693 = vmatprep.subr.bf16.mxu0 0
    %694 = vmatpush1.bf16.msra.mxu0 0
    %695 = vmatprep.subr.bf16.mxu0 0
    %696 = vmatpush1.bf16.msra.mxu0 0
    %697 = vmatprep.subr.bf16.mxu0 0
    %698 = vmatpush1.bf16.msra.mxu0 0
    %699 = vmatprep.subr.bf16.mxu0 0
    %700 = vmatpush1.bf16.msra.mxu0 0
    %701 = vmatprep.subr.bf16.mxu0 0
    %702 = vmatpush1.bf16.msra.mxu0 0
    %703 = vmatprep.subr.bf16.mxu0 0
    %704 = vmatpush1.bf16.msra.mxu0 0
    %705 = vmatprep.subr.bf16.mxu0 0
    %706 = vmatpush1.bf16.msra.mxu0 0
    %707 = vmatprep.subr.bf16.mxu0 0
    %708 = vmatpush1.bf16.msra.mxu0 0
    %709 = vmatprep.subr.bf16.mxu0 0
    %710 = vmatpush1.bf16.msra.mxu0 0
    %711 = vmatprep.subr.bf16.mxu0 0
    %712 = vmatpush1.bf16.msra.mxu0 0
    %713 = vmatprep.subr.bf16.mxu0 0
    %714 = vmatpush1.bf16.msra.mxu0 0
    %715 = vmatprep.subr.bf16.mxu0 0
    %716 = vmatpush1.bf16.msra.mxu0 0
    %717 = vmatprep.mubr.bf16.mxu0 0
    %718 = vmatmul.mubr.bf16.gmra.mrb[0].mxu0 %v679
    %v719 = vpop.f32.mrb[0].mxu0
    %v720 = vadd.f32 0.0, %v719
    %v721 = vpop.f32.mrb[0].mxu0
    %v722 = vpop.f32.mrb[0].mxu0
    %v723 = vpop.f32.mrb[0].mxu0
    %724 = vdwg.mxu0
    %v726 = vsel %vm629, %v675, 0
    %v729 = vsel %vm681, %v405, 0
    %731 = vmatprep.subr.bf16.mxu0 0
    %732 = vmatpush1.bf16.msra.mxu0 %v729
    %733 = vmatprep.subr.bf16.mxu0 0
    %734 = vmatpush1.bf16.msra.mxu0 0
    %735 = vmatprep.subr.bf16.mxu0 0
    %736 = vmatpush1.bf16.msra.mxu0 0
    %737 = vmatprep.subr.bf16.mxu0 0
    %738 = vmatpush1.bf16.msra.mxu0 0
    %739 = vmatprep.subr.bf16.mxu0 0
    %740 = vmatpush1.bf16.msra.mxu0 0
    %741 = vmatprep.subr.bf16.mxu0 0
    %742 = vmatpush1.bf16.msra.mxu0 0
    %743 = vmatprep.subr.bf16.mxu0 0
    %744 = vmatpush1.bf16.msra.mxu0 0
    %745 = vmatprep.subr.bf16.mxu0 0
    %746 = vmatpush1.bf16.msra.mxu0 0
    %747 = vmatprep.subr.bf16.mxu0 0
    %748 = vmatpush1.bf16.msra.mxu0 0
    %749 = vmatprep.subr.bf16.mxu0 0
    %750 = vmatpush1.bf16.msra.mxu0 0
    %751 = vmatprep.subr.bf16.mxu0 0
    %752 = vmatpush1.bf16.msra.mxu0 0
    %753 = vmatprep.subr.bf16.mxu0 0
    %754 = vmatpush1.bf16.msra.mxu0 0
    %755 = vmatprep.subr.bf16.mxu0 0
    %756 = vmatpush1.bf16.msra.mxu0 0
    %757 = vmatprep.subr.bf16.mxu0 0
    %758 = vmatpush1.bf16.msra.mxu0 0
    %759 = vmatprep.subr.bf16.mxu0 0
    %760 = vmatpush1.bf16.msra.mxu0 0
    %761 = vmatprep.subr.bf16.mxu0 0
    %762 = vmatpush1.bf16.msra.mxu0 0
    %763 = vmatprep.mubr.bf16.mxu0 0
    %764 = vmatmul.mubr.bf16.gmra.mrb[0].mxu0 %v726
    %v765 = vpop.f32.mrb[0].mxu0
    %v766 = vadd.f32 0.0, %v765
    %v767 = vpop.f32.mrb[0].mxu0
    %v768 = vpop.f32.mrb[0].mxu0
    %v769 = vpop.f32.mrb[0].mxu0
    %770 = vdwg.mxu0
    %v772 = vsel %vm629, %v676, 0
    %v775 = vsel %vm681, %v406, 0
    %777 = vmatprep.subr.bf16.mxu0 0
    %778 = vmatpush1.bf16.msra.mxu0 %v775
    %779 = vmatprep.subr.bf16.mxu0 0
    %780 = vmatpush1.bf16.msra.mxu0 0
    %781 = vmatprep.subr.bf16.mxu0 0
    %782 = vmatpush1.bf16.msra.mxu0 0
    %783 = vmatprep.subr.bf16.mxu0 0
    %784 = vmatpush1.bf16.msra.mxu0 0
    %785 = vmatprep.subr.bf16.mxu0 0
    %786 = vmatpush1.bf16.msra.mxu0 0
    %787 = vmatprep.subr.bf16.mxu0 0
    %788 = vmatpush1.bf16.msra.mxu0 0
    %789 = vmatprep.subr.bf16.mxu0 0
    %790 = vmatpush1.bf16.msra.mxu0 0
    %791 = vmatprep.subr.bf16.mxu0 0
    %792 = vmatpush1.bf16.msra.mxu0 0
    %793 = vmatprep.subr.bf16.mxu0 0
    %794 = vmatpush1.bf16.msra.mxu0 0
    %795 = vmatprep.subr.bf16.mxu0 0
    %796 = vmatpush1.bf16.msra.mxu0 0
    %797 = vmatprep.subr.bf16.mxu0 0
    %798 = vmatpush1.bf16.msra.mxu0 0
    %799 = vmatprep.subr.bf16.mxu0 0
    %800 = vmatpush1.bf16.msra.mxu0 0
    %801 = vmatprep.subr.bf16.mxu0 0
    %802 = vmatpush1.bf16.msra.mxu0 0
    %803 = vmatprep.subr.bf16.mxu0 0
    %804 = vmatpush1.bf16.msra.mxu0 0
    %805 = vmatprep.subr.bf16.mxu0 0
    %806 = vmatpush1.bf16.msra.mxu0 0
    %807 = vmatprep.subr.bf16.mxu0 0
    %808 = vmatpush1.bf16.msra.mxu0 0
    %809 = vmatprep.mubr.bf16.mxu0 0
    %810 = vmatmul.mubr.bf16.gmra.mrb[0].mxu0 %v772
    %v811 = vpop.f32.mrb[0].mxu0
    %v812 = vadd.f32 0.0, %v811
    %v813 = vpop.f32.mrb[0].mxu0
    %v814 = vpop.f32.mrb[0].mxu0
    %v815 = vpop.f32.mrb[0].mxu0
    %816 = vdwg.mxu0
    %v818 = vsel %vm629, %v677, 0
    %v821 = vsel %vm681, %v407, 0
    %823 = vmatprep.subr.bf16.mxu0 0
    %824 = vmatpush1.bf16.msra.mxu0 %v821
    %825 = vmatprep.subr.bf16.mxu0 0
    %826 = vmatpush1.bf16.msra.mxu0 0
    %827 = vmatprep.subr.bf16.mxu0 0
    %828 = vmatpush1.bf16.msra.mxu0 0
    %829 = vmatprep.subr.bf16.mxu0 0
    %830 = vmatpush1.bf16.msra.mxu0 0
    %831 = vmatprep.subr.bf16.mxu0 0
    %832 = vmatpush1.bf16.msra.mxu0 0
    %833 = vmatprep.subr.bf16.mxu0 0
    %834 = vmatpush1.bf16.msra.mxu0 0
    %835 = vmatprep.subr.bf16.mxu0 0
    %836 = vmatpush1.bf16.msra.mxu0 0
    %837 = vmatprep.subr.bf16.mxu0 0
    %838 = vmatpush1.bf16.msra.mxu0 0
    %839 = vmatprep.subr.bf16.mxu0 0
    %840 = vmatpush1.bf16.msra.mxu0 0
    %841 = vmatprep.subr.bf16.mxu0 0
    %842 = vmatpush1.bf16.msra.mxu0 0
    %843 = vmatprep.subr.bf16.mxu0 0
    %844 = vmatpush1.bf16.msra.mxu0 0
    %845 = vmatprep.subr.bf16.mxu0 0
    %846 = vmatpush1.bf16.msra.mxu0 0
    %847 = vmatprep.subr.bf16.mxu0 0
    %848 = vmatpush1.bf16.msra.mxu0 0
    %849 = vmatprep.subr.bf16.mxu0 0
    %850 = vmatpush1.bf16.msra.mxu0 0
    %851 = vmatprep.subr.bf16.mxu0 0
    %852 = vmatpush1.bf16.msra.mxu0 0
    %853 = vmatprep.subr.bf16.mxu0 0
    %854 = vmatpush1.bf16.msra.mxu0 0
    %855 = vmatprep.mubr.bf16.mxu0 0
    %856 = vmatmul.mubr.bf16.gmra.mrb[0].mxu0 %v818
    %v857 = vpop.f32.mrb[0].mxu0
    %v858 = vadd.f32 0.0, %v857
    %v859 = vpop.f32.mrb[0].mxu0
    %v860 = vpop.f32.mrb[0].mxu0
    %v861 = vpop.f32.mrb[0].mxu0
    %862 = vdwg.mxu0
    %v863 = vpack.c.bf16 %v720, %v720
    %v864 = vpack.c.bf16 %v766, %v766
    %v865 = vpack.c.bf16 %v812, %v812
    %v866 = vpack.c.bf16 %v858, %v858
    %867 = vrot.lane.b32.xlu0 %v236, 124
    %v868 = vpop.permute.xlu0 %867
    %869 = vrot.lane.b32.xlu0 %v320, 124
    %v870 = vpop.permute.xlu0 %869
    %v872 = vsel %vm444, %v868, 0
    %v875 = vsel %vm444, %v870, 0
    %877 = vmatprep.subr.bf16.mxu0 0
    %878 = vmatpush1.bf16.xpose.msra.mxu0 %v875
    %879 = vmatprep.subr.bf16.mxu0 0
    %880 = vmatpush1.bf16.xpose.msra.mxu0 0
    %881 = vmatprep.subr.bf16.mxu0 0
    %882 = vmatpush1.bf16.xpose.msra.mxu0 0
    %883 = vmatprep.subr.bf16.mxu0 0
    %884 = vmatpush1.bf16.xpose.msra.mxu0 0
    %885 = vmatprep.subr.bf16.mxu0 0
    %886 = vmatpush1.bf16.xpose.msra.mxu0 0
    %887 = vmatprep.subr.bf16.mxu0 0
    %888 = vmatpush1.bf16.xpose.msra.mxu0 0
    %889 = vmatprep.subr.bf16.mxu0 0
    %890 = vmatpush1.bf16.xpose.msra.mxu0 0
    %891 = vmatprep.subr.bf16.mxu0 0
    %892 = vmatpush1.bf16.xpose.msra.mxu0 0
    %893 = vmatprep.subr.bf16.mxu0 0
    %894 = vmatpush1.bf16.xpose.msra.mxu0 0
    %895 = vmatprep.subr.bf16.mxu0 0
    %896 = vmatpush1.bf16.xpose.msra.mxu0 0
    %897 = vmatprep.subr.bf16.mxu0 0
    %898 = vmatpush1.bf16.xpose.msra.mxu0 0
    %899 = vmatprep.subr.bf16.mxu0 0
    %900 = vmatpush1.bf16.xpose.msra.mxu0 0
    %901 = vmatprep.subr.bf16.mxu0 0
    %902 = vmatpush1.bf16.xpose.msra.mxu0 0
    %903 = vmatprep.subr.bf16.mxu0 0
    %904 = vmatpush1.bf16.xpose.msra.mxu0 0
    %905 = vmatprep.subr.bf16.mxu0 0
    %906 = vmatpush1.bf16.xpose.msra.mxu0 0
    %907 = vmatprep.subr.bf16.mxu0 0
    %908 = vmatpush1.bf16.xpose.msra.mxu0 0
    %909 = vmatprep.mubr.bf16.mxu0 0
    %910 = vmatmul.mubr.bf16.gmra.mrb[0].mxu0 %v872
    %v911 = vpop.f32.mrb[0].mxu0
    %v912 = vadd.f32 %v427, %v911
    %v913 = vpop.f32.mrb[0].mxu0
    %v914 = vpop.f32.mrb[0].mxu0
    %v915 = vpop.f32.mrb[0].mxu0
    %916 = vdwg.mxu0
    %917 = vrot.lane.b32.xlu0 %v237, 124
    %v918 = vpop.permute.xlu0 %917
    %919 = vrot.lane.b32.xlu0 %v321, 124
    %v920 = vpop.permute.xlu0 %919
    %v922 = vsel %vm444, %v918, 0
    %v925 = vsel %vm444, %v920, 0
    %927 = vmatprep.subr.bf16.mxu0 0
    %928 = vmatpush1.bf16.xpose.msra.mxu0 %v925
    %929 = vmatprep.subr.bf16.mxu0 0
    %930 = vmatpush1.bf16.xpose.msra.mxu0 0
    %931 = vmatprep.subr.bf16.mxu0 0
    %932 = vmatpush1.bf16.xpose.msra.mxu0 0
    %933 = vmatprep.subr.bf16.mxu0 0
    %934 = vmatpush1.bf16.xpose.msra.mxu0 0
    %935 = vmatprep.subr.bf16.mxu0 0
    %936 = vmatpush1.bf16.xpose.msra.mxu0 0
    %937 = vmatprep.subr.bf16.mxu0 0
    %938 = vmatpush1.bf16.xpose.msra.mxu0 0
    %939 = vmatprep.subr.bf16.mxu0 0
    %940 = vmatpush1.bf16.xpose.msra.mxu0 0
    %941 = vmatprep.subr.bf16.mxu0 0
    %942 = vmatpush1.bf16.xpose.msra.mxu0 0
    %943 = vmatprep.subr.bf16.mxu0 0
    %944 = vmatpush1.bf16.xpose.msra.mxu0 0
    %945 = vmatprep.subr.bf16.mxu0 0
    %946 = vmatpush1.bf16.xpose.msra.mxu0 0
    %947 = vmatprep.subr.bf16.mxu0 0
    %948 = vmatpush1.bf16.xpose.msra.mxu0 0
    %949 = vmatprep.subr.bf16.mxu0 0
    %950 = vmatpush1.bf16.xpose.msra.mxu0 0
    %951 = vmatprep.subr.bf16.mxu0 0
    %952 = vmatpush1.bf16.xpose.msra.mxu0 0
    %953 = vmatprep.subr.bf16.mxu0 0
    %954 = vmatpush1.bf16.xpose.msra.mxu0 0
    %955 = vmatprep.subr.bf16.mxu0 0
    %956 = vmatpush1.bf16.xpose.msra.mxu0 0
    %957 = vmatprep.subr.bf16.mxu0 0
    %958 = vmatpush1.bf16.xpose.msra.mxu0 0
    %959 = vmatprep.mubr.bf16.mxu0 0
    %960 = vmatmul.mubr.bf16.gmra.mrb[0].mxu0 %v922
    %v961 = vpop.f32.mrb[0].mxu0
    %v962 = vadd.f32 %v431, %v961
    %v963 = vpop.f32.mrb[0].mxu0
    %v964 = vpop.f32.mrb[0].mxu0
    %v965 = vpop.f32.mrb[0].mxu0
    %966 = vdwg.mxu0
    %967 = vrot.lane.b32.xlu0 %v238, 124
    %v968 = vpop.permute.xlu0 %967
    %969 = vrot.lane.b32.xlu0 %v322, 124
    %v970 = vpop.permute.xlu0 %969
    %v972 = vsel %vm444, %v968, 0
    %v975 = vsel %vm444, %v970, 0
    %977 = vmatprep.subr.bf16.mxu0 0
    %978 = vmatpush1.bf16.xpose.msra.mxu0 %v975
    %979 = vmatprep.subr.bf16.mxu0 0
    %980 = vmatpush1.bf16.xpose.msra.mxu0 0
    %981 = vmatprep.subr.bf16.mxu0 0
    %982 = vmatpush1.bf16.xpose.msra.mxu0 0
    %983 = vmatprep.subr.bf16.mxu0 0
    %984 = vmatpush1.bf16.xpose.msra.mxu0 0
    %985 = vmatprep.subr.bf16.mxu0 0
    %986 = vmatpush1.bf16.xpose.msra.mxu0 0
    %987 = vmatprep.subr.bf16.mxu0 0
    %988 = vmatpush1.bf16.xpose.msra.mxu0 0
    %989 = vmatprep.subr.bf16.mxu0 0
    %990 = vmatpush1.bf16.xpose.msra.mxu0 0
    %991 = vmatprep.subr.bf16.mxu0 0
    %992 = vmatpush1.bf16.xpose.msra.mxu0 0
    %993 = vmatprep.subr.bf16.mxu0 0
    %994 = vmatpush1.bf16.xpose.msra.mxu0 0
    %995 = vmatprep.subr.bf16.mxu0 0
    %996 = vmatpush1.bf16.xpose.msra.mxu0 0
    %997 = vmatprep.subr.bf16.mxu0 0
    %998 = vmatpush1.bf16.xpose.msra.mxu0 0
    %999 = vmatprep.subr.bf16.mxu0 0
    %1000 = vmatpush1.bf16.xpose.msra.mxu0 0
    %1001 = vmatprep.subr.bf16.mxu0 0
    %1002 = vmatpush1.bf16.xpose.msra.mxu0 0
    %1003 = vmatprep.subr.bf16.mxu0 0
    %1004 = vmatpush1.bf16.xpose.msra.mxu0 0
    %1005 = vmatprep.subr.bf16.mxu0 0
    %1006 = vmatpush1.bf16.xpose.msra.mxu0 0
    %1007 = vmatprep.subr.bf16.mxu0 0
    %1008 = vmatpush1.bf16.xpose.msra.mxu0 0
    %1009 = vmatprep.mubr.bf16.mxu0 0
    %1010 = vmatmul.mubr.bf16.gmra.mrb[0].mxu0 %v972
    %v1011 = vpop.f32.mrb[0].mxu0
    %v1012 = vadd.f32 %v435, %v1011
    %v1013 = vpop.f32.mrb[0].mxu0
    %v1014 = vpop.f32.mrb[0].mxu0
    %v1015 = vpop.f32.mrb[0].mxu0
    %1016 = vdwg.mxu0
    %1017 = vrot.lane.b32.xlu0 %v239, 124
    %v1018 = vpop.permute.xlu0 %1017
    %1019 = vrot.lane.b32.xlu0 %v323, 124
    %v1020 = vpop.permute.xlu0 %1019
    %v1022 = vsel %vm444, %v1018, 0
    %v1025 = vsel %vm444, %v1020, 0
    %1027 = vmatprep.subr.bf16.mxu0 0
    %1028 = vmatpush1.bf16.xpose.msra.mxu0 %v1025
    %1029 = vmatprep.subr.bf16.mxu0 0
    %1030 = vmatpush1.bf16.xpose.msra.mxu0 0
    %1031 = vmatprep.subr.bf16.mxu0 0
    %1032 = vmatpush1.bf16.xpose.msra.mxu0 0
    %1033 = vmatprep.subr.bf16.mxu0 0
    %1034 = vmatpush1.bf16.xpose.msra.mxu0 0
    %1035 = vmatprep.subr.bf16.mxu0 0
    %1036 = vmatpush1.bf16.xpose.msra.mxu0 0
    %1037 = vmatprep.subr.bf16.mxu0 0
    %1038 = vmatpush1.bf16.xpose.msra.mxu0 0
    %1039 = vmatprep.subr.bf16.mxu0 0
    %1040 = vmatpush1.bf16.xpose.msra.mxu0 0
    %1041 = vmatprep.subr.bf16.mxu0 0
    %1042 = vmatpush1.bf16.xpose.msra.mxu0 0
    %1043 = vmatprep.subr.bf16.mxu0 0
    %1044 = vmatpush1.bf16.xpose.msra.mxu0 0
    %1045 = vmatprep.subr.bf16.mxu0 0
    %1046 = vmatpush1.bf16.xpose.msra.mxu0 0
    %1047 = vmatprep.subr.bf16.mxu0 0
    %1048 = vmatpush1.bf16.xpose.msra.mxu0 0
    %1049 = vmatprep.subr.bf16.mxu0 0
    %1050 = vmatpush1.bf16.xpose.msra.mxu0 0
    %1051 = vmatprep.subr.bf16.mxu0 0
    %1052 = vmatpush1.bf16.xpose.msra.mxu0 0
    %1053 = vmatprep.subr.bf16.mxu0 0
    %1054 = vmatpush1.bf16.xpose.msra.mxu0 0
    %1055 = vmatprep.subr.bf16.mxu0 0
    %1056 = vmatpush1.bf16.xpose.msra.mxu0 0
    %1057 = vmatprep.subr.bf16.mxu0 0
    %1058 = vmatpush1.bf16.xpose.msra.mxu0 0
    %1059 = vmatprep.mubr.bf16.mxu0 0
    %1060 = vmatmul.mubr.bf16.gmra.mrb[0].mxu0 %v1022
    %v1061 = vpop.f32.mrb[0].mxu0
    %v1062 = vadd.f32 %v439, %v1061
    %v1063 = vpop.f32.mrb[0].mxu0
    %v1064 = vpop.f32.mrb[0].mxu0
    %v1065 = vpop.f32.mrb[0].mxu0
    %1066 = vdwg.mxu0
    %v1067 = vsel %vm629, %v912, -inf
    %1068 = vmax.xlane.f32.xlu0 %v1067
    %v1069 = vpop.xlane.xlu0 %1068
    %v1070 = vsel %vm629, %v962, -inf
    %1071 = vmax.xlane.f32.xlu0 %v1070
    %v1072 = vpop.xlane.xlu0 %1071
    %v1073 = vsel %vm629, %v1012, -inf
    %1074 = vmax.xlane.f32.xlu0 %v1073
    %v1075 = vpop.xlane.xlu0 %1074
    %v1076 = vsel %vm629, %v1062, -inf
    %1077 = vmax.xlane.f32.xlu0 %v1076
    %v1078 = vpop.xlane.xlu0 %1077
    %v1079 = vsub.f32 %v912, %v1069
    %v1080 = vsub.f32 %v962, %v1072
    %v1081 = vsub.f32 %v1012, %v1075
    %v1082 = vsub.f32 %v1062, %v1078
    %v1083 = vmul.f32 %v1079, 1.442695
    %v1084 = vpow.pop %v1083
    %v1085 = vmul.f32 %v1080, 1.442695
    %v1086 = vpow.pop %v1085
    %v1087 = vmul.f32 %v1081, 1.442695
    %v1088 = vpow.pop %v1087
    %v1089 = vmul.f32 %v1082, 1.442695
    %v1090 = vpow.pop %v1089
    %v1091 = vsel %vm629, %v1084, 0.0
    %1092 = vadd.xlane.f32.xlu0 %v1091
    %v1093 = vpop.xlane.xlu0 %1092
    %v1094 = vsel %vm629, %v1086, 0.0
    %1095 = vadd.xlane.f32.xlu0 %v1094
    %v1096 = vpop.xlane.xlu0 %1095
    %v1097 = vsel %vm629, %v1088, 0.0
    %1098 = vadd.xlane.f32.xlu0 %v1097
    %v1099 = vpop.xlane.xlu0 %1098
    %v1100 = vsel %vm629, %v1090, 0.0
    %1101 = vadd.xlane.f32.xlu0 %v1100
    %v1102 = vpop.xlane.xlu0 %1101
    %v1103 = vrcp.pop %v1093
    %v1104 = vrcp.pop %v1096
    %v1105 = vrcp.pop %v1099
    %v1106 = vrcp.pop %v1102
    %v1107 = vmul.f32 %v1084, %v1103
    %v1108 = vmul.f32 %v1086, %v1104
    %v1109 = vmul.f32 %v1088, %v1105
    %v1110 = vmul.f32 %v1090, %v1106
    %v1111 = vpack.c.bf16 %v1107, %v1107
    %v1112 = vpack.c.bf16 %v1108, %v1108
    %v1113 = vpack.c.bf16 %v1109, %v1109
    %v1114 = vpack.c.bf16 %v1110, %v1110
    %1115 = vrot.lane.b32.xlu0 %v404, 124
    %v1116 = vpop.permute.xlu0 %1115
    %v1118 = vsel %vm629, %v1111, 0
    %v1121 = vsel %vm681, %v1116, 0
    %1123 = vmatprep.subr.bf16.mxu0 0
    %1124 = vmatpush1.bf16.msra.mxu0 %v1121
    %1125 = vmatprep.subr.bf16.mxu0 0
    %1126 = vmatpush1.bf16.msra.mxu0 0
    %1127 = vmatprep.subr.bf16.mxu0 0
    %1128 = vmatpush1.bf16.msra.mxu0 0
    %1129 = vmatprep.subr.bf16.mxu0 0
    %1130 = vmatpush1.bf16.msra.mxu0 0
    %1131 = vmatprep.subr.bf16.mxu0 0
    %1132 = vmatpush1.bf16.msra.mxu0 0
    %1133 = vmatprep.subr.bf16.mxu0 0
    %1134 = vmatpush1.bf16.msra.mxu0 0
    %1135 = vmatprep.subr.bf16.mxu0 0
    %1136 = vmatpush1.bf16.msra.mxu0 0
    %1137 = vmatprep.subr.bf16.mxu0 0
    %1138 = vmatpush1.bf16.msra.mxu0 0
    %1139 = vmatprep.subr.bf16.mxu0 0
    %1140 = vmatpush1.bf16.msra.mxu0 0
    %1141 = vmatprep.subr.bf16.mxu0 0
    %1142 = vmatpush1.bf16.msra.mxu0 0
    %1143 = vmatprep.subr.bf16.mxu0 0
    %1144 = vmatpush1.bf16.msra.mxu0 0
    %1145 = vmatprep.subr.bf16.mxu0 0
    %1146 = vmatpush1.bf16.msra.mxu0 0
    %1147 = vmatprep.subr.bf16.mxu0 0
    %1148 = vmatpush1.bf16.msra.mxu0 0
    %1149 = vmatprep.subr.bf16.mxu0 0
    %1150 = vmatpush1.bf16.msra.mxu0 0
    %1151 = vmatprep.subr.bf16.mxu0 0
    %1152 = vmatpush1.bf16.msra.mxu0 0
    %1153 = vmatprep.subr.bf16.mxu0 0
    %1154 = vmatpush1.bf16.msra.mxu0 0
    %1155 = vmatprep.mubr.bf16.mxu0 0
    %1156 = vmatmul.mubr.bf16.gmra.mrb[0].mxu0 %v1118
    %v1157 = vpop.f32.mrb[0].mxu0
    %v1158 = vadd.f32 0.0, %v1157
    %v1159 = vpop.f32.mrb[0].mxu0
    %v1160 = vpop.f32.mrb[0].mxu0
    %v1161 = vpop.f32.mrb[0].mxu0
    %1162 = vdwg.mxu0
    %1163 = vrot.lane.b32.xlu0 %v405, 124
    %v1164 = vpop.permute.xlu0 %1163
    %v1166 = vsel %vm629, %v1112, 0
    %v1169 = vsel %vm681, %v1164, 0
    %1171 = vmatprep.subr.bf16.mxu0 0
    %1172 = vmatpush1.bf16.msra.mxu0 %v1169
    %1173 = vmatprep.subr.bf16.mxu0 0
    %1174 = vmatpush1.bf16.msra.mxu0 0
    %1175 = vmatprep.subr.bf16.mxu0 0
    %1176 = vmatpush1.bf16.msra.mxu0 0
    %1177 = vmatprep.subr.bf16.mxu0 0
    %1178 = vmatpush1.bf16.msra.mxu0 0
    %1179 = vmatprep.subr.bf16.mxu0 0
    %1180 = vmatpush1.bf16.msra.mxu0 0
    %1181 = vmatprep.subr.bf16.mxu0 0
    %1182 = vmatpush1.bf16.msra.mxu0 0
    %1183 = vmatprep.subr.bf16.mxu0 0
    %1184 = vmatpush1.bf16.msra.mxu0 0
    %1185 = vmatprep.subr.bf16.mxu0 0
    %1186 = vmatpush1.bf16.msra.mxu0 0
    %1187 = vmatprep.subr.bf16.mxu0 0
    %1188 = vmatpush1.bf16.msra.mxu0 0
    %1189 = vmatprep.subr.bf16.mxu0 0
    %1190 = vmatpush1.bf16.msra.mxu0 0
    %1191 = vmatprep.subr.bf16.mxu0 0
    %1192 = vmatpush1.bf16.msra.mxu0 0
    %1193 = vmatprep.subr.bf16.mxu0 0
    %1194 = vmatpush1.bf16.msra.mxu0 0
    %1195 = vmatprep.subr.bf16.mxu0 0
    %1196 = vmatpush1.bf16.msra.mxu0 0
    %1197 = vmatprep.subr.bf16.mxu0 0
    %1198 = vmatpush1.bf16.msra.mxu0 0
    %1199 = vmatprep.subr.bf16.mxu0 0
    %1200 = vmatpush1.bf16.msra.mxu0 0
    %1201 = vmatprep.subr.bf16.mxu0 0
    %1202 = vmatpush1.bf16.msra.mxu0 0
    %1203 = vmatprep.mubr.bf16.mxu0 0
    %1204 = vmatmul.mubr.bf16.gmra.mrb[0].mxu0 %v1166
    %v1205 = vpop.f32.mrb[0].mxu0
    %v1206 = vadd.f32 0.0, %v1205
    %v1207 = vpop.f32.mrb[0].mxu0
    %v1208 = vpop.f32.mrb[0].mxu0
    %v1209 = vpop.f32.mrb[0].mxu0
    %1210 = vdwg.mxu0
    %1211 = vrot.lane.b32.xlu0 %v406, 124
    %v1212 = vpop.permute.xlu0 %1211
    %v1214 = vsel %vm629, %v1113, 0
    %v1217 = vsel %vm681, %v1212, 0
    %1219 = vmatprep.subr.bf16.mxu0 0
    %1220 = vmatpush1.bf16.msra.mxu0 %v1217
    %1221 = vmatprep.subr.bf16.mxu0 0
    %1222 = vmatpush1.bf16.msra.mxu0 0
    %1223 = vmatprep.subr.bf16.mxu0 0
    %1224 = vmatpush1.bf16.msra.mxu0 0
    %1225 = vmatprep.subr.bf16.mxu0 0
    %1226 = vmatpush1.bf16.msra.mxu0 0
    %1227 = vmatprep.subr.bf16.mxu0 0
    %1228 = vmatpush1.bf16.msra.mxu0 0
    %1229 = vmatprep.subr.bf16.mxu0 0
    %1230 = vmatpush1.bf16.msra.mxu0 0
    %1231 = vmatprep.subr.bf16.mxu0 0
    %1232 = vmatpush1.bf16.msra.mxu0 0
    %1233 = vmatprep.subr.bf16.mxu0 0
    %1234 = vmatpush1.bf16.msra.mxu0 0
    %1235 = vmatprep.subr.bf16.mxu0 0
    %1236 = vmatpush1.bf16.msra.mxu0 0
    %1237 = vmatprep.subr.bf16.mxu0 0
    %1238 = vmatpush1.bf16.msra.mxu0 0
    %1239 = vmatprep.subr.bf16.mxu0 0
    %1240 = vmatpush1.bf16.msra.mxu0 0
    %1241 = vmatprep.subr.bf16.mxu0 0
    %1242 = vmatpush1.bf16.msra.mxu0 0
    %1243 = vmatprep.subr.bf16.mxu0 0
    %1244 = vmatpush1.bf16.msra.mxu0 0
    %1245 = vmatprep.subr.bf16.mxu0 0
    %1246 = vmatpush1.bf16.msra.mxu0 0
    %1247 = vmatprep.subr.bf16.mxu0 0
    %1248 = vmatpush1.bf16.msra.mxu0 0
    %1249 = vmatprep.subr.bf16.mxu0 0
    %1250 = vmatpush1.bf16.msra.mxu0 0
    %1251 = vmatprep.mubr.bf16.mxu0 0
    %1252 = vmatmul.mubr.bf16.gmra.mrb[0].mxu0 %v1214
    %v1253 = vpop.f32.mrb[0].mxu0
    %v1254 = vadd.f32 0.0, %v1253
    %v1255 = vpop.f32.mrb[0].mxu0
    %v1256 = vpop.f32.mrb[0].mxu0
    %v1257 = vpop.f32.mrb[0].mxu0
    %1258 = vdwg.mxu0
    %1259 = vrot.lane.b32.xlu0 %v407, 124
    %v1260 = vpop.permute.xlu0 %1259
    %v1262 = vsel %vm629, %v1114, 0
    %v1265 = vsel %vm681, %v1260, 0
    %1267 = vmatprep.subr.bf16.mxu0 0
    %1268 = vmatpush1.bf16.msra.mxu0 %v1265
    %1269 = vmatprep.subr.bf16.mxu0 0
    %1270 = vmatpush1.bf16.msra.mxu0 0
    %1271 = vmatprep.subr.bf16.mxu0 0
    %1272 = vmatpush1.bf16.msra.mxu0 0
    %1273 = vmatprep.subr.bf16.mxu0 0
    %1274 = vmatpush1.bf16.msra.mxu0 0
    %1275 = vmatprep.subr.bf16.mxu0 0
    %1276 = vmatpush1.bf16.msra.mxu0 0
    %1277 = vmatprep.subr.bf16.mxu0 0
    %1278 = vmatpush1.bf16.msra.mxu0 0
    %1279 = vmatprep.subr.bf16.mxu0 0
    %1280 = vmatpush1.bf16.msra.mxu0 0
    %1281 = vmatprep.subr.bf16.mxu0 0
    %1282 = vmatpush1.bf16.msra.mxu0 0
    %1283 = vmatprep.subr.bf16.mxu0 0
    %1284 = vmatpush1.bf16.msra.mxu0 0
    %1285 = vmatprep.subr.bf16.mxu0 0
    %1286 = vmatpush1.bf16.msra.mxu0 0
    %1287 = vmatprep.subr.bf16.mxu0 0
    %1288 = vmatpush1.bf16.msra.mxu0 0
    %1289 = vmatprep.subr.bf16.mxu0 0
    %1290 = vmatpush1.bf16.msra.mxu0 0
    %1291 = vmatprep.subr.bf16.mxu0 0
    %1292 = vmatpush1.bf16.msra.mxu0 0
    %1293 = vmatprep.subr.bf16.mxu0 0
    %1294 = vmatpush1.bf16.msra.mxu0 0
    %1295 = vmatprep.subr.bf16.mxu0 0
    %1296 = vmatpush1.bf16.msra.mxu0 0
    %1297 = vmatprep.subr.bf16.mxu0 0
    %1298 = vmatpush1.bf16.msra.mxu0 0
    %1299 = vmatprep.mubr.bf16.mxu0 0
    %1300 = vmatmul.mubr.bf16.gmra.mrb[0].mxu0 %v1262
    %v1301 = vpop.f32.mrb[0].mxu0
    %v1302 = vadd.f32 0.0, %v1301
    %v1303 = vpop.f32.mrb[0].mxu0
    %v1304 = vpop.f32.mrb[0].mxu0
    %v1305 = vpop.f32.mrb[0].mxu0
    %1306 = vdwg.mxu0
    %v1307 = vpack.c.bf16 %v1158, %v1158
    %v1308 = vpack.c.bf16 %v1206, %v1206
    %v1309 = vpack.c.bf16 %v1254, %v1254
    %v1310 = vpack.c.bf16 %v1302, %v1302
    %1311 = vrot.lane.b32.xlu0 %v236, 120
    %v1312 = vpop.permute.xlu0 %1311
    %1313 = vrot.lane.b32.xlu0 %v320, 120
    %v1314 = vpop.permute.xlu0 %1313
    %v1316 = vsel %vm444, %v1312, 0
    %v1319 = vsel %vm444, %v1314, 0
    %1321 = vmatprep.subr.bf16.mxu0 0
    %1322 = vmatpush1.bf16.xpose.msra.mxu0 %v1319
    %1323 = vmatprep.subr.bf16.mxu0 0
    %1324 = vmatpush1.bf16.xpose.msra.mxu0 0
    %1325 = vmatprep.subr.bf16.mxu0 0
    %1326 = vmatpush1.bf16.xpose.msra.mxu0 0
    %1327 = vmatprep.subr.bf16.mxu0 0
    %1328 = vmatpush1.bf16.xpose.msra.mxu0 0
    %1329 = vmatprep.subr.bf16.mxu0 0
    %1330 = vmatpush1.bf16.xpose.msra.mxu0 0
    %1331 = vmatprep.subr.bf16.mxu0 0
    %1332 = vmatpush1.bf16.xpose.msra.mxu0 0
    %1333 = vmatprep.subr.bf16.mxu0 0
    %1334 = vmatpush1.bf16.xpose.msra.mxu0 0
    %1335 = vmatprep.subr.bf16.mxu0 0
    %1336 = vmatpush1.bf16.xpose.msra.mxu0 0
    %1337 = vmatprep.subr.bf16.mxu0 0
    %1338 = vmatpush1.bf16.xpose.msra.mxu0 0
    %1339 = vmatprep.subr.bf16.mxu0 0
    %1340 = vmatpush1.bf16.xpose.msra.mxu0 0
    %1341 = vmatprep.subr.bf16.mxu0 0
    %1342 = vmatpush1.bf16.xpose.msra.mxu0 0
    %1343 = vmatprep.subr.bf16.mxu0 0
    %1344 = vmatpush1.bf16.xpose.msra.mxu0 0
    %1345 = vmatprep.subr.bf16.mxu0 0
    %1346 = vmatpush1.bf16.xpose.msra.mxu0 0
    %1347 = vmatprep.subr.bf16.mxu0 0
    %1348 = vmatpush1.bf16.xpose.msra.mxu0 0
    %1349 = vmatprep.subr.bf16.mxu0 0
    %1350 = vmatpush1.bf16.xpose.msra.mxu0 0
    %1351 = vmatprep.subr.bf16.mxu0 0
    %1352 = vmatpush1.bf16.xpose.msra.mxu0 0
    %1353 = vmatprep.mubr.bf16.mxu0 0
    %1354 = vmatmul.mubr.bf16.gmra.mrb[0].mxu0 %v1316
    %v1355 = vpop.f32.mrb[0].mxu0
    %v1356 = vadd.f32 %v427, %v1355
    %v1357 = vpop.f32.mrb[0].mxu0
    %v1358 = vpop.f32.mrb[0].mxu0
    %v1359 = vpop.f32.mrb[0].mxu0
    %1360 = vdwg.mxu0
    %1361 = vrot.lane.b32.xlu0 %v237, 120
    %v1362 = vpop.permute.xlu0 %1361
    %1363 = vrot.lane.b32.xlu0 %v321, 120
    %v1364 = vpop.permute.xlu0 %1363
    %v1366 = vsel %vm444, %v1362, 0
    %v1369 = vsel %vm444, %v1364, 0
    %1371 = vmatprep.subr.bf16.mxu0 0
    %1372 = vmatpush1.bf16.xpose.msra.mxu0 %v1369
    %1373 = vmatprep.subr.bf16.mxu0 0
    %1374 = vmatpush1.bf16.xpose.msra.mxu0 0
    %1375 = vmatprep.subr.bf16.mxu0 0
    %1376 = vmatpush1.bf16.xpose.msra.mxu0 0
    %1377 = vmatprep.subr.bf16.mxu0 0
    %1378 = vmatpush1.bf16.xpose.msra.mxu0 0
    %1379 = vmatprep.subr.bf16.mxu0 0
    %1380 = vmatpush1.bf16.xpose.msra.mxu0 0
    %1381 = vmatprep.subr.bf16.mxu0 0
    %1382 = vmatpush1.bf16.xpose.msra.mxu0 0
    %1383 = vmatprep.subr.bf16.mxu0 0
    %1384 = vmatpush1.bf16.xpose.msra.mxu0 0
    %1385 = vmatprep.subr.bf16.mxu0 0
    %1386 = vmatpush1.bf16.xpose.msra.mxu0 0
    %1387 = vmatprep.subr.bf16.mxu0 0
    %1388 = vmatpush1.bf16.xpose.msra.mxu0 0
    %1389 = vmatprep.subr.bf16.mxu0 0
    %1390 = vmatpush1.bf16.xpose.msra.mxu0 0
    %1391 = vmatprep.subr.bf16.mxu0 0
    %1392 = vmatpush1.bf16.xpose.msra.mxu0 0
    %1393 = vmatprep.subr.bf16.mxu0 0
    %1394 = vmatpush1.bf16.xpose.msra.mxu0 0
    %1395 = vmatprep.subr.bf16.mxu0 0
    %1396 = vmatpush1.bf16.xpose.msra.mxu0 0
    %1397 = vmatprep.subr.bf16.mxu0 0
    %1398 = vmatpush1.bf16.xpose.msra.mxu0 0
    %1399 = vmatprep.subr.bf16.mxu0 0
    %1400 = vmatpush1.bf16.xpose.msra.mxu0 0
    %1401 = vmatprep.subr.bf16.mxu0 0
    %1402 = vmatpush1.bf16.xpose.msra.mxu0 0
    %1403 = vmatprep.mubr.bf16.mxu0 0
    %1404 = vmatmul.mubr.bf16.gmra.mrb[0].mxu0 %v1366
    %v1405 = vpop.f32.mrb[0].mxu0
    %v1406 = vadd.f32 %v431, %v1405
    %v1407 = vpop.f32.mrb[0].mxu0
    %v1408 = vpop.f32.mrb[0].mxu0
    %v1409 = vpop.f32.mrb[0].mxu0
    %1410 = vdwg.mxu0
    %1411 = vrot.lane.b32.xlu0 %v238, 120
    %v1412 = vpop.permute.xlu0 %1411
    %1413 = vrot.lane.b32.xlu0 %v322, 120
    %v1414 = vpop.permute.xlu0 %1413
    %v1416 = vsel %vm444, %v1412, 0
    %v1419 = vsel %vm444, %v1414, 0
    %1421 = vmatprep.subr.bf16.mxu0 0
    %1422 = vmatpush1.bf16.xpose.msra.mxu0 %v1419
    %1423 = vmatprep.subr.bf16.mxu0 0
    %1424 = vmatpush1.bf16.xpose.msra.mxu0 0
    %1425 = vmatprep.subr.bf16.mxu0 0
    %1426 = vmatpush1.bf16.xpose.msra.mxu0 0
    %1427 = vmatprep.subr.bf16.mxu0 0
    %1428 = vmatpush1.bf16.xpose.msra.mxu0 0
    %1429 = vmatprep.subr.bf16.mxu0 0
    %1430 = vmatpush1.bf16.xpose.msra.mxu0 0
    %1431 = vmatprep.subr.bf16.mxu0 0
    %1432 = vmatpush1.bf16.xpose.msra.mxu0 0
    %1433 = vmatprep.subr.bf16.mxu0 0
    %1434 = vmatpush1.bf16.xpose.msra.mxu0 0
    %1435 = vmatprep.subr.bf16.mxu0 0
    %1436 = vmatpush1.bf16.xpose.msra.mxu0 0
    %1437 = vmatprep.subr.bf16.mxu0 0
    %1438 = vmatpush1.bf16.xpose.msra.mxu0 0
    %1439 = vmatprep.subr.bf16.mxu0 0
    %1440 = vmatpush1.bf16.xpose.msra.mxu0 0
    %1441 = vmatprep.subr.bf16.mxu0 0
    %1442 = vmatpush1.bf16.xpose.msra.mxu0 0
    %1443 = vmatprep.subr.bf16.mxu0 0
    %1444 = vmatpush1.bf16.xpose.msra.mxu0 0
    %1445 = vmatprep.subr.bf16.mxu0 0
    %1446 = vmatpush1.bf16.xpose.msra.mxu0 0
    %1447 = vmatprep.subr.bf16.mxu0 0
    %1448 = vmatpush1.bf16.xpose.msra.mxu0 0
    %1449 = vmatprep.subr.bf16.mxu0 0
    %1450 = vmatpush1.bf16.xpose.msra.mxu0 0
    %1451 = vmatprep.subr.bf16.mxu0 0
    %1452 = vmatpush1.bf16.xpose.msra.mxu0 0
    %1453 = vmatprep.mubr.bf16.mxu0 0
    %1454 = vmatmul.mubr.bf16.gmra.mrb[0].mxu0 %v1416
    %v1455 = vpop.f32.mrb[0].mxu0
    %v1456 = vadd.f32 %v435, %v1455
    %v1457 = vpop.f32.mrb[0].mxu0
    %v1458 = vpop.f32.mrb[0].mxu0
    %v1459 = vpop.f32.mrb[0].mxu0
    %1460 = vdwg.mxu0
    %1461 = vrot.lane.b32.xlu0 %v239, 120
    %v1462 = vpop.permute.xlu0 %1461
    %1463 = vrot.lane.b32.xlu0 %v323, 120
    %v1464 = vpop.permute.xlu0 %1463
    %v1466 = vsel %vm444, %v1462, 0
    %v1469 = vsel %vm444, %v1464, 0
    %1471 = vmatprep.subr.bf16.mxu0 0
    %1472 = vmatpush1.bf16.xpose.msra.mxu0 %v1469
    %1473 = vmatprep.subr.bf16.mxu0 0
    %1474 = vmatpush1.bf16.xpose.msra.mxu0 0
    %1475 = vmatprep.subr.bf16.mxu0 0
    %1476 = vmatpush1.bf16.xpose.msra.mxu0 0
    %1477 = vmatprep.subr.bf16.mxu0 0
    %1478 = vmatpush1.bf16.xpose.msra.mxu0 0
    %1479 = vmatprep.subr.bf16.mxu0 0
    %1480 = vmatpush1.bf16.xpose.msra.mxu0 0
    %1481 = vmatprep.subr.bf16.mxu0 0
    %1482 = vmatpush1.bf16.xpose.msra.mxu0 0
    %1483 = vmatprep.subr.bf16.mxu0 0
    %1484 = vmatpush1.bf16.xpose.msra.mxu0 0
    %1485 = vmatprep.subr.bf16.mxu0 0
    %1486 = vmatpush1.bf16.xpose.msra.mxu0 0
    %1487 = vmatprep.subr.bf16.mxu0 0
    %1488 = vmatpush1.bf16.xpose.msra.mxu0 0
    %1489 = vmatprep.subr.bf16.mxu0 0
    %1490 = vmatpush1.bf16.xpose.msra.mxu0 0
    %1491 = vmatprep.subr.bf16.mxu0 0
    %1492 = vmatpush1.bf16.xpose.msra.mxu0 0
    %1493 = vmatprep.subr.bf16.mxu0 0
    %1494 = vmatpush1.bf16.xpose.msra.mxu0 0
    %1495 = vmatprep.subr.bf16.mxu0 0
    %1496 = vmatpush1.bf16.xpose.msra.mxu0 0
    %1497 = vmatprep.subr.bf16.mxu0 0
    %1498 = vmatpush1.bf16.xpose.msra.mxu0 0
    %1499 = vmatprep.subr.bf16.mxu0 0
    %1500 = vmatpush1.bf16.xpose.msra.mxu0 0
    %1501 = vmatprep.subr.bf16.mxu0 0
    %1502 = vmatpush1.bf16.xpose.msra.mxu0 0
    %1503 = vmatprep.mubr.bf16.mxu0 0
    %1504 = vmatmul.mubr.bf16.gmra.mrb[0].mxu0 %v1466
    %v1505 = vpop.f32.mrb[0].mxu0
    %v1506 = vadd.f32 %v439, %v1505
    %v1507 = vpop.f32.mrb[0].mxu0
    %v1508 = vpop.f32.mrb[0].mxu0
    %v1509 = vpop.f32.mrb[0].mxu0
    %1510 = vdwg.mxu0
    %v1511 = vsel %vm629, %v1356, -inf
    %1512 = vmax.xlane.f32.xlu0 %v1511
    %v1513 = vpop.xlane.xlu0 %1512
    %v1514 = vsel %vm629, %v1406, -inf
    %1515 = vmax.xlane.f32.xlu0 %v1514
    %v1516 = vpop.xlane.xlu0 %1515
    %v1517 = vsel %vm629, %v1456, -inf
    %1518 = vmax.xlane.f32.xlu0 %v1517
    %v1519 = vpop.xlane.xlu0 %1518
    %v1520 = vsel %vm629, %v1506, -inf
    %1521 = vmax.xlane.f32.xlu0 %v1520
    %v1522 = vpop.xlane.xlu0 %1521
    %v1523 = vsub.f32 %v1356, %v1513
    %v1524 = vsub.f32 %v1406, %v1516
    %v1525 = vsub.f32 %v1456, %v1519
    %v1526 = vsub.f32 %v1506, %v1522
    %v1527 = vmul.f32 %v1523, 1.442695
    %v1528 = vpow.pop %v1527
    %v1529 = vmul.f32 %v1524, 1.442695
    %v1530 = vpow.pop %v1529
    %v1531 = vmul.f32 %v1525, 1.442695
    %v1532 = vpow.pop %v1531
    %v1533 = vmul.f32 %v1526, 1.442695
    %v1534 = vpow.pop %v1533
    %v1535 = vsel %vm629, %v1528, 0.0
    %1536 = vadd.xlane.f32.xlu0 %v1535
    %v1537 = vpop.xlane.xlu0 %1536
    %v1538 = vsel %vm629, %v1530, 0.0
    %1539 = vadd.xlane.f32.xlu0 %v1538
    %v1540 = vpop.xlane.xlu0 %1539
    %v1541 = vsel %vm629, %v1532, 0.0
    %1542 = vadd.xlane.f32.xlu0 %v1541
    %v1543 = vpop.xlane.xlu0 %1542
    %v1544 = vsel %vm629, %v1534, 0.0
    %1545 = vadd.xlane.f32.xlu0 %v1544
    %v1546 = vpop.xlane.xlu0 %1545
    %v1547 = vrcp.pop %v1537
    %v1548 = vrcp.pop %v1540
    %v1549 = vrcp.pop %v1543
    %v1550 = vrcp.pop %v1546
    %v1551 = vmul.f32 %v1528, %v1547
    %v1552 = vmul.f32 %v1530, %v1548
    %v1553 = vmul.f32 %v1532, %v1549
    %v1554 = vmul.f32 %v1534, %v1550
    %v1555 = vpack.c.bf16 %v1551, %v1551
    %v1556 = vpack.c.bf16 %v1552, %v1552
    %v1557 = vpack.c.bf16 %v1553, %v1553
    %v1558 = vpack.c.bf16 %v1554, %v1554
    %1559 = vrot.lane.b32.xlu0 %v404, 120
    %v1560 = vpop.permute.xlu0 %1559
    %v1562 = vsel %vm629, %v1555, 0
    %v1565 = vsel %vm681, %v1560, 0
    %1567 = vmatprep.subr.bf16.mxu0 0
    %1568 = vmatpush1.bf16.msra.mxu0 %v1565
    %1569 = vmatprep.subr.bf16.mxu0 0
    %1570 = vmatpush1.bf16.msra.mxu0 0
    %1571 = vmatprep.subr.bf16.mxu0 0
    %1572 = vmatpush1.bf16.msra.mxu0 0
    %1573 = vmatprep.subr.bf16.mxu0 0
    %1574 = vmatpush1.bf16.msra.mxu0 0
    %1575 = vmatprep.subr.bf16.mxu0 0
    %1576 = vmatpush1.bf16.msra.mxu0 0
    %1577 = vmatprep.subr.bf16.mxu0 0
    %1578 = vmatpush1.bf16.msra.mxu0 0
    %1579 = vmatprep.subr.bf16.mxu0 0
    %1580 = vmatpush1.bf16.msra.mxu0 0
    %1581 = vmatprep.subr.bf16.mxu0 0
    %1582 = vmatpush1.bf16.msra.mxu0 0
    %1583 = vmatprep.subr.bf16.mxu0 0
    %1584 = vmatpush1.bf16.msra.mxu0 0
    %1585 = vmatprep.subr.bf16.mxu0 0
    %1586 = vmatpush1.bf16.msra.mxu0 0
    %1587 = vmatprep.subr.bf16.mxu0 0
    %1588 = vmatpush1.bf16.msra.mxu0 0
    %1589 = vmatprep.subr.bf16.mxu0 0
    %1590 = vmatpush1.bf16.msra.mxu0 0
    %1591 = vmatprep.subr.bf16.mxu0 0
    %1592 = vmatpush1.bf16.msra.mxu0 0
    %1593 = vmatprep.subr.bf16.mxu0 0
    %1594 = vmatpush1.bf16.msra.mxu0 0
    %1595 = vmatprep.subr.bf16.mxu0 0
    %1596 = vmatpush1.bf16.msra.mxu0 0
    %1597 = vmatprep.subr.bf16.mxu0 0
    %1598 = vmatpush1.bf16.msra.mxu0 0
    %1599 = vmatprep.mubr.bf16.mxu0 0
    %1600 = vmatmul.mubr.bf16.gmra.mrb[0].mxu0 %v1562
    %v1601 = vpop.f32.mrb[0].mxu0
    %v1602 = vadd.f32 0.0, %v1601
    %v1603 = vpop.f32.mrb[0].mxu0
    %v1604 = vpop.f32.mrb[0].mxu0
    %v1605 = vpop.f32.mrb[0].mxu0
    %1606 = vdwg.mxu0
    %1607 = vrot.lane.b32.xlu0 %v405, 120
    %v1608 = vpop.permute.xlu0 %1607
    %v1610 = vsel %vm629, %v1556, 0
    %v1613 = vsel %vm681, %v1608, 0
    %1615 = vmatprep.subr.bf16.mxu0 0
    %1616 = vmatpush1.bf16.msra.mxu0 %v1613
    %1617 = vmatprep.subr.bf16.mxu0 0
    %1618 = vmatpush1.bf16.msra.mxu0 0
    %1619 = vmatprep.subr.bf16.mxu0 0
    %1620 = vmatpush1.bf16.msra.mxu0 0
    %1621 = vmatprep.subr.bf16.mxu0 0
    %1622 = vmatpush1.bf16.msra.mxu0 0
    %1623 = vmatprep.subr.bf16.mxu0 0
    %1624 = vmatpush1.bf16.msra.mxu0 0
    %1625 = vmatprep.subr.bf16.mxu0 0
    %1626 = vmatpush1.bf16.msra.mxu0 0
    %1627 = vmatprep.subr.bf16.mxu0 0
    %1628 = vmatpush1.bf16.msra.mxu0 0
    %1629 = vmatprep.subr.bf16.mxu0 0
    %1630 = vmatpush1.bf16.msra.mxu0 0
    %1631 = vmatprep.subr.bf16.mxu0 0
    %1632 = vmatpush1.bf16.msra.mxu0 0
    %1633 = vmatprep.subr.bf16.mxu0 0
    %1634 = vmatpush1.bf16.msra.mxu0 0
    %1635 = vmatprep.subr.bf16.mxu0 0
    %1636 = vmatpush1.bf16.msra.mxu0 0
    %1637 = vmatprep.subr.bf16.mxu0 0
    %1638 = vmatpush1.bf16.msra.mxu0 0
    %1639 = vmatprep.subr.bf16.mxu0 0
    %1640 = vmatpush1.bf16.msra.mxu0 0
    %1641 = vmatprep.subr.bf16.mxu0 0
    %1642 = vmatpush1.bf16.msra.mxu0 0
    %1643 = vmatprep.subr.bf16.mxu0 0
    %1644 = vmatpush1.bf16.msra.mxu0 0
    %1645 = vmatprep.subr.bf16.mxu0 0
    %1646 = vmatpush1.bf16.msra.mxu0 0
    %1647 = vmatprep.mubr.bf16.mxu0 0
    %1648 = vmatmul.mubr.bf16.gmra.mrb[0].mxu0 %v1610
    %v1649 = vpop.f32.mrb[0].mxu0
    %v1650 = vadd.f32 0.0, %v1649
    %v1651 = vpop.f32.mrb[0].mxu0
    %v1652 = vpop.f32.mrb[0].mxu0
    %v1653 = vpop.f32.mrb[0].mxu0
    %1654 = vdwg.mxu0
    %1655 = vrot.lane.b32.xlu0 %v406, 120
    %v1656 = vpop.permute.xlu0 %1655
    %v1658 = vsel %vm629, %v1557, 0
    %v1661 = vsel %vm681, %v1656, 0
    %1663 = vmatprep.subr.bf16.mxu0 0
    %1664 = vmatpush1.bf16.msra.mxu0 %v1661
    %1665 = vmatprep.subr.bf16.mxu0 0
    %1666 = vmatpush1.bf16.msra.mxu0 0
    %1667 = vmatprep.subr.bf16.mxu0 0
    %1668 = vmatpush1.bf16.msra.mxu0 0
    %1669 = vmatprep.subr.bf16.mxu0 0
    %1670 = vmatpush1.bf16.msra.mxu0 0
    %1671 = vmatprep.subr.bf16.mxu0 0
    %1672 = vmatpush1.bf16.msra.mxu0 0
    %1673 = vmatprep.subr.bf16.mxu0 0
    %1674 = vmatpush1.bf16.msra.mxu0 0
    %1675 = vmatprep.subr.bf16.mxu0 0
    %1676 = vmatpush1.bf16.msra.mxu0 0
    %1677 = vmatprep.subr.bf16.mxu0 0
    %1678 = vmatpush1.bf16.msra.mxu0 0
    %1679 = vmatprep.subr.bf16.mxu0 0
    %1680 = vmatpush1.bf16.msra.mxu0 0
    %1681 = vmatprep.subr.bf16.mxu0 0
    %1682 = vmatpush1.bf16.msra.mxu0 0
    %1683 = vmatprep.subr.bf16.mxu0 0
    %1684 = vmatpush1.bf16.msra.mxu0 0
    %1685 = vmatprep.subr.bf16.mxu0 0
    %1686 = vmatpush1.bf16.msra.mxu0 0
    %1687 = vmatprep.subr.bf16.mxu0 0
    %1688 = vmatpush1.bf16.msra.mxu0 0
    %1689 = vmatprep.subr.bf16.mxu0 0
    %1690 = vmatpush1.bf16.msra.mxu0 0
    %1691 = vmatprep.subr.bf16.mxu0 0
    %1692 = vmatpush1.bf16.msra.mxu0 0
    %1693 = vmatprep.subr.bf16.mxu0 0
    %1694 = vmatpush1.bf16.msra.mxu0 0
    %1695 = vmatprep.mubr.bf16.mxu0 0
    %1696 = vmatmul.mubr.bf16.gmra.mrb[0].mxu0 %v1658
    %v1697 = vpop.f32.mrb[0].mxu0
    %v1698 = vadd.f32 0.0, %v1697
    %v1699 = vpop.f32.mrb[0].mxu0
    %v1700 = vpop.f32.mrb[0].mxu0
    %v1701 = vpop.f32.mrb[0].mxu0
    %1702 = vdwg.mxu0
    %1703 = vrot.lane.b32.xlu0 %v407, 120
    %v1704 = vpop.permute.xlu0 %1703
    %v1706 = vsel %vm629, %v1558, 0
    %v1709 = vsel %vm681, %v1704, 0
    %1711 = vmatprep.subr.bf16.mxu0 0
    %1712 = vmatpush1.bf16.msra.mxu0 %v1709
    %1713 = vmatprep.subr.bf16.mxu0 0
    %1714 = vmatpush1.bf16.msra.mxu0 0
    %1715 = vmatprep.subr.bf16.mxu0 0
    %1716 = vmatpush1.bf16.msra.mxu0 0
    %1717 = vmatprep.subr.bf16.mxu0 0
    %1718 = vmatpush1.bf16.msra.mxu0 0
    %1719 = vmatprep.subr.bf16.mxu0 0
    %1720 = vmatpush1.bf16.msra.mxu0 0
    %1721 = vmatprep.subr.bf16.mxu0 0
    %1722 = vmatpush1.bf16.msra.mxu0 0
    %1723 = vmatprep.subr.bf16.mxu0 0
    %1724 = vmatpush1.bf16.msra.mxu0 0
    %1725 = vmatprep.subr.bf16.mxu0 0
    %1726 = vmatpush1.bf16.msra.mxu0 0
    %1727 = vmatprep.subr.bf16.mxu0 0
    %1728 = vmatpush1.bf16.msra.mxu0 0
    %1729 = vmatprep.subr.bf16.mxu0 0
    %1730 = vmatpush1.bf16.msra.mxu0 0
    %1731 = vmatprep.subr.bf16.mxu0 0
    %1732 = vmatpush1.bf16.msra.mxu0 0
    %1733 = vmatprep.subr.bf16.mxu0 0
    %1734 = vmatpush1.bf16.msra.mxu0 0
    %1735 = vmatprep.subr.bf16.mxu0 0
    %1736 = vmatpush1.bf16.msra.mxu0 0
    %1737 = vmatprep.subr.bf16.mxu0 0
    %1738 = vmatpush1.bf16.msra.mxu0 0
    %1739 = vmatprep.subr.bf16.mxu0 0
    %1740 = vmatpush1.bf16.msra.mxu0 0
    %1741 = vmatprep.subr.bf16.mxu0 0
    %1742 = vmatpush1.bf16.msra.mxu0 0
    %1743 = vmatprep.mubr.bf16.mxu0 0
    %1744 = vmatmul.mubr.bf16.gmra.mrb[0].mxu0 %v1706
    %v1745 = vpop.f32.mrb[0].mxu0
    %v1746 = vadd.f32 0.0, %v1745
    %v1747 = vpop.f32.mrb[0].mxu0
    %v1748 = vpop.f32.mrb[0].mxu0
    %v1749 = vpop.f32.mrb[0].mxu0
    %1750 = vdwg.mxu0
    %v1751 = vpack.c.bf16 %v1602, %v1602
    %v1752 = vpack.c.bf16 %v1650, %v1650
    %v1753 = vpack.c.bf16 %v1698, %v1698
    %v1754 = vpack.c.bf16 %v1746, %v1746
    %1755 = vrot.lane.b32.xlu0 %v236, 116
    %v1756 = vpop.permute.xlu0 %1755
    %1757 = vrot.lane.b32.xlu0 %v320, 116
    %v1758 = vpop.permute.xlu0 %1757
    %v1760 = vsel %vm444, %v1756, 0
    %v1763 = vsel %vm444, %v1758, 0
    %1765 = vmatprep.subr.bf16.mxu0 0
    %1766 = vmatpush1.bf16.xpose.msra.mxu0 %v1763
    %1767 = vmatprep.subr.bf16.mxu0 0
    %1768 = vmatpush1.bf16.xpose.msra.mxu0 0
    %1769 = vmatprep.subr.bf16.mxu0 0
    %1770 = vmatpush1.bf16.xpose.msra.mxu0 0
    %1771 = vmatprep.subr.bf16.mxu0 0
    %1772 = vmatpush1.bf16.xpose.msra.mxu0 0
    %1773 = vmatprep.subr.bf16.mxu0 0
    %1774 = vmatpush1.bf16.xpose.msra.mxu0 0
    %1775 = vmatprep.subr.bf16.mxu0 0
    %1776 = vmatpush1.bf16.xpose.msra.mxu0 0
    %1777 = vmatprep.subr.bf16.mxu0 0
    %1778 = vmatpush1.bf16.xpose.msra.mxu0 0
    %1779 = vmatprep.subr.bf16.mxu0 0
    %1780 = vmatpush1.bf16.xpose.msra.mxu0 0
    %1781 = vmatprep.subr.bf16.mxu0 0
    %1782 = vmatpush1.bf16.xpose.msra.mxu0 0
    %1783 = vmatprep.subr.bf16.mxu0 0
    %1784 = vmatpush1.bf16.xpose.msra.mxu0 0
    %1785 = vmatprep.subr.bf16.mxu0 0
    %1786 = vmatpush1.bf16.xpose.msra.mxu0 0
    %1787 = vmatprep.subr.bf16.mxu0 0
    %1788 = vmatpush1.bf16.xpose.msra.mxu0 0
    %1789 = vmatprep.subr.bf16.mxu0 0
    %1790 = vmatpush1.bf16.xpose.msra.mxu0 0
    %1791 = vmatprep.subr.bf16.mxu0 0
    %1792 = vmatpush1.bf16.xpose.msra.mxu0 0
    %1793 = vmatprep.subr.bf16.mxu0 0
    %1794 = vmatpush1.bf16.xpose.msra.mxu0 0
    %1795 = vmatprep.subr.bf16.mxu0 0
    %1796 = vmatpush1.bf16.xpose.msra.mxu0 0
    %1797 = vmatprep.mubr.bf16.mxu0 0
    %1798 = vmatmul.mubr.bf16.gmra.mrb[0].mxu0 %v1760
    %v1799 = vpop.f32.mrb[0].mxu0
    %v1800 = vadd.f32 %v427, %v1799
    %v1801 = vpop.f32.mrb[0].mxu0
    %v1802 = vpop.f32.mrb[0].mxu0
    %v1803 = vpop.f32.mrb[0].mxu0
    %1804 = vdwg.mxu0
    %1805 = vrot.lane.b32.xlu0 %v237, 116
    %v1806 = vpop.permute.xlu0 %1805
    %1807 = vrot.lane.b32.xlu0 %v321, 116
    %v1808 = vpop.permute.xlu0 %1807
    %v1810 = vsel %vm444, %v1806, 0
    %v1813 = vsel %vm444, %v1808, 0
    %1815 = vmatprep.subr.bf16.mxu0 0
    %1816 = vmatpush1.bf16.xpose.msra.mxu0 %v1813
    %1817 = vmatprep.subr.bf16.mxu0 0
    %1818 = vmatpush1.bf16.xpose.msra.mxu0 0
    %1819 = vmatprep.subr.bf16.mxu0 0
    %1820 = vmatpush1.bf16.xpose.msra.mxu0 0
    %1821 = vmatprep.subr.bf16.mxu0 0
    %1822 = vmatpush1.bf16.xpose.msra.mxu0 0
    %1823 = vmatprep.subr.bf16.mxu0 0
    %1824 = vmatpush1.bf16.xpose.msra.mxu0 0
    %1825 = vmatprep.subr.bf16.mxu0 0
    %1826 = vmatpush1.bf16.xpose.msra.mxu0 0
    %1827 = vmatprep.subr.bf16.mxu0 0
    %1828 = vmatpush1.bf16.xpose.msra.mxu0 0
    %1829 = vmatprep.subr.bf16.mxu0 0
    %1830 = vmatpush1.bf16.xpose.msra.mxu0 0
    %1831 = vmatprep.subr.bf16.mxu0 0
    %1832 = vmatpush1.bf16.xpose.msra.mxu0 0
    %1833 = vmatprep.subr.bf16.mxu0 0
    %1834 = vmatpush1.bf16.xpose.msra.mxu0 0
    %1835 = vmatprep.subr.bf16.mxu0 0
    %1836 = vmatpush1.bf16.xpose.msra.mxu0 0
    %1837 = vmatprep.subr.bf16.mxu0 0
    %1838 = vmatpush1.bf16.xpose.msra.mxu0 0
    %1839 = vmatprep.subr.bf16.mxu0 0
    %1840 = vmatpush1.bf16.xpose.msra.mxu0 0
    %1841 = vmatprep.subr.bf16.mxu0 0
    %1842 = vmatpush1.bf16.xpose.msra.mxu0 0
    %1843 = vmatprep.subr.bf16.mxu0 0
    %1844 = vmatpush1.bf16.xpose.msra.mxu0 0
    %1845 = vmatprep.subr.bf16.mxu0 0
    %1846 = vmatpush1.bf16.xpose.msra.mxu0 0
    %1847 = vmatprep.mubr.bf16.mxu0 0
    %1848 = vmatmul.mubr.bf16.gmra.mrb[0].mxu0 %v1810
    %v1849 = vpop.f32.mrb[0].mxu0
    %v1850 = vadd.f32 %v431, %v1849
    %v1851 = vpop.f32.mrb[0].mxu0
    %v1852 = vpop.f32.mrb[0].mxu0
    %v1853 = vpop.f32.mrb[0].mxu0
    %1854 = vdwg.mxu0
    %1855 = vrot.lane.b32.xlu0 %v238, 116
    %v1856 = vpop.permute.xlu0 %1855
    %1857 = vrot.lane.b32.xlu0 %v322, 116
    %v1858 = vpop.permute.xlu0 %1857
    %v1860 = vsel %vm444, %v1856, 0
    %v1863 = vsel %vm444, %v1858, 0
    %1865 = vmatprep.subr.bf16.mxu0 0
    %1866 = vmatpush1.bf16.xpose.msra.mxu0 %v1863
    %1867 = vmatprep.subr.bf16.mxu0 0
    %1868 = vmatpush1.bf16.xpose.msra.mxu0 0
    %1869 = vmatprep.subr.bf16.mxu0 0
    %1870 = vmatpush1.bf16.xpose.msra.mxu0 0
    %1871 = vmatprep.subr.bf16.mxu0 0
    %1872 = vmatpush1.bf16.xpose.msra.mxu0 0
    %1873 = vmatprep.subr.bf16.mxu0 0
    %1874 = vmatpush1.bf16.xpose.msra.mxu0 0
    %1875 = vmatprep.subr.bf16.mxu0 0
    %1876 = vmatpush1.bf16.xpose.msra.mxu0 0
    %1877 = vmatprep.subr.bf16.mxu0 0
    %1878 = vmatpush1.bf16.xpose.msra.mxu0 0
    %1879 = vmatprep.subr.bf16.mxu0 0
    %1880 = vmatpush1.bf16.xpose.msra.mxu0 0
    %1881 = vmatprep.subr.bf16.mxu0 0
    %1882 = vmatpush1.bf16.xpose.msra.mxu0 0
    %1883 = vmatprep.subr.bf16.mxu0 0
    %1884 = vmatpush1.bf16.xpose.msra.mxu0 0
    %1885 = vmatprep.subr.bf16.mxu0 0
    %1886 = vmatpush1.bf16.xpose.msra.mxu0 0
    %1887 = vmatprep.subr.bf16.mxu0 0
    %1888 = vmatpush1.bf16.xpose.msra.mxu0 0
    %1889 = vmatprep.subr.bf16.mxu0 0
    %1890 = vmatpush1.bf16.xpose.msra.mxu0 0
    %1891 = vmatprep.subr.bf16.mxu0 0
    %1892 = vmatpush1.bf16.xpose.msra.mxu0 0
    %1893 = vmatprep.subr.bf16.mxu0 0
    %1894 = vmatpush1.bf16.xpose.msra.mxu0 0
    %1895 = vmatprep.subr.bf16.mxu0 0
    %1896 = vmatpush1.bf16.xpose.msra.mxu0 0
    %1897 = vmatprep.mubr.bf16.mxu0 0
    %1898 = vmatmul.mubr.bf16.gmra.mrb[0].mxu0 %v1860
    %v1899 = vpop.f32.mrb[0].mxu0
    %v1900 = vadd.f32 %v435, %v1899
    %v1901 = vpop.f32.mrb[0].mxu0
    %v1902 = vpop.f32.mrb[0].mxu0
    %v1903 = vpop.f32.mrb[0].mxu0
    %1904 = vdwg.mxu0
    %1905 = vrot.lane.b32.xlu0 %v239, 116
    %v1906 = vpop.permute.xlu0 %1905
    %1907 = vrot.lane.b32.xlu0 %v323, 116
    %v1908 = vpop.permute.xlu0 %1907
    %v1910 = vsel %vm444, %v1906, 0
    %v1913 = vsel %vm444, %v1908, 0
    %1915 = vmatprep.subr.bf16.mxu0 0
    %1916 = vmatpush1.bf16.xpose.msra.mxu0 %v1913
    %1917 = vmatprep.subr.bf16.mxu0 0
    %1918 = vmatpush1.bf16.xpose.msra.mxu0 0
    %1919 = vmatprep.subr.bf16.mxu0 0
    %1920 = vmatpush1.bf16.xpose.msra.mxu0 0
    %1921 = vmatprep.subr.bf16.mxu0 0
    %1922 = vmatpush1.bf16.xpose.msra.mxu0 0
    %1923 = vmatprep.subr.bf16.mxu0 0
    %1924 = vmatpush1.bf16.xpose.msra.mxu0 0
    %1925 = vmatprep.subr.bf16.mxu0 0
    %1926 = vmatpush1.bf16.xpose.msra.mxu0 0
    %1927 = vmatprep.subr.bf16.mxu0 0
    %1928 = vmatpush1.bf16.xpose.msra.mxu0 0
    %1929 = vmatprep.subr.bf16.mxu0 0
    %1930 = vmatpush1.bf16.xpose.msra.mxu0 0
    %1931 = vmatprep.subr.bf16.mxu0 0
    %1932 = vmatpush1.bf16.xpose.msra.mxu0 0
    %1933 = vmatprep.subr.bf16.mxu0 0
    %1934 = vmatpush1.bf16.xpose.msra.mxu0 0
    %1935 = vmatprep.subr.bf16.mxu0 0
    %1936 = vmatpush1.bf16.xpose.msra.mxu0 0
    %1937 = vmatprep.subr.bf16.mxu0 0
    %1938 = vmatpush1.bf16.xpose.msra.mxu0 0
    %1939 = vmatprep.subr.bf16.mxu0 0
    %1940 = vmatpush1.bf16.xpose.msra.mxu0 0
    %1941 = vmatprep.subr.bf16.mxu0 0
    %1942 = vmatpush1.bf16.xpose.msra.mxu0 0
    %1943 = vmatprep.subr.bf16.mxu0 0
    %1944 = vmatpush1.bf16.xpose.msra.mxu0 0
    %1945 = vmatprep.subr.bf16.mxu0 0
    %1946 = vmatpush1.bf16.xpose.msra.mxu0 0
    %1947 = vmatprep.mubr.bf16.mxu0 0
    %1948 = vmatmul.mubr.bf16.gmra.mrb[0].mxu0 %v1910
    %v1949 = vpop.f32.mrb[0].mxu0
    %v1950 = vadd.f32 %v439, %v1949
    %v1951 = vpop.f32.mrb[0].mxu0
    %v1952 = vpop.f32.mrb[0].mxu0
    %v1953 = vpop.f32.mrb[0].mxu0
    %1954 = vdwg.mxu0
    %v1955 = vsel %vm629, %v1800, -inf
    %1956 = vmax.xlane.f32.xlu0 %v1955
    %v1957 = vpop.xlane.xlu0 %1956
    %v1958 = vsel %vm629, %v1850, -inf
    %1959 = vmax.xlane.f32.xlu0 %v1958
    %v1960 = vpop.xlane.xlu0 %1959
    %v1961 = vsel %vm629, %v1900, -inf
    %1962 = vmax.xlane.f32.xlu0 %v1961
    %v1963 = vpop.xlane.xlu0 %1962
    %v1964 = vsel %vm629, %v1950, -inf
    %1965 = vmax.xlane.f32.xlu0 %v1964
    %v1966 = vpop.xlane.xlu0 %1965
    %v1967 = vsub.f32 %v1800, %v1957
    %v1968 = vsub.f32 %v1850, %v1960
    %v1969 = vsub.f32 %v1900, %v1963
    %v1970 = vsub.f32 %v1950, %v1966
    %v1971 = vmul.f32 %v1967, 1.442695
    %v1972 = vpow.pop %v1971
    %v1973 = vmul.f32 %v1968, 1.442695
    %v1974 = vpow.pop %v1973
    %v1975 = vmul.f32 %v1969, 1.442695
    %v1976 = vpow.pop %v1975
    %v1977 = vmul.f32 %v1970, 1.442695
    %v1978 = vpow.pop %v1977
    %v1979 = vsel %vm629, %v1972, 0.0
    %1980 = vadd.xlane.f32.xlu0 %v1979
    %v1981 = vpop.xlane.xlu0 %1980
    %v1982 = vsel %vm629, %v1974, 0.0
    %1983 = vadd.xlane.f32.xlu0 %v1982
    %v1984 = vpop.xlane.xlu0 %1983
    %v1985 = vsel %vm629, %v1976, 0.0
    %1986 = vadd.xlane.f32.xlu0 %v1985
    %v1987 = vpop.xlane.xlu0 %1986
    %v1988 = vsel %vm629, %v1978, 0.0
    %1989 = vadd.xlane.f32.xlu0 %v1988
    %v1990 = vpop.xlane.xlu0 %1989
    %v1991 = vrcp.pop %v1981
    %v1992 = vrcp.pop %v1984
    %v1993 = vrcp.pop %v1987
    %v1994 = vrcp.pop %v1990
    %v1995 = vmul.f32 %v1972, %v1991
    %v1996 = vmul.f32 %v1974, %v1992
    %v1997 = vmul.f32 %v1976, %v1993
    %v1998 = vmul.f32 %v1978, %v1994
    %v1999 = vpack.c.bf16 %v1995, %v1995
    %v2000 = vpack.c.bf16 %v1996, %v1996
    %v2001 = vpack.c.bf16 %v1997, %v1997
    %v2002 = vpack.c.bf16 %v1998, %v1998
    %2003 = vrot.lane.b32.xlu0 %v404, 116
    %v2004 = vpop.permute.xlu0 %2003
    %v2006 = vsel %vm629, %v1999, 0
    %v2009 = vsel %vm681, %v2004, 0
    %2011 = vmatprep.subr.bf16.mxu0 0
    %2012 = vmatpush1.bf16.msra.mxu0 %v2009
    %2013 = vmatprep.subr.bf16.mxu0 0
    %2014 = vmatpush1.bf16.msra.mxu0 0
    %2015 = vmatprep.subr.bf16.mxu0 0
    %2016 = vmatpush1.bf16.msra.mxu0 0
    %2017 = vmatprep.subr.bf16.mxu0 0
    %2018 = vmatpush1.bf16.msra.mxu0 0
    %2019 = vmatprep.subr.bf16.mxu0 0
    %2020 = vmatpush1.bf16.msra.mxu0 0
    %2021 = vmatprep.subr.bf16.mxu0 0
    %2022 = vmatpush1.bf16.msra.mxu0 0
    %2023 = vmatprep.subr.bf16.mxu0 0
    %2024 = vmatpush1.bf16.msra.mxu0 0
    %2025 = vmatprep.subr.bf16.mxu0 0
    %2026 = vmatpush1.bf16.msra.mxu0 0
    %2027 = vmatprep.subr.bf16.mxu0 0
    %2028 = vmatpush1.bf16.msra.mxu0 0
    %2029 = vmatprep.subr.bf16.mxu0 0
    %2030 = vmatpush1.bf16.msra.mxu0 0
    %2031 = vmatprep.subr.bf16.mxu0 0
    %2032 = vmatpush1.bf16.msra.mxu0 0
    %2033 = vmatprep.subr.bf16.mxu0 0
    %2034 = vmatpush1.bf16.msra.mxu0 0
    %2035 = vmatprep.subr.bf16.mxu0 0
    %2036 = vmatpush1.bf16.msra.mxu0 0
    %2037 = vmatprep.subr.bf16.mxu0 0
    %2038 = vmatpush1.bf16.msra.mxu0 0
    %2039 = vmatprep.subr.bf16.mxu0 0
    %2040 = vmatpush1.bf16.msra.mxu0 0
    %2041 = vmatprep.subr.bf16.mxu0 0
    %2042 = vmatpush1.bf16.msra.mxu0 0
    %2043 = vmatprep.mubr.bf16.mxu0 0
    %2044 = vmatmul.mubr.bf16.gmra.mrb[0].mxu0 %v2006
    %v2045 = vpop.f32.mrb[0].mxu0
    %v2046 = vadd.f32 0.0, %v2045
    %v2047 = vpop.f32.mrb[0].mxu0
    %v2048 = vpop.f32.mrb[0].mxu0
    %v2049 = vpop.f32.mrb[0].mxu0
    %2050 = vdwg.mxu0
    %2051 = vrot.lane.b32.xlu0 %v405, 116
    %v2052 = vpop.permute.xlu0 %2051
    %v2054 = vsel %vm629, %v2000, 0
    %v2057 = vsel %vm681, %v2052, 0
    %2059 = vmatprep.subr.bf16.mxu0 0
    %2060 = vmatpush1.bf16.msra.mxu0 %v2057
    %2061 = vmatprep.subr.bf16.mxu0 0
    %2062 = vmatpush1.bf16.msra.mxu0 0
    %2063 = vmatprep.subr.bf16.mxu0 0
    %2064 = vmatpush1.bf16.msra.mxu0 0
    %2065 = vmatprep.subr.bf16.mxu0 0
    %2066 = vmatpush1.bf16.msra.mxu0 0
    %2067 = vmatprep.subr.bf16.mxu0 0
    %2068 = vmatpush1.bf16.msra.mxu0 0
    %2069 = vmatprep.subr.bf16.mxu0 0
    %2070 = vmatpush1.bf16.msra.mxu0 0
    %2071 = vmatprep.subr.bf16.mxu0 0
    %2072 = vmatpush1.bf16.msra.mxu0 0
    %2073 = vmatprep.subr.bf16.mxu0 0
    %2074 = vmatpush1.bf16.msra.mxu0 0
    %2075 = vmatprep.subr.bf16.mxu0 0
    %2076 = vmatpush1.bf16.msra.mxu0 0
    %2077 = vmatprep.subr.bf16.mxu0 0
    %2078 = vmatpush1.bf16.msra.mxu0 0
    %2079 = vmatprep.subr.bf16.mxu0 0
    %2080 = vmatpush1.bf16.msra.mxu0 0
    %2081 = vmatprep.subr.bf16.mxu0 0
    %2082 = vmatpush1.bf16.msra.mxu0 0
    %2083 = vmatprep.subr.bf16.mxu0 0
    %2084 = vmatpush1.bf16.msra.mxu0 0
    %2085 = vmatprep.subr.bf16.mxu0 0
    %2086 = vmatpush1.bf16.msra.mxu0 0
    %2087 = vmatprep.subr.bf16.mxu0 0
    %2088 = vmatpush1.bf16.msra.mxu0 0
    %2089 = vmatprep.subr.bf16.mxu0 0
    %2090 = vmatpush1.bf16.msra.mxu0 0
    %2091 = vmatprep.mubr.bf16.mxu0 0
    %2092 = vmatmul.mubr.bf16.gmra.mrb[0].mxu0 %v2054
    %v2093 = vpop.f32.mrb[0].mxu0
    %v2094 = vadd.f32 0.0, %v2093
    %v2095 = vpop.f32.mrb[0].mxu0
    %v2096 = vpop.f32.mrb[0].mxu0
    %v2097 = vpop.f32.mrb[0].mxu0
    %2098 = vdwg.mxu0
    %2099 = vrot.lane.b32.xlu0 %v406, 116
    %v2100 = vpop.permute.xlu0 %2099
    %v2102 = vsel %vm629, %v2001, 0
    %v2105 = vsel %vm681, %v2100, 0
    %2107 = vmatprep.subr.bf16.mxu0 0
    %2108 = vmatpush1.bf16.msra.mxu0 %v2105
    %2109 = vmatprep.subr.bf16.mxu0 0
    %2110 = vmatpush1.bf16.msra.mxu0 0
    %2111 = vmatprep.subr.bf16.mxu0 0
    %2112 = vmatpush1.bf16.msra.mxu0 0
    %2113 = vmatprep.subr.bf16.mxu0 0
    %2114 = vmatpush1.bf16.msra.mxu0 0
    %2115 = vmatprep.subr.bf16.mxu0 0
    %2116 = vmatpush1.bf16.msra.mxu0 0
    %2117 = vmatprep.subr.bf16.mxu0 0
    %2118 = vmatpush1.bf16.msra.mxu0 0
    %2119 = vmatprep.subr.bf16.mxu0 0
    %2120 = vmatpush1.bf16.msra.mxu0 0
    %2121 = vmatprep.subr.bf16.mxu0 0
    %2122 = vmatpush1.bf16.msra.mxu0 0
    %2123 = vmatprep.subr.bf16.mxu0 0
    %2124 = vmatpush1.bf16.msra.mxu0 0
    %2125 = vmatprep.subr.bf16.mxu0 0
    %2126 = vmatpush1.bf16.msra.mxu0 0
    %2127 = vmatprep.subr.bf16.mxu0 0
    %2128 = vmatpush1.bf16.msra.mxu0 0
    %2129 = vmatprep.subr.bf16.mxu0 0
    %2130 = vmatpush1.bf16.msra.mxu0 0
    %2131 = vmatprep.subr.bf16.mxu0 0
    %2132 = vmatpush1.bf16.msra.mxu0 0
    %2133 = vmatprep.subr.bf16.mxu0 0
    %2134 = vmatpush1.bf16.msra.mxu0 0
    %2135 = vmatprep.subr.bf16.mxu0 0
    %2136 = vmatpush1.bf16.msra.mxu0 0
    %2137 = vmatprep.subr.bf16.mxu0 0
    %2138 = vmatpush1.bf16.msra.mxu0 0
    %2139 = vmatprep.mubr.bf16.mxu0 0
    %2140 = vmatmul.mubr.bf16.gmra.mrb[0].mxu0 %v2102
    %v2141 = vpop.f32.mrb[0].mxu0
    %v2142 = vadd.f32 0.0, %v2141
    %v2143 = vpop.f32.mrb[0].mxu0
    %v2144 = vpop.f32.mrb[0].mxu0
    %v2145 = vpop.f32.mrb[0].mxu0
    %2146 = vdwg.mxu0
    %2147 = vrot.lane.b32.xlu0 %v407, 116
    %v2148 = vpop.permute.xlu0 %2147
    %v2150 = vsel %vm629, %v2002, 0
    %v2153 = vsel %vm681, %v2148, 0
    %2155 = vmatprep.subr.bf16.mxu0 0
    %2156 = vmatpush1.bf16.msra.mxu0 %v2153
    %2157 = vmatprep.subr.bf16.mxu0 0
    %2158 = vmatpush1.bf16.msra.mxu0 0
    %2159 = vmatprep.subr.bf16.mxu0 0
    %2160 = vmatpush1.bf16.msra.mxu0 0
    %2161 = vmatprep.subr.bf16.mxu0 0
    %2162 = vmatpush1.bf16.msra.mxu0 0
    %2163 = vmatprep.subr.bf16.mxu0 0
    %2164 = vmatpush1.bf16.msra.mxu0 0
    %2165 = vmatprep.subr.bf16.mxu0 0
    %2166 = vmatpush1.bf16.msra.mxu0 0
    %2167 = vmatprep.subr.bf16.mxu0 0
    %2168 = vmatpush1.bf16.msra.mxu0 0
    %2169 = vmatprep.subr.bf16.mxu0 0
    %2170 = vmatpush1.bf16.msra.mxu0 0
    %2171 = vmatprep.subr.bf16.mxu0 0
    %2172 = vmatpush1.bf16.msra.mxu0 0
    %2173 = vmatprep.subr.bf16.mxu0 0
    %2174 = vmatpush1.bf16.msra.mxu0 0
    %2175 = vmatprep.subr.bf16.mxu0 0
    %2176 = vmatpush1.bf16.msra.mxu0 0
    %2177 = vmatprep.subr.bf16.mxu0 0
    %2178 = vmatpush1.bf16.msra.mxu0 0
    %2179 = vmatprep.subr.bf16.mxu0 0
    %2180 = vmatpush1.bf16.msra.mxu0 0
    %2181 = vmatprep.subr.bf16.mxu0 0
    %2182 = vmatpush1.bf16.msra.mxu0 0
    %2183 = vmatprep.subr.bf16.mxu0 0
    %2184 = vmatpush1.bf16.msra.mxu0 0
    %2185 = vmatprep.subr.bf16.mxu0 0
    %2186 = vmatpush1.bf16.msra.mxu0 0
    %2187 = vmatprep.mubr.bf16.mxu0 0
    %2188 = vmatmul.mubr.bf16.gmra.mrb[0].mxu0 %v2150
    %v2189 = vpop.f32.mrb[0].mxu0
    %v2190 = vadd.f32 0.0, %v2189
    %v2191 = vpop.f32.mrb[0].mxu0
    %v2192 = vpop.f32.mrb[0].mxu0
    %v2193 = vpop.f32.mrb[0].mxu0
    %2194 = vdwg.mxu0
    %v2195 = vpack.c.bf16 %v2046, %v2046
    %v2196 = vpack.c.bf16 %v2094, %v2094
    %v2197 = vpack.c.bf16 %v2142, %v2142
    %v2198 = vpack.c.bf16 %v2190, %v2190
    %2199 = vrot.lane.b32.xlu0 %v236, 112
    %v2200 = vpop.permute.xlu0 %2199
    %2201 = vrot.lane.b32.xlu0 %v320, 112
    %v2202 = vpop.permute.xlu0 %2201
    %v2204 = vsel %vm444, %v2200, 0
    %v2207 = vsel %vm444, %v2202, 0
    %2209 = vmatprep.subr.bf16.mxu0 0
    %2210 = vmatpush1.bf16.xpose.msra.mxu0 %v2207
    %2211 = vmatprep.subr.bf16.mxu0 0
    %2212 = vmatpush1.bf16.xpose.msra.mxu0 0
    %2213 = vmatprep.subr.bf16.mxu0 0
    %2214 = vmatpush1.bf16.xpose.msra.mxu0 0
    %2215 = vmatprep.subr.bf16.mxu0 0
    %2216 = vmatpush1.bf16.xpose.msra.mxu0 0
    %2217 = vmatprep.subr.bf16.mxu0 0
    %2218 = vmatpush1.bf16.xpose.msra.mxu0 0
    %2219 = vmatprep.subr.bf16.mxu0 0
    %2220 = vmatpush1.bf16.xpose.msra.mxu0 0
    %2221 = vmatprep.subr.bf16.mxu0 0
    %2222 = vmatpush1.bf16.xpose.msra.mxu0 0
    %2223 = vmatprep.subr.bf16.mxu0 0
    %2224 = vmatpush1.bf16.xpose.msra.mxu0 0
    %2225 = vmatprep.subr.bf16.mxu0 0
    %2226 = vmatpush1.bf16.xpose.msra.mxu0 0
    %2227 = vmatprep.subr.bf16.mxu0 0
    %2228 = vmatpush1.bf16.xpose.msra.mxu0 0
    %2229 = vmatprep.subr.bf16.mxu0 0
    %2230 = vmatpush1.bf16.xpose.msra.mxu0 0
    %2231 = vmatprep.subr.bf16.mxu0 0
    %2232 = vmatpush1.bf16.xpose.msra.mxu0 0
    %2233 = vmatprep.subr.bf16.mxu0 0
    %2234 = vmatpush1.bf16.xpose.msra.mxu0 0
    %2235 = vmatprep.subr.bf16.mxu0 0
    %2236 = vmatpush1.bf16.xpose.msra.mxu0 0
    %2237 = vmatprep.subr.bf16.mxu0 0
    %2238 = vmatpush1.bf16.xpose.msra.mxu0 0
    %2239 = vmatprep.subr.bf16.mxu0 0
    %2240 = vmatpush1.bf16.xpose.msra.mxu0 0
    %2241 = vmatprep.mubr.bf16.mxu0 0
    %2242 = vmatmul.mubr.bf16.gmra.mrb[0].mxu0 %v2204
    %v2243 = vpop.f32.mrb[0].mxu0
    %v2244 = vadd.f32 %v427, %v2243
    %v2245 = vpop.f32.mrb[0].mxu0
    %v2246 = vpop.f32.mrb[0].mxu0
    %v2247 = vpop.f32.mrb[0].mxu0
    %2248 = vdwg.mxu0
    %2249 = vrot.lane.b32.xlu0 %v237, 112
    %v2250 = vpop.permute.xlu0 %2249
    %2251 = vrot.lane.b32.xlu0 %v321, 112
    %v2252 = vpop.permute.xlu0 %2251
    %v2254 = vsel %vm444, %v2250, 0
    %v2257 = vsel %vm444, %v2252, 0
    %2259 = vmatprep.subr.bf16.mxu0 0
    %2260 = vmatpush1.bf16.xpose.msra.mxu0 %v2257
    %2261 = vmatprep.subr.bf16.mxu0 0
    %2262 = vmatpush1.bf16.xpose.msra.mxu0 0
    %2263 = vmatprep.subr.bf16.mxu0 0
    %2264 = vmatpush1.bf16.xpose.msra.mxu0 0
    %2265 = vmatprep.subr.bf16.mxu0 0
    %2266 = vmatpush1.bf16.xpose.msra.mxu0 0
    %2267 = vmatprep.subr.bf16.mxu0 0
    %2268 = vmatpush1.bf16.xpose.msra.mxu0 0
    %2269 = vmatprep.subr.bf16.mxu0 0
    %2270 = vmatpush1.bf16.xpose.msra.mxu0 0
    %2271 = vmatprep.subr.bf16.mxu0 0
    %2272 = vmatpush1.bf16.xpose.msra.mxu0 0
    %2273 = vmatprep.subr.bf16.mxu0 0
    %2274 = vmatpush1.bf16.xpose.msra.mxu0 0
    %2275 = vmatprep.subr.bf16.mxu0 0
    %2276 = vmatpush1.bf16.xpose.msra.mxu0 0
    %2277 = vmatprep.subr.bf16.mxu0 0
    %2278 = vmatpush1.bf16.xpose.msra.mxu0 0
    %2279 = vmatprep.subr.bf16.mxu0 0
    %2280 = vmatpush1.bf16.xpose.msra.mxu0 0
    %2281 = vmatprep.subr.bf16.mxu0 0
    %2282 = vmatpush1.bf16.xpose.msra.mxu0 0
    %2283 = vmatprep.subr.bf16.mxu0 0
    %2284 = vmatpush1.bf16.xpose.msra.mxu0 0
    %2285 = vmatprep.subr.bf16.mxu0 0
    %2286 = vmatpush1.bf16.xpose.msra.mxu0 0
    %2287 = vmatprep.subr.bf16.mxu0 0
    %2288 = vmatpush1.bf16.xpose.msra.mxu0 0
    %2289 = vmatprep.subr.bf16.mxu0 0
    %2290 = vmatpush1.bf16.xpose.msra.mxu0 0
    %2291 = vmatprep.mubr.bf16.mxu0 0
    %2292 = vmatmul.mubr.bf16.gmra.mrb[0].mxu0 %v2254
    %v2293 = vpop.f32.mrb[0].mxu0
    %v2294 = vadd.f32 %v431, %v2293
    %v2295 = vpop.f32.mrb[0].mxu0
    %v2296 = vpop.f32.mrb[0].mxu0
    %v2297 = vpop.f32.mrb[0].mxu0
    %2298 = vdwg.mxu0
    %2299 = vrot.lane.b32.xlu0 %v238, 112
    %v2300 = vpop.permute.xlu0 %2299
    %2301 = vrot.lane.b32.xlu0 %v322, 112
    %v2302 = vpop.permute.xlu0 %2301
    %v2304 = vsel %vm444, %v2300, 0
    %v2307 = vsel %vm444, %v2302, 0
    %2309 = vmatprep.subr.bf16.mxu0 0
    %2310 = vmatpush1.bf16.xpose.msra.mxu0 %v2307
    %2311 = vmatprep.subr.bf16.mxu0 0
    %2312 = vmatpush1.bf16.xpose.msra.mxu0 0
    %2313 = vmatprep.subr.bf16.mxu0 0
    %2314 = vmatpush1.bf16.xpose.msra.mxu0 0
    %2315 = vmatprep.subr.bf16.mxu0 0
    %2316 = vmatpush1.bf16.xpose.msra.mxu0 0
    %2317 = vmatprep.subr.bf16.mxu0 0
    %2318 = vmatpush1.bf16.xpose.msra.mxu0 0
    %2319 = vmatprep.subr.bf16.mxu0 0
    %2320 = vmatpush1.bf16.xpose.msra.mxu0 0
    %2321 = vmatprep.subr.bf16.mxu0 0
    %2322 = vmatpush1.bf16.xpose.msra.mxu0 0
    %2323 = vmatprep.subr.bf16.mxu0 0
    %2324 = vmatpush1.bf16.xpose.msra.mxu0 0
    %2325 = vmatprep.subr.bf16.mxu0 0
    %2326 = vmatpush1.bf16.xpose.msra.mxu0 0
    %2327 = vmatprep.subr.bf16.mxu0 0
    %2328 = vmatpush1.bf16.xpose.msra.mxu0 0
    %2329 = vmatprep.subr.bf16.mxu0 0
    %2330 = vmatpush1.bf16.xpose.msra.mxu0 0
    %2331 = vmatprep.subr.bf16.mxu0 0
    %2332 = vmatpush1.bf16.xpose.msra.mxu0 0
    %2333 = vmatprep.subr.bf16.mxu0 0
    %2334 = vmatpush1.bf16.xpose.msra.mxu0 0
    %2335 = vmatprep.subr.bf16.mxu0 0
    %2336 = vmatpush1.bf16.xpose.msra.mxu0 0
    %2337 = vmatprep.subr.bf16.mxu0 0
    %2338 = vmatpush1.bf16.xpose.msra.mxu0 0
    %2339 = vmatprep.subr.bf16.mxu0 0
    %2340 = vmatpush1.bf16.xpose.msra.mxu0 0
    %2341 = vmatprep.mubr.bf16.mxu0 0
    %2342 = vmatmul.mubr.bf16.gmra.mrb[0].mxu0 %v2304
    %v2343 = vpop.f32.mrb[0].mxu0
    %v2344 = vadd.f32 %v435, %v2343
    %v2345 = vpop.f32.mrb[0].mxu0
    %v2346 = vpop.f32.mrb[0].mxu0
    %v2347 = vpop.f32.mrb[0].mxu0
    %2348 = vdwg.mxu0
    %2349 = vrot.lane.b32.xlu0 %v239, 112
    %v2350 = vpop.permute.xlu0 %2349
    %2351 = vrot.lane.b32.xlu0 %v323, 112
    %v2352 = vpop.permute.xlu0 %2351
    %v2354 = vsel %vm444, %v2350, 0
    %v2357 = vsel %vm444, %v2352, 0
    %2359 = vmatprep.subr.bf16.mxu0 0
    %2360 = vmatpush1.bf16.xpose.msra.mxu0 %v2357
    %2361 = vmatprep.subr.bf16.mxu0 0
    %2362 = vmatpush1.bf16.xpose.msra.mxu0 0
    %2363 = vmatprep.subr.bf16.mxu0 0
    %2364 = vmatpush1.bf16.xpose.msra.mxu0 0
    %2365 = vmatprep.subr.bf16.mxu0 0
    %2366 = vmatpush1.bf16.xpose.msra.mxu0 0
    %2367 = vmatprep.subr.bf16.mxu0 0
    %2368 = vmatpush1.bf16.xpose.msra.mxu0 0
    %2369 = vmatprep.subr.bf16.mxu0 0
    %2370 = vmatpush1.bf16.xpose.msra.mxu0 0
    %2371 = vmatprep.subr.bf16.mxu0 0
    %2372 = vmatpush1.bf16.xpose.msra.mxu0 0
    %2373 = vmatprep.subr.bf16.mxu0 0
    %2374 = vmatpush1.bf16.xpose.msra.mxu0 0
    %2375 = vmatprep.subr.bf16.mxu0 0
    %2376 = vmatpush1.bf16.xpose.msra.mxu0 0
    %2377 = vmatprep.subr.bf16.mxu0 0
    %2378 = vmatpush1.bf16.xpose.msra.mxu0 0
    %2379 = vmatprep.subr.bf16.mxu0 0
    %2380 = vmatpush1.bf16.xpose.msra.mxu0 0
    %2381 = vmatprep.subr.bf16.mxu0 0
    %2382 = vmatpush1.bf16.xpose.msra.mxu0 0
    %2383 = vmatprep.subr.bf16.mxu0 0
    %2384 = vmatpush1.bf16.xpose.msra.mxu0 0
    %2385 = vmatprep.subr.bf16.mxu0 0
    %2386 = vmatpush1.bf16.xpose.msra.mxu0 0
    %2387 = vmatprep.subr.bf16.mxu0 0
    %2388 = vmatpush1.bf16.xpose.msra.mxu0 0
    %2389 = vmatprep.subr.bf16.mxu0 0
    %2390 = vmatpush1.bf16.xpose.msra.mxu0 0
    %2391 = vmatprep.mubr.bf16.mxu0 0
    %2392 = vmatmul.mubr.bf16.gmra.mrb[0].mxu0 %v2354
    %v2393 = vpop.f32.mrb[0].mxu0
    %v2394 = vadd.f32 %v439, %v2393
    %v2395 = vpop.f32.mrb[0].mxu0
    %v2396 = vpop.f32.mrb[0].mxu0
    %v2397 = vpop.f32.mrb[0].mxu0
    %2398 = vdwg.mxu0
    %v2399 = vsel %vm629, %v2244, -inf
    %2400 = vmax.xlane.f32.xlu0 %v2399
    %v2401 = vpop.xlane.xlu0 %2400
    %v2402 = vsel %vm629, %v2294, -inf
    %2403 = vmax.xlane.f32.xlu0 %v2402
    %v2404 = vpop.xlane.xlu0 %2403
    %v2405 = vsel %vm629, %v2344, -inf
    %2406 = vmax.xlane.f32.xlu0 %v2405
    %v2407 = vpop.xlane.xlu0 %2406
    %v2408 = vsel %vm629, %v2394, -inf
    %2409 = vmax.xlane.f32.xlu0 %v2408
    %v2410 = vpop.xlane.xlu0 %2409
    %v2411 = vsub.f32 %v2244, %v2401
    %v2412 = vsub.f32 %v2294, %v2404
    %v2413 = vsub.f32 %v2344, %v2407
    %v2414 = vsub.f32 %v2394, %v2410
    %v2415 = vmul.f32 %v2411, 1.442695
    %v2416 = vpow.pop %v2415
    %v2417 = vmul.f32 %v2412, 1.442695
    %v2418 = vpow.pop %v2417
    %v2419 = vmul.f32 %v2413, 1.442695
    %v2420 = vpow.pop %v2419
    %v2421 = vmul.f32 %v2414, 1.442695
    %v2422 = vpow.pop %v2421
    %v2423 = vsel %vm629, %v2416, 0.0
    %2424 = vadd.xlane.f32.xlu0 %v2423
    %v2425 = vpop.xlane.xlu0 %2424
    %v2426 = vsel %vm629, %v2418, 0.0
    %2427 = vadd.xlane.f32.xlu0 %v2426
    %v2428 = vpop.xlane.xlu0 %2427
    %v2429 = vsel %vm629, %v2420, 0.0
    %2430 = vadd.xlane.f32.xlu0 %v2429
    %v2431 = vpop.xlane.xlu0 %2430
    %v2432 = vsel %vm629, %v2422, 0.0
    %2433 = vadd.xlane.f32.xlu0 %v2432
    %v2434 = vpop.xlane.xlu0 %2433
    %v2435 = vrcp.pop %v2425
    %v2436 = vrcp.pop %v2428
    %v2437 = vrcp.pop %v2431
    %v2438 = vrcp.pop %v2434
    %v2439 = vmul.f32 %v2416, %v2435
    %v2440 = vmul.f32 %v2418, %v2436
    %v2441 = vmul.f32 %v2420, %v2437
    %v2442 = vmul.f32 %v2422, %v2438
    %v2443 = vpack.c.bf16 %v2439, %v2439
    %v2444 = vpack.c.bf16 %v2440, %v2440
    %v2445 = vpack.c.bf16 %v2441, %v2441
    %v2446 = vpack.c.bf16 %v2442, %v2442
    %2447 = vrot.lane.b32.xlu0 %v404, 112
    %v2448 = vpop.permute.xlu0 %2447
    %v2450 = vsel %vm629, %v2443, 0
    %v2453 = vsel %vm681, %v2448, 0
    %2455 = vmatprep.subr.bf16.mxu0 0
    %2456 = vmatpush1.bf16.msra.mxu0 %v2453
    %2457 = vmatprep.subr.bf16.mxu0 0
    %2458 = vmatpush1.bf16.msra.mxu0 0
    %2459 = vmatprep.subr.bf16.mxu0 0
    %2460 = vmatpush1.bf16.msra.mxu0 0
    %2461 = vmatprep.subr.bf16.mxu0 0
    %2462 = vmatpush1.bf16.msra.mxu0 0
    %2463 = vmatprep.subr.bf16.mxu0 0
    %2464 = vmatpush1.bf16.msra.mxu0 0
    %2465 = vmatprep.subr.bf16.mxu0 0
    %2466 = vmatpush1.bf16.msra.mxu0 0
    %2467 = vmatprep.subr.bf16.mxu0 0
    %2468 = vmatpush1.bf16.msra.mxu0 0
    %2469 = vmatprep.subr.bf16.mxu0 0
    %2470 = vmatpush1.bf16.msra.mxu0 0
    %2471 = vmatprep.subr.bf16.mxu0 0
    %2472 = vmatpush1.bf16.msra.mxu0 0
    %2473 = vmatprep.subr.bf16.mxu0 0
    %2474 = vmatpush1.bf16.msra.mxu0 0
    %2475 = vmatprep.subr.bf16.mxu0 0
    %2476 = vmatpush1.bf16.msra.mxu0 0
    %2477 = vmatprep.subr.bf16.mxu0 0
    %2478 = vmatpush1.bf16.msra.mxu0 0
    %2479 = vmatprep.subr.bf16.mxu0 0
    %2480 = vmatpush1.bf16.msra.mxu0 0
    %2481 = vmatprep.subr.bf16.mxu0 0
    %2482 = vmatpush1.bf16.msra.mxu0 0
    %2483 = vmatprep.subr.bf16.mxu0 0
    %2484 = vmatpush1.bf16.msra.mxu0 0
    %2485 = vmatprep.subr.bf16.mxu0 0
    %2486 = vmatpush1.bf16.msra.mxu0 0
    %2487 = vmatprep.mubr.bf16.mxu0 0
    %2488 = vmatmul.mubr.bf16.gmra.mrb[0].mxu0 %v2450
    %v2489 = vpop.f32.mrb[0].mxu0
    %v2490 = vadd.f32 0.0, %v2489
    %v2491 = vpop.f32.mrb[0].mxu0
    %v2492 = vpop.f32.mrb[0].mxu0
    %v2493 = vpop.f32.mrb[0].mxu0
    %2494 = vdwg.mxu0
    %2495 = vrot.lane.b32.xlu0 %v405, 112
    %v2496 = vpop.permute.xlu0 %2495
    %v2498 = vsel %vm629, %v2444, 0
    %v2501 = vsel %vm681, %v2496, 0
    %2503 = vmatprep.subr.bf16.mxu0 0
    %2504 = vmatpush1.bf16.msra.mxu0 %v2501
    %2505 = vmatprep.subr.bf16.mxu0 0
    %2506 = vmatpush1.bf16.msra.mxu0 0
    %2507 = vmatprep.subr.bf16.mxu0 0
    %2508 = vmatpush1.bf16.msra.mxu0 0
    %2509 = vmatprep.subr.bf16.mxu0 0
    %2510 = vmatpush1.bf16.msra.mxu0 0
    %2511 = vmatprep.subr.bf16.mxu0 0
    %2512 = vmatpush1.bf16.msra.mxu0 0
    %2513 = vmatprep.subr.bf16.mxu0 0
    %2514 = vmatpush1.bf16.msra.mxu0 0
    %2515 = vmatprep.subr.bf16.mxu0 0
    %2516 = vmatpush1.bf16.msra.mxu0 0
    %2517 = vmatprep.subr.bf16.mxu0 0
    %2518 = vmatpush1.bf16.msra.mxu0 0
    %2519 = vmatprep.subr.bf16.mxu0 0
    %2520 = vmatpush1.bf16.msra.mxu0 0
    %2521 = vmatprep.subr.bf16.mxu0 0
    %2522 = vmatpush1.bf16.msra.mxu0 0
    %2523 = vmatprep.subr.bf16.mxu0 0
    %2524 = vmatpush1.bf16.msra.mxu0 0
    %2525 = vmatprep.subr.bf16.mxu0 0
    %2526 = vmatpush1.bf16.msra.mxu0 0
    %2527 = vmatprep.subr.bf16.mxu0 0
    %2528 = vmatpush1.bf16.msra.mxu0 0
    %2529 = vmatprep.subr.bf16.mxu0 0
    %2530 = vmatpush1.bf16.msra.mxu0 0
    %2531 = vmatprep.subr.bf16.mxu0 0
    %2532 = vmatpush1.bf16.msra.mxu0 0
    %2533 = vmatprep.subr.bf16.mxu0 0
    %2534 = vmatpush1.bf16.msra.mxu0 0
    %2535 = vmatprep.mubr.bf16.mxu0 0
    %2536 = vmatmul.mubr.bf16.gmra.mrb[0].mxu0 %v2498
    %v2537 = vpop.f32.mrb[0].mxu0
    %v2538 = vadd.f32 0.0, %v2537
    %v2539 = vpop.f32.mrb[0].mxu0
    %v2540 = vpop.f32.mrb[0].mxu0
    %v2541 = vpop.f32.mrb[0].mxu0
    %2542 = vdwg.mxu0
    %2543 = vrot.lane.b32.xlu0 %v406, 112
    %v2544 = vpop.permute.xlu0 %2543
    %v2546 = vsel %vm629, %v2445, 0
    %v2549 = vsel %vm681, %v2544, 0
    %2551 = vmatprep.subr.bf16.mxu0 0
    %2552 = vmatpush1.bf16.msra.mxu0 %v2549
    %2553 = vmatprep.subr.bf16.mxu0 0
    %2554 = vmatpush1.bf16.msra.mxu0 0
    %2555 = vmatprep.subr.bf16.mxu0 0
    %2556 = vmatpush1.bf16.msra.mxu0 0
    %2557 = vmatprep.subr.bf16.mxu0 0
    %2558 = vmatpush1.bf16.msra.mxu0 0
    %2559 = vmatprep.subr.bf16.mxu0 0
    %2560 = vmatpush1.bf16.msra.mxu0 0
    %2561 = vmatprep.subr.bf16.mxu0 0
    %2562 = vmatpush1.bf16.msra.mxu0 0
    %2563 = vmatprep.subr.bf16.mxu0 0
    %2564 = vmatpush1.bf16.msra.mxu0 0
    %2565 = vmatprep.subr.bf16.mxu0 0
    %2566 = vmatpush1.bf16.msra.mxu0 0
    %2567 = vmatprep.subr.bf16.mxu0 0
    %2568 = vmatpush1.bf16.msra.mxu0 0
    %2569 = vmatprep.subr.bf16.mxu0 0
    %2570 = vmatpush1.bf16.msra.mxu0 0
    %2571 = vmatprep.subr.bf16.mxu0 0
    %2572 = vmatpush1.bf16.msra.mxu0 0
    %2573 = vmatprep.subr.bf16.mxu0 0
    %2574 = vmatpush1.bf16.msra.mxu0 0
    %2575 = vmatprep.subr.bf16.mxu0 0
    %2576 = vmatpush1.bf16.msra.mxu0 0
    %2577 = vmatprep.subr.bf16.mxu0 0
    %2578 = vmatpush1.bf16.msra.mxu0 0
    %2579 = vmatprep.subr.bf16.mxu0 0
    %2580 = vmatpush1.bf16.msra.mxu0 0
    %2581 = vmatprep.subr.bf16.mxu0 0
    %2582 = vmatpush1.bf16.msra.mxu0 0
    %2583 = vmatprep.mubr.bf16.mxu0 0
    %2584 = vmatmul.mubr.bf16.gmra.mrb[0].mxu0 %v2546
    %v2585 = vpop.f32.mrb[0].mxu0
    %v2586 = vadd.f32 0.0, %v2585
    %v2587 = vpop.f32.mrb[0].mxu0
    %v2588 = vpop.f32.mrb[0].mxu0
    %v2589 = vpop.f32.mrb[0].mxu0
    %2590 = vdwg.mxu0
    %2591 = vrot.lane.b32.xlu0 %v407, 112
    %v2592 = vpop.permute.xlu0 %2591
    %v2594 = vsel %vm629, %v2446, 0
    %v2597 = vsel %vm681, %v2592, 0
    %2599 = vmatprep.subr.bf16.mxu0 0
    %2600 = vmatpush1.bf16.msra.mxu0 %v2597
    %2601 = vmatprep.subr.bf16.mxu0 0
    %2602 = vmatpush1.bf16.msra.mxu0 0
    %2603 = vmatprep.subr.bf16.mxu0 0
    %2604 = vmatpush1.bf16.msra.mxu0 0
    %2605 = vmatprep.subr.bf16.mxu0 0
    %2606 = vmatpush1.bf16.msra.mxu0 0
    %2607 = vmatprep.subr.bf16.mxu0 0
    %2608 = vmatpush1.bf16.msra.mxu0 0
    %2609 = vmatprep.subr.bf16.mxu0 0
    %2610 = vmatpush1.bf16.msra.mxu0 0
    %2611 = vmatprep.subr.bf16.mxu0 0
    %2612 = vmatpush1.bf16.msra.mxu0 0
    %2613 = vmatprep.subr.bf16.mxu0 0
    %2614 = vmatpush1.bf16.msra.mxu0 0
    %2615 = vmatprep.subr.bf16.mxu0 0
    %2616 = vmatpush1.bf16.msra.mxu0 0
    %2617 = vmatprep.subr.bf16.mxu0 0
    %2618 = vmatpush1.bf16.msra.mxu0 0
    %2619 = vmatprep.subr.bf16.mxu0 0
    %2620 = vmatpush1.bf16.msra.mxu0 0
    %2621 = vmatprep.subr.bf16.mxu0 0
    %2622 = vmatpush1.bf16.msra.mxu0 0
    %2623 = vmatprep.subr.bf16.mxu0 0
    %2624 = vmatpush1.bf16.msra.mxu0 0
    %2625 = vmatprep.subr.bf16.mxu0 0
    %2626 = vmatpush1.bf16.msra.mxu0 0
    %2627 = vmatprep.subr.bf16.mxu0 0
    %2628 = vmatpush1.bf16.msra.mxu0 0
    %2629 = vmatprep.subr.bf16.mxu0 0
    %2630 = vmatpush1.bf16.msra.mxu0 0
    %2631 = vmatprep.mubr.bf16.mxu0 0
    %2632 = vmatmul.mubr.bf16.gmra.mrb[0].mxu0 %v2594
    %v2633 = vpop.f32.mrb[0].mxu0
    %v2634 = vadd.f32 0.0, %v2633
    %v2635 = vpop.f32.mrb[0].mxu0
    %v2636 = vpop.f32.mrb[0].mxu0
    %v2637 = vpop.f32.mrb[0].mxu0
    %2638 = vdwg.mxu0
    %v2639 = vpack.c.bf16 %v2490, %v2490
    %v2640 = vpack.c.bf16 %v2538, %v2538
    %v2641 = vpack.c.bf16 %v2586, %v2586
    %v2642 = vpack.c.bf16 %v2634, %v2634
    %2643 = vrot.lane.b32.xlu0 %v236, 108
    %v2644 = vpop.permute.xlu0 %2643
    %2645 = vrot.lane.b32.xlu0 %v320, 108
    %v2646 = vpop.permute.xlu0 %2645
    %v2648 = vsel %vm444, %v2644, 0
    %v2651 = vsel %vm444, %v2646, 0
    %2653 = vmatprep.subr.bf16.mxu0 0
    %2654 = vmatpush1.bf16.xpose.msra.mxu0 %v2651
    %2655 = vmatprep.subr.bf16.mxu0 0
    %2656 = vmatpush1.bf16.xpose.msra.mxu0 0
    %2657 = vmatprep.subr.bf16.mxu0 0
    %2658 = vmatpush1.bf16.xpose.msra.mxu0 0
    %2659 = vmatprep.subr.bf16.mxu0 0
    %2660 = vmatpush1.bf16.xpose.msra.mxu0 0
    %2661 = vmatprep.subr.bf16.mxu0 0
    %2662 = vmatpush1.bf16.xpose.msra.mxu0 0
    %2663 = vmatprep.subr.bf16.mxu0 0
    %2664 = vmatpush1.bf16.xpose.msra.mxu0 0
    %2665 = vmatprep.subr.bf16.mxu0 0
    %2666 = vmatpush1.bf16.xpose.msra.mxu0 0
    %2667 = vmatprep.subr.bf16.mxu0 0
    %2668 = vmatpush1.bf16.xpose.msra.mxu0 0
    %2669 = vmatprep.subr.bf16.mxu0 0
    %2670 = vmatpush1.bf16.xpose.msra.mxu0 0
    %2671 = vmatprep.subr.bf16.mxu0 0
    %2672 = vmatpush1.bf16.xpose.msra.mxu0 0
    %2673 = vmatprep.subr.bf16.mxu0 0
    %2674 = vmatpush1.bf16.xpose.msra.mxu0 0
    %2675 = vmatprep.subr.bf16.mxu0 0
    %2676 = vmatpush1.bf16.xpose.msra.mxu0 0
    %2677 = vmatprep.subr.bf16.mxu0 0
    %2678 = vmatpush1.bf16.xpose.msra.mxu0 0
    %2679 = vmatprep.subr.bf16.mxu0 0
    %2680 = vmatpush1.bf16.xpose.msra.mxu0 0
    %2681 = vmatprep.subr.bf16.mxu0 0
    %2682 = vmatpush1.bf16.xpose.msra.mxu0 0
    %2683 = vmatprep.subr.bf16.mxu0 0
    %2684 = vmatpush1.bf16.xpose.msra.mxu0 0
    %2685 = vmatprep.mubr.bf16.mxu0 0
    %2686 = vmatmul.mubr.bf16.gmra.mrb[0].mxu0 %v2648
    %v2687 = vpop.f32.mrb[0].mxu0
    %v2688 = vadd.f32 %v427, %v2687
    %v2689 = vpop.f32.mrb[0].mxu0
    %v2690 = vpop.f32.mrb[0].mxu0
    %v2691 = vpop.f32.mrb[0].mxu0
    %2692 = vdwg.mxu0
    %2693 = vrot.lane.b32.xlu0 %v237, 108
    %v2694 = vpop.permute.xlu0 %2693
    %2695 = vrot.lane.b32.xlu0 %v321, 108
    %v2696 = vpop.permute.xlu0 %2695
    %v2698 = vsel %vm444, %v2694, 0
    %v2701 = vsel %vm444, %v2696, 0
    %2703 = vmatprep.subr.bf16.mxu0 0
    %2704 = vmatpush1.bf16.xpose.msra.mxu0 %v2701
    %2705 = vmatprep.subr.bf16.mxu0 0
    %2706 = vmatpush1.bf16.xpose.msra.mxu0 0
    %2707 = vmatprep.subr.bf16.mxu0 0
    %2708 = vmatpush1.bf16.xpose.msra.mxu0 0
    %2709 = vmatprep.subr.bf16.mxu0 0
    %2710 = vmatpush1.bf16.xpose.msra.mxu0 0
    %2711 = vmatprep.subr.bf16.mxu0 0
    %2712 = vmatpush1.bf16.xpose.msra.mxu0 0
    %2713 = vmatprep.subr.bf16.mxu0 0
    %2714 = vmatpush1.bf16.xpose.msra.mxu0 0
    %2715 = vmatprep.subr.bf16.mxu0 0
    %2716 = vmatpush1.bf16.xpose.msra.mxu0 0
    %2717 = vmatprep.subr.bf16.mxu0 0
    %2718 = vmatpush1.bf16.xpose.msra.mxu0 0
    %2719 = vmatprep.subr.bf16.mxu0 0
    %2720 = vmatpush1.bf16.xpose.msra.mxu0 0
    %2721 = vmatprep.subr.bf16.mxu0 0
    %2722 = vmatpush1.bf16.xpose.msra.mxu0 0
    %2723 = vmatprep.subr.bf16.mxu0 0
    %2724 = vmatpush1.bf16.xpose.msra.mxu0 0
    %2725 = vmatprep.subr.bf16.mxu0 0
    %2726 = vmatpush1.bf16.xpose.msra.mxu0 0
    %2727 = vmatprep.subr.bf16.mxu0 0
    %2728 = vmatpush1.bf16.xpose.msra.mxu0 0
    %2729 = vmatprep.subr.bf16.mxu0 0
    %2730 = vmatpush1.bf16.xpose.msra.mxu0 0
    %2731 = vmatprep.subr.bf16.mxu0 0
    %2732 = vmatpush1.bf16.xpose.msra.mxu0 0
    %2733 = vmatprep.subr.bf16.mxu0 0
    %2734 = vmatpush1.bf16.xpose.msra.mxu0 0
    %2735 = vmatprep.mubr.bf16.mxu0 0
    %2736 = vmatmul.mubr.bf16.gmra.mrb[0].mxu0 %v2698
    %v2737 = vpop.f32.mrb[0].mxu0
    %v2738 = vadd.f32 %v431, %v2737
    %v2739 = vpop.f32.mrb[0].mxu0
    %v2740 = vpop.f32.mrb[0].mxu0
    %v2741 = vpop.f32.mrb[0].mxu0
    %2742 = vdwg.mxu0
    %2743 = vrot.lane.b32.xlu0 %v238, 108
    %v2744 = vpop.permute.xlu0 %2743
    %2745 = vrot.lane.b32.xlu0 %v322, 108
    %v2746 = vpop.permute.xlu0 %2745
    %v2748 = vsel %vm444, %v2744, 0
    %v2751 = vsel %vm444, %v2746, 0
    %2753 = vmatprep.subr.bf16.mxu0 0
    %2754 = vmatpush1.bf16.xpose.msra.mxu0 %v2751
    %2755 = vmatprep.subr.bf16.mxu0 0
    %2756 = vmatpush1.bf16.xpose.msra.mxu0 0
    %2757 = vmatprep.subr.bf16.mxu0 0
    %2758 = vmatpush1.bf16.xpose.msra.mxu0 0
    %2759 = vmatprep.subr.bf16.mxu0 0
    %2760 = vmatpush1.bf16.xpose.msra.mxu0 0
    %2761 = vmatprep.subr.bf16.mxu0 0
    %2762 = vmatpush1.bf16.xpose.msra.mxu0 0
    %2763 = vmatprep.subr.bf16.mxu0 0
    %2764 = vmatpush1.bf16.xpose.msra.mxu0 0
    %2765 = vmatprep.subr.bf16.mxu0 0
    %2766 = vmatpush1.bf16.xpose.msra.mxu0 0
    %2767 = vmatprep.subr.bf16.mxu0 0
    %2768 = vmatpush1.bf16.xpose.msra.mxu0 0
    %2769 = vmatprep.subr.bf16.mxu0 0
    %2770 = vmatpush1.bf16.xpose.msra.mxu0 0
    %2771 = vmatprep.subr.bf16.mxu0 0
    %2772 = vmatpush1.bf16.xpose.msra.mxu0 0
    %2773 = vmatprep.subr.bf16.mxu0 0
    %2774 = vmatpush1.bf16.xpose.msra.mxu0 0
    %2775 = vmatprep.subr.bf16.mxu0 0
    %2776 = vmatpush1.bf16.xpose.msra.mxu0 0
    %2777 = vmatprep.subr.bf16.mxu0 0
    %2778 = vmatpush1.bf16.xpose.msra.mxu0 0
    %2779 = vmatprep.subr.bf16.mxu0 0
    %2780 = vmatpush1.bf16.xpose.msra.mxu0 0
    %2781 = vmatprep.subr.bf16.mxu0 0
    %2782 = vmatpush1.bf16.xpose.msra.mxu0 0
    %2783 = vmatprep.subr.bf16.mxu0 0
    %2784 = vmatpush1.bf16.xpose.msra.mxu0 0
    %2785 = vmatprep.mubr.bf16.mxu0 0
    %2786 = vmatmul.mubr.bf16.gmra.mrb[0].mxu0 %v2748
    %v2787 = vpop.f32.mrb[0].mxu0
    %v2788 = vadd.f32 %v435, %v2787
    %v2789 = vpop.f32.mrb[0].mxu0
    %v2790 = vpop.f32.mrb[0].mxu0
    %v2791 = vpop.f32.mrb[0].mxu0
    %2792 = vdwg.mxu0
    %2793 = vrot.lane.b32.xlu0 %v239, 108
    %v2794 = vpop.permute.xlu0 %2793
    %2795 = vrot.lane.b32.xlu0 %v323, 108
    %v2796 = vpop.permute.xlu0 %2795
    %v2798 = vsel %vm444, %v2794, 0
    %v2801 = vsel %vm444, %v2796, 0
    %2803 = vmatprep.subr.bf16.mxu0 0
    %2804 = vmatpush1.bf16.xpose.msra.mxu0 %v2801
    %2805 = vmatprep.subr.bf16.mxu0 0
    %2806 = vmatpush1.bf16.xpose.msra.mxu0 0
    %2807 = vmatprep.subr.bf16.mxu0 0
    %2808 = vmatpush1.bf16.xpose.msra.mxu0 0
    %2809 = vmatprep.subr.bf16.mxu0 0
    %2810 = vmatpush1.bf16.xpose.msra.mxu0 0
    %2811 = vmatprep.subr.bf16.mxu0 0
    %2812 = vmatpush1.bf16.xpose.msra.mxu0 0
    %2813 = vmatprep.subr.bf16.mxu0 0
    %2814 = vmatpush1.bf16.xpose.msra.mxu0 0
    %2815 = vmatprep.subr.bf16.mxu0 0
    %2816 = vmatpush1.bf16.xpose.msra.mxu0 0
    %2817 = vmatprep.subr.bf16.mxu0 0
    %2818 = vmatpush1.bf16.xpose.msra.mxu0 0
    %2819 = vmatprep.subr.bf16.mxu0 0
    %2820 = vmatpush1.bf16.xpose.msra.mxu0 0
    %2821 = vmatprep.subr.bf16.mxu0 0
    %2822 = vmatpush1.bf16.xpose.msra.mxu0 0
    %2823 = vmatprep.subr.bf16.mxu0 0
    %2824 = vmatpush1.bf16.xpose.msra.mxu0 0
    %2825 = vmatprep.subr.bf16.mxu0 0
    %2826 = vmatpush1.bf16.xpose.msra.mxu0 0
    %2827 = vmatprep.subr.bf16.mxu0 0
    %2828 = vmatpush1.bf16.xpose.msra.mxu0 0
    %2829 = vmatprep.subr.bf16.mxu0 0
    %2830 = vmatpush1.bf16.xpose.msra.mxu0 0
    %2831 = vmatprep.subr.bf16.mxu0 0
    %2832 = vmatpush1.bf16.xpose.msra.mxu0 0
    %2833 = vmatprep.subr.bf16.mxu0 0
    %2834 = vmatpush1.bf16.xpose.msra.mxu0 0
    %2835 = vmatprep.mubr.bf16.mxu0 0
    %2836 = vmatmul.mubr.bf16.gmra.mrb[0].mxu0 %v2798
    %v2837 = vpop.f32.mrb[0].mxu0
    %v2838 = vadd.f32 %v439, %v2837
    %v2839 = vpop.f32.mrb[0].mxu0
    %v2840 = vpop.f32.mrb[0].mxu0
    %v2841 = vpop.f32.mrb[0].mxu0
    %2842 = vdwg.mxu0
    %v2843 = vsel %vm629, %v2688, -inf
    %2844 = vmax.xlane.f32.xlu0 %v2843
    %v2845 = vpop.xlane.xlu0 %2844
    %v2846 = vsel %vm629, %v2738, -inf
    %2847 = vmax.xlane.f32.xlu0 %v2846
    %v2848 = vpop.xlane.xlu0 %2847
    %v2849 = vsel %vm629, %v2788, -inf
    %2850 = vmax.xlane.f32.xlu0 %v2849
    %v2851 = vpop.xlane.xlu0 %2850
    %v2852 = vsel %vm629, %v2838, -inf
    %2853 = vmax.xlane.f32.xlu0 %v2852
    %v2854 = vpop.xlane.xlu0 %2853
    %v2855 = vsub.f32 %v2688, %v2845
    %v2856 = vsub.f32 %v2738, %v2848
    %v2857 = vsub.f32 %v2788, %v2851
    %v2858 = vsub.f32 %v2838, %v2854
    %v2859 = vmul.f32 %v2855, 1.442695
    %v2860 = vpow.pop %v2859
    %v2861 = vmul.f32 %v2856, 1.442695
    %v2862 = vpow.pop %v2861
    %v2863 = vmul.f32 %v2857, 1.442695
    %v2864 = vpow.pop %v2863
    %v2865 = vmul.f32 %v2858, 1.442695
    %v2866 = vpow.pop %v2865
    %v2867 = vsel %vm629, %v2860, 0.0
    %2868 = vadd.xlane.f32.xlu0 %v2867
    %v2869 = vpop.xlane.xlu0 %2868
    %v2870 = vsel %vm629, %v2862, 0.0
    %2871 = vadd.xlane.f32.xlu0 %v2870
    %v2872 = vpop.xlane.xlu0 %2871
    %v2873 = vsel %vm629, %v2864, 0.0
    %2874 = vadd.xlane.f32.xlu0 %v2873
    %v2875 = vpop.xlane.xlu0 %2874
    %v2876 = vsel %vm629, %v2866, 0.0
    %2877 = vadd.xlane.f32.xlu0 %v2876
    %v2878 = vpop.xlane.xlu0 %2877
    %v2879 = vrcp.pop %v2869
    %v2880 = vrcp.pop %v2872
    %v2881 = vrcp.pop %v2875
    %v2882 = vrcp.pop %v2878
    %v2883 = vmul.f32 %v2860, %v2879
    %v2884 = vmul.f32 %v2862, %v2880
    %v2885 = vmul.f32 %v2864, %v2881
    %v2886 = vmul.f32 %v2866, %v2882
    %v2887 = vpack.c.bf16 %v2883, %v2883
    %v2888 = vpack.c.bf16 %v2884, %v2884
    %v2889 = vpack.c.bf16 %v2885, %v2885
    %v2890 = vpack.c.bf16 %v2886, %v2886
    %2891 = vrot.lane.b32.xlu0 %v404, 108
    %v2892 = vpop.permute.xlu0 %2891
    %v2894 = vsel %vm629, %v2887, 0
    %v2897 = vsel %vm681, %v2892, 0
    %2899 = vmatprep.subr.bf16.mxu0 0
    %2900 = vmatpush1.bf16.msra.mxu0 %v2897
    %2901 = vmatprep.subr.bf16.mxu0 0
    %2902 = vmatpush1.bf16.msra.mxu0 0
    %2903 = vmatprep.subr.bf16.mxu0 0
    %2904 = vmatpush1.bf16.msra.mxu0 0
    %2905 = vmatprep.subr.bf16.mxu0 0
    %2906 = vmatpush1.bf16.msra.mxu0 0
    %2907 = vmatprep.subr.bf16.mxu0 0
    %2908 = vmatpush1.bf16.msra.mxu0 0
    %2909 = vmatprep.subr.bf16.mxu0 0
    %2910 = vmatpush1.bf16.msra.mxu0 0
    %2911 = vmatprep.subr.bf16.mxu0 0
    %2912 = vmatpush1.bf16.msra.mxu0 0
    %2913 = vmatprep.subr.bf16.mxu0 0
    %2914 = vmatpush1.bf16.msra.mxu0 0
    %2915 = vmatprep.subr.bf16.mxu0 0
    %2916 = vmatpush1.bf16.msra.mxu0 0
    %2917 = vmatprep.subr.bf16.mxu0 0
    %2918 = vmatpush1.bf16.msra.mxu0 0
    %2919 = vmatprep.subr.bf16.mxu0 0
    %2920 = vmatpush1.bf16.msra.mxu0 0
    %2921 = vmatprep.subr.bf16.mxu0 0
    %2922 = vmatpush1.bf16.msra.mxu0 0
    %2923 = vmatprep.subr.bf16.mxu0 0
    %2924 = vmatpush1.bf16.msra.mxu0 0
    %2925 = vmatprep.subr.bf16.mxu0 0
    %2926 = vmatpush1.bf16.msra.mxu0 0
    %2927 = vmatprep.subr.bf16.mxu0 0
    %2928 = vmatpush1.bf16.msra.mxu0 0
    %2929 = vmatprep.subr.bf16.mxu0 0
    %2930 = vmatpush1.bf16.msra.mxu0 0
    %2931 = vmatprep.mubr.bf16.mxu0 0
    %2932 = vmatmul.mubr.bf16.gmra.mrb[0].mxu0 %v2894
    %v2933 = vpop.f32.mrb[0].mxu0
    %v2934 = vadd.f32 0.0, %v2933
    %v2935 = vpop.f32.mrb[0].mxu0
    %v2936 = vpop.f32.mrb[0].mxu0
    %v2937 = vpop.f32.mrb[0].mxu0
    %2938 = vdwg.mxu0
    %2939 = vrot.lane.b32.xlu0 %v405, 108
    %v2940 = vpop.permute.xlu0 %2939
    %v2942 = vsel %vm629, %v2888, 0
    %v2945 = vsel %vm681, %v2940, 0
    %2947 = vmatprep.subr.bf16.mxu0 0
    %2948 = vmatpush1.bf16.msra.mxu0 %v2945
    %2949 = vmatprep.subr.bf16.mxu0 0
    %2950 = vmatpush1.bf16.msra.mxu0 0
    %2951 = vmatprep.subr.bf16.mxu0 0
    %2952 = vmatpush1.bf16.msra.mxu0 0
    %2953 = vmatprep.subr.bf16.mxu0 0
    %2954 = vmatpush1.bf16.msra.mxu0 0
    %2955 = vmatprep.subr.bf16.mxu0 0
    %2956 = vmatpush1.bf16.msra.mxu0 0
    %2957 = vmatprep.subr.bf16.mxu0 0
    %2958 = vmatpush1.bf16.msra.mxu0 0
    %2959 = vmatprep.subr.bf16.mxu0 0
    %2960 = vmatpush1.bf16.msra.mxu0 0
    %2961 = vmatprep.subr.bf16.mxu0 0
    %2962 = vmatpush1.bf16.msra.mxu0 0
    %2963 = vmatprep.subr.bf16.mxu0 0
    %2964 = vmatpush1.bf16.msra.mxu0 0
    %2965 = vmatprep.subr.bf16.mxu0 0
    %2966 = vmatpush1.bf16.msra.mxu0 0
    %2967 = vmatprep.subr.bf16.mxu0 0
    %2968 = vmatpush1.bf16.msra.mxu0 0
    %2969 = vmatprep.subr.bf16.mxu0 0
    %2970 = vmatpush1.bf16.msra.mxu0 0
    %2971 = vmatprep.subr.bf16.mxu0 0
    %2972 = vmatpush1.bf16.msra.mxu0 0
    %2973 = vmatprep.subr.bf16.mxu0 0
    %2974 = vmatpush1.bf16.msra.mxu0 0
    %2975 = vmatprep.subr.bf16.mxu0 0
    %2976 = vmatpush1.bf16.msra.mxu0 0
    %2977 = vmatprep.subr.bf16.mxu0 0
    %2978 = vmatpush1.bf16.msra.mxu0 0
    %2979 = vmatprep.mubr.bf16.mxu0 0
    %2980 = vmatmul.mubr.bf16.gmra.mrb[0].mxu0 %v2942
    %v2981 = vpop.f32.mrb[0].mxu0
    %v2982 = vadd.f32 0.0, %v2981
    %v2983 = vpop.f32.mrb[0].mxu0
    %v2984 = vpop.f32.mrb[0].mxu0
    %v2985 = vpop.f32.mrb[0].mxu0
    %2986 = vdwg.mxu0
    %2987 = vrot.lane.b32.xlu0 %v406, 108
    %v2988 = vpop.permute.xlu0 %2987
    %v2990 = vsel %vm629, %v2889, 0
    %v2993 = vsel %vm681, %v2988, 0
    %2995 = vmatprep.subr.bf16.mxu0 0
    %2996 = vmatpush1.bf16.msra.mxu0 %v2993
    %2997 = vmatprep.subr.bf16.mxu0 0
    %2998 = vmatpush1.bf16.msra.mxu0 0
    %2999 = vmatprep.subr.bf16.mxu0 0
    %3000 = vmatpush1.bf16.msra.mxu0 0
    %3001 = vmatprep.subr.bf16.mxu0 0
    %3002 = vmatpush1.bf16.msra.mxu0 0
    %3003 = vmatprep.subr.bf16.mxu0 0
    %3004 = vmatpush1.bf16.msra.mxu0 0
    %3005 = vmatprep.subr.bf16.mxu0 0
    %3006 = vmatpush1.bf16.msra.mxu0 0
    %3007 = vmatprep.subr.bf16.mxu0 0
    %3008 = vmatpush1.bf16.msra.mxu0 0
    %3009 = vmatprep.subr.bf16.mxu0 0
    %3010 = vmatpush1.bf16.msra.mxu0 0
    %3011 = vmatprep.subr.bf16.mxu0 0
    %3012 = vmatpush1.bf16.msra.mxu0 0
    %3013 = vmatprep.subr.bf16.mxu0 0
    %3014 = vmatpush1.bf16.msra.mxu0 0
    %3015 = vmatprep.subr.bf16.mxu0 0
    %3016 = vmatpush1.bf16.msra.mxu0 0
    %3017 = vmatprep.subr.bf16.mxu0 0
    %3018 = vmatpush1.bf16.msra.mxu0 0
    %3019 = vmatprep.subr.bf16.mxu0 0
    %3020 = vmatpush1.bf16.msra.mxu0 0
    %3021 = vmatprep.subr.bf16.mxu0 0
    %3022 = vmatpush1.bf16.msra.mxu0 0
    %3023 = vmatprep.subr.bf16.mxu0 0
    %3024 = vmatpush1.bf16.msra.mxu0 0
    %3025 = vmatprep.subr.bf16.mxu0 0
    %3026 = vmatpush1.bf16.msra.mxu0 0
    %3027 = vmatprep.mubr.bf16.mxu0 0
    %3028 = vmatmul.mubr.bf16.gmra.mrb[0].mxu0 %v2990
    %v3029 = vpop.f32.mrb[0].mxu0
    %v3030 = vadd.f32 0.0, %v3029
    %v3031 = vpop.f32.mrb[0].mxu0
    %v3032 = vpop.f32.mrb[0].mxu0
    %v3033 = vpop.f32.mrb[0].mxu0
    %3034 = vdwg.mxu0
    %3035 = vrot.lane.b32.xlu0 %v407, 108
    %v3036 = vpop.permute.xlu0 %3035
    %v3038 = vsel %vm629, %v2890, 0
    %v3041 = vsel %vm681, %v3036, 0
    %3043 = vmatprep.subr.bf16.mxu0 0
    %3044 = vmatpush1.bf16.msra.mxu0 %v3041
    %3045 = vmatprep.subr.bf16.mxu0 0
    %3046 = vmatpush1.bf16.msra.mxu0 0
    %3047 = vmatprep.subr.bf16.mxu0 0
    %3048 = vmatpush1.bf16.msra.mxu0 0
    %3049 = vmatprep.subr.bf16.mxu0 0
    %3050 = vmatpush1.bf16.msra.mxu0 0
    %3051 = vmatprep.subr.bf16.mxu0 0
    %3052 = vmatpush1.bf16.msra.mxu0 0
    %3053 = vmatprep.subr.bf16.mxu0 0
    %3054 = vmatpush1.bf16.msra.mxu0 0
    %3055 = vmatprep.subr.bf16.mxu0 0
    %3056 = vmatpush1.bf16.msra.mxu0 0
    %3057 = vmatprep.subr.bf16.mxu0 0
    %3058 = vmatpush1.bf16.msra.mxu0 0
    %3059 = vmatprep.subr.bf16.mxu0 0
    %3060 = vmatpush1.bf16.msra.mxu0 0
    %3061 = vmatprep.subr.bf16.mxu0 0
    %3062 = vmatpush1.bf16.msra.mxu0 0
    %3063 = vmatprep.subr.bf16.mxu0 0
    %3064 = vmatpush1.bf16.msra.mxu0 0
    %3065 = vmatprep.subr.bf16.mxu0 0
    %3066 = vmatpush1.bf16.msra.mxu0 0
    %3067 = vmatprep.subr.bf16.mxu0 0
    %3068 = vmatpush1.bf16.msra.mxu0 0
    %3069 = vmatprep.subr.bf16.mxu0 0
    %3070 = vmatpush1.bf16.msra.mxu0 0
    %3071 = vmatprep.subr.bf16.mxu0 0
    %3072 = vmatpush1.bf16.msra.mxu0 0
    %3073 = vmatprep.subr.bf16.mxu0 0
    %3074 = vmatpush1.bf16.msra.mxu0 0
    %3075 = vmatprep.mubr.bf16.mxu0 0
    %3076 = vmatmul.mubr.bf16.gmra.mrb[0].mxu0 %v3038
    %v3077 = vpop.f32.mrb[0].mxu0
    %v3078 = vadd.f32 0.0, %v3077
    %v3079 = vpop.f32.mrb[0].mxu0
    %v3080 = vpop.f32.mrb[0].mxu0
    %v3081 = vpop.f32.mrb[0].mxu0
    %3082 = vdwg.mxu0
    %v3083 = vpack.c.bf16 %v2934, %v2934
    %v3084 = vpack.c.bf16 %v2982, %v2982
    %v3085 = vpack.c.bf16 %v3030, %v3030
    %v3086 = vpack.c.bf16 %v3078, %v3078
    %3087 = vrot.lane.b32.xlu0 %v236, 104
    %v3088 = vpop.permute.xlu0 %3087
    %3089 = vrot.lane.b32.xlu0 %v320, 104
    %v3090 = vpop.permute.xlu0 %3089
    %v3092 = vsel %vm444, %v3088, 0
    %v3095 = vsel %vm444, %v3090, 0
    %3097 = vmatprep.subr.bf16.mxu0 0
    %3098 = vmatpush1.bf16.xpose.msra.mxu0 %v3095
    %3099 = vmatprep.subr.bf16.mxu0 0
    %3100 = vmatpush1.bf16.xpose.msra.mxu0 0
    %3101 = vmatprep.subr.bf16.mxu0 0
    %3102 = vmatpush1.bf16.xpose.msra.mxu0 0
    %3103 = vmatprep.subr.bf16.mxu0 0
    %3104 = vmatpush1.bf16.xpose.msra.mxu0 0
    %3105 = vmatprep.subr.bf16.mxu0 0
    %3106 = vmatpush1.bf16.xpose.msra.mxu0 0
    %3107 = vmatprep.subr.bf16.mxu0 0
    %3108 = vmatpush1.bf16.xpose.msra.mxu0 0
    %3109 = vmatprep.subr.bf16.mxu0 0
    %3110 = vmatpush1.bf16.xpose.msra.mxu0 0
    %3111 = vmatprep.subr.bf16.mxu0 0
    %3112 = vmatpush1.bf16.xpose.msra.mxu0 0
    %3113 = vmatprep.subr.bf16.mxu0 0
    %3114 = vmatpush1.bf16.xpose.msra.mxu0 0
    %3115 = vmatprep.subr.bf16.mxu0 0
    %3116 = vmatpush1.bf16.xpose.msra.mxu0 0
    %3117 = vmatprep.subr.bf16.mxu0 0
    %3118 = vmatpush1.bf16.xpose.msra.mxu0 0
    %3119 = vmatprep.subr.bf16.mxu0 0
    %3120 = vmatpush1.bf16.xpose.msra.mxu0 0
    %3121 = vmatprep.subr.bf16.mxu0 0
    %3122 = vmatpush1.bf16.xpose.msra.mxu0 0
    %3123 = vmatprep.subr.bf16.mxu0 0
    %3124 = vmatpush1.bf16.xpose.msra.mxu0 0
    %3125 = vmatprep.subr.bf16.mxu0 0
    %3126 = vmatpush1.bf16.xpose.msra.mxu0 0
    %3127 = vmatprep.subr.bf16.mxu0 0
    %3128 = vmatpush1.bf16.xpose.msra.mxu0 0
    %3129 = vmatprep.mubr.bf16.mxu0 0
    %3130 = vmatmul.mubr.bf16.gmra.mrb[0].mxu0 %v3092
    %v3131 = vpop.f32.mrb[0].mxu0
    %v3132 = vadd.f32 %v427, %v3131
    %v3133 = vpop.f32.mrb[0].mxu0
    %v3134 = vpop.f32.mrb[0].mxu0
    %v3135 = vpop.f32.mrb[0].mxu0
    %3136 = vdwg.mxu0
    %3137 = vrot.lane.b32.xlu0 %v237, 104
    %v3138 = vpop.permute.xlu0 %3137
    %3139 = vrot.lane.b32.xlu0 %v321, 104
    %v3140 = vpop.permute.xlu0 %3139
    %v3142 = vsel %vm444, %v3138, 0
    %v3145 = vsel %vm444, %v3140, 0
    %3147 = vmatprep.subr.bf16.mxu0 0
    %3148 = vmatpush1.bf16.xpose.msra.mxu0 %v3145
    %3149 = vmatprep.subr.bf16.mxu0 0
    %3150 = vmatpush1.bf16.xpose.msra.mxu0 0
    %3151 = vmatprep.subr.bf16.mxu0 0
    %3152 = vmatpush1.bf16.xpose.msra.mxu0 0
    %3153 = vmatprep.subr.bf16.mxu0 0
    %3154 = vmatpush1.bf16.xpose.msra.mxu0 0
    %3155 = vmatprep.subr.bf16.mxu0 0
    %3156 = vmatpush1.bf16.xpose.msra.mxu0 0
    %3157 = vmatprep.subr.bf16.mxu0 0
    %3158 = vmatpush1.bf16.xpose.msra.mxu0 0
    %3159 = vmatprep.subr.bf16.mxu0 0
    %3160 = vmatpush1.bf16.xpose.msra.mxu0 0
    %3161 = vmatprep.subr.bf16.mxu0 0
    %3162 = vmatpush1.bf16.xpose.msra.mxu0 0
    %3163 = vmatprep.subr.bf16.mxu0 0
    %3164 = vmatpush1.bf16.xpose.msra.mxu0 0
    %3165 = vmatprep.subr.bf16.mxu0 0
    %3166 = vmatpush1.bf16.xpose.msra.mxu0 0
    %3167 = vmatprep.subr.bf16.mxu0 0
    %3168 = vmatpush1.bf16.xpose.msra.mxu0 0
    %3169 = vmatprep.subr.bf16.mxu0 0
    %3170 = vmatpush1.bf16.xpose.msra.mxu0 0
    %3171 = vmatprep.subr.bf16.mxu0 0
    %3172 = vmatpush1.bf16.xpose.msra.mxu0 0
    %3173 = vmatprep.subr.bf16.mxu0 0
    %3174 = vmatpush1.bf16.xpose.msra.mxu0 0
    %3175 = vmatprep.subr.bf16.mxu0 0
    %3176 = vmatpush1.bf16.xpose.msra.mxu0 0
    %3177 = vmatprep.subr.bf16.mxu0 0
    %3178 = vmatpush1.bf16.xpose.msra.mxu0 0
    %3179 = vmatprep.mubr.bf16.mxu0 0
    %3180 = vmatmul.mubr.bf16.gmra.mrb[0].mxu0 %v3142
    %v3181 = vpop.f32.mrb[0].mxu0
    %v3182 = vadd.f32 %v431, %v3181
    %v3183 = vpop.f32.mrb[0].mxu0
    %v3184 = vpop.f32.mrb[0].mxu0
    %v3185 = vpop.f32.mrb[0].mxu0
    %3186 = vdwg.mxu0
    %3187 = vrot.lane.b32.xlu0 %v238, 104
    %v3188 = vpop.permute.xlu0 %3187
    %3189 = vrot.lane.b32.xlu0 %v322, 104
    %v3190 = vpop.permute.xlu0 %3189
    %v3192 = vsel %vm444, %v3188, 0
    %v3195 = vsel %vm444, %v3190, 0
    %3197 = vmatprep.subr.bf16.mxu0 0
    %3198 = vmatpush1.bf16.xpose.msra.mxu0 %v3195
    %3199 = vmatprep.subr.bf16.mxu0 0
    %3200 = vmatpush1.bf16.xpose.msra.mxu0 0
    %3201 = vmatprep.subr.bf16.mxu0 0
    %3202 = vmatpush1.bf16.xpose.msra.mxu0 0
    %3203 = vmatprep.subr.bf16.mxu0 0
    %3204 = vmatpush1.bf16.xpose.msra.mxu0 0
    %3205 = vmatprep.subr.bf16.mxu0 0
    %3206 = vmatpush1.bf16.xpose.msra.mxu0 0
    %3207 = vmatprep.subr.bf16.mxu0 0
    %3208 = vmatpush1.bf16.xpose.msra.mxu0 0
    %3209 = vmatprep.subr.bf16.mxu0 0
    %3210 = vmatpush1.bf16.xpose.msra.mxu0 0
    %3211 = vmatprep.subr.bf16.mxu0 0
    %3212 = vmatpush1.bf16.xpose.msra.mxu0 0
    %3213 = vmatprep.subr.bf16.mxu0 0
    %3214 = vmatpush1.bf16.xpose.msra.mxu0 0
    %3215 = vmatprep.subr.bf16.mxu0 0
    %3216 = vmatpush1.bf16.xpose.msra.mxu0 0
    %3217 = vmatprep.subr.bf16.mxu0 0
    %3218 = vmatpush1.bf16.xpose.msra.mxu0 0
    %3219 = vmatprep.subr.bf16.mxu0 0
    %3220 = vmatpush1.bf16.xpose.msra.mxu0 0
    %3221 = vmatprep.subr.bf16.mxu0 0
    %3222 = vmatpush1.bf16.xpose.msra.mxu0 0
    %3223 = vmatprep.subr.bf16.mxu0 0
    %3224 = vmatpush1.bf16.xpose.msra.mxu0 0
    %3225 = vmatprep.subr.bf16.mxu0 0
    %3226 = vmatpush1.bf16.xpose.msra.mxu0 0
    %3227 = vmatprep.subr.bf16.mxu0 0
    %3228 = vmatpush1.bf16.xpose.msra.mxu0 0
    %3229 = vmatprep.mubr.bf16.mxu0 0
    %3230 = vmatmul.mubr.bf16.gmra.mrb[0].mxu0 %v3192
    %v3231 = vpop.f32.mrb[0].mxu0
    %v3232 = vadd.f32 %v435, %v3231
    %v3233 = vpop.f32.mrb[0].mxu0
    %v3234 = vpop.f32.mrb[0].mxu0
    %v3235 = vpop.f32.mrb[0].mxu0
    %3236 = vdwg.mxu0
    %3237 = vrot.lane.b32.xlu0 %v239, 104
    %v3238 = vpop.permute.xlu0 %3237
    %3239 = vrot.lane.b32.xlu0 %v323, 104
    %v3240 = vpop.permute.xlu0 %3239
    %v3242 = vsel %vm444, %v3238, 0
    %v3245 = vsel %vm444, %v3240, 0
    %3247 = vmatprep.subr.bf16.mxu0 0
    %3248 = vmatpush1.bf16.xpose.msra.mxu0 %v3245
    %3249 = vmatprep.subr.bf16.mxu0 0
    %3250 = vmatpush1.bf16.xpose.msra.mxu0 0
    %3251 = vmatprep.subr.bf16.mxu0 0
    %3252 = vmatpush1.bf16.xpose.msra.mxu0 0
    %3253 = vmatprep.subr.bf16.mxu0 0
    %3254 = vmatpush1.bf16.xpose.msra.mxu0 0
    %3255 = vmatprep.subr.bf16.mxu0 0
    %3256 = vmatpush1.bf16.xpose.msra.mxu0 0
    %3257 = vmatprep.subr.bf16.mxu0 0
    %3258 = vmatpush1.bf16.xpose.msra.mxu0 0
    %3259 = vmatprep.subr.bf16.mxu0 0
    %3260 = vmatpush1.bf16.xpose.msra.mxu0 0
    %3261 = vmatprep.subr.bf16.mxu0 0
    %3262 = vmatpush1.bf16.xpose.msra.mxu0 0
    %3263 = vmatprep.subr.bf16.mxu0 0
    %3264 = vmatpush1.bf16.xpose.msra.mxu0 0
    %3265 = vmatprep.subr.bf16.mxu0 0
    %3266 = vmatpush1.bf16.xpose.msra.mxu0 0
    %3267 = vmatprep.subr.bf16.mxu0 0
    %3268 = vmatpush1.bf16.xpose.msra.mxu0 0
    %3269 = vmatprep.subr.bf16.mxu0 0
    %3270 = vmatpush1.bf16.xpose.msra.mxu0 0
    %3271 = vmatprep.subr.bf16.mxu0 0
    %3272 = vmatpush1.bf16.xpose.msra.mxu0 0
    %3273 = vmatprep.subr.bf16.mxu0 0
    %3274 = vmatpush1.bf16.xpose.msra.mxu0 0
    %3275 = vmatprep.subr.bf16.mxu0 0
    %3276 = vmatpush1.bf16.xpose.msra.mxu0 0
    %3277 = vmatprep.subr.bf16.mxu0 0
    %3278 = vmatpush1.bf16.xpose.msra.mxu0 0
    %3279 = vmatprep.mubr.bf16.mxu0 0
    %3280 = vmatmul.mubr.bf16.gmra.mrb[0].mxu0 %v3242
    %v3281 = vpop.f32.mrb[0].mxu0
    %v3282 = vadd.f32 %v439, %v3281
    %v3283 = vpop.f32.mrb[0].mxu0
    %v3284 = vpop.f32.mrb[0].mxu0
    %v3285 = vpop.f32.mrb[0].mxu0
    %3286 = vdwg.mxu0
    %v3287 = vsel %vm629, %v3132, -inf
    %3288 = vmax.xlane.f32.xlu0 %v3287
    %v3289 = vpop.xlane.xlu0 %3288
    %v3290 = vsel %vm629, %v3182, -inf
    %3291 = vmax.xlane.f32.xlu0 %v3290
    %v3292 = vpop.xlane.xlu0 %3291
    %v3293 = vsel %vm629, %v3232, -inf
    %3294 = vmax.xlane.f32.xlu0 %v3293
    %v3295 = vpop.xlane.xlu0 %3294
    %v3296 = vsel %vm629, %v3282, -inf
    %3297 = vmax.xlane.f32.xlu0 %v3296
    %v3298 = vpop.xlane.xlu0 %3297
    %v3299 = vsub.f32 %v3132, %v3289
    %v3300 = vsub.f32 %v3182, %v3292
    %v3301 = vsub.f32 %v3232, %v3295
    %v3302 = vsub.f32 %v3282, %v3298
    %v3303 = vmul.f32 %v3299, 1.442695
    %v3304 = vpow.pop %v3303
    %v3305 = vmul.f32 %v3300, 1.442695
    %v3306 = vpow.pop %v3305
    %v3307 = vmul.f32 %v3301, 1.442695
    %v3308 = vpow.pop %v3307
    %v3309 = vmul.f32 %v3302, 1.442695
    %v3310 = vpow.pop %v3309
    %v3311 = vsel %vm629, %v3304, 0.0
    %3312 = vadd.xlane.f32.xlu0 %v3311
    %v3313 = vpop.xlane.xlu0 %3312
    %v3314 = vsel %vm629, %v3306, 0.0
    %3315 = vadd.xlane.f32.xlu0 %v3314
    %v3316 = vpop.xlane.xlu0 %3315
    %v3317 = vsel %vm629, %v3308, 0.0
    %3318 = vadd.xlane.f32.xlu0 %v3317
    %v3319 = vpop.xlane.xlu0 %3318
    %v3320 = vsel %vm629, %v3310, 0.0
    %3321 = vadd.xlane.f32.xlu0 %v3320
    %v3322 = vpop.xlane.xlu0 %3321
    %v3323 = vrcp.pop %v3313
    %v3324 = vrcp.pop %v3316
    %v3325 = vrcp.pop %v3319
    %v3326 = vrcp.pop %v3322
    %v3327 = vmul.f32 %v3304, %v3323
    %v3328 = vmul.f32 %v3306, %v3324
    %v3329 = vmul.f32 %v3308, %v3325
    %v3330 = vmul.f32 %v3310, %v3326
    %v3331 = vpack.c.bf16 %v3327, %v3327
    %v3332 = vpack.c.bf16 %v3328, %v3328
    %v3333 = vpack.c.bf16 %v3329, %v3329
    %v3334 = vpack.c.bf16 %v3330, %v3330
    %3335 = vrot.lane.b32.xlu0 %v404, 104
    %v3336 = vpop.permute.xlu0 %3335
    %v3338 = vsel %vm629, %v3331, 0
    %v3341 = vsel %vm681, %v3336, 0
    %3343 = vmatprep.subr.bf16.mxu0 0
    %3344 = vmatpush1.bf16.msra.mxu0 %v3341
    %3345 = vmatprep.subr.bf16.mxu0 0
    %3346 = vmatpush1.bf16.msra.mxu0 0
    %3347 = vmatprep.subr.bf16.mxu0 0
    %3348 = vmatpush1.bf16.msra.mxu0 0
    %3349 = vmatprep.subr.bf16.mxu0 0
    %3350 = vmatpush1.bf16.msra.mxu0 0
    %3351 = vmatprep.subr.bf16.mxu0 0
    %3352 = vmatpush1.bf16.msra.mxu0 0
    %3353 = vmatprep.subr.bf16.mxu0 0
    %3354 = vmatpush1.bf16.msra.mxu0 0
    %3355 = vmatprep.subr.bf16.mxu0 0
    %3356 = vmatpush1.bf16.msra.mxu0 0
    %3357 = vmatprep.subr.bf16.mxu0 0
    %3358 = vmatpush1.bf16.msra.mxu0 0
    %3359 = vmatprep.subr.bf16.mxu0 0
    %3360 = vmatpush1.bf16.msra.mxu0 0
    %3361 = vmatprep.subr.bf16.mxu0 0
    %3362 = vmatpush1.bf16.msra.mxu0 0
    %3363 = vmatprep.subr.bf16.mxu0 0
    %3364 = vmatpush1.bf16.msra.mxu0 0
    %3365 = vmatprep.subr.bf16.mxu0 0
    %3366 = vmatpush1.bf16.msra.mxu0 0
    %3367 = vmatprep.subr.bf16.mxu0 0
    %3368 = vmatpush1.bf16.msra.mxu0 0
    %3369 = vmatprep.subr.bf16.mxu0 0
    %3370 = vmatpush1.bf16.msra.mxu0 0
    %3371 = vmatprep.subr.bf16.mxu0 0
    %3372 = vmatpush1.bf16.msra.mxu0 0
    %3373 = vmatprep.subr.bf16.mxu0 0
    %3374 = vmatpush1.bf16.msra.mxu0 0
    %3375 = vmatprep.mubr.bf16.mxu0 0
    %3376 = vmatmul.mubr.bf16.gmra.mrb[0].mxu0 %v3338
    %v3377 = vpop.f32.mrb[0].mxu0
    %v3378 = vadd.f32 0.0, %v3377
    %v3379 = vpop.f32.mrb[0].mxu0
    %v3380 = vpop.f32.mrb[0].mxu0
    %v3381 = vpop.f32.mrb[0].mxu0
    %3382 = vdwg.mxu0
    %3383 = vrot.lane.b32.xlu0 %v405, 104
    %v3384 = vpop.permute.xlu0 %3383
    %v3386 = vsel %vm629, %v3332, 0
    %v3389 = vsel %vm681, %v3384, 0
    %3391 = vmatprep.subr.bf16.mxu0 0
    %3392 = vmatpush1.bf16.msra.mxu0 %v3389
    %3393 = vmatprep.subr.bf16.mxu0 0
    %3394 = vmatpush1.bf16.msra.mxu0 0
    %3395 = vmatprep.subr.bf16.mxu0 0
    %3396 = vmatpush1.bf16.msra.mxu0 0
    %3397 = vmatprep.subr.bf16.mxu0 0
    %3398 = vmatpush1.bf16.msra.mxu0 0
    %3399 = vmatprep.subr.bf16.mxu0 0
    %3400 = vmatpush1.bf16.msra.mxu0 0
    %3401 = vmatprep.subr.bf16.mxu0 0
    %3402 = vmatpush1.bf16.msra.mxu0 0
    %3403 = vmatprep.subr.bf16.mxu0 0
    %3404 = vmatpush1.bf16.msra.mxu0 0
    %3405 = vmatprep.subr.bf16.mxu0 0
    %3406 = vmatpush1.bf16.msra.mxu0 0
    %3407 = vmatprep.subr.bf16.mxu0 0
    %3408 = vmatpush1.bf16.msra.mxu0 0
    %3409 = vmatprep.subr.bf16.mxu0 0
    %3410 = vmatpush1.bf16.msra.mxu0 0
    %3411 = vmatprep.subr.bf16.mxu0 0
    %3412 = vmatpush1.bf16.msra.mxu0 0
    %3413 = vmatprep.subr.bf16.mxu0 0
    %3414 = vmatpush1.bf16.msra.mxu0 0
    %3415 = vmatprep.subr.bf16.mxu0 0
    %3416 = vmatpush1.bf16.msra.mxu0 0
    %3417 = vmatprep.subr.bf16.mxu0 0
    %3418 = vmatpush1.bf16.msra.mxu0 0
    %3419 = vmatprep.subr.bf16.mxu0 0
    %3420 = vmatpush1.bf16.msra.mxu0 0
    %3421 = vmatprep.subr.bf16.mxu0 0
    %3422 = vmatpush1.bf16.msra.mxu0 0
    %3423 = vmatprep.mubr.bf16.mxu0 0
    %3424 = vmatmul.mubr.bf16.gmra.mrb[0].mxu0 %v3386
    %v3425 = vpop.f32.mrb[0].mxu0
    %v3426 = vadd.f32 0.0, %v3425
    %v3427 = vpop.f32.mrb[0].mxu0
    %v3428 = vpop.f32.mrb[0].mxu0
    %v3429 = vpop.f32.mrb[0].mxu0
    %3430 = vdwg.mxu0
    %3431 = vrot.lane.b32.xlu0 %v406, 104
    %v3432 = vpop.permute.xlu0 %3431
    %v3434 = vsel %vm629, %v3333, 0
    %v3437 = vsel %vm681, %v3432, 0
    %3439 = vmatprep.subr.bf16.mxu0 0
    %3440 = vmatpush1.bf16.msra.mxu0 %v3437
    %3441 = vmatprep.subr.bf16.mxu0 0
    %3442 = vmatpush1.bf16.msra.mxu0 0
    %3443 = vmatprep.subr.bf16.mxu0 0
    %3444 = vmatpush1.bf16.msra.mxu0 0
    %3445 = vmatprep.subr.bf16.mxu0 0
    %3446 = vmatpush1.bf16.msra.mxu0 0
    %3447 = vmatprep.subr.bf16.mxu0 0
    %3448 = vmatpush1.bf16.msra.mxu0 0
    %3449 = vmatprep.subr.bf16.mxu0 0
    %3450 = vmatpush1.bf16.msra.mxu0 0
    %3451 = vmatprep.subr.bf16.mxu0 0
    %3452 = vmatpush1.bf16.msra.mxu0 0
    %3453 = vmatprep.subr.bf16.mxu0 0
    %3454 = vmatpush1.bf16.msra.mxu0 0
    %3455 = vmatprep.subr.bf16.mxu0 0
    %3456 = vmatpush1.bf16.msra.mxu0 0
    %3457 = vmatprep.subr.bf16.mxu0 0
    %3458 = vmatpush1.bf16.msra.mxu0 0
    %3459 = vmatprep.subr.bf16.mxu0 0
    %3460 = vmatpush1.bf16.msra.mxu0 0
    %3461 = vmatprep.subr.bf16.mxu0 0
    %3462 = vmatpush1.bf16.msra.mxu0 0
    %3463 = vmatprep.subr.bf16.mxu0 0
    %3464 = vmatpush1.bf16.msra.mxu0 0
    %3465 = vmatprep.subr.bf16.mxu0 0
    %3466 = vmatpush1.bf16.msra.mxu0 0
    %3467 = vmatprep.subr.bf16.mxu0 0
    %3468 = vmatpush1.bf16.msra.mxu0 0
    %3469 = vmatprep.subr.bf16.mxu0 0
    %3470 = vmatpush1.bf16.msra.mxu0 0
    %3471 = vmatprep.mubr.bf16.mxu0 0
    %3472 = vmatmul.mubr.bf16.gmra.mrb[0].mxu0 %v3434
    %v3473 = vpop.f32.mrb[0].mxu0
    %v3474 = vadd.f32 0.0, %v3473
    %v3475 = vpop.f32.mrb[0].mxu0
    %v3476 = vpop.f32.mrb[0].mxu0
    %v3477 = vpop.f32.mrb[0].mxu0
    %3478 = vdwg.mxu0
    %3479 = vrot.lane.b32.xlu0 %v407, 104
    %v3480 = vpop.permute.xlu0 %3479
    %v3482 = vsel %vm629, %v3334, 0
    %v3485 = vsel %vm681, %v3480, 0
    %3487 = vmatprep.subr.bf16.mxu0 0
    %3488 = vmatpush1.bf16.msra.mxu0 %v3485
    %3489 = vmatprep.subr.bf16.mxu0 0
    %3490 = vmatpush1.bf16.msra.mxu0 0
    %3491 = vmatprep.subr.bf16.mxu0 0
    %3492 = vmatpush1.bf16.msra.mxu0 0
    %3493 = vmatprep.subr.bf16.mxu0 0
    %3494 = vmatpush1.bf16.msra.mxu0 0
    %3495 = vmatprep.subr.bf16.mxu0 0
    %3496 = vmatpush1.bf16.msra.mxu0 0
    %3497 = vmatprep.subr.bf16.mxu0 0
    %3498 = vmatpush1.bf16.msra.mxu0 0
    %3499 = vmatprep.subr.bf16.mxu0 0
    %3500 = vmatpush1.bf16.msra.mxu0 0
    %3501 = vmatprep.subr.bf16.mxu0 0
    %3502 = vmatpush1.bf16.msra.mxu0 0
    %3503 = vmatprep.subr.bf16.mxu0 0
    %3504 = vmatpush1.bf16.msra.mxu0 0
    %3505 = vmatprep.subr.bf16.mxu0 0
    %3506 = vmatpush1.bf16.msra.mxu0 0
    %3507 = vmatprep.subr.bf16.mxu0 0
    %3508 = vmatpush1.bf16.msra.mxu0 0
    %3509 = vmatprep.subr.bf16.mxu0 0
    %3510 = vmatpush1.bf16.msra.mxu0 0
    %3511 = vmatprep.subr.bf16.mxu0 0
    %3512 = vmatpush1.bf16.msra.mxu0 0
    %3513 = vmatprep.subr.bf16.mxu0 0
    %3514 = vmatpush1.bf16.msra.mxu0 0
    %3515 = vmatprep.subr.bf16.mxu0 0
    %3516 = vmatpush1.bf16.msra.mxu0 0
    %3517 = vmatprep.subr.bf16.mxu0 0
    %3518 = vmatpush1.bf16.msra.mxu0 0
    %3519 = vmatprep.mubr.bf16.mxu0 0
    %3520 = vmatmul.mubr.bf16.gmra.mrb[0].mxu0 %v3482
    %v3521 = vpop.f32.mrb[0].mxu0
    %v3522 = vadd.f32 0.0, %v3521
    %v3523 = vpop.f32.mrb[0].mxu0
    %v3524 = vpop.f32.mrb[0].mxu0
    %v3525 = vpop.f32.mrb[0].mxu0
    %3526 = vdwg.mxu0
    %v3527 = vpack.c.bf16 %v3378, %v3378
    %v3528 = vpack.c.bf16 %v3426, %v3426
    %v3529 = vpack.c.bf16 %v3474, %v3474
    %v3530 = vpack.c.bf16 %v3522, %v3522
    %3531 = vrot.lane.b32.xlu0 %v236, 100
    %v3532 = vpop.permute.xlu0 %3531
    %3533 = vrot.lane.b32.xlu0 %v320, 100
    %v3534 = vpop.permute.xlu0 %3533
    %v3536 = vsel %vm444, %v3532, 0
    %v3539 = vsel %vm444, %v3534, 0
    %3541 = vmatprep.subr.bf16.mxu0 0
    %3542 = vmatpush1.bf16.xpose.msra.mxu0 %v3539
    %3543 = vmatprep.subr.bf16.mxu0 0
    %3544 = vmatpush1.bf16.xpose.msra.mxu0 0
    %3545 = vmatprep.subr.bf16.mxu0 0
    %3546 = vmatpush1.bf16.xpose.msra.mxu0 0
    %3547 = vmatprep.subr.bf16.mxu0 0
    %3548 = vmatpush1.bf16.xpose.msra.mxu0 0
    %3549 = vmatprep.subr.bf16.mxu0 0
    %3550 = vmatpush1.bf16.xpose.msra.mxu0 0
    %3551 = vmatprep.subr.bf16.mxu0 0
    %3552 = vmatpush1.bf16.xpose.msra.mxu0 0
    %3553 = vmatprep.subr.bf16.mxu0 0
    %3554 = vmatpush1.bf16.xpose.msra.mxu0 0
    %3555 = vmatprep.subr.bf16.mxu0 0
    %3556 = vmatpush1.bf16.xpose.msra.mxu0 0
    %3557 = vmatprep.subr.bf16.mxu0 0
    %3558 = vmatpush1.bf16.xpose.msra.mxu0 0
    %3559 = vmatprep.subr.bf16.mxu0 0
    %3560 = vmatpush1.bf16.xpose.msra.mxu0 0
    %3561 = vmatprep.subr.bf16.mxu0 0
    %3562 = vmatpush1.bf16.xpose.msra.mxu0 0
    %3563 = vmatprep.subr.bf16.mxu0 0
    %3564 = vmatpush1.bf16.xpose.msra.mxu0 0
    %3565 = vmatprep.subr.bf16.mxu0 0
    %3566 = vmatpush1.bf16.xpose.msra.mxu0 0
    %3567 = vmatprep.subr.bf16.mxu0 0
    %3568 = vmatpush1.bf16.xpose.msra.mxu0 0
    %3569 = vmatprep.subr.bf16.mxu0 0
    %3570 = vmatpush1.bf16.xpose.msra.mxu0 0
    %3571 = vmatprep.subr.bf16.mxu0 0
    %3572 = vmatpush1.bf16.xpose.msra.mxu0 0
    %3573 = vmatprep.mubr.bf16.mxu0 0
    %3574 = vmatmul.mubr.bf16.gmra.mrb[0].mxu0 %v3536
    %v3575 = vpop.f32.mrb[0].mxu0
    %v3576 = vadd.f32 %v427, %v3575
    %v3577 = vpop.f32.mrb[0].mxu0
    %v3578 = vpop.f32.mrb[0].mxu0
    %v3579 = vpop.f32.mrb[0].mxu0
    %3580 = vdwg.mxu0
    %3581 = vrot.lane.b32.xlu0 %v237, 100
    %v3582 = vpop.permute.xlu0 %3581
    %3583 = vrot.lane.b32.xlu0 %v321, 100
    %v3584 = vpop.permute.xlu0 %3583
    %v3586 = vsel %vm444, %v3582, 0
    %v3589 = vsel %vm444, %v3584, 0
    %3591 = vmatprep.subr.bf16.mxu0 0
    %3592 = vmatpush1.bf16.xpose.msra.mxu0 %v3589
    %3593 = vmatprep.subr.bf16.mxu0 0
    %3594 = vmatpush1.bf16.xpose.msra.mxu0 0
    %3595 = vmatprep.subr.bf16.mxu0 0
    %3596 = vmatpush1.bf16.xpose.msra.mxu0 0
    %3597 = vmatprep.subr.bf16.mxu0 0
    %3598 = vmatpush1.bf16.xpose.msra.mxu0 0
    %3599 = vmatprep.subr.bf16.mxu0 0
    %3600 = vmatpush1.bf16.xpose.msra.mxu0 0
    %3601 = vmatprep.subr.bf16.mxu0 0
    %3602 = vmatpush1.bf16.xpose.msra.mxu0 0
    %3603 = vmatprep.subr.bf16.mxu0 0
    %3604 = vmatpush1.bf16.xpose.msra.mxu0 0
    %3605 = vmatprep.subr.bf16.mxu0 0
    %3606 = vmatpush1.bf16.xpose.msra.mxu0 0
    %3607 = vmatprep.subr.bf16.mxu0 0
    %3608 = vmatpush1.bf16.xpose.msra.mxu0 0
    %3609 = vmatprep.subr.bf16.mxu0 0
    %3610 = vmatpush1.bf16.xpose.msra.mxu0 0
    %3611 = vmatprep.subr.bf16.mxu0 0
    %3612 = vmatpush1.bf16.xpose.msra.mxu0 0
    %3613 = vmatprep.subr.bf16.mxu0 0
    %3614 = vmatpush1.bf16.xpose.msra.mxu0 0
    %3615 = vmatprep.subr.bf16.mxu0 0
    %3616 = vmatpush1.bf16.xpose.msra.mxu0 0
    %3617 = vmatprep.subr.bf16.mxu0 0
    %3618 = vmatpush1.bf16.xpose.msra.mxu0 0
    %3619 = vmatprep.subr.bf16.mxu0 0
    %3620 = vmatpush1.bf16.xpose.msra.mxu0 0
    %3621 = vmatprep.subr.bf16.mxu0 0
    %3622 = vmatpush1.bf16.xpose.msra.mxu0 0
    %3623 = vmatprep.mubr.bf16.mxu0 0
    %3624 = vmatmul.mubr.bf16.gmra.mrb[0].mxu0 %v3586
    %v3625 = vpop.f32.mrb[0].mxu0
    %v3626 = vadd.f32 %v431, %v3625
    %v3627 = vpop.f32.mrb[0].mxu0
    %v3628 = vpop.f32.mrb[0].mxu0
    %v3629 = vpop.f32.mrb[0].mxu0
    %3630 = vdwg.mxu0
    %3631 = vrot.lane.b32.xlu0 %v238, 100
    %v3632 = vpop.permute.xlu0 %3631
    %3633 = vrot.lane.b32.xlu0 %v322, 100
    %v3634 = vpop.permute.xlu0 %3633
    %v3636 = vsel %vm444, %v3632, 0
    %v3639 = vsel %vm444, %v3634, 0
    %3641 = vmatprep.subr.bf16.mxu0 0
    %3642 = vmatpush1.bf16.xpose.msra.mxu0 %v3639
    %3643 = vmatprep.subr.bf16.mxu0 0
    %3644 = vmatpush1.bf16.xpose.msra.mxu0 0
    %3645 = vmatprep.subr.bf16.mxu0 0
    %3646 = vmatpush1.bf16.xpose.msra.mxu0 0
    %3647 = vmatprep.subr.bf16.mxu0 0
    %3648 = vmatpush1.bf16.xpose.msra.mxu0 0
    %3649 = vmatprep.subr.bf16.mxu0 0
    %3650 = vmatpush1.bf16.xpose.msra.mxu0 0
    %3651 = vmatprep.subr.bf16.mxu0 0
    %3652 = vmatpush1.bf16.xpose.msra.mxu0 0
    %3653 = vmatprep.subr.bf16.mxu0 0
    %3654 = vmatpush1.bf16.xpose.msra.mxu0 0
    %3655 = vmatprep.subr.bf16.mxu0 0
    %3656 = vmatpush1.bf16.xpose.msra.mxu0 0
    %3657 = vmatprep.subr.bf16.mxu0 0
    %3658 = vmatpush1.bf16.xpose.msra.mxu0 0
    %3659 = vmatprep.subr.bf16.mxu0 0
    %3660 = vmatpush1.bf16.xpose.msra.mxu0 0
    %3661 = vmatprep.subr.bf16.mxu0 0
    %3662 = vmatpush1.bf16.xpose.msra.mxu0 0
    %3663 = vmatprep.subr.bf16.mxu0 0
    %3664 = vmatpush1.bf16.xpose.msra.mxu0 0
    %3665 = vmatprep.subr.bf16.mxu0 0
    %3666 = vmatpush1.bf16.xpose.msra.mxu0 0
    %3667 = vmatprep.subr.bf16.mxu0 0
    %3668 = vmatpush1.bf16.xpose.msra.mxu0 0
    %3669 = vmatprep.subr.bf16.mxu0 0
    %3670 = vmatpush1.bf16.xpose.msra.mxu0 0
    %3671 = vmatprep.subr.bf16.mxu0 0
    %3672 = vmatpush1.bf16.xpose.msra.mxu0 0
    %3673 = vmatprep.mubr.bf16.mxu0 0
    %3674 = vmatmul.mubr.bf16.gmra.mrb[0].mxu0 %v3636
    %v3675 = vpop.f32.mrb[0].mxu0
    %v3676 = vadd.f32 %v435, %v3675
    %v3677 = vpop.f32.mrb[0].mxu0
    %v3678 = vpop.f32.mrb[0].mxu0
    %v3679 = vpop.f32.mrb[0].mxu0
    %3680 = vdwg.mxu0
    %3681 = vrot.lane.b32.xlu0 %v239, 100
    %v3682 = vpop.permute.xlu0 %3681
    %3683 = vrot.lane.b32.xlu0 %v323, 100
    %v3684 = vpop.permute.xlu0 %3683
    %v3686 = vsel %vm444, %v3682, 0
    %v3689 = vsel %vm444, %v3684, 0
    %3691 = vmatprep.subr.bf16.mxu0 0
    %3692 = vmatpush1.bf16.xpose.msra.mxu0 %v3689
    %3693 = vmatprep.subr.bf16.mxu0 0
    %3694 = vmatpush1.bf16.xpose.msra.mxu0 0
    %3695 = vmatprep.subr.bf16.mxu0 0
    %3696 = vmatpush1.bf16.xpose.msra.mxu0 0
    %3697 = vmatprep.subr.bf16.mxu0 0
    %3698 = vmatpush1.bf16.xpose.msra.mxu0 0
    %3699 = vmatprep.subr.bf16.mxu0 0
    %3700 = vmatpush1.bf16.xpose.msra.mxu0 0
    %3701 = vmatprep.subr.bf16.mxu0 0
    %3702 = vmatpush1.bf16.xpose.msra.mxu0 0
    %3703 = vmatprep.subr.bf16.mxu0 0
    %3704 = vmatpush1.bf16.xpose.msra.mxu0 0
    %3705 = vmatprep.subr.bf16.mxu0 0
    %3706 = vmatpush1.bf16.xpose.msra.mxu0 0
    %3707 = vmatprep.subr.bf16.mxu0 0
    %3708 = vmatpush1.bf16.xpose.msra.mxu0 0
    %3709 = vmatprep.subr.bf16.mxu0 0
    %3710 = vmatpush1.bf16.xpose.msra.mxu0 0
    %3711 = vmatprep.subr.bf16.mxu0 0
    %3712 = vmatpush1.bf16.xpose.msra.mxu0 0
    %3713 = vmatprep.subr.bf16.mxu0 0
    %3714 = vmatpush1.bf16.xpose.msra.mxu0 0
    %3715 = vmatprep.subr.bf16.mxu0 0
    %3716 = vmatpush1.bf16.xpose.msra.mxu0 0
    %3717 = vmatprep.subr.bf16.mxu0 0
    %3718 = vmatpush1.bf16.xpose.msra.mxu0 0
    %3719 = vmatprep.subr.bf16.mxu0 0
    %3720 = vmatpush1.bf16.xpose.msra.mxu0 0
    %3721 = vmatprep.subr.bf16.mxu0 0
    %3722 = vmatpush1.bf16.xpose.msra.mxu0 0
    %3723 = vmatprep.mubr.bf16.mxu0 0
    %3724 = vmatmul.mubr.bf16.gmra.mrb[0].mxu0 %v3686
    %v3725 = vpop.f32.mrb[0].mxu0
    %v3726 = vadd.f32 %v439, %v3725
    %v3727 = vpop.f32.mrb[0].mxu0
    %v3728 = vpop.f32.mrb[0].mxu0
    %v3729 = vpop.f32.mrb[0].mxu0
    %3730 = vdwg.mxu0
    %v3731 = vsel %vm629, %v3576, -inf
    %3732 = vmax.xlane.f32.xlu0 %v3731
    %v3733 = vpop.xlane.xlu0 %3732
    %v3734 = vsel %vm629, %v3626, -inf
    %3735 = vmax.xlane.f32.xlu0 %v3734
    %v3736 = vpop.xlane.xlu0 %3735
    %v3737 = vsel %vm629, %v3676, -inf
    %3738 = vmax.xlane.f32.xlu0 %v3737
    %v3739 = vpop.xlane.xlu0 %3738
    %v3740 = vsel %vm629, %v3726, -inf
    %3741 = vmax.xlane.f32.xlu0 %v3740
    %v3742 = vpop.xlane.xlu0 %3741
    %v3743 = vsub.f32 %v3576, %v3733
    %v3744 = vsub.f32 %v3626, %v3736
    %v3745 = vsub.f32 %v3676, %v3739
    %v3746 = vsub.f32 %v3726, %v3742
    %v3747 = vmul.f32 %v3743, 1.442695
    %v3748 = vpow.pop %v3747
    %v3749 = vmul.f32 %v3744, 1.442695
    %v3750 = vpow.pop %v3749
    %v3751 = vmul.f32 %v3745, 1.442695
    %v3752 = vpow.pop %v3751
    %v3753 = vmul.f32 %v3746, 1.442695
    %v3754 = vpow.pop %v3753
    %v3755 = vsel %vm629, %v3748, 0.0
    %3756 = vadd.xlane.f32.xlu0 %v3755
    %v3757 = vpop.xlane.xlu0 %3756
    %v3758 = vsel %vm629, %v3750, 0.0
    %3759 = vadd.xlane.f32.xlu0 %v3758
    %v3760 = vpop.xlane.xlu0 %3759
    %v3761 = vsel %vm629, %v3752, 0.0
    %3762 = vadd.xlane.f32.xlu0 %v3761
    %v3763 = vpop.xlane.xlu0 %3762
    %v3764 = vsel %vm629, %v3754, 0.0
    %3765 = vadd.xlane.f32.xlu0 %v3764
    %v3766 = vpop.xlane.xlu0 %3765
    %v3767 = vrcp.pop %v3757
    %v3768 = vrcp.pop %v3760
    %v3769 = vrcp.pop %v3763
    %v3770 = vrcp.pop %v3766
    %v3771 = vmul.f32 %v3748, %v3767
    %v3772 = vmul.f32 %v3750, %v3768
    %v3773 = vmul.f32 %v3752, %v3769
    %v3774 = vmul.f32 %v3754, %v3770
    %v3775 = vpack.c.bf16 %v3771, %v3771
    %v3776 = vpack.c.bf16 %v3772, %v3772
    %v3777 = vpack.c.bf16 %v3773, %v3773
    %v3778 = vpack.c.bf16 %v3774, %v3774
    %3779 = vrot.lane.b32.xlu0 %v404, 100
    %v3780 = vpop.permute.xlu0 %3779
    %v3782 = vsel %vm629, %v3775, 0
    %v3785 = vsel %vm681, %v3780, 0
    %3787 = vmatprep.subr.bf16.mxu0 0
    %3788 = vmatpush1.bf16.msra.mxu0 %v3785
    %3789 = vmatprep.subr.bf16.mxu0 0
    %3790 = vmatpush1.bf16.msra.mxu0 0
    %3791 = vmatprep.subr.bf16.mxu0 0
    %3792 = vmatpush1.bf16.msra.mxu0 0
    %3793 = vmatprep.subr.bf16.mxu0 0
    %3794 = vmatpush1.bf16.msra.mxu0 0
    %3795 = vmatprep.subr.bf16.mxu0 0
    %3796 = vmatpush1.bf16.msra.mxu0 0
    %3797 = vmatprep.subr.bf16.mxu0 0
    %3798 = vmatpush1.bf16.msra.mxu0 0
    %3799 = vmatprep.subr.bf16.mxu0 0
    %3800 = vmatpush1.bf16.msra.mxu0 0
    %3801 = vmatprep.subr.bf16.mxu0 0
    %3802 = vmatpush1.bf16.msra.mxu0 0
    %3803 = vmatprep.subr.bf16.mxu0 0
    %3804 = vmatpush1.bf16.msra.mxu0 0
    %3805 = vmatprep.subr.bf16.mxu0 0
    %3806 = vmatpush1.bf16.msra.mxu0 0
    %3807 = vmatprep.subr.bf16.mxu0 0
    %3808 = vmatpush1.bf16.msra.mxu0 0
    %3809 = vmatprep.subr.bf16.mxu0 0
    %3810 = vmatpush1.bf16.msra.mxu0 0
    %3811 = vmatprep.subr.bf16.mxu0 0
    %3812 = vmatpush1.bf16.msra.mxu0 0
    %3813 = vmatprep.subr.bf16.mxu0 0
    %3814 = vmatpush1.bf16.msra.mxu0 0
    %3815 = vmatprep.subr.bf16.mxu0 0
    %3816 = vmatpush1.bf16.msra.mxu0 0
    %3817 = vmatprep.subr.bf16.mxu0 0
    %3818 = vmatpush1.bf16.msra.mxu0 0
    %3819 = vmatprep.mubr.bf16.mxu0 0
    %3820 = vmatmul.mubr.bf16.gmra.mrb[0].mxu0 %v3782
    %v3821 = vpop.f32.mrb[0].mxu0
    %v3822 = vadd.f32 0.0, %v3821
    %v3823 = vpop.f32.mrb[0].mxu0
    %v3824 = vpop.f32.mrb[0].mxu0
    %v3825 = vpop.f32.mrb[0].mxu0
    %3826 = vdwg.mxu0
    %3827 = vrot.lane.b32.xlu0 %v405, 100
    %v3828 = vpop.permute.xlu0 %3827
    %v3830 = vsel %vm629, %v3776, 0
    %v3833 = vsel %vm681, %v3828, 0
    %3835 = vmatprep.subr.bf16.mxu0 0
    %3836 = vmatpush1.bf16.msra.mxu0 %v3833
    %3837 = vmatprep.subr.bf16.mxu0 0
    %3838 = vmatpush1.bf16.msra.mxu0 0
    %3839 = vmatprep.subr.bf16.mxu0 0
    %3840 = vmatpush1.bf16.msra.mxu0 0
    %3841 = vmatprep.subr.bf16.mxu0 0
    %3842 = vmatpush1.bf16.msra.mxu0 0
    %3843 = vmatprep.subr.bf16.mxu0 0
    %3844 = vmatpush1.bf16.msra.mxu0 0
    %3845 = vmatprep.subr.bf16.mxu0 0
    %3846 = vmatpush1.bf16.msra.mxu0 0
    %3847 = vmatprep.subr.bf16.mxu0 0
    %3848 = vmatpush1.bf16.msra.mxu0 0
    %3849 = vmatprep.subr.bf16.mxu0 0
    %3850 = vmatpush1.bf16.msra.mxu0 0
    %3851 = vmatprep.subr.bf16.mxu0 0
    %3852 = vmatpush1.bf16.msra.mxu0 0
    %3853 = vmatprep.subr.bf16.mxu0 0
    %3854 = vmatpush1.bf16.msra.mxu0 0
    %3855 = vmatprep.subr.bf16.mxu0 0
    %3856 = vmatpush1.bf16.msra.mxu0 0
    %3857 = vmatprep.subr.bf16.mxu0 0
    %3858 = vmatpush1.bf16.msra.mxu0 0
    %3859 = vmatprep.subr.bf16.mxu0 0
    %3860 = vmatpush1.bf16.msra.mxu0 0
    %3861 = vmatprep.subr.bf16.mxu0 0
    %3862 = vmatpush1.bf16.msra.mxu0 0
    %3863 = vmatprep.subr.bf16.mxu0 0
    %3864 = vmatpush1.bf16.msra.mxu0 0
    %3865 = vmatprep.subr.bf16.mxu0 0
    %3866 = vmatpush1.bf16.msra.mxu0 0
    %3867 = vmatprep.mubr.bf16.mxu0 0
    %3868 = vmatmul.mubr.bf16.gmra.mrb[0].mxu0 %v3830
    %v3869 = vpop.f32.mrb[0].mxu0
    %v3870 = vadd.f32 0.0, %v3869
    %v3871 = vpop.f32.mrb[0].mxu0
    %v3872 = vpop.f32.mrb[0].mxu0
    %v3873 = vpop.f32.mrb[0].mxu0
    %3874 = vdwg.mxu0
    %3875 = vrot.lane.b32.xlu0 %v406, 100
    %v3876 = vpop.permute.xlu0 %3875
    %v3878 = vsel %vm629, %v3777, 0
    %v3881 = vsel %vm681, %v3876, 0
    %3883 = vmatprep.subr.bf16.mxu0 0
    %3884 = vmatpush1.bf16.msra.mxu0 %v3881
    %3885 = vmatprep.subr.bf16.mxu0 0
    %3886 = vmatpush1.bf16.msra.mxu0 0
    %3887 = vmatprep.subr.bf16.mxu0 0
    %3888 = vmatpush1.bf16.msra.mxu0 0
    %3889 = vmatprep.subr.bf16.mxu0 0
    %3890 = vmatpush1.bf16.msra.mxu0 0
    %3891 = vmatprep.subr.bf16.mxu0 0
    %3892 = vmatpush1.bf16.msra.mxu0 0
    %3893 = vmatprep.subr.bf16.mxu0 0
    %3894 = vmatpush1.bf16.msra.mxu0 0
    %3895 = vmatprep.subr.bf16.mxu0 0
    %3896 = vmatpush1.bf16.msra.mxu0 0
    %3897 = vmatprep.subr.bf16.mxu0 0
    %3898 = vmatpush1.bf16.msra.mxu0 0
    %3899 = vmatprep.subr.bf16.mxu0 0
    %3900 = vmatpush1.bf16.msra.mxu0 0
    %3901 = vmatprep.subr.bf16.mxu0 0
    %3902 = vmatpush1.bf16.msra.mxu0 0
    %3903 = vmatprep.subr.bf16.mxu0 0
    %3904 = vmatpush1.bf16.msra.mxu0 0
    %3905 = vmatprep.subr.bf16.mxu0 0
    %3906 = vmatpush1.bf16.msra.mxu0 0
    %3907 = vmatprep.subr.bf16.mxu0 0
    %3908 = vmatpush1.bf16.msra.mxu0 0
    %3909 = vmatprep.subr.bf16.mxu0 0
    %3910 = vmatpush1.bf16.msra.mxu0 0
    %3911 = vmatprep.subr.bf16.mxu0 0
    %3912 = vmatpush1.bf16.msra.mxu0 0
    %3913 = vmatprep.subr.bf16.mxu0 0
    %3914 = vmatpush1.bf16.msra.mxu0 0
    %3915 = vmatprep.mubr.bf16.mxu0 0
    %3916 = vmatmul.mubr.bf16.gmra.mrb[0].mxu0 %v3878
    %v3917 = vpop.f32.mrb[0].mxu0
    %v3918 = vadd.f32 0.0, %v3917
    %v3919 = vpop.f32.mrb[0].mxu0
    %v3920 = vpop.f32.mrb[0].mxu0
    %v3921 = vpop.f32.mrb[0].mxu0
    %3922 = vdwg.mxu0
    %3923 = vrot.lane.b32.xlu0 %v407, 100
    %v3924 = vpop.permute.xlu0 %3923
    %v3926 = vsel %vm629, %v3778, 0
    %v3929 = vsel %vm681, %v3924, 0
    %3931 = vmatprep.subr.bf16.mxu0 0
    %3932 = vmatpush1.bf16.msra.mxu0 %v3929
    %3933 = vmatprep.subr.bf16.mxu0 0
    %3934 = vmatpush1.bf16.msra.mxu0 0
    %3935 = vmatprep.subr.bf16.mxu0 0
    %3936 = vmatpush1.bf16.msra.mxu0 0
    %3937 = vmatprep.subr.bf16.mxu0 0
    %3938 = vmatpush1.bf16.msra.mxu0 0
    %3939 = vmatprep.subr.bf16.mxu0 0
    %3940 = vmatpush1.bf16.msra.mxu0 0
    %3941 = vmatprep.subr.bf16.mxu0 0
    %3942 = vmatpush1.bf16.msra.mxu0 0
    %3943 = vmatprep.subr.bf16.mxu0 0
    %3944 = vmatpush1.bf16.msra.mxu0 0
    %3945 = vmatprep.subr.bf16.mxu0 0
    %3946 = vmatpush1.bf16.msra.mxu0 0
    %3947 = vmatprep.subr.bf16.mxu0 0
    %3948 = vmatpush1.bf16.msra.mxu0 0
    %3949 = vmatprep.subr.bf16.mxu0 0
    %3950 = vmatpush1.bf16.msra.mxu0 0
    %3951 = vmatprep.subr.bf16.mxu0 0
    %3952 = vmatpush1.bf16.msra.mxu0 0
    %3953 = vmatprep.subr.bf16.mxu0 0
    %3954 = vmatpush1.bf16.msra.mxu0 0
    %3955 = vmatprep.subr.bf16.mxu0 0
    %3956 = vmatpush1.bf16.msra.mxu0 0
    %3957 = vmatprep.subr.bf16.mxu0 0
    %3958 = vmatpush1.bf16.msra.mxu0 0
    %3959 = vmatprep.subr.bf16.mxu0 0
    %3960 = vmatpush1.bf16.msra.mxu0 0
    %3961 = vmatprep.subr.bf16.mxu0 0
    %3962 = vmatpush1.bf16.msra.mxu0 0
    %3963 = vmatprep.mubr.bf16.mxu0 0
    %3964 = vmatmul.mubr.bf16.gmra.mrb[0].mxu0 %v3926
    %v3965 = vpop.f32.mrb[0].mxu0
    %v3966 = vadd.f32 0.0, %v3965
    %v3967 = vpop.f32.mrb[0].mxu0
    %v3968 = vpop.f32.mrb[0].mxu0
    %v3969 = vpop.f32.mrb[0].mxu0
    %3970 = vdwg.mxu0
    %v3971 = vpack.c.bf16 %v3822, %v3822
    %v3972 = vpack.c.bf16 %v3870, %v3870
    %v3973 = vpack.c.bf16 %v3918, %v3918
    %v3974 = vpack.c.bf16 %v3966, %v3966
    %3979 = vrot.lane.b32.xlu0 %v1307, 4
    %v3980 = vpop.permute.xlu0 %3979
    %3981 = vrot.lane.b32.xlu0 %v1308, 4
    %v3982 = vpop.permute.xlu0 %3981
    %3983 = vrot.lane.b32.xlu0 %v1309, 4
    %v3984 = vpop.permute.xlu0 %3983
    %3985 = vrot.lane.b32.xlu0 %v1310, 4
    %v3986 = vpop.permute.xlu0 %3985
    %3991 = vrot.lane.b32.xlu0 %v1751, 8
    %v3992 = vpop.permute.xlu0 %3991
    %3993 = vrot.lane.b32.xlu0 %v1752, 8
    %v3994 = vpop.permute.xlu0 %3993
    %3995 = vrot.lane.b32.xlu0 %v1753, 8
    %v3996 = vpop.permute.xlu0 %3995
    %3997 = vrot.lane.b32.xlu0 %v1754, 8
    %v3998 = vpop.permute.xlu0 %3997
    %4003 = vrot.lane.b32.xlu0 %v2195, 12
    %v4004 = vpop.permute.xlu0 %4003
    %4005 = vrot.lane.b32.xlu0 %v2196, 12
    %v4006 = vpop.permute.xlu0 %4005
    %4007 = vrot.lane.b32.xlu0 %v2197, 12
    %v4008 = vpop.permute.xlu0 %4007
    %4009 = vrot.lane.b32.xlu0 %v2198, 12
    %v4010 = vpop.permute.xlu0 %4009
    %4015 = vrot.lane.b32.xlu0 %v2639, 16
    %v4016 = vpop.permute.xlu0 %4015
    %4017 = vrot.lane.b32.xlu0 %v2640, 16
    %v4018 = vpop.permute.xlu0 %4017
    %4019 = vrot.lane.b32.xlu0 %v2641, 16
    %v4020 = vpop.permute.xlu0 %4019
    %4021 = vrot.lane.b32.xlu0 %v2642, 16
    %v4022 = vpop.permute.xlu0 %4021
    %4027 = vrot.lane.b32.xlu0 %v3083, 20
    %v4028 = vpop.permute.xlu0 %4027
    %4029 = vrot.lane.b32.xlu0 %v3084, 20
    %v4030 = vpop.permute.xlu0 %4029
    %4031 = vrot.lane.b32.xlu0 %v3085, 20
    %v4032 = vpop.permute.xlu0 %4031
    %4033 = vrot.lane.b32.xlu0 %v3086, 20
    %v4034 = vpop.permute.xlu0 %4033
    %4039 = vrot.lane.b32.xlu0 %v3527, 24
    %v4040 = vpop.permute.xlu0 %4039
    %4041 = vrot.lane.b32.xlu0 %v3528, 24
    %v4042 = vpop.permute.xlu0 %4041
    %4043 = vrot.lane.b32.xlu0 %v3529, 24
    %v4044 = vpop.permute.xlu0 %4043
    %4045 = vrot.lane.b32.xlu0 %v3530, 24
    %v4046 = vpop.permute.xlu0 %4045
    %4051 = vrot.lane.b32.xlu0 %v3971, 28
    %v4052 = vpop.permute.xlu0 %4051
    %4053 = vrot.lane.b32.xlu0 %v3972, 28
    %v4054 = vpop.permute.xlu0 %4053
    %4055 = vrot.lane.b32.xlu0 %v3973, 28
    %v4056 = vpop.permute.xlu0 %4055
    %4057 = vrot.lane.b32.xlu0 %v3974, 28
    %v4058 = vpop.permute.xlu0 %4057
    %v4061 = vsel %vm444, %v863, %v3980
    %v4064 = vsel %vm444, %v864, %v3982
    %v4067 = vsel %vm444, %v865, %v3984
    %v4070 = vsel %vm444, %v866, %v3986
    %v4072 = vsel %vm629, %v4061, %v3992
    %v4074 = vsel %vm629, %v4064, %v3994
    %v4076 = vsel %vm629, %v4067, %v3996
    %v4078 = vsel %vm629, %v4070, %v3998
    %vm4079 = vcmask 97280
    %v4081 = vsel %vm4079, %v4072, %v4004
    %v4083 = vsel %vm4079, %v4074, %v4006
    %v4085 = vsel %vm4079, %v4076, %v4008
    %v4087 = vsel %vm4079, %v4078, %v4010
    %vm4088 = vcmask 130048
    %v4090 = vsel %vm4088, %v4081, %v4016
    %v4092 = vsel %vm4088, %v4083, %v4018
    %v4094 = vsel %vm4088, %v4085, %v4020
    %v4096 = vsel %vm4088, %v4087, %v4022
    %vm4097 = vcmask 162816
    %v4099 = vsel %vm4097, %v4090, %v4028
    %v4101 = vsel %vm4097, %v4092, %v4030
    %v4103 = vsel %vm4097, %v4094, %v4032
    %v4105 = vsel %vm4097, %v4096, %v4034
    %vm4106 = vcmask 195584
    %v4108 = vsel %vm4106, %v4099, %v4040
    %v4110 = vsel %vm4106, %v4101, %v4042
    %v4112 = vsel %vm4106, %v4103, %v4044
    %v4114 = vsel %vm4106, %v4105, %v4046
    %vm4115 = vcmask 228352
    %v4117 = vsel %vm4115, %v4108, %v4052
    %v4119 = vsel %vm4115, %v4110, %v4054
    %v4121 = vsel %vm4115, %v4112, %v4056
    %v4123 = vsel %vm4115, %v4114, %v4058
    %v4124 = vld [vmem:[#allocation10] sm:$0xf]
    %v4125 = vld [vmem:[#allocation10 + $0x4] sm:$0xf]
    %v4126 = vld [vmem:[#allocation10 + $0x8] sm:$0xf]
    %v4127 = vld [vmem:[#allocation10 + $0xc] sm:$0xf]
    %v4128 = vld [vmem:[#allocation11] sm:$0x1]
    %v4130 = vlaneseq
    %v4131 = vshrl.u32 %v4130, 7
    %v4132 = vsub.s32 0, %v4131
    %v4133 = vrot.slane %v4128, %v4132
    %v4139 = vunpack.c.l.b16 %v4117
    %v4140 = vunpack.c.l.b16 %v4119
    %v4141 = vunpack.c.l.b16 %v4121
    %v4142 = vunpack.c.l.b16 %v4123
    %v4143 = vpack.c.b16 %v4140, %v4139
    %v4144 = vpack.c.b16 %v4142, %v4141
    %v4149 = vunpack.c.l.b16 %v4124
    %v4150 = vunpack.c.l.b16 %v4125
    %v4151 = vunpack.c.l.b16 %v4126
    %v4152 = vunpack.c.l.b16 %v4127
    %v4153 = vpack.c.b16 %v4150, %v4149
    %v4154 = vpack.c.b16 %v4152, %v4151
    %v4158 = vsel %vm168, %v4143, 0
    %v4161 = vsel %vm168, %v4144, 0
    %4163 = vmatprep.subr.bf16.mxu0 0
    %4164 = vmatpush1.bf16.msra.mxu0 %v4153
    %4165 = vmatprep.subr.bf16.mxu0 0
    %4166 = vmatpush1.bf16.msra.mxu0 %v4154
    %4167 = vmatprep.subr.bf16.mxu0 0
    %4168 = vmatpush1.bf16.msra.mxu0 0
    %4169 = vmatprep.subr.bf16.mxu0 0
    %4170 = vmatpush1.bf16.msra.mxu0 0
    %4171 = vmatprep.subr.bf16.mxu0 0
    %4172 = vmatpush1.bf16.msra.mxu0 0
    %4173 = vmatprep.subr.bf16.mxu0 0
    %4174 = vmatpush1.bf16.msra.mxu0 0
    %4175 = vmatprep.subr.bf16.mxu0 0
    %4176 = vmatpush1.bf16.msra.mxu0 0
    %4177 = vmatprep.subr.bf16.mxu0 0
    %4178 = vmatpush1.bf16.msra.mxu0 0
    %4179 = vmatprep.subr.bf16.mxu0 0
    %4180 = vmatpush1.bf16.msra.mxu0 0
    %4181 = vmatprep.subr.bf16.mxu0 0
    %4182 = vmatpush1.bf16.msra.mxu0 0
    %4183 = vmatprep.subr.bf16.mxu0 0
    %4184 = vmatpush1.bf16.msra.mxu0 0
    %4185 = vmatprep.subr.bf16.mxu0 0
    %4186 = vmatpush1.bf16.msra.mxu0 0
    %4187 = vmatprep.subr.bf16.mxu0 0
    %4188 = vmatpush1.bf16.msra.mxu0 0
    %4189 = vmatprep.subr.bf16.mxu0 0
    %4190 = vmatpush1.bf16.msra.mxu0 0
    %4191 = vmatprep.subr.bf16.mxu0 0
    %4192 = vmatpush1.bf16.msra.mxu0 0
    %4193 = vmatprep.subr.bf16.mxu0 0
    %4194 = vmatpush1.bf16.msra.mxu0 0
    %4195 = vmatprep.mubr.bf16.mxu0 0
    %4196 = vmatmul.mubr.bf16.gmra.mrb[0].mxu0 %v4158
    %v4197 = vpop.f32.mrb[0].mxu0
    %v4198 = vadd.f32 %v4133, %v4197
    %v4199 = vpop.f32.mrb[0].mxu0
    %v4200 = vpop.f32.mrb[0].mxu0
    %v4201 = vadd.f32 %v4133, %v4200
    %v4202 = vpop.f32.mrb[0].mxu0
    %4203 = vmatprep.mubr.bf16.mxu0 0
    %4204 = vmatmul.mubr.bf16.gmra.mrb[0].mxu0 %v4161
    %v4205 = vpop.f32.mrb[0].mxu0
    %v4206 = vadd.f32 %v4133, %v4205
    %v4207 = vpop.f32.mrb[0].mxu0
    %v4208 = vpop.f32.mrb[0].mxu0
    %v4209 = vadd.f32 %v4133, %v4208
    %v4210 = vpop.f32.mrb[0].mxu0
    %4211 = vdwg.mxu0
    %v4212 = vadd.f32 %v139, %v4198
    %v4213 = vadd.f32 %v140, %v4201
    %v4214 = vadd.f32 %v141, %v4206
    %v4215 = vadd.f32 %v142, %v4209
    %v4216 = vld [vmem:[%s14] sm:$0x1]
    %v4217 = vld [vmem:[%s15] sm:$0x1]
    %v4218 = vsel %vm168, %v4212, 0.0
    %4219 = vadd.xlane.f32.xlu0 %v4218
    %v4220 = vpop.xlane.xlu0 %4219
    %v4221 = vsel %vm168, %v4213, 0.0
    %4222 = vadd.xlane.f32.xlu0 %v4221
    %v4223 = vpop.xlane.xlu0 %4222
    %v4224 = vsel %vm168, %v4214, 0.0
    %4225 = vadd.xlane.f32.xlu0 %v4224
    %v4226 = vpop.xlane.xlu0 %4225
    %v4227 = vsel %vm168, %v4215, 0.0
    %4228 = vadd.xlane.f32.xlu0 %v4227
    %v4229 = vpop.xlane.xlu0 %4228
    %v4230 = vrcp.pop 32.0
    %v4231 = vmul.f32 %v4220, %v4230
    %v4232 = vmul.f32 %v4223, %v4230
    %v4233 = vmul.f32 %v4226, %v4230
    %v4234 = vmul.f32 %v4229, %v4230
    %v4235 = vsub.f32 %v4212, %v4231
    %v4236 = vsub.f32 %v4213, %v4232
    %v4237 = vsub.f32 %v4214, %v4233
    %v4238 = vsub.f32 %v4215, %v4234
    %v4239 = vmul.f32 %v4235, %v4235
    %v4240 = vmul.f32 %v4236, %v4236
    %v4241 = vmul.f32 %v4237, %v4237
    %v4242 = vmul.f32 %v4238, %v4238
    %v4243 = vsel %vm168, %v4239, 0.0
    %4244 = vadd.xlane.f32.xlu0 %v4243
    %v4245 = vpop.xlane.xlu0 %4244
    %v4246 = vsel %vm168, %v4240, 0.0
    %4247 = vadd.xlane.f32.xlu0 %v4246
    %v4248 = vpop.xlane.xlu0 %4247
    %v4249 = vsel %vm168, %v4241, 0.0
    %4250 = vadd.xlane.f32.xlu0 %v4249
    %v4251 = vpop.xlane.xlu0 %4250
    %v4252 = vsel %vm168, %v4242, 0.0
    %4253 = vadd.xlane.f32.xlu0 %v4252
    %v4254 = vpop.xlane.xlu0 %4253
    %v4255 = vmul.f32 %v4245, %v4230
    %v4256 = vmul.f32 %v4248, %v4230
    %v4257 = vmul.f32 %v4251, %v4230
    %v4258 = vmul.f32 %v4254, %v4230
    %v4259 = vadd.f32 %v4255, 1e-05
    %v4260 = vadd.f32 %v4256, 1e-05
    %v4261 = vadd.f32 %v4257, 1e-05
    %v4262 = vadd.f32 %v4258, 1e-05
    %v4263 = vrsqrt.pop %v4259
    %v4264 = vrsqrt.pop %v4260
    %v4265 = vrsqrt.pop %v4261
    %v4266 = vrsqrt.pop %v4262
    %v4267 = vmul.f32 %v4235, %v4263
    %v4268 = vmul.f32 %v4236, %v4264
    %v4269 = vmul.f32 %v4237, %v4265
    %v4270 = vmul.f32 %v4238, %v4266
    %v4272 = vlaneseq
    %v4273 = vshrl.u32 %v4272, 7
    %v4274 = vsub.s32 0, %v4273
    %v4275 = vrot.slane %v4216, %v4274
    %v4277 = vmul.f32 %v4267, %v4275
    %v4278 = vmul.f32 %v4268, %v4275
    %v4279 = vmul.f32 %v4269, %v4275
    %v4280 = vmul.f32 %v4270, %v4275
    %v4282 = vlaneseq
    %v4283 = vshrl.u32 %v4282, 7
    %v4284 = vsub.s32 0, %v4283
    %v4285 = vrot.slane %v4217, %v4284
    %v4287 = vadd.f32 %v4277, %v4285
    %v4288 = vadd.f32 %v4278, %v4285
    %v4289 = vadd.f32 %v4279, %v4285
    %v4290 = vadd.f32 %v4280, %v4285
    %v4291 = vpack.c.bf16 %v4288, %v4287
    %v4292 = vpack.c.bf16 %v4290, %v4289
    %v4293 = vld [vmem:[%s10] sm:$0xf]
    %v4294 = vld [vmem:[%s10 + $0x4] sm:$0xf]
    %v4295 = vld [vmem:[%s10 + $0x8] sm:$0xf]
    %v4296 = vld [vmem:[%s10 + $0xc] sm:$0xf]
    %v4297 = vld [vmem:[%s11] sm:$0x1]
    %v4299 = vlaneseq
    %v4300 = vshrl.u32 %v4299, 7
    %v4301 = vsub.s32 0, %v4300
    %v4302 = vrot.slane %v4297, %v4301
    %v4308 = vunpack.c.l.b16 %v4293
    %v4309 = vunpack.c.l.b16 %v4294
    %v4310 = vunpack.c.l.b16 %v4295
    %v4311 = vunpack.c.l.b16 %v4296
    %v4312 = vpack.c.b16 %v4309, %v4308
    %v4313 = vpack.c.b16 %v4311, %v4310
    %v4317 = vsel %vm168, %v4291, 0
    %v4320 = vsel %vm168, %v4292, 0
    %4322 = vmatprep.subr.bf16.mxu0 0
    %4323 = vmatpush1.bf16.msra.mxu0 %v4312
    %4324 = vmatprep.subr.bf16.mxu0 0
    %4325 = vmatpush1.bf16.msra.mxu0 %v4313
    %4326 = vmatprep.subr.bf16.mxu0 0
    %4327 = vmatpush1.bf16.msra.mxu0 0
    %4328 = vmatprep.subr.bf16.mxu0 0
    %4329 = vmatpush1.bf16.msra.mxu0 0
    %4330 = vmatprep.subr.bf16.mxu0 0
    %4331 = vmatpush1.bf16.msra.mxu0 0
    %4332 = vmatprep.subr.bf16.mxu0 0
    %4333 = vmatpush1.bf16.msra.mxu0 0
    %4334 = vmatprep.subr.bf16.mxu0 0
    %4335 = vmatpush1.bf16.msra.mxu0 0
    %4336 = vmatprep.subr.bf16.mxu0 0
    %4337 = vmatpush1.bf16.msra.mxu0 0
    %4338 = vmatprep.subr.bf16.mxu0 0
    %4339 = vmatpush1.bf16.msra.mxu0 0
    %4340 = vmatprep.subr.bf16.mxu0 0
    %4341 = vmatpush1.bf16.msra.mxu0 0
    %4342 = vmatprep.subr.bf16.mxu0 0
    %4343 = vmatpush1.bf16.msra.mxu0 0
    %4344 = vmatprep.subr.bf16.mxu0 0
    %4345 = vmatpush1.bf16.msra.mxu0 0
    %4346 = vmatprep.subr.bf16.mxu0 0
    %4347 = vmatpush1.bf16.msra.mxu0 0
    %4348 = vmatprep.subr.bf16.mxu0 0
    %4349 = vmatpush1.bf16.msra.mxu0 0
    %4350 = vmatprep.subr.bf16.mxu0 0
    %4351 = vmatpush1.bf16.msra.mxu0 0
    %4352 = vmatprep.subr.bf16.mxu0 0
    %4353 = vmatpush1.bf16.msra.mxu0 0
    %4354 = vmatprep.mubr.bf16.mxu0 0
    %4355 = vmatmul.mubr.bf16.gmra.mrb[0].mxu0 %v4317
    %v4356 = vpop.f32.mrb[0].mxu0
    %v4357 = vadd.f32 %v4302, %v4356
    %v4358 = vpop.f32.mrb[0].mxu0
    %v4359 = vpop.f32.mrb[0].mxu0
    %v4360 = vadd.f32 %v4302, %v4359
    %v4361 = vpop.f32.mrb[0].mxu0
    %4362 = vmatprep.mubr.bf16.mxu0 0
    %4363 = vmatmul.mubr.bf16.gmra.mrb[0].mxu0 %v4320
    %v4364 = vpop.f32.mrb[0].mxu0
    %v4365 = vadd.f32 %v4302, %v4364
    %v4366 = vpop.f32.mrb[0].mxu0
    %v4367 = vpop.f32.mrb[0].mxu0
    %v4368 = vadd.f32 %v4302, %v4367
    %v4369 = vpop.f32.mrb[0].mxu0
    %4370 = vdwg.mxu0
    %v4371 = vmax.f32 %v4357, 0.0
    %v4372 = vmax.f32 %v4360, 0.0
    %v4373 = vmax.f32 %v4365, 0.0
    %v4374 = vmax.f32 %v4368, 0.0
    %v4375 = vpack.c.bf16 %v4372, %v4371
    %v4376 = vpack.c.bf16 %v4374, %v4373
    %v4377 = vld [vmem:[%s12] sm:$0xf]
    %v4378 = vld [vmem:[%s12 + $0x4] sm:$0xf]
    %v4379 = vld [vmem:[%s12 + $0x8] sm:$0xf]
    %v4380 = vld [vmem:[%s12 + $0xc] sm:$0xf]
    %v4381 = vld [vmem:[%s12 + $0x10] sm:$0xf]
    %v4382 = vld [vmem:[%s12 + $0x14] sm:$0xf]
    %v4383 = vld [vmem:[%s12 + $0x18] sm:$0xf]
    %v4384 = vld [vmem:[%s12 + $0x1c] sm:$0xf]
    %v4385 = vld [vmem:[%s13] sm:$0x1]
    %v4387 = vlaneseq
    %v4388 = vshrl.u32 %v4387, 7
    %v4389 = vsub.s32 0, %v4388
    %v4390 = vrot.slane %v4385, %v4389
    %v4400 = vunpack.c.l.b16 %v4377
    %v4401 = vunpack.c.l.b16 %v4378
    %v4402 = vunpack.c.l.b16 %v4379
    %v4403 = vunpack.c.l.b16 %v4380
    %v4404 = vunpack.c.l.b16 %v4381
    %v4405 = vunpack.c.l.b16 %v4382
    %v4406 = vunpack.c.l.b16 %v4383
    %v4407 = vunpack.c.l.b16 %v4384
    %v4408 = vpack.c.b16 %v4401, %v4400
    %v4409 = vpack.c.b16 %v4403, %v4402
    %v4410 = vpack.c.b16 %v4405, %v4404
    %v4411 = vpack.c.b16 %v4407, %v4406
    %vm4416 = vcmask 523264
    %v4418 = vsel %vm4416, %v4375, 0
    %v4421 = vsel %vm4416, %v4376, 0
    %4423 = vmatprep.subr.bf16.mxu0 0
    %4424 = vmatpush1.bf16.msra.mxu0 %v4408
    %4425 = vmatprep.subr.bf16.mxu0 0
    %4426 = vmatpush1.bf16.msra.mxu0 %v4409
    %4427 = vmatprep.subr.bf16.mxu0 0
    %4428 = vmatpush1.bf16.msra.mxu0 %v4410
    %4429 = vmatprep.subr.bf16.mxu0 0
    %4430 = vmatpush1.bf16.msra.mxu0 %v4411
    %4431 = vmatprep.subr.bf16.mxu0 0
    %4432 = vmatpush1.bf16.msra.mxu0 0
    %4433 = vmatprep.subr.bf16.mxu0 0
    %4434 = vmatpush1.bf16.msra.mxu0 0
    %4435 = vmatprep.subr.bf16.mxu0 0
    %4436 = vmatpush1.bf16.msra.mxu0 0
    %4437 = vmatprep.subr.bf16.mxu0 0
    %4438 = vmatpush1.bf16.msra.mxu0 0
    %4439 = vmatprep.subr.bf16.mxu0 0
    %4440 = vmatpush1.bf16.msra.mxu0 0
    %4441 = vmatprep.subr.bf16.mxu0 0
    %4442 = vmatpush1.bf16.msra.mxu0 0
    %4443 = vmatprep.subr.bf16.mxu0 0
    %4444 = vmatpush1.bf16.msra.mxu0 0
    %4445 = vmatprep.subr.bf16.mxu0 0
    %4446 = vmatpush1.bf16.msra.mxu0 0
    %4447 = vmatprep.subr.bf16.mxu0 0
    %4448 = vmatpush1.bf16.msra.mxu0 0
    %4449 = vmatprep.subr.bf16.mxu0 0
    %4450 = vmatpush1.bf16.msra.mxu0 0
    %4451 = vmatprep.subr.bf16.mxu0 0
    %4452 = vmatpush1.bf16.msra.mxu0 0
    %4453 = vmatprep.subr.bf16.mxu0 0
    %4454 = vmatpush1.bf16.msra.mxu0 0
    %4455 = vmatprep.mubr.bf16.mxu0 0
    %4456 = vmatmul.mubr.bf16.gmra.mrb[0].mxu0 %v4418
    %v4457 = vpop.f32.mrb[0].mxu0
    %v4458 = vadd.f32 %v4390, %v4457
    %v4459 = vpop.f32.mrb[0].mxu0
    %v4460 = vpop.f32.mrb[0].mxu0
    %v4461 = vadd.f32 %v4390, %v4460
    %v4462 = vpop.f32.mrb[0].mxu0
    %4463 = vmatprep.mubr.bf16.mxu0 0
    %4464 = vmatmul.mubr.bf16.gmra.mrb[0].mxu0 %v4421
    %v4465 = vpop.f32.mrb[0].mxu0
    %v4466 = vadd.f32 %v4390, %v4465
    %v4467 = vpop.f32.mrb[0].mxu0
    %v4468 = vpop.f32.mrb[0].mxu0
    %v4469 = vadd.f32 %v4390, %v4468
    %v4470 = vpop.f32.mrb[0].mxu0
    %4471 = vdwg.mxu0
    %v4472 = vadd.f32 %v4287, %v4458
    %v4473 = vadd.f32 %v4288, %v4461
    %v4474 = vadd.f32 %v4289, %v4466
    %v4475 = vadd.f32 %v4290, %v4469
    %v4476 = vld [vmem:[%s16] sm:$0x1]
    %v4477 = vld [vmem:[%s17] sm:$0x1]
    %v4478 = vsel %vm168, %v4472, 0.0
    %4479 = vadd.xlane.f32.xlu0 %v4478
    %v4480 = vpop.xlane.xlu0 %4479
    %v4481 = vsel %vm168, %v4473, 0.0
    %4482 = vadd.xlane.f32.xlu0 %v4481
    %v4483 = vpop.xlane.xlu0 %4482
    %v4484 = vsel %vm168, %v4474, 0.0
    %4485 = vadd.xlane.f32.xlu0 %v4484
    %v4486 = vpop.xlane.xlu0 %4485
    %v4487 = vsel %vm168, %v4475, 0.0
    %4488 = vadd.xlane.f32.xlu0 %v4487
    %v4489 = vpop.xlane.xlu0 %4488
    %v4490 = vmul.f32 %v4480, %v4230
    %v4491 = vmul.f32 %v4483, %v4230
    %v4492 = vmul.f32 %v4486, %v4230
    %v4493 = vmul.f32 %v4489, %v4230
    %v4494 = vsub.f32 %v4472, %v4490
    %v4495 = vsub.f32 %v4473, %v4491
    %v4496 = vsub.f32 %v4474, %v4492
    %v4497 = vsub.f32 %v4475, %v4493
    %v4498 = vmul.f32 %v4494, %v4494
    %v4499 = vmul.f32 %v4495, %v4495
    %v4500 = vmul.f32 %v4496, %v4496
    %v4501 = vmul.f32 %v4497, %v4497
    %v4502 = vsel %vm168, %v4498, 0.0
    %4503 = vadd.xlane.f32.xlu0 %v4502
    %v4504 = vpop.xlane.xlu0 %4503
    %v4505 = vsel %vm168, %v4499, 0.0
    %4506 = vadd.xlane.f32.xlu0 %v4505
    %v4507 = vpop.xlane.xlu0 %4506
    %v4508 = vsel %vm168, %v4500, 0.0
    %4509 = vadd.xlane.f32.xlu0 %v4508
    %v4510 = vpop.xlane.xlu0 %4509
    %v4511 = vsel %vm168, %v4501, 0.0
    %4512 = vadd.xlane.f32.xlu0 %v4511
    %v4513 = vpop.xlane.xlu0 %4512
    %v4514 = vmul.f32 %v4504, %v4230
    %v4515 = vmul.f32 %v4507, %v4230
    %v4516 = vmul.f32 %v4510, %v4230
    %v4517 = vmul.f32 %v4513, %v4230
    %v4518 = vadd.f32 %v4514, 1e-05
    %v4519 = vadd.f32 %v4515, 1e-05
    %v4520 = vadd.f32 %v4516, 1e-05
    %v4521 = vadd.f32 %v4517, 1e-05
    %v4522 = vrsqrt.pop %v4518
    %v4523 = vrsqrt.pop %v4519
    %v4524 = vrsqrt.pop %v4520
    %v4525 = vrsqrt.pop %v4521
    %v4526 = vmul.f32 %v4494, %v4522
    %v4527 = vmul.f32 %v4495, %v4523
    %v4528 = vmul.f32 %v4496, %v4524
    %v4529 = vmul.f32 %v4497, %v4525
    %v4531 = vlaneseq
    %v4532 = vshrl.u32 %v4531, 7
    %v4533 = vsub.s32 0, %v4532
    %v4534 = vrot.slane %v4476, %v4533
    %v4536 = vmul.f32 %v4526, %v4534
    %v4537 = vmul.f32 %v4527, %v4534
    %v4538 = vmul.f32 %v4528, %v4534
    %v4539 = vmul.f32 %v4529, %v4534
    %v4541 = vlaneseq
    %v4542 = vshrl.u32 %v4541, 7
    %v4543 = vsub.s32 0, %v4542
    %v4544 = vrot.slane %v4477, %v4543
    %v4546 = vadd.f32 %v4536, %v4544
    %v4547 = vadd.f32 %v4537, %v4544
    %v4548 = vadd.f32 %v4538, %v4544
    %v4549 = vadd.f32 %v4539, %v4544
    %4550 = vst.msk [vmem:[#allocation13] sm:$0xff] %vm168, %v4546
    %4551 = vst.msk [vmem:[#allocation13 + $0x8] sm:$0xff] %vm168, %v4547
    %4552 = vst.msk [vmem:[#allocation13 + $0x10] sm:$0xff] %vm168, %v4548
    %4553 = vst.msk [vmem:[#allocation13 + $0x18] sm:$0xff] %vm168, %v4549
    // Predicated region
    $region98: #{tpu_custom_call.1} parent=1 // pred_check
      _
    $region99: #{tpu_custom_call.1} parent=1 // pred_check_branch
      %4555 = sbr.rel (0) target = $region101
    $region100: #{tpu_custom_call.1} parent=1 // pred_region
      %s4557 = ssub.s32 512, 512
      %4558 = vsyncadd [#allocation4], %s4557
      %s4559 = sshll.u32 [#allocation13], 4
      %s4560 = int_to_ptr.vmem [resolvable:$true] %s4559
      %4565 = dma.vmem_to_hbm [thread:$0]  %s4560, 512, %s18, [#allocation4], 128, 128, 8
    $region101: #{tpu_custom_call.1} parent=1 // pred_fallthru
      _
    // Predicated region
    $region102: #{tpu_custom_call.1} parent=1 // pred_check
      _
    $region103: #{tpu_custom_call.1} parent=1 // pred_check_branch
      %4567 = sbr.rel (0) target = $region105
    $region104: #{tpu_custom_call.1} parent=1 // pred_region
      %4568 = dma.done [#allocation4], 512
    $region105: #{tpu_custom_call.1} parent=1 // pred_fallthru
      _
    %4569 = vsyncpa [#allocation3], 1
    %4570 = vsyncpa [#allocation6], 1
    %4571 = vsyncpa [#allocation9], 1
    %4572 = vsyncpa [#allocation12], 1
    %4573 = vsyncpa [#allocation4], 1

</llo_original>
